<compile_context>
chip_gen: v7x
topology: tpu7x:2x2x1
jax: 0.10.0
libtpu: 0.0.40
codegen_flags: <defaults>
</compile_context>

<pallas_src>
import functools

import jax
import jax.numpy as jnp
from jax.experimental import pallas as pl
from jax.experimental.pallas import tpu as pltpu


# ----------------------------------------------------------------------------
# Fused ASPP kernel
# ----------------------------------------------------------------------------
def _aspp_fused_kernel(x_ref, w0_ref, wdil_ref, w4_ref, wproj_ref, shifts_ref,
                       o_ref, *, H, W, TH, P, rates, C, Cp):
    # x_ref:      (Hp, Wp, Cp)   zero-padded NHWC image (f32), one batch elem
    # w0_ref:     (Cp, C)        1x1 conv, BN scale folded, bf16
    # wdil_ref:   (3, 9, Cp, C)  dilated 3x3 convs (tap-major), bf16
    # w4_ref:     (Cp, C)        pooled-branch 1x1 conv, bf16
    # wproj_ref:  (5, C, C)      projection 1x1 conv split per branch, bf16
    # shifts_ref: (6, 1, C)      BN shifts [b0, b1, b2, b3, b4, project], f32
    # o_ref:      (TH*W, C)      output slab for this (batch, row-tile)
    t = pl.program_id(1)
    row0 = t * TH
    M = TH * W

    def x_tap(dy, dx, r):
        # shifted (TH, W, Cp) window of the padded input -> (M, Cp) bf16
        rs = row0 + P + (dy - 1) * r          # dynamic only on untiled dim
        cs = P + (dx - 1) * r                 # static
        blk = x_ref[pl.ds(rs, TH), pl.ds(cs, W), :]
        return blk.reshape(M, Cp).astype(jnp.bfloat16)

    def branch_to_proj(h_f32, shift_row, proj_idx):
        # BN shift + ReLU in f32, then project this branch into the output acc.
        h = jnp.maximum(h_f32 + shifts_ref[shift_row], 0.0)
        return jnp.dot(h.astype(jnp.bfloat16), wproj_ref[proj_idx],
                       preferred_element_type=jnp.float32)

    # ---- b0: 1x1 conv + BN + ReLU -------------------------------------------
    h0 = jnp.dot(x_tap(1, 1, 0), w0_ref[...],
                 preferred_element_type=jnp.float32)
    acc = branch_to_proj(h0, 0, 0)

    # ---- b1..b3: dilated 3x3 conv + BN + ReLU (taps unrolled, halo slices) --
    for bi, r in enumerate(rates):
        hb = jnp.zeros((M, C), jnp.float32)
        for dy in range(3):
            for dx in range(3):
                hb = hb + jnp.dot(x_tap(dy, dx, r),
                                  wdil_ref[bi, dy * 3 + dx],
                                  preferred_element_type=jnp.float32)
        acc = acc + branch_to_proj(hb, 1 + bi, 1 + bi)

    # ---- b4: global average pool + 1x1 conv + BN + ReLU + bilinear upsample -
    # (align_corners=True upsample from 1x1 is an exact broadcast)
    x_full = x_ref[pl.ds(P, H), pl.ds(P, W), :].reshape(H * W, Cp)
    pooled = jnp.mean(x_full, axis=0, keepdims=True)              # (1, Cp) f32
    h4 = jnp.dot(pooled.astype(jnp.bfloat16), w4_ref[...],
                 preferred_element_type=jnp.float32)
    h4 = jnp.maximum(h4 + shifts_ref[4], 0.0)                     # (1, C)
    c4 = jnp.dot(h4.astype(jnp.bfloat16), wproj_ref[4],
                 preferred_element_type=jnp.float32)              # (1, C)
    acc = acc + c4                                                # broadcast

    # ---- project epilogue: BN shift + ReLU (Dropout = eval identity) --------
    o_ref[...] = jnp.maximum(acc + shifts_ref[5], 0.0).astype(o_ref.dtype)


# ----------------------------------------------------------------------------
# Wrapper
# ----------------------------------------------------------------------------
@functools.partial(jax.jit, static_argnames=("rates",))
def aspp_forward(x_nchw, params, *, rates):
    """Fused _ASPP forward.  Input/output NCHW f32 (PyTorch layout)."""
    w0 = params["w0"]              # (Cp, C)   bf16
    wdil = params["wdil"]          # (3, 9, Cp, C) bf16
    w4 = params["w4"]              # (Cp, C)   bf16
    wproj = params["wproj"]        # (5, C, C) bf16
    shifts = params["shifts"]      # (6, 1, C) f32

    Cp, C = w0.shape
    N, Cin, H, W = x_nchw.shape
    P = max(rates)

    # NHWC, zero-pad channels to Cp (>=8) and spatial by max rate (halo).
    x = jnp.transpose(x_nchw, (0, 2, 3, 1)).astype(jnp.float32)
    x = jnp.pad(x, ((0, 0), (0, 0), (0, 0), (0, Cp - Cin)))
    xp = jnp.pad(x, ((0, 0), (P, P), (P, P), (0, 0)))
    Hp, Wp = H + 2 * P, W + 2 * P

    TH = 8 if H % 8 == 0 else H            # rows per tile
    NT = H // TH
    M = TH * W

    kernel = functools.partial(_aspp_fused_kernel, H=H, W=W, TH=TH, P=P,
                               rates=tuple(rates), C=C, Cp=Cp)

    out = pl.pallas_call(
        kernel,
        out_shape=jax.ShapeDtypeStruct((N, H * W, C), jnp.float32),
        grid_spec=pltpu.PrefetchScalarGridSpec(
            num_scalar_prefetch=0,
            grid=(N, NT),
            in_specs=[
                pl.BlockSpec((None, Hp, Wp, Cp), lambda n, t: (n, 0, 0, 0)),
                pl.BlockSpec((Cp, C), lambda n, t: (0, 0)),
                pl.BlockSpec((3, 9, Cp, C), lambda n, t: (0, 0, 0, 0)),
                pl.BlockSpec((Cp, C), lambda n, t: (0, 0)),
                pl.BlockSpec((5, C, C), lambda n, t: (0, 0, 0)),
                pl.BlockSpec((6, 1, C), lambda n, t: (0, 0, 0)),
            ],
            out_specs=pl.BlockSpec((None, M, C), lambda n, t: (n, t, 0)),
        ),
        compiler_params=pltpu.CompilerParams(
            dimension_semantics=("parallel", "parallel"),
            vmem_limit_bytes=32 * 1024 * 1024),
    )(xp, w0, wdil, w4, wproj, shifts)

    out = out.reshape(N, H, W, C)
    return jnp.transpose(out, (0, 3, 1, 2))        # back to NCHW


# ----------------------------------------------------------------------------
# Parameter construction (synthetic weights + trace-time BN folding)
# ----------------------------------------------------------------------------
def _fold_conv_bn(key, k_in, c_out, eps=1e-5):
    ks = jax.random.split(key, 5)
    w = jax.random.normal(ks[0], (k_in, c_out), jnp.float32) * 0.05
    gamma = 1.0 + 0.1 * jax.random.normal(ks[1], (c_out,), jnp.float32)
    beta = 0.1 * jax.random.normal(ks[2], (c_out,), jnp.float32)
    mean = 0.1 * jax.random.normal(ks[3], (c_out,), jnp.float32)
    var = jnp.abs(jax.random.normal(ks[4], (c_out,), jnp.float32)) + 0.5
    scale = gamma / jnp.sqrt(var + eps)
    shift = beta - mean * scale
    return w * scale[None, :], shift                # BN scale folded into W


def make_aspp_params(key, cin, c):
    cp = ((cin + 7) // 8) * 8                       # pad Cin to sublane multiple
    k0, k1, k2, k3, k4, kp = jax.random.split(key, 6)

    def pad_cin(w_kc):                              # (k*cin, C) -> (k, cp, C)
        k = w_kc.shape[0] // cin
        w = w_kc.reshape(k, cin, c)
        return jnp.pad(w, ((0, 0), (0, cp - cin), (0, 0)))

    w0, s0 = _fold_conv_bn(k0, cin, c)
    w1, s1 = _fold_conv_bn(k1, 9 * cin, c)
    w2, s2 = _fold_conv_bn(k2, 9 * cin, c)
    w3, s3 = _fold_conv_bn(k3, 9 * cin, c)
    w4, s4 = _fold_conv_bn(k4, cin, c)
    wp, sp = _fold_conv_bn(kp, 5 * c, c)

    params = {
        "w0": pad_cin(w0)[0].astype(jnp.bfloat16),                       # (cp,C)
        "wdil": jnp.stack([pad_cin(w1), pad_cin(w2), pad_cin(w3)],
                          axis=0).astype(jnp.bfloat16),                  # (3,9,cp,C)
        "w4": pad_cin(w4)[0].astype(jnp.bfloat16),                       # (cp,C)
        "wproj": wp.reshape(5, c, c).astype(jnp.bfloat16),               # (5,C,C)
        "shifts": jnp.stack([s0, s1, s2, s3, s4, sp],
                            axis=0).reshape(6, 1, c).astype(jnp.float32),
    }
    return params


# ----------------------------------------------------------------------------
# Pure-JAX reference (same folded bf16 weights, same math) for validation
# ----------------------------------------------------------------------------
def aspp_reference(x_nchw, params, rates):
    w0, wdil, w4 = params["w0"], params["wdil"], params["w4"]
    wproj, shifts = params["wproj"], params["shifts"]
    Cp, C = w0.shape
    N, Cin, H, W = x_nchw.shape
    P = max(rates)
    M = H * W

    x = jnp.transpose(x_nchw, (0, 2, 3, 1)).astype(jnp.float32)
    x = jnp.pad(x, ((0, 0), (0, 0), (0, 0), (0, Cp - Cin)))
    xp = jnp.pad(x, ((0, 0), (P, P), (P, P), (0, 0)))

    def mm(a, w):
        return jnp.einsum("nmc,ck->nmk", a.astype(jnp.bfloat16), w,
                          preferred_element_type=jnp.float32)

    def tap(dy, dx, r):
        ys, xs = P + (dy - 1) * r, P + (dx - 1) * r
        return xp[:, ys:ys + H, xs:xs + W, :].reshape(N, M, Cp)

    h0 = jnp.maximum(mm(tap(1, 1, 0), w0) + shifts[0], 0.0)
    acc = mm(h0, wproj[0])
    for bi, r in enumerate(rates):
        hb = jnp.zeros((N, M, C), jnp.float32)
        for dy in range(3):
            for dx in range(3):
                hb = hb + mm(tap(dy, dx, r), wdil[bi, dy * 3 + dx])
        h = jnp.maximum(hb + shifts[1 + bi], 0.0)
        acc = acc + mm(h, wproj[1 + bi])
    pooled = jnp.mean(tap(1, 1, 0), axis=1, keepdims=True)        # (N,1,Cp)
    h4 = jnp.maximum(mm(pooled, w4) + shifts[4], 0.0)             # (N,1,C)
    acc = acc + mm(h4, wproj[4])                                  # broadcast
    out = jnp.maximum(acc + shifts[5], 0.0)
    return jnp.transpose(out.reshape(N, H, W, C), (0, 3, 1, 2))


# ----------------------------------------------------------------------------
# main
# ----------------------------------------------------------------------------
if __name__ == "__main__":
    # Small shapes consistent with the _ASPP forward (spatial 16 forces small
    # atrous rates; real head uses rates (12,24,36) on 64x64 feature maps).
    N, Cin, H, W = 2, 4, 16, 16
    C = 128                         # num_classannels (small, lane-aligned)
    rates = (1, 2, 3)

    root = jax.random.PRNGKey(0)
    k_x, k_p = jax.random.split(root, 2)

    x = jax.random.normal(k_x, (N, Cin, H, W), jnp.float32)
    params = make_aspp_params(k_p, Cin, C)

    out = aspp_forward(x, params, rates=rates)
    jax.block_until_ready(out)

    assert out.shape == (N, C, H, W), out.shape
    assert bool(jnp.all(jnp.isfinite(out)))

    ref = aspp_reference(x, params, rates)
    max_err = float(jnp.max(jnp.abs(out - ref)))
    tol = 1e-2 * (1.0 + float(jnp.max(jnp.abs(ref))))
    assert max_err <= tol, (max_err, tol)

    print("KERNEL_OK")
</pallas_src>

<mosaic_0001>
module attributes {stable_mosaic.version = 11 : i64} {
  func.func @_aspp_fused_kernel(%arg0: i32, %arg1: i32, %arg2: memref<1x22x22x8xf32, #tpu.memory_space<vmem>>, %arg3: memref<8x128xbf16, #tpu.memory_space<vmem>>, %arg4: memref<3x9x8x128xbf16, #tpu.memory_space<vmem>>, %arg5: memref<8x128xbf16, #tpu.memory_space<vmem>>, %arg6: memref<5x128x128xbf16, #tpu.memory_space<vmem>>, %arg7: memref<6x1x128xf32, #tpu.memory_space<vmem>>, %arg8: memref<1x128x128xf32, #tpu.memory_space<vmem>>) attributes {dimension_semantics = [#tpu.dimension_semantics<parallel>, #tpu.dimension_semantics<parallel>], iteration_bounds = array<i64: 2, 2>, scalar_prefetch = 0 : i64, scratch_operands = 0 : i64, tpu.core_type = #tpu.core_type<tc>, window_params = [{transform_indices = @transform_0, window_bounds = array<i64: 1, 22, 22, 8>}, {pipeline_mode = #tpu.pipeline_mode<synchronous>, transform_indices = @transform_1, window_bounds = array<i64: 8, 128>}, {pipeline_mode = #tpu.pipeline_mode<synchronous>, transform_indices = @transform_2, window_bounds = array<i64: 3, 9, 8, 128>}, {pipeline_mode = #tpu.pipeline_mode<synchronous>, transform_indices = @transform_3, window_bounds = array<i64: 8, 128>}, {pipeline_mode = #tpu.pipeline_mode<synchronous>, transform_indices = @transform_4, window_bounds = array<i64: 5, 128, 128>}, {pipeline_mode = #tpu.pipeline_mode<synchronous>, transform_indices = @transform_5, window_bounds = array<i64: 6, 1, 128>}, {transform_indices = @transform_6, window_bounds = array<i64: 1, 128, 128>}]} {
    %c8_i32 = arith.constant 8 : i32
    %0 = arith.muli %arg1, %c8_i32 : i32
    %c3_i32 = arith.constant 3 : i32
    %1 = arith.addi %0, %c3_i32 : i32
    %c0_i32 = arith.constant 0 : i32
    %2 = arith.addi %1, %c0_i32 : i32
    %c0 = arith.constant 0 : index
    %3 = arith.index_cast %2 : i32 to index
    %c3 = arith.constant 3 : index
    %c0_0 = arith.constant 0 : index
    %4 = vector.load %arg2[%c0, %3, %c3, %c0_0] : memref<1x22x22x8xf32, #tpu.memory_space<vmem>>, vector<1x8x16x8xf32>
    %5 = vector.shape_cast %4 : vector<1x8x16x8xf32> to vector<8x16x8xf32>
    %6 = vector.shape_cast %5 : vector<8x16x8xf32> to vector<128x8xf32>
    %7 = arith.truncf %6 : vector<128x8xf32> to vector<128x8xbf16>
    %c0_1 = arith.constant 0 : index
    %c0_2 = arith.constant 0 : index
    %8 = vector.load %arg3[%c0_1, %c0_2] : memref<8x128xbf16, #tpu.memory_space<vmem>>, vector<8x128xbf16>
    %cst = arith.constant dense<0.000000e+00> : vector<128x128xf32>
    %9 = tpu.matmul %7, %8, %cst {dimension_numbers = #tpu.dot_dimension_numbers<[1], [0], [0], [1], [0, 0, 1, 1], [], []>} : vector<128x8xbf16>, vector<8x128xbf16>, vector<128x128xf32> -> vector<128x128xf32>
    %c0_3 = arith.constant 0 : index
    %c0_4 = arith.constant 0 : index
    %c0_5 = arith.constant 0 : index
    %10 = vector.load %arg7[%c0_3, %c0_4, %c0_5] : memref<6x1x128xf32, #tpu.memory_space<vmem>>, vector<1x1x128xf32>
    %11 = vector.shape_cast %10 : vector<1x1x128xf32> to vector<1x128xf32>
    %12 = vector.broadcast %11 : vector<1x128xf32> to vector<128x128xf32>
    %13 = arith.addf %9, %12 : vector<128x128xf32>
    %cst_6 = arith.constant 0.000000e+00 : f32
    %14 = vector.broadcast %cst_6 : f32 to vector<128x128xf32>
    %15 = arith.maximumf %13, %14 : vector<128x128xf32>
    %16 = arith.truncf %15 : vector<128x128xf32> to vector<128x128xbf16>
    %c0_7 = arith.constant 0 : index
    %c0_8 = arith.constant 0 : index
    %c0_9 = arith.constant 0 : index
    %17 = vector.load %arg6[%c0_7, %c0_8, %c0_9] : memref<5x128x128xbf16, #tpu.memory_space<vmem>>, vector<1x128x128xbf16>
    %18 = vector.shape_cast %17 : vector<1x128x128xbf16> to vector<128x128xbf16>
    %cst_10 = arith.constant dense<0.000000e+00> : vector<128x128xf32>
    %19 = tpu.matmul %16, %18, %cst_10 {dimension_numbers = #tpu.dot_dimension_numbers<[1], [0], [0], [1], [0, 0, 1, 1], [], []>} : vector<128x128xbf16>, vector<128x128xbf16>, vector<128x128xf32> -> vector<128x128xf32>
    %cst_11 = arith.constant 0.000000e+00 : f32
    %20 = vector.broadcast %cst_11 : f32 to vector<128x128xf32>
    %c3_i32_12 = arith.constant 3 : i32
    %21 = arith.addi %0, %c3_i32_12 : i32
    %c-1_i32 = arith.constant -1 : i32
    %22 = arith.addi %21, %c-1_i32 : i32
    %c0_13 = arith.constant 0 : index
    %23 = arith.index_cast %22 : i32 to index
    %c2 = arith.constant 2 : index
    %c0_14 = arith.constant 0 : index
    %24 = vector.load %arg2[%c0_13, %23, %c2, %c0_14] : memref<1x22x22x8xf32, #tpu.memory_space<vmem>>, vector<1x8x16x8xf32>
    %25 = vector.shape_cast %24 : vector<1x8x16x8xf32> to vector<8x16x8xf32>
    %26 = vector.shape_cast %25 : vector<8x16x8xf32> to vector<128x8xf32>
    %27 = arith.truncf %26 : vector<128x8xf32> to vector<128x8xbf16>
    %c0_15 = arith.constant 0 : index
    %c0_16 = arith.constant 0 : index
    %c0_17 = arith.constant 0 : index
    %c0_18 = arith.constant 0 : index
    %28 = vector.load %arg4[%c0_15, %c0_16, %c0_17, %c0_18] : memref<3x9x8x128xbf16, #tpu.memory_space<vmem>>, vector<1x1x8x128xbf16>
    %29 = vector.shape_cast %28 : vector<1x1x8x128xbf16> to vector<8x128xbf16>
    %cst_19 = arith.constant dense<0.000000e+00> : vector<128x128xf32>
    %30 = tpu.matmul %27, %29, %cst_19 {dimension_numbers = #tpu.dot_dimension_numbers<[1], [0], [0], [1], [0, 0, 1, 1], [], []>} : vector<128x8xbf16>, vector<8x128xbf16>, vector<128x128xf32> -> vector<128x128xf32>
    %31 = arith.addf %20, %30 : vector<128x128xf32>
    %c3_i32_20 = arith.constant 3 : i32
    %32 = arith.addi %0, %c3_i32_20 : i32
    %c-1_i32_21 = arith.constant -1 : i32
    %33 = arith.addi %32, %c-1_i32_21 : i32
    %c0_22 = arith.constant 0 : index
    %34 = arith.index_cast %33 : i32 to index
    %c3_23 = arith.constant 3 : index
    %c0_24 = arith.constant 0 : index
    %35 = vector.load %arg2[%c0_22, %34, %c3_23, %c0_24] : memref<1x22x22x8xf32, #tpu.memory_space<vmem>>, vector<1x8x16x8xf32>
    %36 = vector.shape_cast %35 : vector<1x8x16x8xf32> to vector<8x16x8xf32>
    %37 = vector.shape_cast %36 : vector<8x16x8xf32> to vector<128x8xf32>
    %38 = arith.truncf %37 : vector<128x8xf32> to vector<128x8xbf16>
    %c0_25 = arith.constant 0 : index
    %c1 = arith.constant 1 : index
    %c0_26 = arith.constant 0 : index
    %c0_27 = arith.constant 0 : index
    %39 = vector.load %arg4[%c0_25, %c1, %c0_26, %c0_27] : memref<3x9x8x128xbf16, #tpu.memory_space<vmem>>, vector<1x1x8x128xbf16>
    %40 = vector.shape_cast %39 : vector<1x1x8x128xbf16> to vector<8x128xbf16>
    %cst_28 = arith.constant dense<0.000000e+00> : vector<128x128xf32>
    %41 = tpu.matmul %38, %40, %cst_28 {dimension_numbers = #tpu.dot_dimension_numbers<[1], [0], [0], [1], [0, 0, 1, 1], [], []>} : vector<128x8xbf16>, vector<8x128xbf16>, vector<128x128xf32> -> vector<128x128xf32>
    %42 = arith.addf %31, %41 : vector<128x128xf32>
    %c3_i32_29 = arith.constant 3 : i32
    %43 = arith.addi %0, %c3_i32_29 : i32
    %c-1_i32_30 = arith.constant -1 : i32
    %44 = arith.addi %43, %c-1_i32_30 : i32
    %c0_31 = arith.constant 0 : index
    %45 = arith.index_cast %44 : i32 to index
    %c4 = arith.constant 4 : index
    %c0_32 = arith.constant 0 : index
    %46 = vector.load %arg2[%c0_31, %45, %c4, %c0_32] : memref<1x22x22x8xf32, #tpu.memory_space<vmem>>, vector<1x8x16x8xf32>
    %47 = vector.shape_cast %46 : vector<1x8x16x8xf32> to vector<8x16x8xf32>
    %48 = vector.shape_cast %47 : vector<8x16x8xf32> to vector<128x8xf32>
    %49 = arith.truncf %48 : vector<128x8xf32> to vector<128x8xbf16>
    %c0_33 = arith.constant 0 : index
    %c2_34 = arith.constant 2 : index
    %c0_35 = arith.constant 0 : index
    %c0_36 = arith.constant 0 : index
    %50 = vector.load %arg4[%c0_33, %c2_34, %c0_35, %c0_36] : memref<3x9x8x128xbf16, #tpu.memory_space<vmem>>, vector<1x1x8x128xbf16>
    %51 = vector.shape_cast %50 : vector<1x1x8x128xbf16> to vector<8x128xbf16>
    %cst_37 = arith.constant dense<0.000000e+00> : vector<128x128xf32>
    %52 = tpu.matmul %49, %51, %cst_37 {dimension_numbers = #tpu.dot_dimension_numbers<[1], [0], [0], [1], [0, 0, 1, 1], [], []>} : vector<128x8xbf16>, vector<8x128xbf16>, vector<128x128xf32> -> vector<128x128xf32>
    %53 = arith.addf %42, %52 : vector<128x128xf32>
    %c3_i32_38 = arith.constant 3 : i32
    %54 = arith.addi %0, %c3_i32_38 : i32
    %c0_i32_39 = arith.constant 0 : i32
    %55 = arith.addi %54, %c0_i32_39 : i32
    %c0_40 = arith.constant 0 : index
    %56 = arith.index_cast %55 : i32 to index
    %c2_41 = arith.constant 2 : index
    %c0_42 = arith.constant 0 : index
    %57 = vector.load %arg2[%c0_40, %56, %c2_41, %c0_42] : memref<1x22x22x8xf32, #tpu.memory_space<vmem>>, vector<1x8x16x8xf32>
    %58 = vector.shape_cast %57 : vector<1x8x16x8xf32> to vector<8x16x8xf32>
    %59 = vector.shape_cast %58 : vector<8x16x8xf32> to vector<128x8xf32>
    %60 = arith.truncf %59 : vector<128x8xf32> to vector<128x8xbf16>
    %c0_43 = arith.constant 0 : index
    %c3_44 = arith.constant 3 : index
    %c0_45 = arith.constant 0 : index
    %c0_46 = arith.constant 0 : index
    %61 = vector.load %arg4[%c0_43, %c3_44, %c0_45, %c0_46] : memref<3x9x8x128xbf16, #tpu.memory_space<vmem>>, vector<1x1x8x128xbf16>
    %62 = vector.shape_cast %61 : vector<1x1x8x128xbf16> to vector<8x128xbf16>
    %cst_47 = arith.constant dense<0.000000e+00> : vector<128x128xf32>
    %63 = tpu.matmul %60, %62, %cst_47 {dimension_numbers = #tpu.dot_dimension_numbers<[1], [0], [0], [1], [0, 0, 1, 1], [], []>} : vector<128x8xbf16>, vector<8x128xbf16>, vector<128x128xf32> -> vector<128x128xf32>
    %64 = arith.addf %53, %63 : vector<128x128xf32>
    %c3_i32_48 = arith.constant 3 : i32
    %65 = arith.addi %0, %c3_i32_48 : i32
    %c0_i32_49 = arith.constant 0 : i32
    %66 = arith.addi %65, %c0_i32_49 : i32
    %c0_50 = arith.constant 0 : index
    %67 = arith.index_cast %66 : i32 to index
    %c3_51 = arith.constant 3 : index
    %c0_52 = arith.constant 0 : index
    %68 = vector.load %arg2[%c0_50, %67, %c3_51, %c0_52] : memref<1x22x22x8xf32, #tpu.memory_space<vmem>>, vector<1x8x16x8xf32>
    %69 = vector.shape_cast %68 : vector<1x8x16x8xf32> to vector<8x16x8xf32>
    %70 = vector.shape_cast %69 : vector<8x16x8xf32> to vector<128x8xf32>
    %71 = arith.truncf %70 : vector<128x8xf32> to vector<128x8xbf16>
    %c0_53 = arith.constant 0 : index
    %c4_54 = arith.constant 4 : index
    %c0_55 = arith.constant 0 : index
    %c0_56 = arith.constant 0 : index
    %72 = vector.load %arg4[%c0_53, %c4_54, %c0_55, %c0_56] : memref<3x9x8x128xbf16, #tpu.memory_space<vmem>>, vector<1x1x8x128xbf16>
    %73 = vector.shape_cast %72 : vector<1x1x8x128xbf16> to vector<8x128xbf16>
    %cst_57 = arith.constant dense<0.000000e+00> : vector<128x128xf32>
    %74 = tpu.matmul %71, %73, %cst_57 {dimension_numbers = #tpu.dot_dimension_numbers<[1], [0], [0], [1], [0, 0, 1, 1], [], []>} : vector<128x8xbf16>, vector<8x128xbf16>, vector<128x128xf32> -> vector<128x128xf32>
    %75 = arith.addf %64, %74 : vector<128x128xf32>
    %c3_i32_58 = arith.constant 3 : i32
    %76 = arith.addi %0, %c3_i32_58 : i32
    %c0_i32_59 = arith.constant 0 : i32
    %77 = arith.addi %76, %c0_i32_59 : i32
    %c0_60 = arith.constant 0 : index
    %78 = arith.index_cast %77 : i32 to index
    %c4_61 = arith.constant 4 : index
    %c0_62 = arith.constant 0 : index
    %79 = vector.load %arg2[%c0_60, %78, %c4_61, %c0_62] : memref<1x22x22x8xf32, #tpu.memory_space<vmem>>, vector<1x8x16x8xf32>
    %80 = vector.shape_cast %79 : vector<1x8x16x8xf32> to vector<8x16x8xf32>
    %81 = vector.shape_cast %80 : vector<8x16x8xf32> to vector<128x8xf32>
    %82 = arith.truncf %81 : vector<128x8xf32> to vector<128x8xbf16>
    %c0_63 = arith.constant 0 : index
    %c5 = arith.constant 5 : index
    %c0_64 = arith.constant 0 : index
    %c0_65 = arith.constant 0 : index
    %83 = vector.load %arg4[%c0_63, %c5, %c0_64, %c0_65] : memref<3x9x8x128xbf16, #tpu.memory_space<vmem>>, vector<1x1x8x128xbf16>
    %84 = vector.shape_cast %83 : vector<1x1x8x128xbf16> to vector<8x128xbf16>
    %cst_66 = arith.constant dense<0.000000e+00> : vector<128x128xf32>
    %85 = tpu.matmul %82, %84, %cst_66 {dimension_numbers = #tpu.dot_dimension_numbers<[1], [0], [0], [1], [0, 0, 1, 1], [], []>} : vector<128x8xbf16>, vector<8x128xbf16>, vector<128x128xf32> -> vector<128x128xf32>
    %86 = arith.addf %75, %85 : vector<128x128xf32>
    %c3_i32_67 = arith.constant 3 : i32
    %87 = arith.addi %0, %c3_i32_67 : i32
    %c1_i32 = arith.constant 1 : i32
    %88 = arith.addi %87, %c1_i32 : i32
    %c0_68 = arith.constant 0 : index
    %89 = arith.index_cast %88 : i32 to index
    %c2_69 = arith.constant 2 : index
    %c0_70 = arith.constant 0 : index
    %90 = vector.load %arg2[%c0_68, %89, %c2_69, %c0_70] : memref<1x22x22x8xf32, #tpu.memory_space<vmem>>, vector<1x8x16x8xf32>
    %91 = vector.shape_cast %90 : vector<1x8x16x8xf32> to vector<8x16x8xf32>
    %92 = vector.shape_cast %91 : vector<8x16x8xf32> to vector<128x8xf32>
    %93 = arith.truncf %92 : vector<128x8xf32> to vector<128x8xbf16>
    %c0_71 = arith.constant 0 : index
    %c6 = arith.constant 6 : index
    %c0_72 = arith.constant 0 : index
    %c0_73 = arith.constant 0 : index
    %94 = vector.load %arg4[%c0_71, %c6, %c0_72, %c0_73] : memref<3x9x8x128xbf16, #tpu.memory_space<vmem>>, vector<1x1x8x128xbf16>
    %95 = vector.shape_cast %94 : vector<1x1x8x128xbf16> to vector<8x128xbf16>
    %cst_74 = arith.constant dense<0.000000e+00> : vector<128x128xf32>
    %96 = tpu.matmul %93, %95, %cst_74 {dimension_numbers = #tpu.dot_dimension_numbers<[1], [0], [0], [1], [0, 0, 1, 1], [], []>} : vector<128x8xbf16>, vector<8x128xbf16>, vector<128x128xf32> -> vector<128x128xf32>
    %97 = arith.addf %86, %96 : vector<128x128xf32>
    %c3_i32_75 = arith.constant 3 : i32
    %98 = arith.addi %0, %c3_i32_75 : i32
    %c1_i32_76 = arith.constant 1 : i32
    %99 = arith.addi %98, %c1_i32_76 : i32
    %c0_77 = arith.constant 0 : index
    %100 = arith.index_cast %99 : i32 to index
    %c3_78 = arith.constant 3 : index
    %c0_79 = arith.constant 0 : index
    %101 = vector.load %arg2[%c0_77, %100, %c3_78, %c0_79] : memref<1x22x22x8xf32, #tpu.memory_space<vmem>>, vector<1x8x16x8xf32>
    %102 = vector.shape_cast %101 : vector<1x8x16x8xf32> to vector<8x16x8xf32>
    %103 = vector.shape_cast %102 : vector<8x16x8xf32> to vector<128x8xf32>
    %104 = arith.truncf %103 : vector<128x8xf32> to vector<128x8xbf16>
    %c0_80 = arith.constant 0 : index
    %c7 = arith.constant 7 : index
    %c0_81 = arith.constant 0 : index
    %c0_82 = arith.constant 0 : index
    %105 = vector.load %arg4[%c0_80, %c7, %c0_81, %c0_82] : memref<3x9x8x128xbf16, #tpu.memory_space<vmem>>, vector<1x1x8x128xbf16>
    %106 = vector.shape_cast %105 : vector<1x1x8x128xbf16> to vector<8x128xbf16>
    %cst_83 = arith.constant dense<0.000000e+00> : vector<128x128xf32>
    %107 = tpu.matmul %104, %106, %cst_83 {dimension_numbers = #tpu.dot_dimension_numbers<[1], [0], [0], [1], [0, 0, 1, 1], [], []>} : vector<128x8xbf16>, vector<8x128xbf16>, vector<128x128xf32> -> vector<128x128xf32>
    %108 = arith.addf %97, %107 : vector<128x128xf32>
    %c3_i32_84 = arith.constant 3 : i32
    %109 = arith.addi %0, %c3_i32_84 : i32
    %c1_i32_85 = arith.constant 1 : i32
    %110 = arith.addi %109, %c1_i32_85 : i32
    %c0_86 = arith.constant 0 : index
    %111 = arith.index_cast %110 : i32 to index
    %c4_87 = arith.constant 4 : index
    %c0_88 = arith.constant 0 : index
    %112 = vector.load %arg2[%c0_86, %111, %c4_87, %c0_88] : memref<1x22x22x8xf32, #tpu.memory_space<vmem>>, vector<1x8x16x8xf32>
    %113 = vector.shape_cast %112 : vector<1x8x16x8xf32> to vector<8x16x8xf32>
    %114 = vector.shape_cast %113 : vector<8x16x8xf32> to vector<128x8xf32>
    %115 = arith.truncf %114 : vector<128x8xf32> to vector<128x8xbf16>
    %c0_89 = arith.constant 0 : index
    %c8 = arith.constant 8 : index
    %c0_90 = arith.constant 0 : index
    %c0_91 = arith.constant 0 : index
    %116 = vector.load %arg4[%c0_89, %c8, %c0_90, %c0_91] : memref<3x9x8x128xbf16, #tpu.memory_space<vmem>>, vector<1x1x8x128xbf16>
    %117 = vector.shape_cast %116 : vector<1x1x8x128xbf16> to vector<8x128xbf16>
    %cst_92 = arith.constant dense<0.000000e+00> : vector<128x128xf32>
    %118 = tpu.matmul %115, %117, %cst_92 {dimension_numbers = #tpu.dot_dimension_numbers<[1], [0], [0], [1], [0, 0, 1, 1], [], []>} : vector<128x8xbf16>, vector<8x128xbf16>, vector<128x128xf32> -> vector<128x128xf32>
    %119 = arith.addf %108, %118 : vector<128x128xf32>
    %c1_93 = arith.constant 1 : index
    %c0_94 = arith.constant 0 : index
    %c0_95 = arith.constant 0 : index
    %120 = vector.load %arg7[%c1_93, %c0_94, %c0_95] : memref<6x1x128xf32, #tpu.memory_space<vmem>>, vector<1x1x128xf32>
    %121 = vector.shape_cast %120 : vector<1x1x128xf32> to vector<1x128xf32>
    %122 = vector.broadcast %121 : vector<1x128xf32> to vector<128x128xf32>
    %123 = arith.addf %119, %122 : vector<128x128xf32>
    %cst_96 = arith.constant 0.000000e+00 : f32
    %124 = vector.broadcast %cst_96 : f32 to vector<128x128xf32>
    %125 = arith.maximumf %123, %124 : vector<128x128xf32>
    %126 = arith.truncf %125 : vector<128x128xf32> to vector<128x128xbf16>
    %c1_97 = arith.constant 1 : index
    %c0_98 = arith.constant 0 : index
    %c0_99 = arith.constant 0 : index
    %127 = vector.load %arg6[%c1_97, %c0_98, %c0_99] : memref<5x128x128xbf16, #tpu.memory_space<vmem>>, vector<1x128x128xbf16>
    %128 = vector.shape_cast %127 : vector<1x128x128xbf16> to vector<128x128xbf16>
    %cst_100 = arith.constant dense<0.000000e+00> : vector<128x128xf32>
    %129 = tpu.matmul %126, %128, %cst_100 {dimension_numbers = #tpu.dot_dimension_numbers<[1], [0], [0], [1], [0, 0, 1, 1], [], []>} : vector<128x128xbf16>, vector<128x128xbf16>, vector<128x128xf32> -> vector<128x128xf32>
    %130 = arith.addf %19, %129 : vector<128x128xf32>
    %cst_101 = arith.constant 0.000000e+00 : f32
    %131 = vector.broadcast %cst_101 : f32 to vector<128x128xf32>
    %c3_i32_102 = arith.constant 3 : i32
    %132 = arith.addi %0, %c3_i32_102 : i32
    %c-2_i32 = arith.constant -2 : i32
    %133 = arith.addi %132, %c-2_i32 : i32
    %c0_103 = arith.constant 0 : index
    %134 = arith.index_cast %133 : i32 to index
    %c1_104 = arith.constant 1 : index
    %c0_105 = arith.constant 0 : index
    %135 = vector.load %arg2[%c0_103, %134, %c1_104, %c0_105] : memref<1x22x22x8xf32, #tpu.memory_space<vmem>>, vector<1x8x16x8xf32>
    %136 = vector.shape_cast %135 : vector<1x8x16x8xf32> to vector<8x16x8xf32>
    %137 = vector.shape_cast %136 : vector<8x16x8xf32> to vector<128x8xf32>
    %138 = arith.truncf %137 : vector<128x8xf32> to vector<128x8xbf16>
    %c1_106 = arith.constant 1 : index
    %c0_107 = arith.constant 0 : index
    %c0_108 = arith.constant 0 : index
    %c0_109 = arith.constant 0 : index
    %139 = vector.load %arg4[%c1_106, %c0_107, %c0_108, %c0_109] : memref<3x9x8x128xbf16, #tpu.memory_space<vmem>>, vector<1x1x8x128xbf16>
    %140 = vector.shape_cast %139 : vector<1x1x8x128xbf16> to vector<8x128xbf16>
    %cst_110 = arith.constant dense<0.000000e+00> : vector<128x128xf32>
    %141 = tpu.matmul %138, %140, %cst_110 {dimension_numbers = #tpu.dot_dimension_numbers<[1], [0], [0], [1], [0, 0, 1, 1], [], []>} : vector<128x8xbf16>, vector<8x128xbf16>, vector<128x128xf32> -> vector<128x128xf32>
    %142 = arith.addf %131, %141 : vector<128x128xf32>
    %c3_i32_111 = arith.constant 3 : i32
    %143 = arith.addi %0, %c3_i32_111 : i32
    %c-2_i32_112 = arith.constant -2 : i32
    %144 = arith.addi %143, %c-2_i32_112 : i32
    %c0_113 = arith.constant 0 : index
    %145 = arith.index_cast %144 : i32 to index
    %c3_114 = arith.constant 3 : index
    %c0_115 = arith.constant 0 : index
    %146 = vector.load %arg2[%c0_113, %145, %c3_114, %c0_115] : memref<1x22x22x8xf32, #tpu.memory_space<vmem>>, vector<1x8x16x8xf32>
    %147 = vector.shape_cast %146 : vector<1x8x16x8xf32> to vector<8x16x8xf32>
    %148 = vector.shape_cast %147 : vector<8x16x8xf32> to vector<128x8xf32>
    %149 = arith.truncf %148 : vector<128x8xf32> to vector<128x8xbf16>
    %c1_116 = arith.constant 1 : index
    %c1_117 = arith.constant 1 : index
    %c0_118 = arith.constant 0 : index
    %c0_119 = arith.constant 0 : index
    %150 = vector.load %arg4[%c1_116, %c1_117, %c0_118, %c0_119] : memref<3x9x8x128xbf16, #tpu.memory_space<vmem>>, vector<1x1x8x128xbf16>
    %151 = vector.shape_cast %150 : vector<1x1x8x128xbf16> to vector<8x128xbf16>
    %cst_120 = arith.constant dense<0.000000e+00> : vector<128x128xf32>
    %152 = tpu.matmul %149, %151, %cst_120 {dimension_numbers = #tpu.dot_dimension_numbers<[1], [0], [0], [1], [0, 0, 1, 1], [], []>} : vector<128x8xbf16>, vector<8x128xbf16>, vector<128x128xf32> -> vector<128x128xf32>
    %153 = arith.addf %142, %152 : vector<128x128xf32>
    %c3_i32_121 = arith.constant 3 : i32
    %154 = arith.addi %0, %c3_i32_121 : i32
    %c-2_i32_122 = arith.constant -2 : i32
    %155 = arith.addi %154, %c-2_i32_122 : i32
    %c0_123 = arith.constant 0 : index
    %156 = arith.index_cast %155 : i32 to index
    %c5_124 = arith.constant 5 : index
    %c0_125 = arith.constant 0 : index
    %157 = vector.load %arg2[%c0_123, %156, %c5_124, %c0_125] : memref<1x22x22x8xf32, #tpu.memory_space<vmem>>, vector<1x8x16x8xf32>
    %158 = vector.shape_cast %157 : vector<1x8x16x8xf32> to vector<8x16x8xf32>
    %159 = vector.shape_cast %158 : vector<8x16x8xf32> to vector<128x8xf32>
    %160 = arith.truncf %159 : vector<128x8xf32> to vector<128x8xbf16>
    %c1_126 = arith.constant 1 : index
    %c2_127 = arith.constant 2 : index
    %c0_128 = arith.constant 0 : index
    %c0_129 = arith.constant 0 : index
    %161 = vector.load %arg4[%c1_126, %c2_127, %c0_128, %c0_129] : memref<3x9x8x128xbf16, #tpu.memory_space<vmem>>, vector<1x1x8x128xbf16>
    %162 = vector.shape_cast %161 : vector<1x1x8x128xbf16> to vector<8x128xbf16>
    %cst_130 = arith.constant dense<0.000000e+00> : vector<128x128xf32>
    %163 = tpu.matmul %160, %162, %cst_130 {dimension_numbers = #tpu.dot_dimension_numbers<[1], [0], [0], [1], [0, 0, 1, 1], [], []>} : vector<128x8xbf16>, vector<8x128xbf16>, vector<128x128xf32> -> vector<128x128xf32>
    %164 = arith.addf %153, %163 : vector<128x128xf32>
    %c3_i32_131 = arith.constant 3 : i32
    %165 = arith.addi %0, %c3_i32_131 : i32
    %c0_i32_132 = arith.constant 0 : i32
    %166 = arith.addi %165, %c0_i32_132 : i32
    %c0_133 = arith.constant 0 : index
    %167 = arith.index_cast %166 : i32 to index
    %c1_134 = arith.constant 1 : index
    %c0_135 = arith.constant 0 : index
    %168 = vector.load %arg2[%c0_133, %167, %c1_134, %c0_135] : memref<1x22x22x8xf32, #tpu.memory_space<vmem>>, vector<1x8x16x8xf32>
    %169 = vector.shape_cast %168 : vector<1x8x16x8xf32> to vector<8x16x8xf32>
    %170 = vector.shape_cast %169 : vector<8x16x8xf32> to vector<128x8xf32>
    %171 = arith.truncf %170 : vector<128x8xf32> to vector<128x8xbf16>
    %c1_136 = arith.constant 1 : index
    %c3_137 = arith.constant 3 : index
    %c0_138 = arith.constant 0 : index
    %c0_139 = arith.constant 0 : index
    %172 = vector.load %arg4[%c1_136, %c3_137, %c0_138, %c0_139] : memref<3x9x8x128xbf16, #tpu.memory_space<vmem>>, vector<1x1x8x128xbf16>
    %173 = vector.shape_cast %172 : vector<1x1x8x128xbf16> to vector<8x128xbf16>
    %cst_140 = arith.constant dense<0.000000e+00> : vector<128x128xf32>
    %174 = tpu.matmul %171, %173, %cst_140 {dimension_numbers = #tpu.dot_dimension_numbers<[1], [0], [0], [1], [0, 0, 1, 1], [], []>} : vector<128x8xbf16>, vector<8x128xbf16>, vector<128x128xf32> -> vector<128x128xf32>
    %175 = arith.addf %164, %174 : vector<128x128xf32>
    %c3_i32_141 = arith.constant 3 : i32
    %176 = arith.addi %0, %c3_i32_141 : i32
    %c0_i32_142 = arith.constant 0 : i32
    %177 = arith.addi %176, %c0_i32_142 : i32
    %c0_143 = arith.constant 0 : index
    %178 = arith.index_cast %177 : i32 to index
    %c3_144 = arith.constant 3 : index
    %c0_145 = arith.constant 0 : index
    %179 = vector.load %arg2[%c0_143, %178, %c3_144, %c0_145] : memref<1x22x22x8xf32, #tpu.memory_space<vmem>>, vector<1x8x16x8xf32>
    %180 = vector.shape_cast %179 : vector<1x8x16x8xf32> to vector<8x16x8xf32>
    %181 = vector.shape_cast %180 : vector<8x16x8xf32> to vector<128x8xf32>
    %182 = arith.truncf %181 : vector<128x8xf32> to vector<128x8xbf16>
    %c1_146 = arith.constant 1 : index
    %c4_147 = arith.constant 4 : index
    %c0_148 = arith.constant 0 : index
    %c0_149 = arith.constant 0 : index
    %183 = vector.load %arg4[%c1_146, %c4_147, %c0_148, %c0_149] : memref<3x9x8x128xbf16, #tpu.memory_space<vmem>>, vector<1x1x8x128xbf16>
    %184 = vector.shape_cast %183 : vector<1x1x8x128xbf16> to vector<8x128xbf16>
    %cst_150 = arith.constant dense<0.000000e+00> : vector<128x128xf32>
    %185 = tpu.matmul %182, %184, %cst_150 {dimension_numbers = #tpu.dot_dimension_numbers<[1], [0], [0], [1], [0, 0, 1, 1], [], []>} : vector<128x8xbf16>, vector<8x128xbf16>, vector<128x128xf32> -> vector<128x128xf32>
    %186 = arith.addf %175, %185 : vector<128x128xf32>
    %c3_i32_151 = arith.constant 3 : i32
    %187 = arith.addi %0, %c3_i32_151 : i32
    %c0_i32_152 = arith.constant 0 : i32
    %188 = arith.addi %187, %c0_i32_152 : i32
    %c0_153 = arith.constant 0 : index
    %189 = arith.index_cast %188 : i32 to index
    %c5_154 = arith.constant 5 : index
    %c0_155 = arith.constant 0 : index
    %190 = vector.load %arg2[%c0_153, %189, %c5_154, %c0_155] : memref<1x22x22x8xf32, #tpu.memory_space<vmem>>, vector<1x8x16x8xf32>
    %191 = vector.shape_cast %190 : vector<1x8x16x8xf32> to vector<8x16x8xf32>
    %192 = vector.shape_cast %191 : vector<8x16x8xf32> to vector<128x8xf32>
    %193 = arith.truncf %192 : vector<128x8xf32> to vector<128x8xbf16>
    %c1_156 = arith.constant 1 : index
    %c5_157 = arith.constant 5 : index
    %c0_158 = arith.constant 0 : index
    %c0_159 = arith.constant 0 : index
    %194 = vector.load %arg4[%c1_156, %c5_157, %c0_158, %c0_159] : memref<3x9x8x128xbf16, #tpu.memory_space<vmem>>, vector<1x1x8x128xbf16>
    %195 = vector.shape_cast %194 : vector<1x1x8x128xbf16> to vector<8x128xbf16>
    %cst_160 = arith.constant dense<0.000000e+00> : vector<128x128xf32>
    %196 = tpu.matmul %193, %195, %cst_160 {dimension_numbers = #tpu.dot_dimension_numbers<[1], [0], [0], [1], [0, 0, 1, 1], [], []>} : vector<128x8xbf16>, vector<8x128xbf16>, vector<128x128xf32> -> vector<128x128xf32>
    %197 = arith.addf %186, %196 : vector<128x128xf32>
    %c3_i32_161 = arith.constant 3 : i32
    %198 = arith.addi %0, %c3_i32_161 : i32
    %c2_i32 = arith.constant 2 : i32
    %199 = arith.addi %198, %c2_i32 : i32
    %c0_162 = arith.constant 0 : index
    %200 = arith.index_cast %199 : i32 to index
    %c1_163 = arith.constant 1 : index
    %c0_164 = arith.constant 0 : index
    %201 = vector.load %arg2[%c0_162, %200, %c1_163, %c0_164] : memref<1x22x22x8xf32, #tpu.memory_space<vmem>>, vector<1x8x16x8xf32>
    %202 = vector.shape_cast %201 : vector<1x8x16x8xf32> to vector<8x16x8xf32>
    %203 = vector.shape_cast %202 : vector<8x16x8xf32> to vector<128x8xf32>
    %204 = arith.truncf %203 : vector<128x8xf32> to vector<128x8xbf16>
    %c1_165 = arith.constant 1 : index
    %c6_166 = arith.constant 6 : index
    %c0_167 = arith.constant 0 : index
    %c0_168 = arith.constant 0 : index
    %205 = vector.load %arg4[%c1_165, %c6_166, %c0_167, %c0_168] : memref<3x9x8x128xbf16, #tpu.memory_space<vmem>>, vector<1x1x8x128xbf16>
    %206 = vector.shape_cast %205 : vector<1x1x8x128xbf16> to vector<8x128xbf16>
    %cst_169 = arith.constant dense<0.000000e+00> : vector<128x128xf32>
    %207 = tpu.matmul %204, %206, %cst_169 {dimension_numbers = #tpu.dot_dimension_numbers<[1], [0], [0], [1], [0, 0, 1, 1], [], []>} : vector<128x8xbf16>, vector<8x128xbf16>, vector<128x128xf32> -> vector<128x128xf32>
    %208 = arith.addf %197, %207 : vector<128x128xf32>
    %c3_i32_170 = arith.constant 3 : i32
    %209 = arith.addi %0, %c3_i32_170 : i32
    %c2_i32_171 = arith.constant 2 : i32
    %210 = arith.addi %209, %c2_i32_171 : i32
    %c0_172 = arith.constant 0 : index
    %211 = arith.index_cast %210 : i32 to index
    %c3_173 = arith.constant 3 : index
    %c0_174 = arith.constant 0 : index
    %212 = vector.load %arg2[%c0_172, %211, %c3_173, %c0_174] : memref<1x22x22x8xf32, #tpu.memory_space<vmem>>, vector<1x8x16x8xf32>
    %213 = vector.shape_cast %212 : vector<1x8x16x8xf32> to vector<8x16x8xf32>
    %214 = vector.shape_cast %213 : vector<8x16x8xf32> to vector<128x8xf32>
    %215 = arith.truncf %214 : vector<128x8xf32> to vector<128x8xbf16>
    %c1_175 = arith.constant 1 : index
    %c7_176 = arith.constant 7 : index
    %c0_177 = arith.constant 0 : index
    %c0_178 = arith.constant 0 : index
    %216 = vector.load %arg4[%c1_175, %c7_176, %c0_177, %c0_178] : memref<3x9x8x128xbf16, #tpu.memory_space<vmem>>, vector<1x1x8x128xbf16>
    %217 = vector.shape_cast %216 : vector<1x1x8x128xbf16> to vector<8x128xbf16>
    %cst_179 = arith.constant dense<0.000000e+00> : vector<128x128xf32>
    %218 = tpu.matmul %215, %217, %cst_179 {dimension_numbers = #tpu.dot_dimension_numbers<[1], [0], [0], [1], [0, 0, 1, 1], [], []>} : vector<128x8xbf16>, vector<8x128xbf16>, vector<128x128xf32> -> vector<128x128xf32>
    %219 = arith.addf %208, %218 : vector<128x128xf32>
    %c3_i32_180 = arith.constant 3 : i32
    %220 = arith.addi %0, %c3_i32_180 : i32
    %c2_i32_181 = arith.constant 2 : i32
    %221 = arith.addi %220, %c2_i32_181 : i32
    %c0_182 = arith.constant 0 : index
    %222 = arith.index_cast %221 : i32 to index
    %c5_183 = arith.constant 5 : index
    %c0_184 = arith.constant 0 : index
    %223 = vector.load %arg2[%c0_182, %222, %c5_183, %c0_184] : memref<1x22x22x8xf32, #tpu.memory_space<vmem>>, vector<1x8x16x8xf32>
    %224 = vector.shape_cast %223 : vector<1x8x16x8xf32> to vector<8x16x8xf32>
    %225 = vector.shape_cast %224 : vector<8x16x8xf32> to vector<128x8xf32>
    %226 = arith.truncf %225 : vector<128x8xf32> to vector<128x8xbf16>
    %c1_185 = arith.constant 1 : index
    %c8_186 = arith.constant 8 : index
    %c0_187 = arith.constant 0 : index
    %c0_188 = arith.constant 0 : index
    %227 = vector.load %arg4[%c1_185, %c8_186, %c0_187, %c0_188] : memref<3x9x8x128xbf16, #tpu.memory_space<vmem>>, vector<1x1x8x128xbf16>
    %228 = vector.shape_cast %227 : vector<1x1x8x128xbf16> to vector<8x128xbf16>
    %cst_189 = arith.constant dense<0.000000e+00> : vector<128x128xf32>
    %229 = tpu.matmul %226, %228, %cst_189 {dimension_numbers = #tpu.dot_dimension_numbers<[1], [0], [0], [1], [0, 0, 1, 1], [], []>} : vector<128x8xbf16>, vector<8x128xbf16>, vector<128x128xf32> -> vector<128x128xf32>
    %230 = arith.addf %219, %229 : vector<128x128xf32>
    %c2_190 = arith.constant 2 : index
    %c0_191 = arith.constant 0 : index
    %c0_192 = arith.constant 0 : index
    %231 = vector.load %arg7[%c2_190, %c0_191, %c0_192] : memref<6x1x128xf32, #tpu.memory_space<vmem>>, vector<1x1x128xf32>
    %232 = vector.shape_cast %231 : vector<1x1x128xf32> to vector<1x128xf32>
    %233 = vector.broadcast %232 : vector<1x128xf32> to vector<128x128xf32>
    %234 = arith.addf %230, %233 : vector<128x128xf32>
    %cst_193 = arith.constant 0.000000e+00 : f32
    %235 = vector.broadcast %cst_193 : f32 to vector<128x128xf32>
    %236 = arith.maximumf %234, %235 : vector<128x128xf32>
    %237 = arith.truncf %236 : vector<128x128xf32> to vector<128x128xbf16>
    %c2_194 = arith.constant 2 : index
    %c0_195 = arith.constant 0 : index
    %c0_196 = arith.constant 0 : index
    %238 = vector.load %arg6[%c2_194, %c0_195, %c0_196] : memref<5x128x128xbf16, #tpu.memory_space<vmem>>, vector<1x128x128xbf16>
    %239 = vector.shape_cast %238 : vector<1x128x128xbf16> to vector<128x128xbf16>
    %cst_197 = arith.constant dense<0.000000e+00> : vector<128x128xf32>
    %240 = tpu.matmul %237, %239, %cst_197 {dimension_numbers = #tpu.dot_dimension_numbers<[1], [0], [0], [1], [0, 0, 1, 1], [], []>} : vector<128x128xbf16>, vector<128x128xbf16>, vector<128x128xf32> -> vector<128x128xf32>
    %241 = arith.addf %130, %240 : vector<128x128xf32>
    %cst_198 = arith.constant 0.000000e+00 : f32
    %242 = vector.broadcast %cst_198 : f32 to vector<128x128xf32>
    %c3_i32_199 = arith.constant 3 : i32
    %243 = arith.addi %0, %c3_i32_199 : i32
    %c-3_i32 = arith.constant -3 : i32
    %244 = arith.addi %243, %c-3_i32 : i32
    %c0_200 = arith.constant 0 : index
    %245 = arith.index_cast %244 : i32 to index
    %c0_201 = arith.constant 0 : index
    %c0_202 = arith.constant 0 : index
    %246 = vector.load %arg2[%c0_200, %245, %c0_201, %c0_202] : memref<1x22x22x8xf32, #tpu.memory_space<vmem>>, vector<1x8x16x8xf32>
    %247 = vector.shape_cast %246 : vector<1x8x16x8xf32> to vector<8x16x8xf32>
    %248 = vector.shape_cast %247 : vector<8x16x8xf32> to vector<128x8xf32>
    %249 = arith.truncf %248 : vector<128x8xf32> to vector<128x8xbf16>
    %c2_203 = arith.constant 2 : index
    %c0_204 = arith.constant 0 : index
    %c0_205 = arith.constant 0 : index
    %c0_206 = arith.constant 0 : index
    %250 = vector.load %arg4[%c2_203, %c0_204, %c0_205, %c0_206] : memref<3x9x8x128xbf16, #tpu.memory_space<vmem>>, vector<1x1x8x128xbf16>
    %251 = vector.shape_cast %250 : vector<1x1x8x128xbf16> to vector<8x128xbf16>
    %cst_207 = arith.constant dense<0.000000e+00> : vector<128x128xf32>
    %252 = tpu.matmul %249, %251, %cst_207 {dimension_numbers = #tpu.dot_dimension_numbers<[1], [0], [0], [1], [0, 0, 1, 1], [], []>} : vector<128x8xbf16>, vector<8x128xbf16>, vector<128x128xf32> -> vector<128x128xf32>
    %253 = arith.addf %242, %252 : vector<128x128xf32>
    %c3_i32_208 = arith.constant 3 : i32
    %254 = arith.addi %0, %c3_i32_208 : i32
    %c-3_i32_209 = arith.constant -3 : i32
    %255 = arith.addi %254, %c-3_i32_209 : i32
    %c0_210 = arith.constant 0 : index
    %256 = arith.index_cast %255 : i32 to index
    %c3_211 = arith.constant 3 : index
    %c0_212 = arith.constant 0 : index
    %257 = vector.load %arg2[%c0_210, %256, %c3_211, %c0_212] : memref<1x22x22x8xf32, #tpu.memory_space<vmem>>, vector<1x8x16x8xf32>
    %258 = vector.shape_cast %257 : vector<1x8x16x8xf32> to vector<8x16x8xf32>
    %259 = vector.shape_cast %258 : vector<8x16x8xf32> to vector<128x8xf32>
    %260 = arith.truncf %259 : vector<128x8xf32> to vector<128x8xbf16>
    %c2_213 = arith.constant 2 : index
    %c1_214 = arith.constant 1 : index
    %c0_215 = arith.constant 0 : index
    %c0_216 = arith.constant 0 : index
    %261 = vector.load %arg4[%c2_213, %c1_214, %c0_215, %c0_216] : memref<3x9x8x128xbf16, #tpu.memory_space<vmem>>, vector<1x1x8x128xbf16>
    %262 = vector.shape_cast %261 : vector<1x1x8x128xbf16> to vector<8x128xbf16>
    %cst_217 = arith.constant dense<0.000000e+00> : vector<128x128xf32>
    %263 = tpu.matmul %260, %262, %cst_217 {dimension_numbers = #tpu.dot_dimension_numbers<[1], [0], [0], [1], [0, 0, 1, 1], [], []>} : vector<128x8xbf16>, vector<8x128xbf16>, vector<128x128xf32> -> vector<128x128xf32>
    %264 = arith.addf %253, %263 : vector<128x128xf32>
    %c3_i32_218 = arith.constant 3 : i32
    %265 = arith.addi %0, %c3_i32_218 : i32
    %c-3_i32_219 = arith.constant -3 : i32
    %266 = arith.addi %265, %c-3_i32_219 : i32
    %c0_220 = arith.constant 0 : index
    %267 = arith.index_cast %266 : i32 to index
    %c6_221 = arith.constant 6 : index
    %c0_222 = arith.constant 0 : index
    %268 = vector.load %arg2[%c0_220, %267, %c6_221, %c0_222] : memref<1x22x22x8xf32, #tpu.memory_space<vmem>>, vector<1x8x16x8xf32>
    %269 = vector.shape_cast %268 : vector<1x8x16x8xf32> to vector<8x16x8xf32>
    %270 = vector.shape_cast %269 : vector<8x16x8xf32> to vector<128x8xf32>
    %271 = arith.truncf %270 : vector<128x8xf32> to vector<128x8xbf16>
    %c2_223 = arith.constant 2 : index
    %c2_224 = arith.constant 2 : index
    %c0_225 = arith.constant 0 : index
    %c0_226 = arith.constant 0 : index
    %272 = vector.load %arg4[%c2_223, %c2_224, %c0_225, %c0_226] : memref<3x9x8x128xbf16, #tpu.memory_space<vmem>>, vector<1x1x8x128xbf16>
    %273 = vector.shape_cast %272 : vector<1x1x8x128xbf16> to vector<8x128xbf16>
    %cst_227 = arith.constant dense<0.000000e+00> : vector<128x128xf32>
    %274 = tpu.matmul %271, %273, %cst_227 {dimension_numbers = #tpu.dot_dimension_numbers<[1], [0], [0], [1], [0, 0, 1, 1], [], []>} : vector<128x8xbf16>, vector<8x128xbf16>, vector<128x128xf32> -> vector<128x128xf32>
    %275 = arith.addf %264, %274 : vector<128x128xf32>
    %c3_i32_228 = arith.constant 3 : i32
    %276 = arith.addi %0, %c3_i32_228 : i32
    %c0_i32_229 = arith.constant 0 : i32
    %277 = arith.addi %276, %c0_i32_229 : i32
    %c0_230 = arith.constant 0 : index
    %278 = arith.index_cast %277 : i32 to index
    %c0_231 = arith.constant 0 : index
    %c0_232 = arith.constant 0 : index
    %279 = vector.load %arg2[%c0_230, %278, %c0_231, %c0_232] : memref<1x22x22x8xf32, #tpu.memory_space<vmem>>, vector<1x8x16x8xf32>
    %280 = vector.shape_cast %279 : vector<1x8x16x8xf32> to vector<8x16x8xf32>
    %281 = vector.shape_cast %280 : vector<8x16x8xf32> to vector<128x8xf32>
    %282 = arith.truncf %281 : vector<128x8xf32> to vector<128x8xbf16>
    %c2_233 = arith.constant 2 : index
    %c3_234 = arith.constant 3 : index
    %c0_235 = arith.constant 0 : index
    %c0_236 = arith.constant 0 : index
    %283 = vector.load %arg4[%c2_233, %c3_234, %c0_235, %c0_236] : memref<3x9x8x128xbf16, #tpu.memory_space<vmem>>, vector<1x1x8x128xbf16>
    %284 = vector.shape_cast %283 : vector<1x1x8x128xbf16> to vector<8x128xbf16>
    %cst_237 = arith.constant dense<0.000000e+00> : vector<128x128xf32>
    %285 = tpu.matmul %282, %284, %cst_237 {dimension_numbers = #tpu.dot_dimension_numbers<[1], [0], [0], [1], [0, 0, 1, 1], [], []>} : vector<128x8xbf16>, vector<8x128xbf16>, vector<128x128xf32> -> vector<128x128xf32>
    %286 = arith.addf %275, %285 : vector<128x128xf32>
    %c3_i32_238 = arith.constant 3 : i32
    %287 = arith.addi %0, %c3_i32_238 : i32
    %c0_i32_239 = arith.constant 0 : i32
    %288 = arith.addi %287, %c0_i32_239 : i32
    %c0_240 = arith.constant 0 : index
    %289 = arith.index_cast %288 : i32 to index
    %c3_241 = arith.constant 3 : index
    %c0_242 = arith.constant 0 : index
    %290 = vector.load %arg2[%c0_240, %289, %c3_241, %c0_242] : memref<1x22x22x8xf32, #tpu.memory_space<vmem>>, vector<1x8x16x8xf32>
    %291 = vector.shape_cast %290 : vector<1x8x16x8xf32> to vector<8x16x8xf32>
    %292 = vector.shape_cast %291 : vector<8x16x8xf32> to vector<128x8xf32>
    %293 = arith.truncf %292 : vector<128x8xf32> to vector<128x8xbf16>
    %c2_243 = arith.constant 2 : index
    %c4_244 = arith.constant 4 : index
    %c0_245 = arith.constant 0 : index
    %c0_246 = arith.constant 0 : index
    %294 = vector.load %arg4[%c2_243, %c4_244, %c0_245, %c0_246] : memref<3x9x8x128xbf16, #tpu.memory_space<vmem>>, vector<1x1x8x128xbf16>
    %295 = vector.shape_cast %294 : vector<1x1x8x128xbf16> to vector<8x128xbf16>
    %cst_247 = arith.constant dense<0.000000e+00> : vector<128x128xf32>
    %296 = tpu.matmul %293, %295, %cst_247 {dimension_numbers = #tpu.dot_dimension_numbers<[1], [0], [0], [1], [0, 0, 1, 1], [], []>} : vector<128x8xbf16>, vector<8x128xbf16>, vector<128x128xf32> -> vector<128x128xf32>
    %297 = arith.addf %286, %296 : vector<128x128xf32>
    %c3_i32_248 = arith.constant 3 : i32
    %298 = arith.addi %0, %c3_i32_248 : i32
    %c0_i32_249 = arith.constant 0 : i32
    %299 = arith.addi %298, %c0_i32_249 : i32
    %c0_250 = arith.constant 0 : index
    %300 = arith.index_cast %299 : i32 to index
    %c6_251 = arith.constant 6 : index
    %c0_252 = arith.constant 0 : index
    %301 = vector.load %arg2[%c0_250, %300, %c6_251, %c0_252] : memref<1x22x22x8xf32, #tpu.memory_space<vmem>>, vector<1x8x16x8xf32>
    %302 = vector.shape_cast %301 : vector<1x8x16x8xf32> to vector<8x16x8xf32>
    %303 = vector.shape_cast %302 : vector<8x16x8xf32> to vector<128x8xf32>
    %304 = arith.truncf %303 : vector<128x8xf32> to vector<128x8xbf16>
    %c2_253 = arith.constant 2 : index
    %c5_254 = arith.constant 5 : index
    %c0_255 = arith.constant 0 : index
    %c0_256 = arith.constant 0 : index
    %305 = vector.load %arg4[%c2_253, %c5_254, %c0_255, %c0_256] : memref<3x9x8x128xbf16, #tpu.memory_space<vmem>>, vector<1x1x8x128xbf16>
    %306 = vector.shape_cast %305 : vector<1x1x8x128xbf16> to vector<8x128xbf16>
    %cst_257 = arith.constant dense<0.000000e+00> : vector<128x128xf32>
    %307 = tpu.matmul %304, %306, %cst_257 {dimension_numbers = #tpu.dot_dimension_numbers<[1], [0], [0], [1], [0, 0, 1, 1], [], []>} : vector<128x8xbf16>, vector<8x128xbf16>, vector<128x128xf32> -> vector<128x128xf32>
    %308 = arith.addf %297, %307 : vector<128x128xf32>
    %c3_i32_258 = arith.constant 3 : i32
    %309 = arith.addi %0, %c3_i32_258 : i32
    %c3_i32_259 = arith.constant 3 : i32
    %310 = arith.addi %309, %c3_i32_259 : i32
    %c0_260 = arith.constant 0 : index
    %311 = arith.index_cast %310 : i32 to index
    %c0_261 = arith.constant 0 : index
    %c0_262 = arith.constant 0 : index
    %312 = vector.load %arg2[%c0_260, %311, %c0_261, %c0_262] : memref<1x22x22x8xf32, #tpu.memory_space<vmem>>, vector<1x8x16x8xf32>
    %313 = vector.shape_cast %312 : vector<1x8x16x8xf32> to vector<8x16x8xf32>
    %314 = vector.shape_cast %313 : vector<8x16x8xf32> to vector<128x8xf32>
    %315 = arith.truncf %314 : vector<128x8xf32> to vector<128x8xbf16>
    %c2_263 = arith.constant 2 : index
    %c6_264 = arith.constant 6 : index
    %c0_265 = arith.constant 0 : index
    %c0_266 = arith.constant 0 : index
    %316 = vector.load %arg4[%c2_263, %c6_264, %c0_265, %c0_266] : memref<3x9x8x128xbf16, #tpu.memory_space<vmem>>, vector<1x1x8x128xbf16>
    %317 = vector.shape_cast %316 : vector<1x1x8x128xbf16> to vector<8x128xbf16>
    %cst_267 = arith.constant dense<0.000000e+00> : vector<128x128xf32>
    %318 = tpu.matmul %315, %317, %cst_267 {dimension_numbers = #tpu.dot_dimension_numbers<[1], [0], [0], [1], [0, 0, 1, 1], [], []>} : vector<128x8xbf16>, vector<8x128xbf16>, vector<128x128xf32> -> vector<128x128xf32>
    %319 = arith.addf %308, %318 : vector<128x128xf32>
    %c3_i32_268 = arith.constant 3 : i32
    %320 = arith.addi %0, %c3_i32_268 : i32
    %c3_i32_269 = arith.constant 3 : i32
    %321 = arith.addi %320, %c3_i32_269 : i32
    %c0_270 = arith.constant 0 : index
    %322 = arith.index_cast %321 : i32 to index
    %c3_271 = arith.constant 3 : index
    %c0_272 = arith.constant 0 : index
    %323 = vector.load %arg2[%c0_270, %322, %c3_271, %c0_272] : memref<1x22x22x8xf32, #tpu.memory_space<vmem>>, vector<1x8x16x8xf32>
    %324 = vector.shape_cast %323 : vector<1x8x16x8xf32> to vector<8x16x8xf32>
    %325 = vector.shape_cast %324 : vector<8x16x8xf32> to vector<128x8xf32>
    %326 = arith.truncf %325 : vector<128x8xf32> to vector<128x8xbf16>
    %c2_273 = arith.constant 2 : index
    %c7_274 = arith.constant 7 : index
    %c0_275 = arith.constant 0 : index
    %c0_276 = arith.constant 0 : index
    %327 = vector.load %arg4[%c2_273, %c7_274, %c0_275, %c0_276] : memref<3x9x8x128xbf16, #tpu.memory_space<vmem>>, vector<1x1x8x128xbf16>
    %328 = vector.shape_cast %327 : vector<1x1x8x128xbf16> to vector<8x128xbf16>
    %cst_277 = arith.constant dense<0.000000e+00> : vector<128x128xf32>
    %329 = tpu.matmul %326, %328, %cst_277 {dimension_numbers = #tpu.dot_dimension_numbers<[1], [0], [0], [1], [0, 0, 1, 1], [], []>} : vector<128x8xbf16>, vector<8x128xbf16>, vector<128x128xf32> -> vector<128x128xf32>
    %330 = arith.addf %319, %329 : vector<128x128xf32>
    %c3_i32_278 = arith.constant 3 : i32
    %331 = arith.addi %0, %c3_i32_278 : i32
    %c3_i32_279 = arith.constant 3 : i32
    %332 = arith.addi %331, %c3_i32_279 : i32
    %c0_280 = arith.constant 0 : index
    %333 = arith.index_cast %332 : i32 to index
    %c6_281 = arith.constant 6 : index
    %c0_282 = arith.constant 0 : index
    %334 = vector.load %arg2[%c0_280, %333, %c6_281, %c0_282] : memref<1x22x22x8xf32, #tpu.memory_space<vmem>>, vector<1x8x16x8xf32>
    %335 = vector.shape_cast %334 : vector<1x8x16x8xf32> to vector<8x16x8xf32>
    %336 = vector.shape_cast %335 : vector<8x16x8xf32> to vector<128x8xf32>
    %337 = arith.truncf %336 : vector<128x8xf32> to vector<128x8xbf16>
    %c2_283 = arith.constant 2 : index
    %c8_284 = arith.constant 8 : index
    %c0_285 = arith.constant 0 : index
    %c0_286 = arith.constant 0 : index
    %338 = vector.load %arg4[%c2_283, %c8_284, %c0_285, %c0_286] : memref<3x9x8x128xbf16, #tpu.memory_space<vmem>>, vector<1x1x8x128xbf16>
    %339 = vector.shape_cast %338 : vector<1x1x8x128xbf16> to vector<8x128xbf16>
    %cst_287 = arith.constant dense<0.000000e+00> : vector<128x128xf32>
    %340 = tpu.matmul %337, %339, %cst_287 {dimension_numbers = #tpu.dot_dimension_numbers<[1], [0], [0], [1], [0, 0, 1, 1], [], []>} : vector<128x8xbf16>, vector<8x128xbf16>, vector<128x128xf32> -> vector<128x128xf32>
    %341 = arith.addf %330, %340 : vector<128x128xf32>
    %c3_288 = arith.constant 3 : index
    %c0_289 = arith.constant 0 : index
    %c0_290 = arith.constant 0 : index
    %342 = vector.load %arg7[%c3_288, %c0_289, %c0_290] : memref<6x1x128xf32, #tpu.memory_space<vmem>>, vector<1x1x128xf32>
    %343 = vector.shape_cast %342 : vector<1x1x128xf32> to vector<1x128xf32>
    %344 = vector.broadcast %343 : vector<1x128xf32> to vector<128x128xf32>
    %345 = arith.addf %341, %344 : vector<128x128xf32>
    %cst_291 = arith.constant 0.000000e+00 : f32
    %346 = vector.broadcast %cst_291 : f32 to vector<128x128xf32>
    %347 = arith.maximumf %345, %346 : vector<128x128xf32>
    %348 = arith.truncf %347 : vector<128x128xf32> to vector<128x128xbf16>
    %c3_292 = arith.constant 3 : index
    %c0_293 = arith.constant 0 : index
    %c0_294 = arith.constant 0 : index
    %349 = vector.load %arg6[%c3_292, %c0_293, %c0_294] : memref<5x128x128xbf16, #tpu.memory_space<vmem>>, vector<1x128x128xbf16>
    %350 = vector.shape_cast %349 : vector<1x128x128xbf16> to vector<128x128xbf16>
    %cst_295 = arith.constant dense<0.000000e+00> : vector<128x128xf32>
    %351 = tpu.matmul %348, %350, %cst_295 {dimension_numbers = #tpu.dot_dimension_numbers<[1], [0], [0], [1], [0, 0, 1, 1], [], []>} : vector<128x128xbf16>, vector<128x128xbf16>, vector<128x128xf32> -> vector<128x128xf32>
    %352 = arith.addf %241, %351 : vector<128x128xf32>
    %c0_296 = arith.constant 0 : index
    %c3_297 = arith.constant 3 : index
    %c3_298 = arith.constant 3 : index
    %c0_299 = arith.constant 0 : index
    %353 = vector.load %arg2[%c0_296, %c3_297, %c3_298, %c0_299] : memref<1x22x22x8xf32, #tpu.memory_space<vmem>>, vector<1x16x16x8xf32>
    %354 = vector.shape_cast %353 : vector<1x16x16x8xf32> to vector<16x16x8xf32>
    %355 = vector.shape_cast %354 : vector<16x16x8xf32> to vector<256x8xf32>
    %cst_300 = arith.constant dense<0.000000e+00> : vector<8xf32>
    %356 = vector.multi_reduction <add>, %355, %cst_300 [0] : vector<256x8xf32> to vector<8xf32>
    %357 = vector.shape_cast %356 : vector<8xf32> to vector<1x8xf32>
    %cst_301 = arith.constant 2.560000e+02 : f32
    %358 = vector.broadcast %cst_301 : f32 to vector<1x8xf32>
    %359 = arith.divf %357, %358 : vector<1x8xf32>
    %360 = arith.truncf %359 : vector<1x8xf32> to vector<1x8xbf16>
    %c0_302 = arith.constant 0 : index
    %c0_303 = arith.constant 0 : index
    %361 = vector.load %arg5[%c0_302, %c0_303] : memref<8x128xbf16, #tpu.memory_space<vmem>>, vector<8x128xbf16>
    %cst_304 = arith.constant dense<0.000000e+00> : vector<1x128xf32>
    %362 = tpu.matmul %360, %361, %cst_304 {dimension_numbers = #tpu.dot_dimension_numbers<[1], [0], [0], [1], [0, 0, 1, 1], [], []>} : vector<1x8xbf16>, vector<8x128xbf16>, vector<1x128xf32> -> vector<1x128xf32>
    %c4_305 = arith.constant 4 : index
    %c0_306 = arith.constant 0 : index
    %c0_307 = arith.constant 0 : index
    %363 = vector.load %arg7[%c4_305, %c0_306, %c0_307] : memref<6x1x128xf32, #tpu.memory_space<vmem>>, vector<1x1x128xf32>
    %364 = vector.shape_cast %363 : vector<1x1x128xf32> to vector<1x128xf32>
    %365 = arith.addf %362, %364 : vector<1x128xf32>
    %cst_308 = arith.constant 0.000000e+00 : f32
    %366 = vector.broadcast %cst_308 : f32 to vector<1x128xf32>
    %367 = arith.maximumf %365, %366 : vector<1x128xf32>
    %368 = arith.truncf %367 : vector<1x128xf32> to vector<1x128xbf16>
    %c4_309 = arith.constant 4 : index
    %c0_310 = arith.constant 0 : index
    %c0_311 = arith.constant 0 : index
    %369 = vector.load %arg6[%c4_309, %c0_310, %c0_311] : memref<5x128x128xbf16, #tpu.memory_space<vmem>>, vector<1x128x128xbf16>
    %370 = vector.shape_cast %369 : vector<1x128x128xbf16> to vector<128x128xbf16>
    %cst_312 = arith.constant dense<0.000000e+00> : vector<1x128xf32>
    %371 = tpu.matmul %368, %370, %cst_312 {dimension_numbers = #tpu.dot_dimension_numbers<[1], [0], [0], [1], [0, 0, 1, 1], [], []>} : vector<1x128xbf16>, vector<128x128xbf16>, vector<1x128xf32> -> vector<1x128xf32>
    %372 = vector.broadcast %371 : vector<1x128xf32> to vector<128x128xf32>
    %373 = arith.addf %352, %372 : vector<128x128xf32>
    %c5_313 = arith.constant 5 : index
    %c0_314 = arith.constant 0 : index
    %c0_315 = arith.constant 0 : index
    %374 = vector.load %arg7[%c5_313, %c0_314, %c0_315] : memref<6x1x128xf32, #tpu.memory_space<vmem>>, vector<1x1x128xf32>
    %375 = vector.shape_cast %374 : vector<1x1x128xf32> to vector<1x128xf32>
    %376 = vector.broadcast %375 : vector<1x128xf32> to vector<128x128xf32>
    %377 = arith.addf %373, %376 : vector<128x128xf32>
    %cst_316 = arith.constant 0.000000e+00 : f32
    %378 = vector.broadcast %cst_316 : f32 to vector<128x128xf32>
    %379 = arith.maximumf %377, %378 : vector<128x128xf32>
    %c0_317 = arith.constant 0 : index
    %c0_318 = arith.constant 0 : index
    %c0_319 = arith.constant 0 : index
    %380 = vector.load %arg8[%c0_317, %c0_318, %c0_319] : memref<1x128x128xf32, #tpu.memory_space<vmem>>, vector<1x128x128xf32>
    %381 = vector.shape_cast %380 : vector<1x128x128xf32> to vector<128x128xf32>
    %382 = vector.shape_cast %379 : vector<128x128xf32> to vector<1x128x128xf32>
    tpu.vector_store %arg8[%c0_317, %c0_318, %c0_319], %382 {strides = array<i32>} : memref<1x128x128xf32, #tpu.memory_space<vmem>>, vector<1x128x128xf32>,
    return
  }
  func.func @transform_0(%arg0: i32, %arg1: i32) -> (i32, i32, i32, i32) {
    %c0_i32 = arith.constant 0 : i32
    %c0_i32_0 = arith.constant 0 : i32
    %c0_i32_1 = arith.constant 0 : i32
    %c0_i32_2 = arith.constant 0 : i32
    return %arg0, %c0_i32, %c0_i32_0, %c0_i32_1 : i32, i32, i32, i32
  }
  func.func @transform_1(%arg0: i32, %arg1: i32) -> (i32, i32) {
    %c0_i32 = arith.constant 0 : i32
    %c0_i32_0 = arith.constant 0 : i32
    %c0_i32_1 = arith.constant 0 : i32
    return %c0_i32, %c0_i32_0 : i32, i32
  }
  func.func @transform_2(%arg0: i32, %arg1: i32) -> (i32, i32, i32, i32) {
    %c0_i32 = arith.constant 0 : i32
    %c0_i32_0 = arith.constant 0 : i32
    %c0_i32_1 = arith.constant 0 : i32
    %c0_i32_2 = arith.constant 0 : i32
    %c0_i32_3 = arith.constant 0 : i32
    return %c0_i32, %c0_i32_0, %c0_i32_1, %c0_i32_2 : i32, i32, i32, i32
  }
  func.func @transform_3(%arg0: i32, %arg1: i32) -> (i32, i32) {
    %c0_i32 = arith.constant 0 : i32
    %c0_i32_0 = arith.constant 0 : i32
    %c0_i32_1 = arith.constant 0 : i32
    return %c0_i32, %c0_i32_0 : i32, i32
  }
  func.func @transform_4(%arg0: i32, %arg1: i32) -> (i32, i32, i32) {
    %c0_i32 = arith.constant 0 : i32
    %c0_i32_0 = arith.constant 0 : i32
    %c0_i32_1 = arith.constant 0 : i32
    %c0_i32_2 = arith.constant 0 : i32
    return %c0_i32, %c0_i32_0, %c0_i32_1 : i32, i32, i32
  }
  func.func @transform_5(%arg0: i32, %arg1: i32) -> (i32, i32, i32) {
    %c0_i32 = arith.constant 0 : i32
    %c0_i32_0 = arith.constant 0 : i32
    %c0_i32_1 = arith.constant 0 : i32
    %c0_i32_2 = arith.constant 0 : i32
    return %c0_i32, %c0_i32_0, %c0_i32_1 : i32, i32, i32
  }
  func.func @transform_6(%arg0: i32, %arg1: i32) -> (i32, i32, i32) {
    %c0_i32 = arith.constant 0 : i32
    %c0_i32_0 = arith.constant 0 : i32
    return %arg0, %arg1, %c0_i32 : i32, i32, i32
  }
}

</mosaic_0001>

<llo_original>
// kernel: aspp_forward.1
$region0: #{aspp_forward.1}
  #allocation0 [shape = 'u32[]', space=smem, size = 0x4, offset = 0x4, fixed_abs, tag = 'smem constant byte address 0x4 - core index']
  #allocation1 [shape = 'u32[144,128]{1,0:T(1,128)}', space=vmem, size = 0x12000, scoped, tag = 'internal scratch']
  %s0 = inlined_call_operand.vmem [shape: f32[2,22,22,8], index: 0, kind: input, shape index: {}]
  %s1 = inlined_call_operand.vmem [shape: bf16[8,128], index: 1, kind: input, shape index: {}]
  %s2 = inlined_call_operand.vmem [shape: bf16[3,9,8,128], index: 2, kind: input, shape index: {}]
  %s3 = inlined_call_operand.vmem [shape: bf16[8,128], index: 3, kind: input, shape index: {}]
  %s4 = inlined_call_operand.vmem [shape: bf16[5,128,128], index: 4, kind: input, shape index: {}]
  %s5 = inlined_call_operand.vmem [shape: f32[6,1,128], index: 5, kind: input, shape index: {}]
  %s6 = inlined_call_operand.hbm [shape: f32[2,256,128], index: 6, kind: output, shape index: {}]
  %s7 = sld [smem:[#allocation0]]
  $region57: #{aspp_forward.1} parent=0
    _
  %s9 = ssub.s32 1, %s7
  %s10 = scalar_select 0, %s9, %s7
  $region1: #{aspp_forward.1} parent=0
    #allocation2 [shape = 'u8[131072]{0}', space=vmem, size = 0x20000, scoped, tag = 'output window, operand 0']
    #allocation3 [shape = 's32[2]{0}', space=sflag, size = 0x8, scoped, tag = 'scoped memory for aspp_forward.1']
    %11 = vsyncpa [#allocation3], 0
    %s12 = scalar_lea.sflag [#allocation3], 1
    %13 = vsyncpa %s12, 0
    loop: start=0, step=1, limit=6
    $region2: #{aspp_forward.1} parent=1 // loop_pre_header
      _
    $region3: #{aspp_forward.1} parent=1 // loop_header
      %s15 = sphi 0, %s19
      %p16 = scmp.ge.s32.totalorder %s15, 6
      %s22 = sphi 0, %s34
      %s23 = sphi 0, %s30
      %s24 = sphi 0, %s22
      %s25 = sphi 0, %s23
      %s26 = sphi 0, %s24
      %s27 = sphi 0, %s25
      %s37 = sphi 0, %s39
      %s40 = sphi 0, %s37
      %s41 = sphi 0, %s40
      %s57 = sphi 0, %s41
      %s61 = sphi 0, %s61
      %s63 = sphi 0, %s61
      %s64 = sphi 0, %s63
      %s78 = sphi 0, %s64
      %s82 = sphi 0, %s82
      %s84 = sphi 0, %s82
      %s85 = sphi 0, %s84
      %s99 = sphi 0, %s85
      %s103 = sphi 0, %s103
      %s105 = sphi 0, %s103
      %s106 = sphi 0, %s105
      %s120 = sphi 0, %s106
      %s124 = sphi 0, %s124
      %s126 = sphi 0, %s124
      %s127 = sphi 0, %s126
      %s141 = sphi 0, %s127
      %s145 = sphi 0, %s145
      %s147 = sphi 0, %s145
      %s148 = sphi 0, %s147
      %s162 = sphi 0, %s148
      %s170 = sphi 0, %s172
      %s173 = sphi 0, %s170
      %s174 = sphi 0, %s173
      %s190 = sphi 0, %s174
    $region4: #{aspp_forward.1} parent=1 // loop_header_branch
      %18 = sbr.rel (%p16) target = $region8
    $region5: #{aspp_forward.1} parent=1 // loop_body
      %s20 = ssub.s32 %s15, 1
      %s21 = ssub.s32 %s15, 2
      %s28 = sadd.s32 1, %s23
      %p29 = scmp.ge.s32.totalorder %s28, 2
      %s30 = scalar_select %p29, 0, %s28
      %s31 = sadd.s32 1, %s22
      %s32 = scalar_select %p29, %s31, %s22
      %p33 = scmp.ge.s32.totalorder %s32, 2
      %s34 = scalar_select %p33, 0, %s32
      %s35 = ssub.s32 %s22, %s34
      %p36 = scmp.eq.s32.totalorder %s35, 0
      %s38 = sadd.s32 %s37, 1
      %s39 = scalar_select %p36, %s37, %s38
      %p42 = pneg %p36
      %p43 = scmp.eq.s32.totalorder %s15, 3
      %p44 = por %p42, %p43
      %p45 = scmp.ne.s32.totalorder %s37, %s40
      %p46 = scmp.eq.s32.totalorder %s15, 0
      %p47 = por %p45, %p46
      %p48 = scmp.ne.s32.totalorder %s37, %s40
      %p49 = scmp.eq.s32.totalorder %s20, 3
      %p50 = por %p48, %p49
      %p51 = scmp.ne.s32.totalorder %s40, %s41
      %p52 = scmp.eq.s32.totalorder %s20, 0
      %p53 = por %p51, %p52
      %p54 = scmp.ne.s32.totalorder %s40, %s41
      %p55 = scmp.eq.s32.totalorder %s21, 3
      %p56 = por %p54, %p55
      %p58 = scmp.ne.s32.totalorder %s41, %s57
      %p59 = scmp.eq.s32.totalorder %s21, 0
      %p60 = por %p58, %p59
      %s62 = sadd.s32 %s61, 1
      %p65 = scmp.eq.s32.totalorder %s15, 3
      %p66 = scmp.ne.s32.totalorder %s61, %s63
      %p67 = scmp.eq.s32.totalorder %s15, 0
      %p68 = por %p66, %p67
      %p69 = scmp.ne.s32.totalorder %s61, %s63
      %p70 = scmp.eq.s32.totalorder %s20, 3
      %p71 = por %p69, %p70
      %p72 = scmp.ne.s32.totalorder %s63, %s64
      %p73 = scmp.eq.s32.totalorder %s20, 0
      %p74 = por %p72, %p73
      %p75 = scmp.ne.s32.totalorder %s63, %s64
      %p76 = scmp.eq.s32.totalorder %s21, 3
      %p77 = por %p75, %p76
      %p79 = scmp.ne.s32.totalorder %s64, %s78
      %p80 = scmp.eq.s32.totalorder %s21, 0
      %p81 = por %p79, %p80
      %s83 = sadd.s32 %s82, 1
      %p86 = scmp.eq.s32.totalorder %s15, 3
      %p87 = scmp.ne.s32.totalorder %s82, %s84
      %p88 = scmp.eq.s32.totalorder %s15, 0
      %p89 = por %p87, %p88
      %p90 = scmp.ne.s32.totalorder %s82, %s84
      %p91 = scmp.eq.s32.totalorder %s20, 3
      %p92 = por %p90, %p91
      %p93 = scmp.ne.s32.totalorder %s84, %s85
      %p94 = scmp.eq.s32.totalorder %s20, 0
      %p95 = por %p93, %p94
      %p96 = scmp.ne.s32.totalorder %s84, %s85
      %p97 = scmp.eq.s32.totalorder %s21, 3
      %p98 = por %p96, %p97
      %p100 = scmp.ne.s32.totalorder %s85, %s99
      %p101 = scmp.eq.s32.totalorder %s21, 0
      %p102 = por %p100, %p101
      %s104 = sadd.s32 %s103, 1
      %p107 = scmp.eq.s32.totalorder %s15, 3
      %p108 = scmp.ne.s32.totalorder %s103, %s105
      %p109 = scmp.eq.s32.totalorder %s15, 0
      %p110 = por %p108, %p109
      %p111 = scmp.ne.s32.totalorder %s103, %s105
      %p112 = scmp.eq.s32.totalorder %s20, 3
      %p113 = por %p111, %p112
      %p114 = scmp.ne.s32.totalorder %s105, %s106
      %p115 = scmp.eq.s32.totalorder %s20, 0
      %p116 = por %p114, %p115
      %p117 = scmp.ne.s32.totalorder %s105, %s106
      %p118 = scmp.eq.s32.totalorder %s21, 3
      %p119 = por %p117, %p118
      %p121 = scmp.ne.s32.totalorder %s106, %s120
      %p122 = scmp.eq.s32.totalorder %s21, 0
      %p123 = por %p121, %p122
      %s125 = sadd.s32 %s124, 1
      %p128 = scmp.eq.s32.totalorder %s15, 3
      %p129 = scmp.ne.s32.totalorder %s124, %s126
      %p130 = scmp.eq.s32.totalorder %s15, 0
      %p131 = por %p129, %p130
      %p132 = scmp.ne.s32.totalorder %s124, %s126
      %p133 = scmp.eq.s32.totalorder %s20, 3
      %p134 = por %p132, %p133
      %p135 = scmp.ne.s32.totalorder %s126, %s127
      %p136 = scmp.eq.s32.totalorder %s20, 0
      %p137 = por %p135, %p136
      %p138 = scmp.ne.s32.totalorder %s126, %s127
      %p139 = scmp.eq.s32.totalorder %s21, 3
      %p140 = por %p138, %p139
      %p142 = scmp.ne.s32.totalorder %s127, %s141
      %p143 = scmp.eq.s32.totalorder %s21, 0
      %p144 = por %p142, %p143
      %s146 = sadd.s32 %s145, 1
      %p149 = scmp.eq.s32.totalorder %s15, 3
      %p150 = scmp.ne.s32.totalorder %s145, %s147
      %p151 = scmp.eq.s32.totalorder %s15, 0
      %p152 = por %p150, %p151
      %p153 = scmp.ne.s32.totalorder %s145, %s147
      %p154 = scmp.eq.s32.totalorder %s20, 3
      %p155 = por %p153, %p154
      %p156 = scmp.ne.s32.totalorder %s147, %s148
      %p157 = scmp.eq.s32.totalorder %s20, 0
      %p158 = por %p156, %p157
      %p159 = scmp.ne.s32.totalorder %s147, %s148
      %p160 = scmp.eq.s32.totalorder %s21, 3
      %p161 = por %p159, %p160
      %p163 = scmp.ne.s32.totalorder %s148, %s162
      %p164 = scmp.eq.s32.totalorder %s21, 0
      %p165 = por %p163, %p164
      %s166 = ssub.s32 %s22, %s34
      %s167 = ssub.s32 %s23, %s30
      %s168 = sor.u32 %s166, %s167
      %p169 = scmp.eq.s32.totalorder %s168, 0
      %s171 = sadd.s32 %s170, 1
      %s172 = scalar_select %p169, %s170, %s171
      %p175 = pneg %p169
      %p176 = scmp.eq.s32.totalorder %s15, 3
      %p177 = por %p175, %p176
      %p178 = scmp.ne.s32.totalorder %s170, %s173
      %p179 = scmp.eq.s32.totalorder %s15, 0
      %p180 = por %p178, %p179
      %p181 = scmp.ne.s32.totalorder %s170, %s173
      %p182 = scmp.eq.s32.totalorder %s20, 3
      %p183 = por %p181, %p182
      %p184 = scmp.ne.s32.totalorder %s173, %s174
      %p185 = scmp.eq.s32.totalorder %s20, 0
      %p186 = por %p184, %p185
      %p187 = scmp.ne.s32.totalorder %s173, %s174
      %p188 = scmp.eq.s32.totalorder %s21, 3
      %p189 = por %p187, %p188
      %p191 = scmp.ne.s32.totalorder %s174, %s190
      %p192 = scmp.eq.s32.totalorder %s21, 0
      %p193 = por %p191, %p192
      %p194 = scmp.le.s32.totalorder 1, %s15
      %p195 = scmp.lt.s32.totalorder %s15, 5
      %p196 = pnand %p194, %p195
      %p197 = pneg %p196
      // Predicated region
      $region9: #{aspp_forward.1} parent=5 // pred_check
        _
      $region10: #{aspp_forward.1} parent=5 // pred_check_branch
        %199 = sbr.rel (%p196) target = $region12
      $region11: #{aspp_forward.1} parent=5 // pred_region
        %s200 = ssub.s32 %s15, 1
        // Predicated region
        $region13: #{aspp_forward.1} parent=11 // pred_check
          %p201 = pneg %p74
        $region14: #{aspp_forward.1} parent=11 // pred_check_branch
          %203 = sbr.rel (%p201) target = $region16
        $region15: #{aspp_forward.1} parent=11 // pred_region
          _
        $region16: #{aspp_forward.1} parent=11 // pred_fallthru
          _
        // Predicated region
        $region17: #{aspp_forward.1} parent=11 // pred_check
          %p204 = pneg %p95
        $region18: #{aspp_forward.1} parent=11 // pred_check_branch
          %206 = sbr.rel (%p204) target = $region20
        $region19: #{aspp_forward.1} parent=11 // pred_region
          _
        $region20: #{aspp_forward.1} parent=11 // pred_fallthru
          _
        // Predicated region
        $region21: #{aspp_forward.1} parent=11 // pred_check
          %p207 = pneg %p116
        $region22: #{aspp_forward.1} parent=11 // pred_check_branch
          %209 = sbr.rel (%p207) target = $region24
        $region23: #{aspp_forward.1} parent=11 // pred_region
          _
        $region24: #{aspp_forward.1} parent=11 // pred_fallthru
          _
        // Predicated region
        $region25: #{aspp_forward.1} parent=11 // pred_check
          %p210 = pneg %p137
        $region26: #{aspp_forward.1} parent=11 // pred_check_branch
          %212 = sbr.rel (%p210) target = $region28
        $region27: #{aspp_forward.1} parent=11 // pred_region
          _
        $region28: #{aspp_forward.1} parent=11 // pred_fallthru
          _
        // Predicated region
        $region29: #{aspp_forward.1} parent=11 // pred_check
          %p213 = pneg %p158
        $region30: #{aspp_forward.1} parent=11 // pred_check_branch
          %215 = sbr.rel (%p213) target = $region32
        $region31: #{aspp_forward.1} parent=11 // pred_region
          _
        $region32: #{aspp_forward.1} parent=11 // pred_fallthru
          _
      $region12: #{aspp_forward.1} parent=5 // pred_fallthru
        _
      %p216 = scmp.lt.s32.totalorder %s15, 4
      // Predicated region
      $region33: #{aspp_forward.1} parent=5 // pred_check
        %p217 = pneg %p216
      $region34: #{aspp_forward.1} parent=5 // pred_check_branch
        %219 = sbr.rel (%p217) target = $region36
      $region35: #{aspp_forward.1} parent=5 // pred_region
        // Predicated region
        $region37: #{aspp_forward.1} parent=35 // pred_check
          %p220 = pneg %p47
        $region38: #{aspp_forward.1} parent=35 // pred_check_branch
          %222 = sbr.rel (%p220) target = $region40
        $region39: #{aspp_forward.1} parent=35 // pred_region
          %p223 = scmp.lt.s32.totalorder %s22, 1
          %s224 = scalar_select %p223, %s22, 1
          %s225 = smul.addr %s224, 66
          %s226 = smul.addr %s225, 8
          %s227 = scalar_lea.vmem %s0, %s226
        $region40: #{aspp_forward.1} parent=35 // pred_fallthru
          _
      $region36: #{aspp_forward.1} parent=5 // pred_fallthru
        _
      %p228 = scmp.le.s32.totalorder 1, %s15
      %p229 = scmp.lt.s32.totalorder %s15, 5
      %p230 = pnand %p228, %p229
      %p231 = pneg %p230
      // Predicated region
      $region41: #{aspp_forward.1} parent=5 // pred_check
        _
      $region42: #{aspp_forward.1} parent=5 // pred_check_branch
        %233 = sbr.rel (%p230) target = $region44
      $region43: #{aspp_forward.1} parent=5 // pred_region
        %s234 = ssub.s32 %s15, 1
        %p235 = scmp.lt.s32.totalorder %s24, 1
        %s236 = scalar_select %p235, %s24, 1
        %s237 = smul.addr %s236, 66
        %s238 = smul.addr %s237, 8
        %s239 = scalar_lea.vmem %s0, %s238
        %p240 = pneg %p53
        %p241 = pneg %p50
        %p242 = pneg %p74
        %p243 = pneg %p71
        %p244 = pneg %p95
        %p245 = pneg %p92
        %p246 = pneg %p116
        %p247 = pneg %p113
        %p248 = pneg %p137
        %p249 = pneg %p134
        %p250 = pneg %p158
        %p251 = pneg %p155
        %p252 = pneg %p186
        %p253 = pneg %p183
        %s254 = sand.u32 %s173, 1
        %s255 = scalar_lea.sflag [#allocation3], %s254
        %s256 = sand.u32 %s173, 1
        %s257 = smul.addr %s256, 128
        %s258 = scalar_lea.vmem [#allocation2], %s257
        %p259 = scmp.lt.s32.totalorder %s24, 1
        %s260 = scalar_select %p259, %s24, 1
        %s261 = smul.addr %s260, 66
        %s262 = smul.addr %s261, 8
        %s263 = scalar_lea.vmem %s0, %s262
        %s264 = smul.u32 16, %s25
        %s266 = smul.u32 %s25, 8
        %s267 = sadd.s32 %s266, 3
        %s268 = smul.u32 %s267, 24
        %s269 = scalar_lea.vmem %s263, %s268
        %v270 = vld [vmem:[%s269 + $0x3] sm:$0xff]
        %v271 = vld [vmem:[%s269 + $0xb] sm:$0xff]
        %v272 = vld [vmem:[%s269 + $0x1b] sm:$0xff]
        %v273 = vld [vmem:[%s269 + $0x23] sm:$0xff]
        %v274 = vld [vmem:[%s269 + $0x33] sm:$0xff]
        %v275 = vld [vmem:[%s269 + $0x3b] sm:$0xff]
        %v276 = vld [vmem:[%s269 + $0x4b] sm:$0xff]
        %v277 = vld [vmem:[%s269 + $0x53] sm:$0xff]
        %v278 = vld [vmem:[%s269 + $0x63] sm:$0xff]
        %v279 = vld [vmem:[%s269 + $0x6b] sm:$0xff]
        %v280 = vld [vmem:[%s269 + $0x7b] sm:$0xff]
        %v281 = vld [vmem:[%s269 + $0x83] sm:$0xff]
        %v282 = vld [vmem:[%s269 + $0x93] sm:$0xff]
        %v283 = vld [vmem:[%s269 + $0x9b] sm:$0xff]
        %v284 = vld [vmem:[%s269 + $0xab] sm:$0xff]
        %v285 = vld [vmem:[%s269 + $0xb3] sm:$0xff]
        %v286 = vpack.c.bf16 %v271, %v270
        %v287 = vpack.c.bf16 %v273, %v272
        %v288 = vpack.c.bf16 %v275, %v274
        %v289 = vpack.c.bf16 %v277, %v276
        %v290 = vpack.c.bf16 %v279, %v278
        %v291 = vpack.c.bf16 %v281, %v280
        %v292 = vpack.c.bf16 %v283, %v282
        %v293 = vpack.c.bf16 %v285, %v284
        %v294 = vld [vmem:[%s1] sm:$0xf]
        %v295 = vld [vmem:[%s5] sm:$0x1]
        %v297 = vlaneseq
        %v298 = vshrl.u32 %v297, 7
        %v299 = vsub.s32 0, %v298
        %v300 = vrot.slane %v295, %v299
        %vm302 = vcmask 64512
        %v304 = vsel %vm302, %v286, 0
        %v307 = vsel %vm302, %v287, 0
        %v310 = vsel %vm302, %v288, 0
        %v313 = vsel %vm302, %v289, 0
        %v316 = vsel %vm302, %v290, 0
        %v319 = vsel %vm302, %v291, 0
        %v322 = vsel %vm302, %v292, 0
        %v325 = vsel %vm302, %v293, 0
        %vm327 = vcmask 1043456
        %v329 = vsel %vm327, %v294, 0
        %331 = vmatprep.subr.bf16.mxu0 0
        %332 = vmatpush1.bf16.msra.mxu0 %v329
        %333 = vmatprep.subr.bf16.mxu0 0
        %334 = vmatpush1.bf16.msra.mxu0 0
        %335 = vmatprep.subr.bf16.mxu0 0
        %336 = vmatpush1.bf16.msra.mxu0 0
        %337 = vmatprep.subr.bf16.mxu0 0
        %338 = vmatpush1.bf16.msra.mxu0 0
        %339 = vmatprep.subr.bf16.mxu0 0
        %340 = vmatpush1.bf16.msra.mxu0 0
        %341 = vmatprep.subr.bf16.mxu0 0
        %342 = vmatpush1.bf16.msra.mxu0 0
        %343 = vmatprep.subr.bf16.mxu0 0
        %344 = vmatpush1.bf16.msra.mxu0 0
        %345 = vmatprep.subr.bf16.mxu0 0
        %346 = vmatpush1.bf16.msra.mxu0 0
        %347 = vmatprep.subr.bf16.mxu0 0
        %348 = vmatpush1.bf16.msra.mxu0 0
        %349 = vmatprep.subr.bf16.mxu0 0
        %350 = vmatpush1.bf16.msra.mxu0 0
        %351 = vmatprep.subr.bf16.mxu0 0
        %352 = vmatpush1.bf16.msra.mxu0 0
        %353 = vmatprep.subr.bf16.mxu0 0
        %354 = vmatpush1.bf16.msra.mxu0 0
        %355 = vmatprep.subr.bf16.mxu0 0
        %356 = vmatpush1.bf16.msra.mxu0 0
        %357 = vmatprep.subr.bf16.mxu0 0
        %358 = vmatpush1.bf16.msra.mxu0 0
        %359 = vmatprep.subr.bf16.mxu0 0
        %360 = vmatpush1.bf16.msra.mxu0 0
        %361 = vmatprep.subr.bf16.mxu0 0
        %362 = vmatpush1.bf16.msra.mxu0 0
        %363 = vmatprep.mubr.bf16.mxu0 0
        %364 = vmatmul.mubr.bf16.gmra.mrb[0].mxu0 %v304
        %v365 = vpop.f32.mrb[0].mxu0
        %v366 = vadd.f32 %v300, %v365
        %v367 = vpop.f32.mrb[0].mxu0
        %v368 = vpop.f32.mrb[0].mxu0
        %v369 = vadd.f32 %v300, %v368
        %v370 = vpop.f32.mrb[0].mxu0
        %371 = vmatprep.mubr.bf16.mxu0 0
        %372 = vmatmul.mubr.bf16.gmra.mrb[0].mxu0 %v307
        %v373 = vpop.f32.mrb[0].mxu0
        %v374 = vadd.f32 %v300, %v373
        %v375 = vpop.f32.mrb[0].mxu0
        %v376 = vpop.f32.mrb[0].mxu0
        %v377 = vadd.f32 %v300, %v376
        %v378 = vpop.f32.mrb[0].mxu0
        %379 = vmatprep.mubr.bf16.mxu0 0
        %380 = vmatmul.mubr.bf16.gmra.mrb[0].mxu0 %v310
        %v381 = vpop.f32.mrb[0].mxu0
        %v382 = vadd.f32 %v300, %v381
        %v383 = vpop.f32.mrb[0].mxu0
        %v384 = vpop.f32.mrb[0].mxu0
        %v385 = vadd.f32 %v300, %v384
        %v386 = vpop.f32.mrb[0].mxu0
        %387 = vmatprep.mubr.bf16.mxu0 0
        %388 = vmatmul.mubr.bf16.gmra.mrb[0].mxu0 %v313
        %v389 = vpop.f32.mrb[0].mxu0
        %v390 = vadd.f32 %v300, %v389
        %v391 = vpop.f32.mrb[0].mxu0
        %v392 = vpop.f32.mrb[0].mxu0
        %v393 = vadd.f32 %v300, %v392
        %v394 = vpop.f32.mrb[0].mxu0
        %395 = vmatprep.mubr.bf16.mxu0 0
        %396 = vmatmul.mubr.bf16.gmra.mrb[0].mxu0 %v316
        %v397 = vpop.f32.mrb[0].mxu0
        %v398 = vadd.f32 %v300, %v397
        %v399 = vpop.f32.mrb[0].mxu0
        %v400 = vpop.f32.mrb[0].mxu0
        %v401 = vadd.f32 %v300, %v400
        %v402 = vpop.f32.mrb[0].mxu0
        %403 = vmatprep.mubr.bf16.mxu0 0
        %404 = vmatmul.mubr.bf16.gmra.mrb[0].mxu0 %v319
        %v405 = vpop.f32.mrb[0].mxu0
        %v406 = vadd.f32 %v300, %v405
        %v407 = vpop.f32.mrb[0].mxu0
        %v408 = vpop.f32.mrb[0].mxu0
        %v409 = vadd.f32 %v300, %v408
        %v410 = vpop.f32.mrb[0].mxu0
        %411 = vmatprep.mubr.bf16.mxu0 0
        %412 = vmatmul.mubr.bf16.gmra.mrb[0].mxu0 %v322
        %v413 = vpop.f32.mrb[0].mxu0
        %v414 = vadd.f32 %v300, %v413
        %v415 = vpop.f32.mrb[0].mxu0
        %v416 = vpop.f32.mrb[0].mxu0
        %v417 = vadd.f32 %v300, %v416
        %v418 = vpop.f32.mrb[0].mxu0
        %419 = vmatprep.mubr.bf16.mxu0 0
        %420 = vmatmul.mubr.bf16.gmra.mrb[0].mxu0 %v325
        %v421 = vpop.f32.mrb[0].mxu0
        %v422 = vadd.f32 %v300, %v421
        %v423 = vpop.f32.mrb[0].mxu0
        %v424 = vpop.f32.mrb[0].mxu0
        %v425 = vadd.f32 %v300, %v424
        %v426 = vpop.f32.mrb[0].mxu0
        %427 = vdwg.mxu0
        %v428 = vmax.f32 %v366, 0.0
        %v429 = vmax.f32 %v369, 0.0
        %v430 = vmax.f32 %v374, 0.0
        %v431 = vmax.f32 %v377, 0.0
        %v432 = vmax.f32 %v382, 0.0
        %v433 = vmax.f32 %v385, 0.0
        %v434 = vmax.f32 %v390, 0.0
        %v435 = vmax.f32 %v393, 0.0
        %v436 = vmax.f32 %v398, 0.0
        %v437 = vmax.f32 %v401, 0.0
        %v438 = vmax.f32 %v406, 0.0
        %v439 = vmax.f32 %v409, 0.0
        %v440 = vmax.f32 %v414, 0.0
        %v441 = vmax.f32 %v417, 0.0
        %v442 = vmax.f32 %v422, 0.0
        %v443 = vmax.f32 %v425, 0.0
        %v444 = vpack.c.bf16 %v429, %v428
        %v445 = vpack.c.bf16 %v431, %v430
        %v446 = vpack.c.bf16 %v433, %v432
        %v447 = vpack.c.bf16 %v435, %v434
        %v448 = vpack.c.bf16 %v437, %v436
        %v449 = vpack.c.bf16 %v439, %v438
        %v450 = vpack.c.bf16 %v441, %v440
        %v451 = vpack.c.bf16 %v443, %v442
        %v452 = vld [vmem:[%s4] sm:$0xf]
        %v453 = vld [vmem:[%s4 + $0x4] sm:$0xf]
        %v454 = vld [vmem:[%s4 + $0x8] sm:$0xf]
        %v455 = vld [vmem:[%s4 + $0xc] sm:$0xf]
        %v456 = vld [vmem:[%s4 + $0x10] sm:$0xf]
        %v457 = vld [vmem:[%s4 + $0x14] sm:$0xf]
        %v458 = vld [vmem:[%s4 + $0x18] sm:$0xf]
        %v459 = vld [vmem:[%s4 + $0x1c] sm:$0xf]
        %v460 = vld [vmem:[%s4 + $0x20] sm:$0xf]
        %v461 = vld [vmem:[%s4 + $0x24] sm:$0xf]
        %v462 = vld [vmem:[%s4 + $0x28] sm:$0xf]
        %v463 = vld [vmem:[%s4 + $0x2c] sm:$0xf]
        %v464 = vld [vmem:[%s4 + $0x30] sm:$0xf]
        %v465 = vld [vmem:[%s4 + $0x34] sm:$0xf]
        %v466 = vld [vmem:[%s4 + $0x38] sm:$0xf]
        %v467 = vld [vmem:[%s4 + $0x3c] sm:$0xf]
        %s468 = sadd.s32 %s266, 2
        %s469 = smul.u32 %s468, 24
        %s470 = scalar_lea.vmem %s263, %s469
        %v471 = vld [vmem:[%s470 + $0x2] sm:$0xff]
        %v472 = vld [vmem:[%s470 + $0xa] sm:$0xff]
        %v473 = vld [vmem:[%s470 + $0x1a] sm:$0xff]
        %v474 = vld [vmem:[%s470 + $0x22] sm:$0xff]
        %v475 = vld [vmem:[%s470 + $0x32] sm:$0xff]
        %v476 = vld [vmem:[%s470 + $0x3a] sm:$0xff]
        %v477 = vld [vmem:[%s470 + $0x4a] sm:$0xff]
        %v478 = vld [vmem:[%s470 + $0x52] sm:$0xff]
        %v479 = vld [vmem:[%s470 + $0x62] sm:$0xff]
        %v480 = vld [vmem:[%s470 + $0x6a] sm:$0xff]
        %v481 = vld [vmem:[%s470 + $0x7a] sm:$0xff]
        %v482 = vld [vmem:[%s470 + $0x82] sm:$0xff]
        %v483 = vld [vmem:[%s470 + $0x92] sm:$0xff]
        %v484 = vld [vmem:[%s470 + $0x9a] sm:$0xff]
        %v485 = vld [vmem:[%s470 + $0xaa] sm:$0xff]
        %v486 = vld [vmem:[%s470 + $0xb2] sm:$0xff]
        %v487 = vpack.c.bf16 %v472, %v471
        %v488 = vpack.c.bf16 %v474, %v473
        %v489 = vpack.c.bf16 %v476, %v475
        %v490 = vpack.c.bf16 %v478, %v477
        %v491 = vpack.c.bf16 %v480, %v479
        %v492 = vpack.c.bf16 %v482, %v481
        %v493 = vpack.c.bf16 %v484, %v483
        %v494 = vpack.c.bf16 %v486, %v485
        %v495 = vld [vmem:[%s2] sm:$0xf]
        %v496 = vld [vmem:[%s470 + $0x3] sm:$0xff]
        %v497 = vld [vmem:[%s470 + $0xb] sm:$0xff]
        %v498 = vld [vmem:[%s470 + $0x1b] sm:$0xff]
        %v499 = vld [vmem:[%s470 + $0x23] sm:$0xff]
        %v500 = vld [vmem:[%s470 + $0x33] sm:$0xff]
        %v501 = vld [vmem:[%s470 + $0x3b] sm:$0xff]
        %v502 = vld [vmem:[%s470 + $0x4b] sm:$0xff]
        %v503 = vld [vmem:[%s470 + $0x53] sm:$0xff]
        %v504 = vld [vmem:[%s470 + $0x63] sm:$0xff]
        %v505 = vld [vmem:[%s470 + $0x6b] sm:$0xff]
        %v506 = vld [vmem:[%s470 + $0x7b] sm:$0xff]
        %v507 = vld [vmem:[%s470 + $0x83] sm:$0xff]
        %v508 = vld [vmem:[%s470 + $0x93] sm:$0xff]
        %v509 = vld [vmem:[%s470 + $0x9b] sm:$0xff]
        %v510 = vld [vmem:[%s470 + $0xab] sm:$0xff]
        %v511 = vld [vmem:[%s470 + $0xb3] sm:$0xff]
        %v512 = vpack.c.bf16 %v497, %v496
        %v513 = vpack.c.bf16 %v499, %v498
        %v514 = vpack.c.bf16 %v501, %v500
        %v515 = vpack.c.bf16 %v503, %v502
        %v516 = vpack.c.bf16 %v505, %v504
        %v517 = vpack.c.bf16 %v507, %v506
        %v518 = vpack.c.bf16 %v509, %v508
        %v519 = vpack.c.bf16 %v511, %v510
        %s520 = scalar_lea.vmem %s2, 4
        %v521 = vld [vmem:[%s520] sm:$0xf]
        %v523 = vsel %vm302, %v512, 0
        %v526 = vsel %vm302, %v513, 0
        %v529 = vsel %vm302, %v514, 0
        %v532 = vsel %vm302, %v515, 0
        %v535 = vsel %vm302, %v516, 0
        %v538 = vsel %vm302, %v517, 0
        %v541 = vsel %vm302, %v518, 0
        %v544 = vsel %vm302, %v519, 0
        %v547 = vsel %vm327, %v521, 0
        %549 = vmatprep.subr.bf16.mxu0 0
        %550 = vmatpush1.bf16.msra.mxu0 %v547
        %551 = vmatprep.subr.bf16.mxu0 0
        %552 = vmatpush1.bf16.msra.mxu0 0
        %553 = vmatprep.subr.bf16.mxu0 0
        %554 = vmatpush1.bf16.msra.mxu0 0
        %555 = vmatprep.subr.bf16.mxu0 0
        %556 = vmatpush1.bf16.msra.mxu0 0
        %557 = vmatprep.subr.bf16.mxu0 0
        %558 = vmatpush1.bf16.msra.mxu0 0
        %559 = vmatprep.subr.bf16.mxu0 0
        %560 = vmatpush1.bf16.msra.mxu0 0
        %561 = vmatprep.subr.bf16.mxu0 0
        %562 = vmatpush1.bf16.msra.mxu0 0
        %563 = vmatprep.subr.bf16.mxu0 0
        %564 = vmatpush1.bf16.msra.mxu0 0
        %565 = vmatprep.subr.bf16.mxu0 0
        %566 = vmatpush1.bf16.msra.mxu0 0
        %567 = vmatprep.subr.bf16.mxu0 0
        %568 = vmatpush1.bf16.msra.mxu0 0
        %569 = vmatprep.subr.bf16.mxu0 0
        %570 = vmatpush1.bf16.msra.mxu0 0
        %571 = vmatprep.subr.bf16.mxu0 0
        %572 = vmatpush1.bf16.msra.mxu0 0
        %573 = vmatprep.subr.bf16.mxu0 0
        %574 = vmatpush1.bf16.msra.mxu0 0
        %575 = vmatprep.subr.bf16.mxu0 0
        %576 = vmatpush1.bf16.msra.mxu0 0
        %577 = vmatprep.subr.bf16.mxu0 0
        %578 = vmatpush1.bf16.msra.mxu0 0
        %579 = vmatprep.subr.bf16.mxu0 0
        %580 = vmatpush1.bf16.msra.mxu0 0
        %581 = vmatprep.mubr.bf16.mxu0 0
        %582 = vmatmul.mubr.bf16.gmra.mrb[0].mxu0 %v523
        %v583 = vpop.f32.mrb[0].mxu0
        %v584 = vadd.f32 0.0, %v583
        %v585 = vpop.f32.mrb[0].mxu0
        %v586 = vpop.f32.mrb[0].mxu0
        %v587 = vadd.f32 0.0, %v586
        %v588 = vpop.f32.mrb[0].mxu0
        %589 = vmatprep.mubr.bf16.mxu0 0
        %590 = vmatmul.mubr.bf16.gmra.mrb[0].mxu0 %v526
        %v591 = vpop.f32.mrb[0].mxu0
        %v592 = vadd.f32 0.0, %v591
        %v593 = vpop.f32.mrb[0].mxu0
        %v594 = vpop.f32.mrb[0].mxu0
        %v595 = vadd.f32 0.0, %v594
        %v596 = vpop.f32.mrb[0].mxu0
        %597 = vmatprep.mubr.bf16.mxu0 0
        %598 = vmatmul.mubr.bf16.gmra.mrb[0].mxu0 %v529
        %v599 = vpop.f32.mrb[0].mxu0
        %v600 = vadd.f32 0.0, %v599
        %v601 = vpop.f32.mrb[0].mxu0
        %v602 = vpop.f32.mrb[0].mxu0
        %v603 = vadd.f32 0.0, %v602
        %v604 = vpop.f32.mrb[0].mxu0
        %605 = vmatprep.mubr.bf16.mxu0 0
        %606 = vmatmul.mubr.bf16.gmra.mrb[0].mxu0 %v532
        %v607 = vpop.f32.mrb[0].mxu0
        %v608 = vadd.f32 0.0, %v607
        %v609 = vpop.f32.mrb[0].mxu0
        %v610 = vpop.f32.mrb[0].mxu0
        %v611 = vadd.f32 0.0, %v610
        %v612 = vpop.f32.mrb[0].mxu0
        %613 = vmatprep.mubr.bf16.mxu0 0
        %614 = vmatmul.mubr.bf16.gmra.mrb[0].mxu0 %v535
        %v615 = vpop.f32.mrb[0].mxu0
        %v616 = vadd.f32 0.0, %v615
        %v617 = vpop.f32.mrb[0].mxu0
        %v618 = vpop.f32.mrb[0].mxu0
        %v619 = vadd.f32 0.0, %v618
        %v620 = vpop.f32.mrb[0].mxu0
        %621 = vmatprep.mubr.bf16.mxu0 0
        %622 = vmatmul.mubr.bf16.gmra.mrb[0].mxu0 %v538
        %v623 = vpop.f32.mrb[0].mxu0
        %v624 = vadd.f32 0.0, %v623
        %v625 = vpop.f32.mrb[0].mxu0
        %v626 = vpop.f32.mrb[0].mxu0
        %v627 = vadd.f32 0.0, %v626
        %v628 = vpop.f32.mrb[0].mxu0
        %629 = vmatprep.mubr.bf16.mxu0 0
        %630 = vmatmul.mubr.bf16.gmra.mrb[0].mxu0 %v541
        %v631 = vpop.f32.mrb[0].mxu0
        %v632 = vadd.f32 0.0, %v631
        %v633 = vpop.f32.mrb[0].mxu0
        %v634 = vpop.f32.mrb[0].mxu0
        %v635 = vadd.f32 0.0, %v634
        %v636 = vpop.f32.mrb[0].mxu0
        %637 = vmatprep.mubr.bf16.mxu0 0
        %638 = vmatmul.mubr.bf16.gmra.mrb[0].mxu0 %v544
        %v639 = vpop.f32.mrb[0].mxu0
        %v640 = vadd.f32 0.0, %v639
        %v641 = vpop.f32.mrb[0].mxu0
        %v642 = vpop.f32.mrb[0].mxu0
        %v643 = vadd.f32 0.0, %v642
        %v644 = vpop.f32.mrb[0].mxu0
        %645 = vdwg.mxu0
        %v647 = vsel %vm302, %v487, 0
        %v650 = vsel %vm302, %v488, 0
        %v653 = vsel %vm302, %v489, 0
        %v656 = vsel %vm302, %v490, 0
        %v659 = vsel %vm302, %v491, 0
        %v662 = vsel %vm302, %v492, 0
        %v665 = vsel %vm302, %v493, 0
        %v668 = vsel %vm302, %v494, 0
        %v671 = vsel %vm327, %v495, 0
        %673 = vmatprep.subr.bf16.mxu0 0
        %674 = vmatpush1.bf16.msra.mxu0 %v671
        %675 = vmatprep.subr.bf16.mxu0 0
        %676 = vmatpush1.bf16.msra.mxu0 0
        %677 = vmatprep.subr.bf16.mxu0 0
        %678 = vmatpush1.bf16.msra.mxu0 0
        %679 = vmatprep.subr.bf16.mxu0 0
        %680 = vmatpush1.bf16.msra.mxu0 0
        %681 = vmatprep.subr.bf16.mxu0 0
        %682 = vmatpush1.bf16.msra.mxu0 0
        %683 = vmatprep.subr.bf16.mxu0 0
        %684 = vmatpush1.bf16.msra.mxu0 0
        %685 = vmatprep.subr.bf16.mxu0 0
        %686 = vmatpush1.bf16.msra.mxu0 0
        %687 = vmatprep.subr.bf16.mxu0 0
        %688 = vmatpush1.bf16.msra.mxu0 0
        %689 = vmatprep.subr.bf16.mxu0 0
        %690 = vmatpush1.bf16.msra.mxu0 0
        %691 = vmatprep.subr.bf16.mxu0 0
        %692 = vmatpush1.bf16.msra.mxu0 0
        %693 = vmatprep.subr.bf16.mxu0 0
        %694 = vmatpush1.bf16.msra.mxu0 0
        %695 = vmatprep.subr.bf16.mxu0 0
        %696 = vmatpush1.bf16.msra.mxu0 0
        %697 = vmatprep.subr.bf16.mxu0 0
        %698 = vmatpush1.bf16.msra.mxu0 0
        %699 = vmatprep.subr.bf16.mxu0 0
        %700 = vmatpush1.bf16.msra.mxu0 0
        %701 = vmatprep.subr.bf16.mxu0 0
        %702 = vmatpush1.bf16.msra.mxu0 0
        %703 = vmatprep.subr.bf16.mxu0 0
        %704 = vmatpush1.bf16.msra.mxu0 0
        %705 = vmatprep.mubr.bf16.mxu0 0
        %706 = vmatmul.mubr.bf16.gmra.mrb[0].mxu0 %v647
        %v707 = vpop.f32.mrb[0].mxu0
        %v708 = vadd.f32 %v584, %v707
        %v709 = vpop.f32.mrb[0].mxu0
        %v710 = vpop.f32.mrb[0].mxu0
        %v711 = vadd.f32 %v587, %v710
        %v712 = vpop.f32.mrb[0].mxu0
        %713 = vmatprep.mubr.bf16.mxu0 0
        %714 = vmatmul.mubr.bf16.gmra.mrb[0].mxu0 %v650
        %v715 = vpop.f32.mrb[0].mxu0
        %v716 = vadd.f32 %v592, %v715
        %v717 = vpop.f32.mrb[0].mxu0
        %v718 = vpop.f32.mrb[0].mxu0
        %v719 = vadd.f32 %v595, %v718
        %v720 = vpop.f32.mrb[0].mxu0
        %721 = vmatprep.mubr.bf16.mxu0 0
        %722 = vmatmul.mubr.bf16.gmra.mrb[0].mxu0 %v653
        %v723 = vpop.f32.mrb[0].mxu0
        %v724 = vadd.f32 %v600, %v723
        %v725 = vpop.f32.mrb[0].mxu0
        %v726 = vpop.f32.mrb[0].mxu0
        %v727 = vadd.f32 %v603, %v726
        %v728 = vpop.f32.mrb[0].mxu0
        %729 = vmatprep.mubr.bf16.mxu0 0
        %730 = vmatmul.mubr.bf16.gmra.mrb[0].mxu0 %v656
        %v731 = vpop.f32.mrb[0].mxu0
        %v732 = vadd.f32 %v608, %v731
        %v733 = vpop.f32.mrb[0].mxu0
        %v734 = vpop.f32.mrb[0].mxu0
        %v735 = vadd.f32 %v611, %v734
        %v736 = vpop.f32.mrb[0].mxu0
        %737 = vmatprep.mubr.bf16.mxu0 0
        %738 = vmatmul.mubr.bf16.gmra.mrb[0].mxu0 %v659
        %v739 = vpop.f32.mrb[0].mxu0
        %v740 = vadd.f32 %v616, %v739
        %v741 = vpop.f32.mrb[0].mxu0
        %v742 = vpop.f32.mrb[0].mxu0
        %v743 = vadd.f32 %v619, %v742
        %v744 = vpop.f32.mrb[0].mxu0
        %745 = vmatprep.mubr.bf16.mxu0 0
        %746 = vmatmul.mubr.bf16.gmra.mrb[0].mxu0 %v662
        %v747 = vpop.f32.mrb[0].mxu0
        %v748 = vadd.f32 %v624, %v747
        %v749 = vpop.f32.mrb[0].mxu0
        %v750 = vpop.f32.mrb[0].mxu0
        %v751 = vadd.f32 %v627, %v750
        %v752 = vpop.f32.mrb[0].mxu0
        %753 = vmatprep.mubr.bf16.mxu0 0
        %754 = vmatmul.mubr.bf16.gmra.mrb[0].mxu0 %v665
        %v755 = vpop.f32.mrb[0].mxu0
        %v756 = vadd.f32 %v632, %v755
        %v757 = vpop.f32.mrb[0].mxu0
        %v758 = vpop.f32.mrb[0].mxu0
        %v759 = vadd.f32 %v635, %v758
        %v760 = vpop.f32.mrb[0].mxu0
        %761 = vmatprep.mubr.bf16.mxu0 0
        %762 = vmatmul.mubr.bf16.gmra.mrb[0].mxu0 %v668
        %v763 = vpop.f32.mrb[0].mxu0
        %v764 = vadd.f32 %v640, %v763
        %v765 = vpop.f32.mrb[0].mxu0
        %v766 = vpop.f32.mrb[0].mxu0
        %v767 = vadd.f32 %v643, %v766
        %v768 = vpop.f32.mrb[0].mxu0
        %769 = vdwg.mxu0
        %v770 = vld [vmem:[%s470 + $0x4] sm:$0xff]
        %v771 = vld [vmem:[%s470 + $0xc] sm:$0xff]
        %v772 = vld [vmem:[%s470 + $0x1c] sm:$0xff]
        %v773 = vld [vmem:[%s470 + $0x24] sm:$0xff]
        %v774 = vld [vmem:[%s470 + $0x34] sm:$0xff]
        %v775 = vld [vmem:[%s470 + $0x3c] sm:$0xff]
        %v776 = vld [vmem:[%s470 + $0x4c] sm:$0xff]
        %v777 = vld [vmem:[%s470 + $0x54] sm:$0xff]
        %v778 = vld [vmem:[%s470 + $0x64] sm:$0xff]
        %v779 = vld [vmem:[%s470 + $0x6c] sm:$0xff]
        %v780 = vld [vmem:[%s470 + $0x7c] sm:$0xff]
        %v781 = vld [vmem:[%s470 + $0x84] sm:$0xff]
        %v782 = vld [vmem:[%s470 + $0x94] sm:$0xff]
        %v783 = vld [vmem:[%s470 + $0x9c] sm:$0xff]
        %v784 = vld [vmem:[%s470 + $0xac] sm:$0xff]
        %v785 = vld [vmem:[%s470 + $0xb4] sm:$0xff]
        %v786 = vpack.c.bf16 %v771, %v770
        %v787 = vpack.c.bf16 %v773, %v772
        %v788 = vpack.c.bf16 %v775, %v774
        %v789 = vpack.c.bf16 %v777, %v776
        %v790 = vpack.c.bf16 %v779, %v778
        %v791 = vpack.c.bf16 %v781, %v780
        %v792 = vpack.c.bf16 %v783, %v782
        %v793 = vpack.c.bf16 %v785, %v784
        %s794 = scalar_lea.vmem %s2, 8
        %v795 = vld [vmem:[%s794] sm:$0xf]
        %v797 = vsel %vm302, %v786, 0
        %v800 = vsel %vm302, %v787, 0
        %v803 = vsel %vm302, %v788, 0
        %v806 = vsel %vm302, %v789, 0
        %v809 = vsel %vm302, %v790, 0
        %v812 = vsel %vm302, %v791, 0
        %v815 = vsel %vm302, %v792, 0
        %v818 = vsel %vm302, %v793, 0
        %v821 = vsel %vm327, %v795, 0
        %823 = vmatprep.subr.bf16.mxu0 0
        %824 = vmatpush1.bf16.msra.mxu0 %v821
        %825 = vmatprep.subr.bf16.mxu0 0
        %826 = vmatpush1.bf16.msra.mxu0 0
        %827 = vmatprep.subr.bf16.mxu0 0
        %828 = vmatpush1.bf16.msra.mxu0 0
        %829 = vmatprep.subr.bf16.mxu0 0
        %830 = vmatpush1.bf16.msra.mxu0 0
        %831 = vmatprep.subr.bf16.mxu0 0
        %832 = vmatpush1.bf16.msra.mxu0 0
        %833 = vmatprep.subr.bf16.mxu0 0
        %834 = vmatpush1.bf16.msra.mxu0 0
        %835 = vmatprep.subr.bf16.mxu0 0
        %836 = vmatpush1.bf16.msra.mxu0 0
        %837 = vmatprep.subr.bf16.mxu0 0
        %838 = vmatpush1.bf16.msra.mxu0 0
        %839 = vmatprep.subr.bf16.mxu0 0
        %840 = vmatpush1.bf16.msra.mxu0 0
        %841 = vmatprep.subr.bf16.mxu0 0
        %842 = vmatpush1.bf16.msra.mxu0 0
        %843 = vmatprep.subr.bf16.mxu0 0
        %844 = vmatpush1.bf16.msra.mxu0 0
        %845 = vmatprep.subr.bf16.mxu0 0
        %846 = vmatpush1.bf16.msra.mxu0 0
        %847 = vmatprep.subr.bf16.mxu0 0
        %848 = vmatpush1.bf16.msra.mxu0 0
        %849 = vmatprep.subr.bf16.mxu0 0
        %850 = vmatpush1.bf16.msra.mxu0 0
        %851 = vmatprep.subr.bf16.mxu0 0
        %852 = vmatpush1.bf16.msra.mxu0 0
        %853 = vmatprep.subr.bf16.mxu0 0
        %854 = vmatpush1.bf16.msra.mxu0 0
        %855 = vmatprep.mubr.bf16.mxu0 0
        %856 = vmatmul.mubr.bf16.gmra.mrb[0].mxu0 %v797
        %v857 = vpop.f32.mrb[0].mxu0
        %v858 = vadd.f32 0.0, %v857
        %v859 = vpop.f32.mrb[0].mxu0
        %v860 = vpop.f32.mrb[0].mxu0
        %v861 = vadd.f32 0.0, %v860
        %v862 = vpop.f32.mrb[0].mxu0
        %863 = vmatprep.mubr.bf16.mxu0 0
        %864 = vmatmul.mubr.bf16.gmra.mrb[0].mxu0 %v800
        %v865 = vpop.f32.mrb[0].mxu0
        %v866 = vadd.f32 0.0, %v865
        %v867 = vpop.f32.mrb[0].mxu0
        %v868 = vpop.f32.mrb[0].mxu0
        %v869 = vadd.f32 0.0, %v868
        %v870 = vpop.f32.mrb[0].mxu0
        %871 = vmatprep.mubr.bf16.mxu0 0
        %872 = vmatmul.mubr.bf16.gmra.mrb[0].mxu0 %v803
        %v873 = vpop.f32.mrb[0].mxu0
        %v874 = vadd.f32 0.0, %v873
        %v875 = vpop.f32.mrb[0].mxu0
        %v876 = vpop.f32.mrb[0].mxu0
        %v877 = vadd.f32 0.0, %v876
        %v878 = vpop.f32.mrb[0].mxu0
        %879 = vmatprep.mubr.bf16.mxu0 0
        %880 = vmatmul.mubr.bf16.gmra.mrb[0].mxu0 %v806
        %v881 = vpop.f32.mrb[0].mxu0
        %v882 = vadd.f32 0.0, %v881
        %v883 = vpop.f32.mrb[0].mxu0
        %v884 = vpop.f32.mrb[0].mxu0
        %v885 = vadd.f32 0.0, %v884
        %v886 = vpop.f32.mrb[0].mxu0
        %887 = vmatprep.mubr.bf16.mxu0 0
        %888 = vmatmul.mubr.bf16.gmra.mrb[0].mxu0 %v809
        %v889 = vpop.f32.mrb[0].mxu0
        %v890 = vadd.f32 0.0, %v889
        %v891 = vpop.f32.mrb[0].mxu0
        %v892 = vpop.f32.mrb[0].mxu0
        %v893 = vadd.f32 0.0, %v892
        %v894 = vpop.f32.mrb[0].mxu0
        %895 = vmatprep.mubr.bf16.mxu0 0
        %896 = vmatmul.mubr.bf16.gmra.mrb[0].mxu0 %v812
        %v897 = vpop.f32.mrb[0].mxu0
        %v898 = vadd.f32 0.0, %v897
        %v899 = vpop.f32.mrb[0].mxu0
        %v900 = vpop.f32.mrb[0].mxu0
        %v901 = vadd.f32 0.0, %v900
        %v902 = vpop.f32.mrb[0].mxu0
        %903 = vmatprep.mubr.bf16.mxu0 0
        %904 = vmatmul.mubr.bf16.gmra.mrb[0].mxu0 %v815
        %v905 = vpop.f32.mrb[0].mxu0
        %v906 = vadd.f32 0.0, %v905
        %v907 = vpop.f32.mrb[0].mxu0
        %v908 = vpop.f32.mrb[0].mxu0
        %v909 = vadd.f32 0.0, %v908
        %v910 = vpop.f32.mrb[0].mxu0
        %911 = vmatprep.mubr.bf16.mxu0 0
        %912 = vmatmul.mubr.bf16.gmra.mrb[0].mxu0 %v818
        %v913 = vpop.f32.mrb[0].mxu0
        %v914 = vadd.f32 0.0, %v913
        %v915 = vpop.f32.mrb[0].mxu0
        %v916 = vpop.f32.mrb[0].mxu0
        %v917 = vadd.f32 0.0, %v916
        %v918 = vpop.f32.mrb[0].mxu0
        %919 = vdwg.mxu0
        %v920 = vadd.f32 %v708, %v858
        %v921 = vadd.f32 %v711, %v861
        %v922 = vadd.f32 %v716, %v866
        %v923 = vadd.f32 %v719, %v869
        %v924 = vadd.f32 %v724, %v874
        %v925 = vadd.f32 %v727, %v877
        %v926 = vadd.f32 %v732, %v882
        %v927 = vadd.f32 %v735, %v885
        %v928 = vadd.f32 %v740, %v890
        %v929 = vadd.f32 %v743, %v893
        %v930 = vadd.f32 %v748, %v898
        %v931 = vadd.f32 %v751, %v901
        %v932 = vadd.f32 %v756, %v906
        %v933 = vadd.f32 %v759, %v909
        %v934 = vadd.f32 %v764, %v914
        %v935 = vadd.f32 %v767, %v917
        %v936 = vld [vmem:[%s269 + $0x2] sm:$0xff]
        %v937 = vld [vmem:[%s269 + $0xa] sm:$0xff]
        %v938 = vld [vmem:[%s269 + $0x1a] sm:$0xff]
        %v939 = vld [vmem:[%s269 + $0x22] sm:$0xff]
        %v940 = vld [vmem:[%s269 + $0x32] sm:$0xff]
        %v941 = vld [vmem:[%s269 + $0x3a] sm:$0xff]
        %v942 = vld [vmem:[%s269 + $0x4a] sm:$0xff]
        %v943 = vld [vmem:[%s269 + $0x52] sm:$0xff]
        %v944 = vld [vmem:[%s269 + $0x62] sm:$0xff]
        %v945 = vld [vmem:[%s269 + $0x6a] sm:$0xff]
        %v946 = vld [vmem:[%s269 + $0x7a] sm:$0xff]
        %v947 = vld [vmem:[%s269 + $0x82] sm:$0xff]
        %v948 = vld [vmem:[%s269 + $0x92] sm:$0xff]
        %v949 = vld [vmem:[%s269 + $0x9a] sm:$0xff]
        %v950 = vld [vmem:[%s269 + $0xaa] sm:$0xff]
        %v951 = vld [vmem:[%s269 + $0xb2] sm:$0xff]
        %v952 = vpack.c.bf16 %v937, %v936
        %v953 = vpack.c.bf16 %v939, %v938
        %v954 = vpack.c.bf16 %v941, %v940
        %v955 = vpack.c.bf16 %v943, %v942
        %v956 = vpack.c.bf16 %v945, %v944
        %v957 = vpack.c.bf16 %v947, %v946
        %v958 = vpack.c.bf16 %v949, %v948
        %v959 = vpack.c.bf16 %v951, %v950
        %s960 = scalar_lea.vmem %s2, 12
        %v961 = vld [vmem:[%s960] sm:$0xf]
        %v963 = vsel %vm302, %v952, 0
        %v966 = vsel %vm302, %v953, 0
        %v969 = vsel %vm302, %v954, 0
        %v972 = vsel %vm302, %v955, 0
        %v975 = vsel %vm302, %v956, 0
        %v978 = vsel %vm302, %v957, 0
        %v981 = vsel %vm302, %v958, 0
        %v984 = vsel %vm302, %v959, 0
        %v987 = vsel %vm327, %v961, 0
        %989 = vmatprep.subr.bf16.mxu0 0
        %990 = vmatpush1.bf16.msra.mxu0 %v987
        %991 = vmatprep.subr.bf16.mxu0 0
        %992 = vmatpush1.bf16.msra.mxu0 0
        %993 = vmatprep.subr.bf16.mxu0 0
        %994 = vmatpush1.bf16.msra.mxu0 0
        %995 = vmatprep.subr.bf16.mxu0 0
        %996 = vmatpush1.bf16.msra.mxu0 0
        %997 = vmatprep.subr.bf16.mxu0 0
        %998 = vmatpush1.bf16.msra.mxu0 0
        %999 = vmatprep.subr.bf16.mxu0 0
        %1000 = vmatpush1.bf16.msra.mxu0 0
        %1001 = vmatprep.subr.bf16.mxu0 0
        %1002 = vmatpush1.bf16.msra.mxu0 0
        %1003 = vmatprep.subr.bf16.mxu0 0
        %1004 = vmatpush1.bf16.msra.mxu0 0
        %1005 = vmatprep.subr.bf16.mxu0 0
        %1006 = vmatpush1.bf16.msra.mxu0 0
        %1007 = vmatprep.subr.bf16.mxu0 0
        %1008 = vmatpush1.bf16.msra.mxu0 0
        %1009 = vmatprep.subr.bf16.mxu0 0
        %1010 = vmatpush1.bf16.msra.mxu0 0
        %1011 = vmatprep.subr.bf16.mxu0 0
        %1012 = vmatpush1.bf16.msra.mxu0 0
        %1013 = vmatprep.subr.bf16.mxu0 0
        %1014 = vmatpush1.bf16.msra.mxu0 0
        %1015 = vmatprep.subr.bf16.mxu0 0
        %1016 = vmatpush1.bf16.msra.mxu0 0
        %1017 = vmatprep.subr.bf16.mxu0 0
        %1018 = vmatpush1.bf16.msra.mxu0 0
        %1019 = vmatprep.subr.bf16.mxu0 0
        %1020 = vmatpush1.bf16.msra.mxu0 0
        %1021 = vmatprep.mubr.bf16.mxu0 0
        %1022 = vmatmul.mubr.bf16.gmra.mrb[0].mxu0 %v963
        %v1023 = vpop.f32.mrb[0].mxu0
        %v1024 = vadd.f32 0.0, %v1023
        %v1025 = vpop.f32.mrb[0].mxu0
        %v1026 = vpop.f32.mrb[0].mxu0
        %v1027 = vadd.f32 0.0, %v1026
        %v1028 = vpop.f32.mrb[0].mxu0
        %1029 = vmatprep.mubr.bf16.mxu0 0
        %1030 = vmatmul.mubr.bf16.gmra.mrb[0].mxu0 %v966
        %v1031 = vpop.f32.mrb[0].mxu0
        %v1032 = vadd.f32 0.0, %v1031
        %v1033 = vpop.f32.mrb[0].mxu0
        %v1034 = vpop.f32.mrb[0].mxu0
        %v1035 = vadd.f32 0.0, %v1034
        %v1036 = vpop.f32.mrb[0].mxu0
        %1037 = vmatprep.mubr.bf16.mxu0 0
        %1038 = vmatmul.mubr.bf16.gmra.mrb[0].mxu0 %v969
        %v1039 = vpop.f32.mrb[0].mxu0
        %v1040 = vadd.f32 0.0, %v1039
        %v1041 = vpop.f32.mrb[0].mxu0
        %v1042 = vpop.f32.mrb[0].mxu0
        %v1043 = vadd.f32 0.0, %v1042
        %v1044 = vpop.f32.mrb[0].mxu0
        %1045 = vmatprep.mubr.bf16.mxu0 0
        %1046 = vmatmul.mubr.bf16.gmra.mrb[0].mxu0 %v972
        %v1047 = vpop.f32.mrb[0].mxu0
        %v1048 = vadd.f32 0.0, %v1047
        %v1049 = vpop.f32.mrb[0].mxu0
        %v1050 = vpop.f32.mrb[0].mxu0
        %v1051 = vadd.f32 0.0, %v1050
        %v1052 = vpop.f32.mrb[0].mxu0
        %1053 = vmatprep.mubr.bf16.mxu0 0
        %1054 = vmatmul.mubr.bf16.gmra.mrb[0].mxu0 %v975
        %v1055 = vpop.f32.mrb[0].mxu0
        %v1056 = vadd.f32 0.0, %v1055
        %v1057 = vpop.f32.mrb[0].mxu0
        %v1058 = vpop.f32.mrb[0].mxu0
        %v1059 = vadd.f32 0.0, %v1058
        %v1060 = vpop.f32.mrb[0].mxu0
        %1061 = vmatprep.mubr.bf16.mxu0 0
        %1062 = vmatmul.mubr.bf16.gmra.mrb[0].mxu0 %v978
        %v1063 = vpop.f32.mrb[0].mxu0
        %v1064 = vadd.f32 0.0, %v1063
        %v1065 = vpop.f32.mrb[0].mxu0
        %v1066 = vpop.f32.mrb[0].mxu0
        %v1067 = vadd.f32 0.0, %v1066
        %v1068 = vpop.f32.mrb[0].mxu0
        %1069 = vmatprep.mubr.bf16.mxu0 0
        %1070 = vmatmul.mubr.bf16.gmra.mrb[0].mxu0 %v981
        %v1071 = vpop.f32.mrb[0].mxu0
        %v1072 = vadd.f32 0.0, %v1071
        %v1073 = vpop.f32.mrb[0].mxu0
        %v1074 = vpop.f32.mrb[0].mxu0
        %v1075 = vadd.f32 0.0, %v1074
        %v1076 = vpop.f32.mrb[0].mxu0
        %1077 = vmatprep.mubr.bf16.mxu0 0
        %1078 = vmatmul.mubr.bf16.gmra.mrb[0].mxu0 %v984
        %v1079 = vpop.f32.mrb[0].mxu0
        %v1080 = vadd.f32 0.0, %v1079
        %v1081 = vpop.f32.mrb[0].mxu0
        %v1082 = vpop.f32.mrb[0].mxu0
        %v1083 = vadd.f32 0.0, %v1082
        %v1084 = vpop.f32.mrb[0].mxu0
        %1085 = vdwg.mxu0
        %v1086 = vadd.f32 %v920, %v1024
        %v1087 = vadd.f32 %v921, %v1027
        %v1088 = vadd.f32 %v922, %v1032
        %v1089 = vadd.f32 %v923, %v1035
        %v1090 = vadd.f32 %v924, %v1040
        %v1091 = vadd.f32 %v925, %v1043
        %v1092 = vadd.f32 %v926, %v1048
        %v1093 = vadd.f32 %v927, %v1051
        %v1094 = vadd.f32 %v928, %v1056
        %v1095 = vadd.f32 %v929, %v1059
        %v1096 = vadd.f32 %v930, %v1064
        %v1097 = vadd.f32 %v931, %v1067
        %v1098 = vadd.f32 %v932, %v1072
        %v1099 = vadd.f32 %v933, %v1075
        %v1100 = vadd.f32 %v934, %v1080
        %v1101 = vadd.f32 %v935, %v1083
        %s1102 = scalar_lea.vmem %s2, 16
        %v1103 = vld [vmem:[%s1102] sm:$0xf]
        %v1105 = vsel %vm327, %v1103, 0
        %1107 = vmatprep.subr.bf16.mxu0 0
        %1108 = vmatpush1.bf16.msra.mxu0 %v1105
        %1109 = vmatprep.subr.bf16.mxu0 0
        %1110 = vmatpush1.bf16.msra.mxu0 0
        %1111 = vmatprep.subr.bf16.mxu0 0
        %1112 = vmatpush1.bf16.msra.mxu0 0
        %1113 = vmatprep.subr.bf16.mxu0 0
        %1114 = vmatpush1.bf16.msra.mxu0 0
        %1115 = vmatprep.subr.bf16.mxu0 0
        %1116 = vmatpush1.bf16.msra.mxu0 0
        %1117 = vmatprep.subr.bf16.mxu0 0
        %1118 = vmatpush1.bf16.msra.mxu0 0
        %1119 = vmatprep.subr.bf16.mxu0 0
        %1120 = vmatpush1.bf16.msra.mxu0 0
        %1121 = vmatprep.subr.bf16.mxu0 0
        %1122 = vmatpush1.bf16.msra.mxu0 0
        %1123 = vmatprep.subr.bf16.mxu0 0
        %1124 = vmatpush1.bf16.msra.mxu0 0
        %1125 = vmatprep.subr.bf16.mxu0 0
        %1126 = vmatpush1.bf16.msra.mxu0 0
        %1127 = vmatprep.subr.bf16.mxu0 0
        %1128 = vmatpush1.bf16.msra.mxu0 0
        %1129 = vmatprep.subr.bf16.mxu0 0
        %1130 = vmatpush1.bf16.msra.mxu0 0
        %1131 = vmatprep.subr.bf16.mxu0 0
        %1132 = vmatpush1.bf16.msra.mxu0 0
        %1133 = vmatprep.subr.bf16.mxu0 0
        %1134 = vmatpush1.bf16.msra.mxu0 0
        %1135 = vmatprep.subr.bf16.mxu0 0
        %1136 = vmatpush1.bf16.msra.mxu0 0
        %1137 = vmatprep.subr.bf16.mxu0 0
        %1138 = vmatpush1.bf16.msra.mxu0 0
        %1139 = vmatprep.mubr.bf16.mxu0 0
        %1140 = vmatmul.mubr.bf16.gmra.mrb[0].mxu0 %v304
        %v1141 = vpop.f32.mrb[0].mxu0
        %v1142 = vadd.f32 0.0, %v1141
        %v1143 = vpop.f32.mrb[0].mxu0
        %v1144 = vpop.f32.mrb[0].mxu0
        %v1145 = vadd.f32 0.0, %v1144
        %v1146 = vpop.f32.mrb[0].mxu0
        %1147 = vmatprep.mubr.bf16.mxu0 0
        %1148 = vmatmul.mubr.bf16.gmra.mrb[0].mxu0 %v307
        %v1149 = vpop.f32.mrb[0].mxu0
        %v1150 = vadd.f32 0.0, %v1149
        %v1151 = vpop.f32.mrb[0].mxu0
        %v1152 = vpop.f32.mrb[0].mxu0
        %v1153 = vadd.f32 0.0, %v1152
        %v1154 = vpop.f32.mrb[0].mxu0
        %1155 = vmatprep.mubr.bf16.mxu0 0
        %1156 = vmatmul.mubr.bf16.gmra.mrb[0].mxu0 %v310
        %v1157 = vpop.f32.mrb[0].mxu0
        %v1158 = vadd.f32 0.0, %v1157
        %v1159 = vpop.f32.mrb[0].mxu0
        %v1160 = vpop.f32.mrb[0].mxu0
        %v1161 = vadd.f32 0.0, %v1160
        %v1162 = vpop.f32.mrb[0].mxu0
        %1163 = vmatprep.mubr.bf16.mxu0 0
        %1164 = vmatmul.mubr.bf16.gmra.mrb[0].mxu0 %v313
        %v1165 = vpop.f32.mrb[0].mxu0
        %v1166 = vadd.f32 0.0, %v1165
        %v1167 = vpop.f32.mrb[0].mxu0
        %v1168 = vpop.f32.mrb[0].mxu0
        %v1169 = vadd.f32 0.0, %v1168
        %v1170 = vpop.f32.mrb[0].mxu0
        %1171 = vmatprep.mubr.bf16.mxu0 0
        %1172 = vmatmul.mubr.bf16.gmra.mrb[0].mxu0 %v316
        %v1173 = vpop.f32.mrb[0].mxu0
        %v1174 = vadd.f32 0.0, %v1173
        %v1175 = vpop.f32.mrb[0].mxu0
        %v1176 = vpop.f32.mrb[0].mxu0
        %v1177 = vadd.f32 0.0, %v1176
        %v1178 = vpop.f32.mrb[0].mxu0
        %1179 = vmatprep.mubr.bf16.mxu0 0
        %1180 = vmatmul.mubr.bf16.gmra.mrb[0].mxu0 %v319
        %v1181 = vpop.f32.mrb[0].mxu0
        %v1182 = vadd.f32 0.0, %v1181
        %v1183 = vpop.f32.mrb[0].mxu0
        %v1184 = vpop.f32.mrb[0].mxu0
        %v1185 = vadd.f32 0.0, %v1184
        %v1186 = vpop.f32.mrb[0].mxu0
        %1187 = vmatprep.mubr.bf16.mxu0 0
        %1188 = vmatmul.mubr.bf16.gmra.mrb[0].mxu0 %v322
        %v1189 = vpop.f32.mrb[0].mxu0
        %v1190 = vadd.f32 0.0, %v1189
        %v1191 = vpop.f32.mrb[0].mxu0
        %v1192 = vpop.f32.mrb[0].mxu0
        %v1193 = vadd.f32 0.0, %v1192
        %v1194 = vpop.f32.mrb[0].mxu0
        %1195 = vmatprep.mubr.bf16.mxu0 0
        %1196 = vmatmul.mubr.bf16.gmra.mrb[0].mxu0 %v325
        %v1197 = vpop.f32.mrb[0].mxu0
        %v1198 = vadd.f32 0.0, %v1197
        %v1199 = vpop.f32.mrb[0].mxu0
        %v1200 = vpop.f32.mrb[0].mxu0
        %v1201 = vadd.f32 0.0, %v1200
        %v1202 = vpop.f32.mrb[0].mxu0
        %1203 = vdwg.mxu0
        %v1204 = vadd.f32 %v1086, %v1142
        %v1205 = vadd.f32 %v1087, %v1145
        %v1206 = vadd.f32 %v1088, %v1150
        %v1207 = vadd.f32 %v1089, %v1153
        %v1208 = vadd.f32 %v1090, %v1158
        %v1209 = vadd.f32 %v1091, %v1161
        %v1210 = vadd.f32 %v1092, %v1166
        %v1211 = vadd.f32 %v1093, %v1169
        %v1212 = vadd.f32 %v1094, %v1174
        %v1213 = vadd.f32 %v1095, %v1177
        %v1214 = vadd.f32 %v1096, %v1182
        %v1215 = vadd.f32 %v1097, %v1185
        %v1216 = vadd.f32 %v1098, %v1190
        %v1217 = vadd.f32 %v1099, %v1193
        %v1218 = vadd.f32 %v1100, %v1198
        %v1219 = vadd.f32 %v1101, %v1201
        %v1220 = vld [vmem:[%s269 + $0x4] sm:$0xff]
        %v1221 = vld [vmem:[%s269 + $0xc] sm:$0xff]
        %v1222 = vld [vmem:[%s269 + $0x1c] sm:$0xff]
        %v1223 = vld [vmem:[%s269 + $0x24] sm:$0xff]
        %v1224 = vld [vmem:[%s269 + $0x34] sm:$0xff]
        %v1225 = vld [vmem:[%s269 + $0x3c] sm:$0xff]
        %v1226 = vld [vmem:[%s269 + $0x4c] sm:$0xff]
        %v1227 = vld [vmem:[%s269 + $0x54] sm:$0xff]
        %v1228 = vld [vmem:[%s269 + $0x64] sm:$0xff]
        %v1229 = vld [vmem:[%s269 + $0x6c] sm:$0xff]
        %v1230 = vld [vmem:[%s269 + $0x7c] sm:$0xff]
        %v1231 = vld [vmem:[%s269 + $0x84] sm:$0xff]
        %v1232 = vld [vmem:[%s269 + $0x94] sm:$0xff]
        %v1233 = vld [vmem:[%s269 + $0x9c] sm:$0xff]
        %v1234 = vld [vmem:[%s269 + $0xac] sm:$0xff]
        %v1235 = vld [vmem:[%s269 + $0xb4] sm:$0xff]
        %v1236 = vpack.c.bf16 %v1221, %v1220
        %v1237 = vpack.c.bf16 %v1223, %v1222
        %v1238 = vpack.c.bf16 %v1225, %v1224
        %v1239 = vpack.c.bf16 %v1227, %v1226
        %v1240 = vpack.c.bf16 %v1229, %v1228
        %v1241 = vpack.c.bf16 %v1231, %v1230
        %v1242 = vpack.c.bf16 %v1233, %v1232
        %v1243 = vpack.c.bf16 %v1235, %v1234
        %s1244 = scalar_lea.vmem %s2, 20
        %v1245 = vld [vmem:[%s1244] sm:$0xf]
        %v1247 = vsel %vm302, %v1236, 0
        %v1250 = vsel %vm302, %v1237, 0
        %v1253 = vsel %vm302, %v1238, 0
        %v1256 = vsel %vm302, %v1239, 0
        %v1259 = vsel %vm302, %v1240, 0
        %v1262 = vsel %vm302, %v1241, 0
        %v1265 = vsel %vm302, %v1242, 0
        %v1268 = vsel %vm302, %v1243, 0
        %v1271 = vsel %vm327, %v1245, 0
        %1273 = vmatprep.subr.bf16.mxu0 0
        %1274 = vmatpush1.bf16.msra.mxu0 %v1271
        %1275 = vmatprep.subr.bf16.mxu0 0
        %1276 = vmatpush1.bf16.msra.mxu0 0
        %1277 = vmatprep.subr.bf16.mxu0 0
        %1278 = vmatpush1.bf16.msra.mxu0 0
        %1279 = vmatprep.subr.bf16.mxu0 0
        %1280 = vmatpush1.bf16.msra.mxu0 0
        %1281 = vmatprep.subr.bf16.mxu0 0
        %1282 = vmatpush1.bf16.msra.mxu0 0
        %1283 = vmatprep.subr.bf16.mxu0 0
        %1284 = vmatpush1.bf16.msra.mxu0 0
        %1285 = vmatprep.subr.bf16.mxu0 0
        %1286 = vmatpush1.bf16.msra.mxu0 0
        %1287 = vmatprep.subr.bf16.mxu0 0
        %1288 = vmatpush1.bf16.msra.mxu0 0
        %1289 = vmatprep.subr.bf16.mxu0 0
        %1290 = vmatpush1.bf16.msra.mxu0 0
        %1291 = vmatprep.subr.bf16.mxu0 0
        %1292 = vmatpush1.bf16.msra.mxu0 0
        %1293 = vmatprep.subr.bf16.mxu0 0
        %1294 = vmatpush1.bf16.msra.mxu0 0
        %1295 = vmatprep.subr.bf16.mxu0 0
        %1296 = vmatpush1.bf16.msra.mxu0 0
        %1297 = vmatprep.subr.bf16.mxu0 0
        %1298 = vmatpush1.bf16.msra.mxu0 0
        %1299 = vmatprep.subr.bf16.mxu0 0
        %1300 = vmatpush1.bf16.msra.mxu0 0
        %1301 = vmatprep.subr.bf16.mxu0 0
        %1302 = vmatpush1.bf16.msra.mxu0 0
        %1303 = vmatprep.subr.bf16.mxu0 0
        %1304 = vmatpush1.bf16.msra.mxu0 0
        %1305 = vmatprep.mubr.bf16.mxu0 0
        %1306 = vmatmul.mubr.bf16.gmra.mrb[0].mxu0 %v1247
        %v1307 = vpop.f32.mrb[0].mxu0
        %v1308 = vadd.f32 0.0, %v1307
        %v1309 = vpop.f32.mrb[0].mxu0
        %v1310 = vpop.f32.mrb[0].mxu0
        %v1311 = vadd.f32 0.0, %v1310
        %v1312 = vpop.f32.mrb[0].mxu0
        %1313 = vmatprep.mubr.bf16.mxu0 0
        %1314 = vmatmul.mubr.bf16.gmra.mrb[0].mxu0 %v1250
        %v1315 = vpop.f32.mrb[0].mxu0
        %v1316 = vadd.f32 0.0, %v1315
        %v1317 = vpop.f32.mrb[0].mxu0
        %v1318 = vpop.f32.mrb[0].mxu0
        %v1319 = vadd.f32 0.0, %v1318
        %v1320 = vpop.f32.mrb[0].mxu0
        %1321 = vmatprep.mubr.bf16.mxu0 0
        %1322 = vmatmul.mubr.bf16.gmra.mrb[0].mxu0 %v1253
        %v1323 = vpop.f32.mrb[0].mxu0
        %v1324 = vadd.f32 0.0, %v1323
        %v1325 = vpop.f32.mrb[0].mxu0
        %v1326 = vpop.f32.mrb[0].mxu0
        %v1327 = vadd.f32 0.0, %v1326
        %v1328 = vpop.f32.mrb[0].mxu0
        %1329 = vmatprep.mubr.bf16.mxu0 0
        %1330 = vmatmul.mubr.bf16.gmra.mrb[0].mxu0 %v1256
        %v1331 = vpop.f32.mrb[0].mxu0
        %v1332 = vadd.f32 0.0, %v1331
        %v1333 = vpop.f32.mrb[0].mxu0
        %v1334 = vpop.f32.mrb[0].mxu0
        %v1335 = vadd.f32 0.0, %v1334
        %v1336 = vpop.f32.mrb[0].mxu0
        %1337 = vmatprep.mubr.bf16.mxu0 0
        %1338 = vmatmul.mubr.bf16.gmra.mrb[0].mxu0 %v1259
        %v1339 = vpop.f32.mrb[0].mxu0
        %v1340 = vadd.f32 0.0, %v1339
        %v1341 = vpop.f32.mrb[0].mxu0
        %v1342 = vpop.f32.mrb[0].mxu0
        %v1343 = vadd.f32 0.0, %v1342
        %v1344 = vpop.f32.mrb[0].mxu0
        %1345 = vmatprep.mubr.bf16.mxu0 0
        %1346 = vmatmul.mubr.bf16.gmra.mrb[0].mxu0 %v1262
        %v1347 = vpop.f32.mrb[0].mxu0
        %v1348 = vadd.f32 0.0, %v1347
        %v1349 = vpop.f32.mrb[0].mxu0
        %v1350 = vpop.f32.mrb[0].mxu0
        %v1351 = vadd.f32 0.0, %v1350
        %v1352 = vpop.f32.mrb[0].mxu0
        %1353 = vmatprep.mubr.bf16.mxu0 0
        %1354 = vmatmul.mubr.bf16.gmra.mrb[0].mxu0 %v1265
        %v1355 = vpop.f32.mrb[0].mxu0
        %v1356 = vadd.f32 0.0, %v1355
        %v1357 = vpop.f32.mrb[0].mxu0
        %v1358 = vpop.f32.mrb[0].mxu0
        %v1359 = vadd.f32 0.0, %v1358
        %v1360 = vpop.f32.mrb[0].mxu0
        %1361 = vmatprep.mubr.bf16.mxu0 0
        %1362 = vmatmul.mubr.bf16.gmra.mrb[0].mxu0 %v1268
        %v1363 = vpop.f32.mrb[0].mxu0
        %v1364 = vadd.f32 0.0, %v1363
        %v1365 = vpop.f32.mrb[0].mxu0
        %v1366 = vpop.f32.mrb[0].mxu0
        %v1367 = vadd.f32 0.0, %v1366
        %v1368 = vpop.f32.mrb[0].mxu0
        %1369 = vdwg.mxu0
        %v1370 = vadd.f32 %v1204, %v1308
        %v1371 = vadd.f32 %v1205, %v1311
        %v1372 = vadd.f32 %v1206, %v1316
        %v1373 = vadd.f32 %v1207, %v1319
        %v1374 = vadd.f32 %v1208, %v1324
        %v1375 = vadd.f32 %v1209, %v1327
        %v1376 = vadd.f32 %v1210, %v1332
        %v1377 = vadd.f32 %v1211, %v1335
        %v1378 = vadd.f32 %v1212, %v1340
        %v1379 = vadd.f32 %v1213, %v1343
        %v1380 = vadd.f32 %v1214, %v1348
        %v1381 = vadd.f32 %v1215, %v1351
        %v1382 = vadd.f32 %v1216, %v1356
        %v1383 = vadd.f32 %v1217, %v1359
        %v1384 = vadd.f32 %v1218, %v1364
        %v1385 = vadd.f32 %v1219, %v1367
        %s1386 = sadd.s32 %s266, 4
        %s1387 = smul.u32 %s1386, 24
        %s1388 = scalar_lea.vmem %s263, %s1387
        %v1389 = vld [vmem:[%s1388 + $0x2] sm:$0xff]
        %v1390 = vld [vmem:[%s1388 + $0xa] sm:$0xff]
        %v1391 = vld [vmem:[%s1388 + $0x1a] sm:$0xff]
        %v1392 = vld [vmem:[%s1388 + $0x22] sm:$0xff]
        %v1393 = vld [vmem:[%s1388 + $0x32] sm:$0xff]
        %v1394 = vld [vmem:[%s1388 + $0x3a] sm:$0xff]
        %v1395 = vld [vmem:[%s1388 + $0x4a] sm:$0xff]
        %v1396 = vld [vmem:[%s1388 + $0x52] sm:$0xff]
        %v1397 = vld [vmem:[%s1388 + $0x62] sm:$0xff]
        %v1398 = vld [vmem:[%s1388 + $0x6a] sm:$0xff]
        %v1399 = vld [vmem:[%s1388 + $0x7a] sm:$0xff]
        %v1400 = vld [vmem:[%s1388 + $0x82] sm:$0xff]
        %v1401 = vld [vmem:[%s1388 + $0x92] sm:$0xff]
        %v1402 = vld [vmem:[%s1388 + $0x9a] sm:$0xff]
        %v1403 = vld [vmem:[%s1388 + $0xaa] sm:$0xff]
        %v1404 = vld [vmem:[%s1388 + $0xb2] sm:$0xff]
        %v1405 = vpack.c.bf16 %v1390, %v1389
        %v1406 = vpack.c.bf16 %v1392, %v1391
        %v1407 = vpack.c.bf16 %v1394, %v1393
        %v1408 = vpack.c.bf16 %v1396, %v1395
        %v1409 = vpack.c.bf16 %v1398, %v1397
        %v1410 = vpack.c.bf16 %v1400, %v1399
        %v1411 = vpack.c.bf16 %v1402, %v1401
        %v1412 = vpack.c.bf16 %v1404, %v1403
        %s1413 = scalar_lea.vmem %s2, 24
        %v1414 = vld [vmem:[%s1413] sm:$0xf]
        %v1416 = vsel %vm302, %v1405, 0
        %v1419 = vsel %vm302, %v1406, 0
        %v1422 = vsel %vm302, %v1407, 0
        %v1425 = vsel %vm302, %v1408, 0
        %v1428 = vsel %vm302, %v1409, 0
        %v1431 = vsel %vm302, %v1410, 0
        %v1434 = vsel %vm302, %v1411, 0
        %v1437 = vsel %vm302, %v1412, 0
        %v1440 = vsel %vm327, %v1414, 0
        %1442 = vmatprep.subr.bf16.mxu0 0
        %1443 = vmatpush1.bf16.msra.mxu0 %v1440
        %1444 = vmatprep.subr.bf16.mxu0 0
        %1445 = vmatpush1.bf16.msra.mxu0 0
        %1446 = vmatprep.subr.bf16.mxu0 0
        %1447 = vmatpush1.bf16.msra.mxu0 0
        %1448 = vmatprep.subr.bf16.mxu0 0
        %1449 = vmatpush1.bf16.msra.mxu0 0
        %1450 = vmatprep.subr.bf16.mxu0 0
        %1451 = vmatpush1.bf16.msra.mxu0 0
        %1452 = vmatprep.subr.bf16.mxu0 0
        %1453 = vmatpush1.bf16.msra.mxu0 0
        %1454 = vmatprep.subr.bf16.mxu0 0
        %1455 = vmatpush1.bf16.msra.mxu0 0
        %1456 = vmatprep.subr.bf16.mxu0 0
        %1457 = vmatpush1.bf16.msra.mxu0 0
        %1458 = vmatprep.subr.bf16.mxu0 0
        %1459 = vmatpush1.bf16.msra.mxu0 0
        %1460 = vmatprep.subr.bf16.mxu0 0
        %1461 = vmatpush1.bf16.msra.mxu0 0
        %1462 = vmatprep.subr.bf16.mxu0 0
        %1463 = vmatpush1.bf16.msra.mxu0 0
        %1464 = vmatprep.subr.bf16.mxu0 0
        %1465 = vmatpush1.bf16.msra.mxu0 0
        %1466 = vmatprep.subr.bf16.mxu0 0
        %1467 = vmatpush1.bf16.msra.mxu0 0
        %1468 = vmatprep.subr.bf16.mxu0 0
        %1469 = vmatpush1.bf16.msra.mxu0 0
        %1470 = vmatprep.subr.bf16.mxu0 0
        %1471 = vmatpush1.bf16.msra.mxu0 0
        %1472 = vmatprep.subr.bf16.mxu0 0
        %1473 = vmatpush1.bf16.msra.mxu0 0
        %1474 = vmatprep.mubr.bf16.mxu0 0
        %1475 = vmatmul.mubr.bf16.gmra.mrb[0].mxu0 %v1416
        %v1476 = vpop.f32.mrb[0].mxu0
        %v1477 = vadd.f32 0.0, %v1476
        %v1478 = vpop.f32.mrb[0].mxu0
        %v1479 = vpop.f32.mrb[0].mxu0
        %v1480 = vadd.f32 0.0, %v1479
        %v1481 = vpop.f32.mrb[0].mxu0
        %1482 = vmatprep.mubr.bf16.mxu0 0
        %1483 = vmatmul.mubr.bf16.gmra.mrb[0].mxu0 %v1419
        %v1484 = vpop.f32.mrb[0].mxu0
        %v1485 = vadd.f32 0.0, %v1484
        %v1486 = vpop.f32.mrb[0].mxu0
        %v1487 = vpop.f32.mrb[0].mxu0
        %v1488 = vadd.f32 0.0, %v1487
        %v1489 = vpop.f32.mrb[0].mxu0
        %1490 = vmatprep.mubr.bf16.mxu0 0
        %1491 = vmatmul.mubr.bf16.gmra.mrb[0].mxu0 %v1422
        %v1492 = vpop.f32.mrb[0].mxu0
        %v1493 = vadd.f32 0.0, %v1492
        %v1494 = vpop.f32.mrb[0].mxu0
        %v1495 = vpop.f32.mrb[0].mxu0
        %v1496 = vadd.f32 0.0, %v1495
        %v1497 = vpop.f32.mrb[0].mxu0
        %1498 = vmatprep.mubr.bf16.mxu0 0
        %1499 = vmatmul.mubr.bf16.gmra.mrb[0].mxu0 %v1425
        %v1500 = vpop.f32.mrb[0].mxu0
        %v1501 = vadd.f32 0.0, %v1500
        %v1502 = vpop.f32.mrb[0].mxu0
        %v1503 = vpop.f32.mrb[0].mxu0
        %v1504 = vadd.f32 0.0, %v1503
        %v1505 = vpop.f32.mrb[0].mxu0
        %1506 = vmatprep.mubr.bf16.mxu0 0
        %1507 = vmatmul.mubr.bf16.gmra.mrb[0].mxu0 %v1428
        %v1508 = vpop.f32.mrb[0].mxu0
        %v1509 = vadd.f32 0.0, %v1508
        %v1510 = vpop.f32.mrb[0].mxu0
        %v1511 = vpop.f32.mrb[0].mxu0
        %v1512 = vadd.f32 0.0, %v1511
        %v1513 = vpop.f32.mrb[0].mxu0
        %1514 = vmatprep.mubr.bf16.mxu0 0
        %1515 = vmatmul.mubr.bf16.gmra.mrb[0].mxu0 %v1431
        %v1516 = vpop.f32.mrb[0].mxu0
        %v1517 = vadd.f32 0.0, %v1516
        %v1518 = vpop.f32.mrb[0].mxu0
        %v1519 = vpop.f32.mrb[0].mxu0
        %v1520 = vadd.f32 0.0, %v1519
        %v1521 = vpop.f32.mrb[0].mxu0
        %1522 = vmatprep.mubr.bf16.mxu0 0
        %1523 = vmatmul.mubr.bf16.gmra.mrb[0].mxu0 %v1434
        %v1524 = vpop.f32.mrb[0].mxu0
        %v1525 = vadd.f32 0.0, %v1524
        %v1526 = vpop.f32.mrb[0].mxu0
        %v1527 = vpop.f32.mrb[0].mxu0
        %v1528 = vadd.f32 0.0, %v1527
        %v1529 = vpop.f32.mrb[0].mxu0
        %1530 = vmatprep.mubr.bf16.mxu0 0
        %1531 = vmatmul.mubr.bf16.gmra.mrb[0].mxu0 %v1437
        %v1532 = vpop.f32.mrb[0].mxu0
        %v1533 = vadd.f32 0.0, %v1532
        %v1534 = vpop.f32.mrb[0].mxu0
        %v1535 = vpop.f32.mrb[0].mxu0
        %v1536 = vadd.f32 0.0, %v1535
        %v1537 = vpop.f32.mrb[0].mxu0
        %1538 = vdwg.mxu0
        %v1539 = vadd.f32 %v1370, %v1477
        %v1540 = vadd.f32 %v1371, %v1480
        %v1541 = vadd.f32 %v1372, %v1485
        %v1542 = vadd.f32 %v1373, %v1488
        %v1543 = vadd.f32 %v1374, %v1493
        %v1544 = vadd.f32 %v1375, %v1496
        %v1545 = vadd.f32 %v1376, %v1501
        %v1546 = vadd.f32 %v1377, %v1504
        %v1547 = vadd.f32 %v1378, %v1509
        %v1548 = vadd.f32 %v1379, %v1512
        %v1549 = vadd.f32 %v1380, %v1517
        %v1550 = vadd.f32 %v1381, %v1520
        %v1551 = vadd.f32 %v1382, %v1525
        %v1552 = vadd.f32 %v1383, %v1528
        %v1553 = vadd.f32 %v1384, %v1533
        %v1554 = vadd.f32 %v1385, %v1536
        %v1555 = vld [vmem:[%s1388 + $0x3] sm:$0xff]
        %v1556 = vld [vmem:[%s1388 + $0xb] sm:$0xff]
        %v1557 = vld [vmem:[%s1388 + $0x1b] sm:$0xff]
        %v1558 = vld [vmem:[%s1388 + $0x23] sm:$0xff]
        %v1559 = vld [vmem:[%s1388 + $0x33] sm:$0xff]
        %v1560 = vld [vmem:[%s1388 + $0x3b] sm:$0xff]
        %v1561 = vld [vmem:[%s1388 + $0x4b] sm:$0xff]
        %v1562 = vld [vmem:[%s1388 + $0x53] sm:$0xff]
        %v1563 = vld [vmem:[%s1388 + $0x63] sm:$0xff]
        %v1564 = vld [vmem:[%s1388 + $0x6b] sm:$0xff]
        %v1565 = vld [vmem:[%s1388 + $0x7b] sm:$0xff]
        %v1566 = vld [vmem:[%s1388 + $0x83] sm:$0xff]
        %v1567 = vld [vmem:[%s1388 + $0x93] sm:$0xff]
        %v1568 = vld [vmem:[%s1388 + $0x9b] sm:$0xff]
        %v1569 = vld [vmem:[%s1388 + $0xab] sm:$0xff]
        %v1570 = vld [vmem:[%s1388 + $0xb3] sm:$0xff]
        %v1571 = vpack.c.bf16 %v1556, %v1555
        %v1572 = vpack.c.bf16 %v1558, %v1557
        %v1573 = vpack.c.bf16 %v1560, %v1559
        %v1574 = vpack.c.bf16 %v1562, %v1561
        %v1575 = vpack.c.bf16 %v1564, %v1563
        %v1576 = vpack.c.bf16 %v1566, %v1565
        %v1577 = vpack.c.bf16 %v1568, %v1567
        %v1578 = vpack.c.bf16 %v1570, %v1569
        %s1579 = scalar_lea.vmem %s2, 28
        %v1580 = vld [vmem:[%s1579] sm:$0xf]
        %v1582 = vsel %vm302, %v1571, 0
        %v1585 = vsel %vm302, %v1572, 0
        %v1588 = vsel %vm302, %v1573, 0
        %v1591 = vsel %vm302, %v1574, 0
        %v1594 = vsel %vm302, %v1575, 0
        %v1597 = vsel %vm302, %v1576, 0
        %v1600 = vsel %vm302, %v1577, 0
        %v1603 = vsel %vm302, %v1578, 0
        %v1606 = vsel %vm327, %v1580, 0
        %1608 = vmatprep.subr.bf16.mxu0 0
        %1609 = vmatpush1.bf16.msra.mxu0 %v1606
        %1610 = vmatprep.subr.bf16.mxu0 0
        %1611 = vmatpush1.bf16.msra.mxu0 0
        %1612 = vmatprep.subr.bf16.mxu0 0
        %1613 = vmatpush1.bf16.msra.mxu0 0
        %1614 = vmatprep.subr.bf16.mxu0 0
        %1615 = vmatpush1.bf16.msra.mxu0 0
        %1616 = vmatprep.subr.bf16.mxu0 0
        %1617 = vmatpush1.bf16.msra.mxu0 0
        %1618 = vmatprep.subr.bf16.mxu0 0
        %1619 = vmatpush1.bf16.msra.mxu0 0
        %1620 = vmatprep.subr.bf16.mxu0 0
        %1621 = vmatpush1.bf16.msra.mxu0 0
        %1622 = vmatprep.subr.bf16.mxu0 0
        %1623 = vmatpush1.bf16.msra.mxu0 0
        %1624 = vmatprep.subr.bf16.mxu0 0
        %1625 = vmatpush1.bf16.msra.mxu0 0
        %1626 = vmatprep.subr.bf16.mxu0 0
        %1627 = vmatpush1.bf16.msra.mxu0 0
        %1628 = vmatprep.subr.bf16.mxu0 0
        %1629 = vmatpush1.bf16.msra.mxu0 0
        %1630 = vmatprep.subr.bf16.mxu0 0
        %1631 = vmatpush1.bf16.msra.mxu0 0
        %1632 = vmatprep.subr.bf16.mxu0 0
        %1633 = vmatpush1.bf16.msra.mxu0 0
        %1634 = vmatprep.subr.bf16.mxu0 0
        %1635 = vmatpush1.bf16.msra.mxu0 0
        %1636 = vmatprep.subr.bf16.mxu0 0
        %1637 = vmatpush1.bf16.msra.mxu0 0
        %1638 = vmatprep.subr.bf16.mxu0 0
        %1639 = vmatpush1.bf16.msra.mxu0 0
        %1640 = vmatprep.mubr.bf16.mxu0 0
        %1641 = vmatmul.mubr.bf16.gmra.mrb[0].mxu0 %v1582
        %v1642 = vpop.f32.mrb[0].mxu0
        %v1643 = vadd.f32 0.0, %v1642
        %v1644 = vpop.f32.mrb[0].mxu0
        %v1645 = vpop.f32.mrb[0].mxu0
        %v1646 = vadd.f32 0.0, %v1645
        %v1647 = vpop.f32.mrb[0].mxu0
        %1648 = vmatprep.mubr.bf16.mxu0 0
        %1649 = vmatmul.mubr.bf16.gmra.mrb[0].mxu0 %v1585
        %v1650 = vpop.f32.mrb[0].mxu0
        %v1651 = vadd.f32 0.0, %v1650
        %v1652 = vpop.f32.mrb[0].mxu0
        %v1653 = vpop.f32.mrb[0].mxu0
        %v1654 = vadd.f32 0.0, %v1653
        %v1655 = vpop.f32.mrb[0].mxu0
        %1656 = vmatprep.mubr.bf16.mxu0 0
        %1657 = vmatmul.mubr.bf16.gmra.mrb[0].mxu0 %v1588
        %v1658 = vpop.f32.mrb[0].mxu0
        %v1659 = vadd.f32 0.0, %v1658
        %v1660 = vpop.f32.mrb[0].mxu0
        %v1661 = vpop.f32.mrb[0].mxu0
        %v1662 = vadd.f32 0.0, %v1661
        %v1663 = vpop.f32.mrb[0].mxu0
        %1664 = vmatprep.mubr.bf16.mxu0 0
        %1665 = vmatmul.mubr.bf16.gmra.mrb[0].mxu0 %v1591
        %v1666 = vpop.f32.mrb[0].mxu0
        %v1667 = vadd.f32 0.0, %v1666
        %v1668 = vpop.f32.mrb[0].mxu0
        %v1669 = vpop.f32.mrb[0].mxu0
        %v1670 = vadd.f32 0.0, %v1669
        %v1671 = vpop.f32.mrb[0].mxu0
        %1672 = vmatprep.mubr.bf16.mxu0 0
        %1673 = vmatmul.mubr.bf16.gmra.mrb[0].mxu0 %v1594
        %v1674 = vpop.f32.mrb[0].mxu0
        %v1675 = vadd.f32 0.0, %v1674
        %v1676 = vpop.f32.mrb[0].mxu0
        %v1677 = vpop.f32.mrb[0].mxu0
        %v1678 = vadd.f32 0.0, %v1677
        %v1679 = vpop.f32.mrb[0].mxu0
        %1680 = vmatprep.mubr.bf16.mxu0 0
        %1681 = vmatmul.mubr.bf16.gmra.mrb[0].mxu0 %v1597
        %v1682 = vpop.f32.mrb[0].mxu0
        %v1683 = vadd.f32 0.0, %v1682
        %v1684 = vpop.f32.mrb[0].mxu0
        %v1685 = vpop.f32.mrb[0].mxu0
        %v1686 = vadd.f32 0.0, %v1685
        %v1687 = vpop.f32.mrb[0].mxu0
        %1688 = vmatprep.mubr.bf16.mxu0 0
        %1689 = vmatmul.mubr.bf16.gmra.mrb[0].mxu0 %v1600
        %v1690 = vpop.f32.mrb[0].mxu0
        %v1691 = vadd.f32 0.0, %v1690
        %v1692 = vpop.f32.mrb[0].mxu0
        %v1693 = vpop.f32.mrb[0].mxu0
        %v1694 = vadd.f32 0.0, %v1693
        %v1695 = vpop.f32.mrb[0].mxu0
        %1696 = vmatprep.mubr.bf16.mxu0 0
        %1697 = vmatmul.mubr.bf16.gmra.mrb[0].mxu0 %v1603
        %v1698 = vpop.f32.mrb[0].mxu0
        %v1699 = vadd.f32 0.0, %v1698
        %v1700 = vpop.f32.mrb[0].mxu0
        %v1701 = vpop.f32.mrb[0].mxu0
        %v1702 = vadd.f32 0.0, %v1701
        %v1703 = vpop.f32.mrb[0].mxu0
        %1704 = vdwg.mxu0
        %v1705 = vadd.f32 %v1539, %v1643
        %v1706 = vadd.f32 %v1540, %v1646
        %v1707 = vadd.f32 %v1541, %v1651
        %v1708 = vadd.f32 %v1542, %v1654
        %v1709 = vadd.f32 %v1543, %v1659
        %v1710 = vadd.f32 %v1544, %v1662
        %v1711 = vadd.f32 %v1545, %v1667
        %v1712 = vadd.f32 %v1546, %v1670
        %v1713 = vadd.f32 %v1547, %v1675
        %v1714 = vadd.f32 %v1548, %v1678
        %v1715 = vadd.f32 %v1549, %v1683
        %v1716 = vadd.f32 %v1550, %v1686
        %v1717 = vadd.f32 %v1551, %v1691
        %v1718 = vadd.f32 %v1552, %v1694
        %v1719 = vadd.f32 %v1553, %v1699
        %v1720 = vadd.f32 %v1554, %v1702
        %v1721 = vld [vmem:[%s1388 + $0x4] sm:$0xff]
        %v1722 = vld [vmem:[%s1388 + $0xc] sm:$0xff]
        %v1723 = vld [vmem:[%s1388 + $0x1c] sm:$0xff]
        %v1724 = vld [vmem:[%s1388 + $0x24] sm:$0xff]
        %v1725 = vld [vmem:[%s1388 + $0x34] sm:$0xff]
        %v1726 = vld [vmem:[%s1388 + $0x3c] sm:$0xff]
        %v1727 = vld [vmem:[%s1388 + $0x4c] sm:$0xff]
        %v1728 = vld [vmem:[%s1388 + $0x54] sm:$0xff]
        %v1729 = vld [vmem:[%s1388 + $0x64] sm:$0xff]
        %v1730 = vld [vmem:[%s1388 + $0x6c] sm:$0xff]
        %v1731 = vld [vmem:[%s1388 + $0x7c] sm:$0xff]
        %v1732 = vld [vmem:[%s1388 + $0x84] sm:$0xff]
        %v1733 = vld [vmem:[%s1388 + $0x94] sm:$0xff]
        %v1734 = vld [vmem:[%s1388 + $0x9c] sm:$0xff]
        %v1735 = vld [vmem:[%s1388 + $0xac] sm:$0xff]
        %v1736 = vld [vmem:[%s1388 + $0xb4] sm:$0xff]
        %v1737 = vpack.c.bf16 %v1722, %v1721
        %v1738 = vpack.c.bf16 %v1724, %v1723
        %v1739 = vpack.c.bf16 %v1726, %v1725
        %v1740 = vpack.c.bf16 %v1728, %v1727
        %v1741 = vpack.c.bf16 %v1730, %v1729
        %v1742 = vpack.c.bf16 %v1732, %v1731
        %v1743 = vpack.c.bf16 %v1734, %v1733
        %v1744 = vpack.c.bf16 %v1736, %v1735
        %s1745 = scalar_lea.vmem %s2, 32
        %v1746 = vld [vmem:[%s1745] sm:$0xf]
        %v1748 = vsel %vm302, %v1737, 0
        %v1751 = vsel %vm302, %v1738, 0
        %v1754 = vsel %vm302, %v1739, 0
        %v1757 = vsel %vm302, %v1740, 0
        %v1760 = vsel %vm302, %v1741, 0
        %v1763 = vsel %vm302, %v1742, 0
        %v1766 = vsel %vm302, %v1743, 0
        %v1769 = vsel %vm302, %v1744, 0
        %v1772 = vsel %vm327, %v1746, 0
        %1774 = vmatprep.subr.bf16.mxu0 0
        %1775 = vmatpush1.bf16.msra.mxu0 %v1772
        %1776 = vmatprep.subr.bf16.mxu0 0
        %1777 = vmatpush1.bf16.msra.mxu0 0
        %1778 = vmatprep.subr.bf16.mxu0 0
        %1779 = vmatpush1.bf16.msra.mxu0 0
        %1780 = vmatprep.subr.bf16.mxu0 0
        %1781 = vmatpush1.bf16.msra.mxu0 0
        %1782 = vmatprep.subr.bf16.mxu0 0
        %1783 = vmatpush1.bf16.msra.mxu0 0
        %1784 = vmatprep.subr.bf16.mxu0 0
        %1785 = vmatpush1.bf16.msra.mxu0 0
        %1786 = vmatprep.subr.bf16.mxu0 0
        %1787 = vmatpush1.bf16.msra.mxu0 0
        %1788 = vmatprep.subr.bf16.mxu0 0
        %1789 = vmatpush1.bf16.msra.mxu0 0
        %1790 = vmatprep.subr.bf16.mxu0 0
        %1791 = vmatpush1.bf16.msra.mxu0 0
        %1792 = vmatprep.subr.bf16.mxu0 0
        %1793 = vmatpush1.bf16.msra.mxu0 0
        %1794 = vmatprep.subr.bf16.mxu0 0
        %1795 = vmatpush1.bf16.msra.mxu0 0
        %1796 = vmatprep.subr.bf16.mxu0 0
        %1797 = vmatpush1.bf16.msra.mxu0 0
        %1798 = vmatprep.subr.bf16.mxu0 0
        %1799 = vmatpush1.bf16.msra.mxu0 0
        %1800 = vmatprep.subr.bf16.mxu0 0
        %1801 = vmatpush1.bf16.msra.mxu0 0
        %1802 = vmatprep.subr.bf16.mxu0 0
        %1803 = vmatpush1.bf16.msra.mxu0 0
        %1804 = vmatprep.subr.bf16.mxu0 0
        %1805 = vmatpush1.bf16.msra.mxu0 0
        %1806 = vmatprep.mubr.bf16.mxu0 0
        %1807 = vmatmul.mubr.bf16.gmra.mrb[0].mxu0 %v1748
        %v1808 = vpop.f32.mrb[0].mxu0
        %v1809 = vadd.f32 0.0, %v1808
        %v1810 = vpop.f32.mrb[0].mxu0
        %v1811 = vpop.f32.mrb[0].mxu0
        %v1812 = vadd.f32 0.0, %v1811
        %v1813 = vpop.f32.mrb[0].mxu0
        %1814 = vmatprep.mubr.bf16.mxu0 0
        %1815 = vmatmul.mubr.bf16.gmra.mrb[0].mxu0 %v1751
        %v1816 = vpop.f32.mrb[0].mxu0
        %v1817 = vadd.f32 0.0, %v1816
        %v1818 = vpop.f32.mrb[0].mxu0
        %v1819 = vpop.f32.mrb[0].mxu0
        %v1820 = vadd.f32 0.0, %v1819
        %v1821 = vpop.f32.mrb[0].mxu0
        %1822 = vmatprep.mubr.bf16.mxu0 0
        %1823 = vmatmul.mubr.bf16.gmra.mrb[0].mxu0 %v1754
        %v1824 = vpop.f32.mrb[0].mxu0
        %v1825 = vadd.f32 0.0, %v1824
        %v1826 = vpop.f32.mrb[0].mxu0
        %v1827 = vpop.f32.mrb[0].mxu0
        %v1828 = vadd.f32 0.0, %v1827
        %v1829 = vpop.f32.mrb[0].mxu0
        %1830 = vmatprep.mubr.bf16.mxu0 0
        %1831 = vmatmul.mubr.bf16.gmra.mrb[0].mxu0 %v1757
        %v1832 = vpop.f32.mrb[0].mxu0
        %v1833 = vadd.f32 0.0, %v1832
        %v1834 = vpop.f32.mrb[0].mxu0
        %v1835 = vpop.f32.mrb[0].mxu0
        %v1836 = vadd.f32 0.0, %v1835
        %v1837 = vpop.f32.mrb[0].mxu0
        %1838 = vmatprep.mubr.bf16.mxu0 0
        %1839 = vmatmul.mubr.bf16.gmra.mrb[0].mxu0 %v1760
        %v1840 = vpop.f32.mrb[0].mxu0
        %v1841 = vadd.f32 0.0, %v1840
        %v1842 = vpop.f32.mrb[0].mxu0
        %v1843 = vpop.f32.mrb[0].mxu0
        %v1844 = vadd.f32 0.0, %v1843
        %v1845 = vpop.f32.mrb[0].mxu0
        %1846 = vmatprep.mubr.bf16.mxu0 0
        %1847 = vmatmul.mubr.bf16.gmra.mrb[0].mxu0 %v1763
        %v1848 = vpop.f32.mrb[0].mxu0
        %v1849 = vadd.f32 0.0, %v1848
        %v1850 = vpop.f32.mrb[0].mxu0
        %v1851 = vpop.f32.mrb[0].mxu0
        %v1852 = vadd.f32 0.0, %v1851
        %v1853 = vpop.f32.mrb[0].mxu0
        %1854 = vmatprep.mubr.bf16.mxu0 0
        %1855 = vmatmul.mubr.bf16.gmra.mrb[0].mxu0 %v1766
        %v1856 = vpop.f32.mrb[0].mxu0
        %v1857 = vadd.f32 0.0, %v1856
        %v1858 = vpop.f32.mrb[0].mxu0
        %v1859 = vpop.f32.mrb[0].mxu0
        %v1860 = vadd.f32 0.0, %v1859
        %v1861 = vpop.f32.mrb[0].mxu0
        %1862 = vmatprep.mubr.bf16.mxu0 0
        %1863 = vmatmul.mubr.bf16.gmra.mrb[0].mxu0 %v1769
        %v1864 = vpop.f32.mrb[0].mxu0
        %v1865 = vadd.f32 0.0, %v1864
        %v1866 = vpop.f32.mrb[0].mxu0
        %v1867 = vpop.f32.mrb[0].mxu0
        %v1868 = vadd.f32 0.0, %v1867
        %v1869 = vpop.f32.mrb[0].mxu0
        %1870 = vdwg.mxu0
        %v1871 = vadd.f32 %v1705, %v1809
        %v1872 = vadd.f32 %v1706, %v1812
        %v1873 = vadd.f32 %v1707, %v1817
        %v1874 = vadd.f32 %v1708, %v1820
        %v1875 = vadd.f32 %v1709, %v1825
        %v1876 = vadd.f32 %v1710, %v1828
        %v1877 = vadd.f32 %v1711, %v1833
        %v1878 = vadd.f32 %v1712, %v1836
        %v1879 = vadd.f32 %v1713, %v1841
        %v1880 = vadd.f32 %v1714, %v1844
        %v1881 = vadd.f32 %v1715, %v1849
        %v1882 = vadd.f32 %v1716, %v1852
        %v1883 = vadd.f32 %v1717, %v1857
        %v1884 = vadd.f32 %v1718, %v1860
        %v1885 = vadd.f32 %v1719, %v1865
        %v1886 = vadd.f32 %v1720, %v1868
        %s1887 = scalar_lea.vmem %s5, 1
        %v1888 = vld [vmem:[%s1887] sm:$0x1]
        %v1890 = vlaneseq
        %v1891 = vshrl.u32 %v1890, 7
        %v1892 = vsub.s32 0, %v1891
        %v1893 = vrot.slane %v1888, %v1892
        %v1895 = vadd.f32 %v1871, %v1893
        %v1896 = vadd.f32 %v1872, %v1893
        %v1897 = vadd.f32 %v1873, %v1893
        %v1898 = vadd.f32 %v1874, %v1893
        %v1899 = vadd.f32 %v1875, %v1893
        %v1900 = vadd.f32 %v1876, %v1893
        %v1901 = vadd.f32 %v1877, %v1893
        %v1902 = vadd.f32 %v1878, %v1893
        %v1903 = vadd.f32 %v1879, %v1893
        %v1904 = vadd.f32 %v1880, %v1893
        %v1905 = vadd.f32 %v1881, %v1893
        %v1906 = vadd.f32 %v1882, %v1893
        %v1907 = vadd.f32 %v1883, %v1893
        %v1908 = vadd.f32 %v1884, %v1893
        %v1909 = vadd.f32 %v1885, %v1893
        %v1910 = vadd.f32 %v1886, %v1893
        %v1911 = vmax.f32 %v1895, 0.0
        %v1912 = vmax.f32 %v1896, 0.0
        %v1913 = vmax.f32 %v1897, 0.0
        %v1914 = vmax.f32 %v1898, 0.0
        %v1915 = vmax.f32 %v1899, 0.0
        %v1916 = vmax.f32 %v1900, 0.0
        %v1917 = vmax.f32 %v1901, 0.0
        %v1918 = vmax.f32 %v1902, 0.0
        %v1919 = vmax.f32 %v1903, 0.0
        %v1920 = vmax.f32 %v1904, 0.0
        %v1921 = vmax.f32 %v1905, 0.0
        %v1922 = vmax.f32 %v1906, 0.0
        %v1923 = vmax.f32 %v1907, 0.0
        %v1924 = vmax.f32 %v1908, 0.0
        %v1925 = vmax.f32 %v1909, 0.0
        %v1926 = vmax.f32 %v1910, 0.0
        %v1927 = vpack.c.bf16 %v1912, %v1911
        %v1928 = vpack.c.bf16 %v1914, %v1913
        %v1929 = vpack.c.bf16 %v1916, %v1915
        %v1930 = vpack.c.bf16 %v1918, %v1917
        %v1931 = vpack.c.bf16 %v1920, %v1919
        %v1932 = vpack.c.bf16 %v1922, %v1921
        %v1933 = vpack.c.bf16 %v1924, %v1923
        %v1934 = vpack.c.bf16 %v1926, %v1925
        %s1935 = scalar_lea.vmem %s4, 64
        %v1936 = vld [vmem:[%s1935] sm:$0xf]
        %v1937 = vld [vmem:[%s1935 + $0x4] sm:$0xf]
        %v1938 = vld [vmem:[%s1935 + $0x8] sm:$0xf]
        %v1939 = vld [vmem:[%s1935 + $0xc] sm:$0xf]
        %v1940 = vld [vmem:[%s1935 + $0x10] sm:$0xf]
        %v1941 = vld [vmem:[%s1935 + $0x14] sm:$0xf]
        %v1942 = vld [vmem:[%s1935 + $0x18] sm:$0xf]
        %v1943 = vld [vmem:[%s1935 + $0x1c] sm:$0xf]
        %v1944 = vld [vmem:[%s1935 + $0x20] sm:$0xf]
        %v1945 = vld [vmem:[%s1935 + $0x24] sm:$0xf]
        %v1946 = vld [vmem:[%s1935 + $0x28] sm:$0xf]
        %v1947 = vld [vmem:[%s1935 + $0x2c] sm:$0xf]
        %v1948 = vld [vmem:[%s1935 + $0x30] sm:$0xf]
        %v1949 = vld [vmem:[%s1935 + $0x34] sm:$0xf]
        %v1950 = vld [vmem:[%s1935 + $0x38] sm:$0xf]
        %v1951 = vld [vmem:[%s1935 + $0x3c] sm:$0xf]
        %v1968 = vunpack.c.l.b16 %v1936
        %v1969 = vunpack.c.l.b16 %v1937
        %v1970 = vunpack.c.l.b16 %v1938
        %v1971 = vunpack.c.l.b16 %v1939
        %v1972 = vunpack.c.l.b16 %v1940
        %v1973 = vunpack.c.l.b16 %v1941
        %v1974 = vunpack.c.l.b16 %v1942
        %v1975 = vunpack.c.l.b16 %v1943
        %v1976 = vunpack.c.l.b16 %v1944
        %v1977 = vunpack.c.l.b16 %v1945
        %v1978 = vunpack.c.l.b16 %v1946
        %v1979 = vunpack.c.l.b16 %v1947
        %v1980 = vunpack.c.l.b16 %v1948
        %v1981 = vunpack.c.l.b16 %v1949
        %v1982 = vunpack.c.l.b16 %v1950
        %v1983 = vunpack.c.l.b16 %v1951
        %v1984 = vpack.c.b16 %v1969, %v1968
        %v1985 = vpack.c.b16 %v1971, %v1970
        %v1986 = vpack.c.b16 %v1973, %v1972
        %v1987 = vpack.c.b16 %v1975, %v1974
        %v1988 = vpack.c.b16 %v1977, %v1976
        %v1989 = vpack.c.b16 %v1979, %v1978
        %v1990 = vpack.c.b16 %v1981, %v1980
        %v1991 = vpack.c.b16 %v1983, %v1982
        %2000 = vmatprep.subr.bf16.mxu0 0
        %2001 = vmatpush1.bf16.msra.mxu0 %v1984
        %2002 = vmatprep.subr.bf16.mxu0 0
        %2003 = vmatpush1.bf16.msra.mxu0 %v1985
        %2004 = vmatprep.subr.bf16.mxu0 0
        %2005 = vmatpush1.bf16.msra.mxu0 %v1986
        %2006 = vmatprep.subr.bf16.mxu0 0
        %2007 = vmatpush1.bf16.msra.mxu0 %v1987
        %2008 = vmatprep.subr.bf16.mxu0 0
        %2009 = vmatpush1.bf16.msra.mxu0 %v1988
        %2010 = vmatprep.subr.bf16.mxu0 0
        %2011 = vmatpush1.bf16.msra.mxu0 %v1989
        %2012 = vmatprep.subr.bf16.mxu0 0
        %2013 = vmatpush1.bf16.msra.mxu0 %v1990
        %2014 = vmatprep.subr.bf16.mxu0 0
        %2015 = vmatpush1.bf16.msra.mxu0 %v1991
        %2016 = vmatprep.subr.bf16.mxu0 0
        %2017 = vmatpush1.bf16.msra.mxu0 0
        %2018 = vmatprep.subr.bf16.mxu0 0
        %2019 = vmatpush1.bf16.msra.mxu0 0
        %2020 = vmatprep.subr.bf16.mxu0 0
        %2021 = vmatpush1.bf16.msra.mxu0 0
        %2022 = vmatprep.subr.bf16.mxu0 0
        %2023 = vmatpush1.bf16.msra.mxu0 0
        %2024 = vmatprep.subr.bf16.mxu0 0
        %2025 = vmatpush1.bf16.msra.mxu0 0
        %2026 = vmatprep.subr.bf16.mxu0 0
        %2027 = vmatpush1.bf16.msra.mxu0 0
        %2028 = vmatprep.subr.bf16.mxu0 0
        %2029 = vmatpush1.bf16.msra.mxu0 0
        %2030 = vmatprep.subr.bf16.mxu0 0
        %2031 = vmatpush1.bf16.msra.mxu0 0
        %2032 = vmatprep.mubr.bf16.mxu0 0
        %2033 = vmatmul.mubr.bf16.gmra.mrb[0].mxu0 %v1927
        %v2034 = vpop.f32.mrb[0].mxu0
        %v2035 = vadd.f32 0.0, %v2034
        %v2036 = vpop.f32.mrb[0].mxu0
        %v2037 = vpop.f32.mrb[0].mxu0
        %v2038 = vadd.f32 0.0, %v2037
        %v2039 = vpop.f32.mrb[0].mxu0
        %2040 = vmatprep.mubr.bf16.mxu0 0
        %2041 = vmatmul.mubr.bf16.gmra.mrb[0].mxu0 %v1928
        %v2042 = vpop.f32.mrb[0].mxu0
        %v2043 = vadd.f32 0.0, %v2042
        %v2044 = vpop.f32.mrb[0].mxu0
        %v2045 = vpop.f32.mrb[0].mxu0
        %v2046 = vadd.f32 0.0, %v2045
        %v2047 = vpop.f32.mrb[0].mxu0
        %2048 = vmatprep.mubr.bf16.mxu0 0
        %2049 = vmatmul.mubr.bf16.gmra.mrb[0].mxu0 %v1929
        %v2050 = vpop.f32.mrb[0].mxu0
        %v2051 = vadd.f32 0.0, %v2050
        %v2052 = vpop.f32.mrb[0].mxu0
        %v2053 = vpop.f32.mrb[0].mxu0
        %v2054 = vadd.f32 0.0, %v2053
        %v2055 = vpop.f32.mrb[0].mxu0
        %2056 = vmatprep.mubr.bf16.mxu0 0
        %2057 = vmatmul.mubr.bf16.gmra.mrb[0].mxu0 %v1930
        %v2058 = vpop.f32.mrb[0].mxu0
        %v2059 = vadd.f32 0.0, %v2058
        %v2060 = vpop.f32.mrb[0].mxu0
        %v2061 = vpop.f32.mrb[0].mxu0
        %v2062 = vadd.f32 0.0, %v2061
        %v2063 = vpop.f32.mrb[0].mxu0
        %2064 = vmatprep.mubr.bf16.mxu0 0
        %2065 = vmatmul.mubr.bf16.gmra.mrb[0].mxu0 %v1931
        %v2066 = vpop.f32.mrb[0].mxu0
        %v2067 = vadd.f32 0.0, %v2066
        %v2068 = vpop.f32.mrb[0].mxu0
        %v2069 = vpop.f32.mrb[0].mxu0
        %v2070 = vadd.f32 0.0, %v2069
        %v2071 = vpop.f32.mrb[0].mxu0
        %2072 = vmatprep.mubr.bf16.mxu0 0
        %2073 = vmatmul.mubr.bf16.gmra.mrb[0].mxu0 %v1932
        %v2074 = vpop.f32.mrb[0].mxu0
        %v2075 = vadd.f32 0.0, %v2074
        %v2076 = vpop.f32.mrb[0].mxu0
        %v2077 = vpop.f32.mrb[0].mxu0
        %v2078 = vadd.f32 0.0, %v2077
        %v2079 = vpop.f32.mrb[0].mxu0
        %2080 = vmatprep.mubr.bf16.mxu0 0
        %2081 = vmatmul.mubr.bf16.gmra.mrb[0].mxu0 %v1933
        %v2082 = vpop.f32.mrb[0].mxu0
        %v2083 = vadd.f32 0.0, %v2082
        %v2084 = vpop.f32.mrb[0].mxu0
        %v2085 = vpop.f32.mrb[0].mxu0
        %v2086 = vadd.f32 0.0, %v2085
        %v2087 = vpop.f32.mrb[0].mxu0
        %2088 = vmatprep.mubr.bf16.mxu0 0
        %2089 = vmatmul.mubr.bf16.gmra.mrb[0].mxu0 %v1934
        %v2090 = vpop.f32.mrb[0].mxu0
        %v2091 = vadd.f32 0.0, %v2090
        %v2092 = vpop.f32.mrb[0].mxu0
        %v2093 = vpop.f32.mrb[0].mxu0
        %v2094 = vadd.f32 0.0, %v2093
        %v2095 = vpop.f32.mrb[0].mxu0
        %2096 = vdwg.mxu0
        %v2113 = vunpack.c.l.b16 %v452
        %v2114 = vunpack.c.l.b16 %v453
        %v2115 = vunpack.c.l.b16 %v454
        %v2116 = vunpack.c.l.b16 %v455
        %v2117 = vunpack.c.l.b16 %v456
        %v2118 = vunpack.c.l.b16 %v457
        %v2119 = vunpack.c.l.b16 %v458
        %v2120 = vunpack.c.l.b16 %v459
        %v2121 = vunpack.c.l.b16 %v460
        %v2122 = vunpack.c.l.b16 %v461
        %v2123 = vunpack.c.l.b16 %v462
        %v2124 = vunpack.c.l.b16 %v463
        %v2125 = vunpack.c.l.b16 %v464
        %v2126 = vunpack.c.l.b16 %v465
        %v2127 = vunpack.c.l.b16 %v466
        %v2128 = vunpack.c.l.b16 %v467
        %v2129 = vpack.c.b16 %v2114, %v2113
        %v2130 = vpack.c.b16 %v2116, %v2115
        %v2131 = vpack.c.b16 %v2118, %v2117
        %v2132 = vpack.c.b16 %v2120, %v2119
        %v2133 = vpack.c.b16 %v2122, %v2121
        %v2134 = vpack.c.b16 %v2124, %v2123
        %v2135 = vpack.c.b16 %v2126, %v2125
        %v2136 = vpack.c.b16 %v2128, %v2127
        %2145 = vmatprep.subr.bf16.mxu0 0
        %2146 = vmatpush1.bf16.msra.mxu0 %v2129
        %2147 = vmatprep.subr.bf16.mxu0 0
        %2148 = vmatpush1.bf16.msra.mxu0 %v2130
        %2149 = vmatprep.subr.bf16.mxu0 0
        %2150 = vmatpush1.bf16.msra.mxu0 %v2131
        %2151 = vmatprep.subr.bf16.mxu0 0
        %2152 = vmatpush1.bf16.msra.mxu0 %v2132
        %2153 = vmatprep.subr.bf16.mxu0 0
        %2154 = vmatpush1.bf16.msra.mxu0 %v2133
        %2155 = vmatprep.subr.bf16.mxu0 0
        %2156 = vmatpush1.bf16.msra.mxu0 %v2134
        %2157 = vmatprep.subr.bf16.mxu0 0
        %2158 = vmatpush1.bf16.msra.mxu0 %v2135
        %2159 = vmatprep.subr.bf16.mxu0 0
        %2160 = vmatpush1.bf16.msra.mxu0 %v2136
        %2161 = vmatprep.subr.bf16.mxu0 0
        %2162 = vmatpush1.bf16.msra.mxu0 0
        %2163 = vmatprep.subr.bf16.mxu0 0
        %2164 = vmatpush1.bf16.msra.mxu0 0
        %2165 = vmatprep.subr.bf16.mxu0 0
        %2166 = vmatpush1.bf16.msra.mxu0 0
        %2167 = vmatprep.subr.bf16.mxu0 0
        %2168 = vmatpush1.bf16.msra.mxu0 0
        %2169 = vmatprep.subr.bf16.mxu0 0
        %2170 = vmatpush1.bf16.msra.mxu0 0
        %2171 = vmatprep.subr.bf16.mxu0 0
        %2172 = vmatpush1.bf16.msra.mxu0 0
        %2173 = vmatprep.subr.bf16.mxu0 0
        %2174 = vmatpush1.bf16.msra.mxu0 0
        %2175 = vmatprep.subr.bf16.mxu0 0
        %2176 = vmatpush1.bf16.msra.mxu0 0
        %2177 = vmatprep.mubr.bf16.mxu0 0
        %2178 = vmatmul.mubr.bf16.gmra.mrb[0].mxu0 %v444
        %v2179 = vpop.f32.mrb[0].mxu0
        %v2180 = vadd.f32 %v2035, %v2179
        %v2181 = vpop.f32.mrb[0].mxu0
        %v2182 = vpop.f32.mrb[0].mxu0
        %v2183 = vadd.f32 %v2038, %v2182
        %v2184 = vpop.f32.mrb[0].mxu0
        %2185 = vmatprep.mubr.bf16.mxu0 0
        %2186 = vmatmul.mubr.bf16.gmra.mrb[0].mxu0 %v445
        %v2187 = vpop.f32.mrb[0].mxu0
        %v2188 = vadd.f32 %v2043, %v2187
        %v2189 = vpop.f32.mrb[0].mxu0
        %v2190 = vpop.f32.mrb[0].mxu0
        %v2191 = vadd.f32 %v2046, %v2190
        %v2192 = vpop.f32.mrb[0].mxu0
        %2193 = vmatprep.mubr.bf16.mxu0 0
        %2194 = vmatmul.mubr.bf16.gmra.mrb[0].mxu0 %v446
        %v2195 = vpop.f32.mrb[0].mxu0
        %v2196 = vadd.f32 %v2051, %v2195
        %v2197 = vpop.f32.mrb[0].mxu0
        %v2198 = vpop.f32.mrb[0].mxu0
        %v2199 = vadd.f32 %v2054, %v2198
        %v2200 = vpop.f32.mrb[0].mxu0
        %2201 = vmatprep.mubr.bf16.mxu0 0
        %2202 = vmatmul.mubr.bf16.gmra.mrb[0].mxu0 %v447
        %v2203 = vpop.f32.mrb[0].mxu0
        %v2204 = vadd.f32 %v2059, %v2203
        %v2205 = vpop.f32.mrb[0].mxu0
        %v2206 = vpop.f32.mrb[0].mxu0
        %v2207 = vadd.f32 %v2062, %v2206
        %v2208 = vpop.f32.mrb[0].mxu0
        %2209 = vmatprep.mubr.bf16.mxu0 0
        %2210 = vmatmul.mubr.bf16.gmra.mrb[0].mxu0 %v448
        %v2211 = vpop.f32.mrb[0].mxu0
        %v2212 = vadd.f32 %v2067, %v2211
        %v2213 = vpop.f32.mrb[0].mxu0
        %v2214 = vpop.f32.mrb[0].mxu0
        %v2215 = vadd.f32 %v2070, %v2214
        %v2216 = vpop.f32.mrb[0].mxu0
        %2217 = vmatprep.mubr.bf16.mxu0 0
        %2218 = vmatmul.mubr.bf16.gmra.mrb[0].mxu0 %v449
        %v2219 = vpop.f32.mrb[0].mxu0
        %v2220 = vadd.f32 %v2075, %v2219
        %v2221 = vpop.f32.mrb[0].mxu0
        %v2222 = vpop.f32.mrb[0].mxu0
        %v2223 = vadd.f32 %v2078, %v2222
        %v2224 = vpop.f32.mrb[0].mxu0
        %2225 = vmatprep.mubr.bf16.mxu0 0
        %2226 = vmatmul.mubr.bf16.gmra.mrb[0].mxu0 %v450
        %v2227 = vpop.f32.mrb[0].mxu0
        %v2228 = vadd.f32 %v2083, %v2227
        %v2229 = vpop.f32.mrb[0].mxu0
        %v2230 = vpop.f32.mrb[0].mxu0
        %v2231 = vadd.f32 %v2086, %v2230
        %v2232 = vpop.f32.mrb[0].mxu0
        %2233 = vmatprep.mubr.bf16.mxu0 0
        %2234 = vmatmul.mubr.bf16.gmra.mrb[0].mxu0 %v451
        %v2235 = vpop.f32.mrb[0].mxu0
        %v2236 = vadd.f32 %v2091, %v2235
        %v2237 = vpop.f32.mrb[0].mxu0
        %v2238 = vpop.f32.mrb[0].mxu0
        %v2239 = vadd.f32 %v2094, %v2238
        %v2240 = vpop.f32.mrb[0].mxu0
        %2241 = vdwg.mxu0
        %s2242 = sadd.s32 %s266, 1
        %s2243 = smul.u32 %s2242, 24
        %s2244 = scalar_lea.vmem %s263, %s2243
        %v2245 = vld [vmem:[%s2244 + $0x1] sm:$0xff]
        %v2246 = vld [vmem:[%s2244 + $0x9] sm:$0xff]
        %v2247 = vld [vmem:[%s2244 + $0x19] sm:$0xff]
        %v2248 = vld [vmem:[%s2244 + $0x21] sm:$0xff]
        %v2249 = vld [vmem:[%s2244 + $0x31] sm:$0xff]
        %v2250 = vld [vmem:[%s2244 + $0x39] sm:$0xff]
        %v2251 = vld [vmem:[%s2244 + $0x49] sm:$0xff]
        %v2252 = vld [vmem:[%s2244 + $0x51] sm:$0xff]
        %v2253 = vld [vmem:[%s2244 + $0x61] sm:$0xff]
        %v2254 = vld [vmem:[%s2244 + $0x69] sm:$0xff]
        %v2255 = vld [vmem:[%s2244 + $0x79] sm:$0xff]
        %v2256 = vld [vmem:[%s2244 + $0x81] sm:$0xff]
        %v2257 = vld [vmem:[%s2244 + $0x91] sm:$0xff]
        %v2258 = vld [vmem:[%s2244 + $0x99] sm:$0xff]
        %v2259 = vld [vmem:[%s2244 + $0xa9] sm:$0xff]
        %v2260 = vld [vmem:[%s2244 + $0xb1] sm:$0xff]
        %v2261 = vpack.c.bf16 %v2246, %v2245
        %v2262 = vpack.c.bf16 %v2248, %v2247
        %v2263 = vpack.c.bf16 %v2250, %v2249
        %v2264 = vpack.c.bf16 %v2252, %v2251
        %v2265 = vpack.c.bf16 %v2254, %v2253
        %v2266 = vpack.c.bf16 %v2256, %v2255
        %v2267 = vpack.c.bf16 %v2258, %v2257
        %v2268 = vpack.c.bf16 %v2260, %v2259
        %s2269 = scalar_lea.vmem %s2, 36
        %v2270 = vld [vmem:[%s2269] sm:$0xf]
        %v2271 = vld [vmem:[%s2244 + $0x3] sm:$0xff]
        %v2272 = vld [vmem:[%s2244 + $0xb] sm:$0xff]
        %v2273 = vld [vmem:[%s2244 + $0x1b] sm:$0xff]
        %v2274 = vld [vmem:[%s2244 + $0x23] sm:$0xff]
        %v2275 = vld [vmem:[%s2244 + $0x33] sm:$0xff]
        %v2276 = vld [vmem:[%s2244 + $0x3b] sm:$0xff]
        %v2277 = vld [vmem:[%s2244 + $0x4b] sm:$0xff]
        %v2278 = vld [vmem:[%s2244 + $0x53] sm:$0xff]
        %v2279 = vld [vmem:[%s2244 + $0x63] sm:$0xff]
        %v2280 = vld [vmem:[%s2244 + $0x6b] sm:$0xff]
        %v2281 = vld [vmem:[%s2244 + $0x7b] sm:$0xff]
        %v2282 = vld [vmem:[%s2244 + $0x83] sm:$0xff]
        %v2283 = vld [vmem:[%s2244 + $0x93] sm:$0xff]
        %v2284 = vld [vmem:[%s2244 + $0x9b] sm:$0xff]
        %v2285 = vld [vmem:[%s2244 + $0xab] sm:$0xff]
        %v2286 = vld [vmem:[%s2244 + $0xb3] sm:$0xff]
        %v2287 = vpack.c.bf16 %v2272, %v2271
        %v2288 = vpack.c.bf16 %v2274, %v2273
        %v2289 = vpack.c.bf16 %v2276, %v2275
        %v2290 = vpack.c.bf16 %v2278, %v2277
        %v2291 = vpack.c.bf16 %v2280, %v2279
        %v2292 = vpack.c.bf16 %v2282, %v2281
        %v2293 = vpack.c.bf16 %v2284, %v2283
        %v2294 = vpack.c.bf16 %v2286, %v2285
        %s2295 = scalar_lea.vmem %s2, 40
        %v2296 = vld [vmem:[%s2295] sm:$0xf]
        %v2298 = vsel %vm302, %v2287, 0
        %v2301 = vsel %vm302, %v2288, 0
        %v2304 = vsel %vm302, %v2289, 0
        %v2307 = vsel %vm302, %v2290, 0
        %v2310 = vsel %vm302, %v2291, 0
        %v2313 = vsel %vm302, %v2292, 0
        %v2316 = vsel %vm302, %v2293, 0
        %v2319 = vsel %vm302, %v2294, 0
        %v2322 = vsel %vm327, %v2296, 0
        %2324 = vmatprep.subr.bf16.mxu0 0
        %2325 = vmatpush1.bf16.msra.mxu0 %v2322
        %2326 = vmatprep.subr.bf16.mxu0 0
        %2327 = vmatpush1.bf16.msra.mxu0 0
        %2328 = vmatprep.subr.bf16.mxu0 0
        %2329 = vmatpush1.bf16.msra.mxu0 0
        %2330 = vmatprep.subr.bf16.mxu0 0
        %2331 = vmatpush1.bf16.msra.mxu0 0
        %2332 = vmatprep.subr.bf16.mxu0 0
        %2333 = vmatpush1.bf16.msra.mxu0 0
        %2334 = vmatprep.subr.bf16.mxu0 0
        %2335 = vmatpush1.bf16.msra.mxu0 0
        %2336 = vmatprep.subr.bf16.mxu0 0
        %2337 = vmatpush1.bf16.msra.mxu0 0
        %2338 = vmatprep.subr.bf16.mxu0 0
        %2339 = vmatpush1.bf16.msra.mxu0 0
        %2340 = vmatprep.subr.bf16.mxu0 0
        %2341 = vmatpush1.bf16.msra.mxu0 0
        %2342 = vmatprep.subr.bf16.mxu0 0
        %2343 = vmatpush1.bf16.msra.mxu0 0
        %2344 = vmatprep.subr.bf16.mxu0 0
        %2345 = vmatpush1.bf16.msra.mxu0 0
        %2346 = vmatprep.subr.bf16.mxu0 0
        %2347 = vmatpush1.bf16.msra.mxu0 0
        %2348 = vmatprep.subr.bf16.mxu0 0
        %2349 = vmatpush1.bf16.msra.mxu0 0
        %2350 = vmatprep.subr.bf16.mxu0 0
        %2351 = vmatpush1.bf16.msra.mxu0 0
        %2352 = vmatprep.subr.bf16.mxu0 0
        %2353 = vmatpush1.bf16.msra.mxu0 0
        %2354 = vmatprep.subr.bf16.mxu0 0
        %2355 = vmatpush1.bf16.msra.mxu0 0
        %2356 = vmatprep.mubr.bf16.mxu0 0
        %2357 = vmatmul.mubr.bf16.gmra.mrb[0].mxu0 %v2298
        %v2358 = vpop.f32.mrb[0].mxu0
        %v2359 = vadd.f32 0.0, %v2358
        %v2360 = vpop.f32.mrb[0].mxu0
        %v2361 = vpop.f32.mrb[0].mxu0
        %v2362 = vadd.f32 0.0, %v2361
        %v2363 = vpop.f32.mrb[0].mxu0
        %2364 = vmatprep.mubr.bf16.mxu0 0
        %2365 = vmatmul.mubr.bf16.gmra.mrb[0].mxu0 %v2301
        %v2366 = vpop.f32.mrb[0].mxu0
        %v2367 = vadd.f32 0.0, %v2366
        %v2368 = vpop.f32.mrb[0].mxu0
        %v2369 = vpop.f32.mrb[0].mxu0
        %v2370 = vadd.f32 0.0, %v2369
        %v2371 = vpop.f32.mrb[0].mxu0
        %2372 = vmatprep.mubr.bf16.mxu0 0
        %2373 = vmatmul.mubr.bf16.gmra.mrb[0].mxu0 %v2304
        %v2374 = vpop.f32.mrb[0].mxu0
        %v2375 = vadd.f32 0.0, %v2374
        %v2376 = vpop.f32.mrb[0].mxu0
        %v2377 = vpop.f32.mrb[0].mxu0
        %v2378 = vadd.f32 0.0, %v2377
        %v2379 = vpop.f32.mrb[0].mxu0
        %2380 = vmatprep.mubr.bf16.mxu0 0
        %2381 = vmatmul.mubr.bf16.gmra.mrb[0].mxu0 %v2307
        %v2382 = vpop.f32.mrb[0].mxu0
        %v2383 = vadd.f32 0.0, %v2382
        %v2384 = vpop.f32.mrb[0].mxu0
        %v2385 = vpop.f32.mrb[0].mxu0
        %v2386 = vadd.f32 0.0, %v2385
        %v2387 = vpop.f32.mrb[0].mxu0
        %2388 = vmatprep.mubr.bf16.mxu0 0
        %2389 = vmatmul.mubr.bf16.gmra.mrb[0].mxu0 %v2310
        %v2390 = vpop.f32.mrb[0].mxu0
        %v2391 = vadd.f32 0.0, %v2390
        %v2392 = vpop.f32.mrb[0].mxu0
        %v2393 = vpop.f32.mrb[0].mxu0
        %v2394 = vadd.f32 0.0, %v2393
        %v2395 = vpop.f32.mrb[0].mxu0
        %2396 = vmatprep.mubr.bf16.mxu0 0
        %2397 = vmatmul.mubr.bf16.gmra.mrb[0].mxu0 %v2313
        %v2398 = vpop.f32.mrb[0].mxu0
        %v2399 = vadd.f32 0.0, %v2398
        %v2400 = vpop.f32.mrb[0].mxu0
        %v2401 = vpop.f32.mrb[0].mxu0
        %v2402 = vadd.f32 0.0, %v2401
        %v2403 = vpop.f32.mrb[0].mxu0
        %2404 = vmatprep.mubr.bf16.mxu0 0
        %2405 = vmatmul.mubr.bf16.gmra.mrb[0].mxu0 %v2316
        %v2406 = vpop.f32.mrb[0].mxu0
        %v2407 = vadd.f32 0.0, %v2406
        %v2408 = vpop.f32.mrb[0].mxu0
        %v2409 = vpop.f32.mrb[0].mxu0
        %v2410 = vadd.f32 0.0, %v2409
        %v2411 = vpop.f32.mrb[0].mxu0
        %2412 = vmatprep.mubr.bf16.mxu0 0
        %2413 = vmatmul.mubr.bf16.gmra.mrb[0].mxu0 %v2319
        %v2414 = vpop.f32.mrb[0].mxu0
        %v2415 = vadd.f32 0.0, %v2414
        %v2416 = vpop.f32.mrb[0].mxu0
        %v2417 = vpop.f32.mrb[0].mxu0
        %v2418 = vadd.f32 0.0, %v2417
        %v2419 = vpop.f32.mrb[0].mxu0
        %2420 = vdwg.mxu0
        %v2422 = vsel %vm302, %v2261, 0
        %v2425 = vsel %vm302, %v2262, 0
        %v2428 = vsel %vm302, %v2263, 0
        %v2431 = vsel %vm302, %v2264, 0
        %v2434 = vsel %vm302, %v2265, 0
        %v2437 = vsel %vm302, %v2266, 0
        %v2440 = vsel %vm302, %v2267, 0
        %v2443 = vsel %vm302, %v2268, 0
        %v2446 = vsel %vm327, %v2270, 0
        %2448 = vmatprep.subr.bf16.mxu0 0
        %2449 = vmatpush1.bf16.msra.mxu0 %v2446
        %2450 = vmatprep.subr.bf16.mxu0 0
        %2451 = vmatpush1.bf16.msra.mxu0 0
        %2452 = vmatprep.subr.bf16.mxu0 0
        %2453 = vmatpush1.bf16.msra.mxu0 0
        %2454 = vmatprep.subr.bf16.mxu0 0
        %2455 = vmatpush1.bf16.msra.mxu0 0
        %2456 = vmatprep.subr.bf16.mxu0 0
        %2457 = vmatpush1.bf16.msra.mxu0 0
        %2458 = vmatprep.subr.bf16.mxu0 0
        %2459 = vmatpush1.bf16.msra.mxu0 0
        %2460 = vmatprep.subr.bf16.mxu0 0
        %2461 = vmatpush1.bf16.msra.mxu0 0
        %2462 = vmatprep.subr.bf16.mxu0 0
        %2463 = vmatpush1.bf16.msra.mxu0 0
        %2464 = vmatprep.subr.bf16.mxu0 0
        %2465 = vmatpush1.bf16.msra.mxu0 0
        %2466 = vmatprep.subr.bf16.mxu0 0
        %2467 = vmatpush1.bf16.msra.mxu0 0
        %2468 = vmatprep.subr.bf16.mxu0 0
        %2469 = vmatpush1.bf16.msra.mxu0 0
        %2470 = vmatprep.subr.bf16.mxu0 0
        %2471 = vmatpush1.bf16.msra.mxu0 0
        %2472 = vmatprep.subr.bf16.mxu0 0
        %2473 = vmatpush1.bf16.msra.mxu0 0
        %2474 = vmatprep.subr.bf16.mxu0 0
        %2475 = vmatpush1.bf16.msra.mxu0 0
        %2476 = vmatprep.subr.bf16.mxu0 0
        %2477 = vmatpush1.bf16.msra.mxu0 0
        %2478 = vmatprep.subr.bf16.mxu0 0
        %2479 = vmatpush1.bf16.msra.mxu0 0
        %2480 = vmatprep.mubr.bf16.mxu0 0
        %2481 = vmatmul.mubr.bf16.gmra.mrb[0].mxu0 %v2422
        %v2482 = vpop.f32.mrb[0].mxu0
        %v2483 = vadd.f32 %v2359, %v2482
        %v2484 = vpop.f32.mrb[0].mxu0
        %v2485 = vpop.f32.mrb[0].mxu0
        %v2486 = vadd.f32 %v2362, %v2485
        %v2487 = vpop.f32.mrb[0].mxu0
        %2488 = vmatprep.mubr.bf16.mxu0 0
        %2489 = vmatmul.mubr.bf16.gmra.mrb[0].mxu0 %v2425
        %v2490 = vpop.f32.mrb[0].mxu0
        %v2491 = vadd.f32 %v2367, %v2490
        %v2492 = vpop.f32.mrb[0].mxu0
        %v2493 = vpop.f32.mrb[0].mxu0
        %v2494 = vadd.f32 %v2370, %v2493
        %v2495 = vpop.f32.mrb[0].mxu0
        %2496 = vmatprep.mubr.bf16.mxu0 0
        %2497 = vmatmul.mubr.bf16.gmra.mrb[0].mxu0 %v2428
        %v2498 = vpop.f32.mrb[0].mxu0
        %v2499 = vadd.f32 %v2375, %v2498
        %v2500 = vpop.f32.mrb[0].mxu0
        %v2501 = vpop.f32.mrb[0].mxu0
        %v2502 = vadd.f32 %v2378, %v2501
        %v2503 = vpop.f32.mrb[0].mxu0
        %2504 = vmatprep.mubr.bf16.mxu0 0
        %2505 = vmatmul.mubr.bf16.gmra.mrb[0].mxu0 %v2431
        %v2506 = vpop.f32.mrb[0].mxu0
        %v2507 = vadd.f32 %v2383, %v2506
        %v2508 = vpop.f32.mrb[0].mxu0
        %v2509 = vpop.f32.mrb[0].mxu0
        %v2510 = vadd.f32 %v2386, %v2509
        %v2511 = vpop.f32.mrb[0].mxu0
        %2512 = vmatprep.mubr.bf16.mxu0 0
        %2513 = vmatmul.mubr.bf16.gmra.mrb[0].mxu0 %v2434
        %v2514 = vpop.f32.mrb[0].mxu0
        %v2515 = vadd.f32 %v2391, %v2514
        %v2516 = vpop.f32.mrb[0].mxu0
        %v2517 = vpop.f32.mrb[0].mxu0
        %v2518 = vadd.f32 %v2394, %v2517
        %v2519 = vpop.f32.mrb[0].mxu0
        %2520 = vmatprep.mubr.bf16.mxu0 0
        %2521 = vmatmul.mubr.bf16.gmra.mrb[0].mxu0 %v2437
        %v2522 = vpop.f32.mrb[0].mxu0
        %v2523 = vadd.f32 %v2399, %v2522
        %v2524 = vpop.f32.mrb[0].mxu0
        %v2525 = vpop.f32.mrb[0].mxu0
        %v2526 = vadd.f32 %v2402, %v2525
        %v2527 = vpop.f32.mrb[0].mxu0
        %2528 = vmatprep.mubr.bf16.mxu0 0
        %2529 = vmatmul.mubr.bf16.gmra.mrb[0].mxu0 %v2440
        %v2530 = vpop.f32.mrb[0].mxu0
        %v2531 = vadd.f32 %v2407, %v2530
        %v2532 = vpop.f32.mrb[0].mxu0
        %v2533 = vpop.f32.mrb[0].mxu0
        %v2534 = vadd.f32 %v2410, %v2533
        %v2535 = vpop.f32.mrb[0].mxu0
        %2536 = vmatprep.mubr.bf16.mxu0 0
        %2537 = vmatmul.mubr.bf16.gmra.mrb[0].mxu0 %v2443
        %v2538 = vpop.f32.mrb[0].mxu0
        %v2539 = vadd.f32 %v2415, %v2538
        %v2540 = vpop.f32.mrb[0].mxu0
        %v2541 = vpop.f32.mrb[0].mxu0
        %v2542 = vadd.f32 %v2418, %v2541
        %v2543 = vpop.f32.mrb[0].mxu0
        %2544 = vdwg.mxu0
        %v2545 = vld [vmem:[%s2244 + $0x5] sm:$0xff]
        %v2546 = vld [vmem:[%s2244 + $0xd] sm:$0xff]
        %v2547 = vld [vmem:[%s2244 + $0x1d] sm:$0xff]
        %v2548 = vld [vmem:[%s2244 + $0x25] sm:$0xff]
        %v2549 = vld [vmem:[%s2244 + $0x35] sm:$0xff]
        %v2550 = vld [vmem:[%s2244 + $0x3d] sm:$0xff]
        %v2551 = vld [vmem:[%s2244 + $0x4d] sm:$0xff]
        %v2552 = vld [vmem:[%s2244 + $0x55] sm:$0xff]
        %v2553 = vld [vmem:[%s2244 + $0x65] sm:$0xff]
        %v2554 = vld [vmem:[%s2244 + $0x6d] sm:$0xff]
        %v2555 = vld [vmem:[%s2244 + $0x7d] sm:$0xff]
        %v2556 = vld [vmem:[%s2244 + $0x85] sm:$0xff]
        %v2557 = vld [vmem:[%s2244 + $0x95] sm:$0xff]
        %v2558 = vld [vmem:[%s2244 + $0x9d] sm:$0xff]
        %v2559 = vld [vmem:[%s2244 + $0xad] sm:$0xff]
        %v2560 = vld [vmem:[%s2244 + $0xb5] sm:$0xff]
        %v2561 = vpack.c.bf16 %v2546, %v2545
        %v2562 = vpack.c.bf16 %v2548, %v2547
        %v2563 = vpack.c.bf16 %v2550, %v2549
        %v2564 = vpack.c.bf16 %v2552, %v2551
        %v2565 = vpack.c.bf16 %v2554, %v2553
        %v2566 = vpack.c.bf16 %v2556, %v2555
        %v2567 = vpack.c.bf16 %v2558, %v2557
        %v2568 = vpack.c.bf16 %v2560, %v2559
        %s2569 = scalar_lea.vmem %s2, 44
        %v2570 = vld [vmem:[%s2569] sm:$0xf]
        %v2572 = vsel %vm302, %v2561, 0
        %v2575 = vsel %vm302, %v2562, 0
        %v2578 = vsel %vm302, %v2563, 0
        %v2581 = vsel %vm302, %v2564, 0
        %v2584 = vsel %vm302, %v2565, 0
        %v2587 = vsel %vm302, %v2566, 0
        %v2590 = vsel %vm302, %v2567, 0
        %v2593 = vsel %vm302, %v2568, 0
        %v2596 = vsel %vm327, %v2570, 0
        %2598 = vmatprep.subr.bf16.mxu0 0
        %2599 = vmatpush1.bf16.msra.mxu0 %v2596
        %2600 = vmatprep.subr.bf16.mxu0 0
        %2601 = vmatpush1.bf16.msra.mxu0 0
        %2602 = vmatprep.subr.bf16.mxu0 0
        %2603 = vmatpush1.bf16.msra.mxu0 0
        %2604 = vmatprep.subr.bf16.mxu0 0
        %2605 = vmatpush1.bf16.msra.mxu0 0
        %2606 = vmatprep.subr.bf16.mxu0 0
        %2607 = vmatpush1.bf16.msra.mxu0 0
        %2608 = vmatprep.subr.bf16.mxu0 0
        %2609 = vmatpush1.bf16.msra.mxu0 0
        %2610 = vmatprep.subr.bf16.mxu0 0
        %2611 = vmatpush1.bf16.msra.mxu0 0
        %2612 = vmatprep.subr.bf16.mxu0 0
        %2613 = vmatpush1.bf16.msra.mxu0 0
        %2614 = vmatprep.subr.bf16.mxu0 0
        %2615 = vmatpush1.bf16.msra.mxu0 0
        %2616 = vmatprep.subr.bf16.mxu0 0
        %2617 = vmatpush1.bf16.msra.mxu0 0
        %2618 = vmatprep.subr.bf16.mxu0 0
        %2619 = vmatpush1.bf16.msra.mxu0 0
        %2620 = vmatprep.subr.bf16.mxu0 0
        %2621 = vmatpush1.bf16.msra.mxu0 0
        %2622 = vmatprep.subr.bf16.mxu0 0
        %2623 = vmatpush1.bf16.msra.mxu0 0
        %2624 = vmatprep.subr.bf16.mxu0 0
        %2625 = vmatpush1.bf16.msra.mxu0 0
        %2626 = vmatprep.subr.bf16.mxu0 0
        %2627 = vmatpush1.bf16.msra.mxu0 0
        %2628 = vmatprep.subr.bf16.mxu0 0
        %2629 = vmatpush1.bf16.msra.mxu0 0
        %2630 = vmatprep.mubr.bf16.mxu0 0
        %2631 = vmatmul.mubr.bf16.gmra.mrb[0].mxu0 %v2572
        %v2632 = vpop.f32.mrb[0].mxu0
        %v2633 = vadd.f32 0.0, %v2632
        %v2634 = vpop.f32.mrb[0].mxu0
        %v2635 = vpop.f32.mrb[0].mxu0
        %v2636 = vadd.f32 0.0, %v2635
        %v2637 = vpop.f32.mrb[0].mxu0
        %2638 = vmatprep.mubr.bf16.mxu0 0
        %2639 = vmatmul.mubr.bf16.gmra.mrb[0].mxu0 %v2575
        %v2640 = vpop.f32.mrb[0].mxu0
        %v2641 = vadd.f32 0.0, %v2640
        %v2642 = vpop.f32.mrb[0].mxu0
        %v2643 = vpop.f32.mrb[0].mxu0
        %v2644 = vadd.f32 0.0, %v2643
        %v2645 = vpop.f32.mrb[0].mxu0
        %2646 = vmatprep.mubr.bf16.mxu0 0
        %2647 = vmatmul.mubr.bf16.gmra.mrb[0].mxu0 %v2578
        %v2648 = vpop.f32.mrb[0].mxu0
        %v2649 = vadd.f32 0.0, %v2648
        %v2650 = vpop.f32.mrb[0].mxu0
        %v2651 = vpop.f32.mrb[0].mxu0
        %v2652 = vadd.f32 0.0, %v2651
        %v2653 = vpop.f32.mrb[0].mxu0
        %2654 = vmatprep.mubr.bf16.mxu0 0
        %2655 = vmatmul.mubr.bf16.gmra.mrb[0].mxu0 %v2581
        %v2656 = vpop.f32.mrb[0].mxu0
        %v2657 = vadd.f32 0.0, %v2656
        %v2658 = vpop.f32.mrb[0].mxu0
        %v2659 = vpop.f32.mrb[0].mxu0
        %v2660 = vadd.f32 0.0, %v2659
        %v2661 = vpop.f32.mrb[0].mxu0
        %2662 = vmatprep.mubr.bf16.mxu0 0
        %2663 = vmatmul.mubr.bf16.gmra.mrb[0].mxu0 %v2584
        %v2664 = vpop.f32.mrb[0].mxu0
        %v2665 = vadd.f32 0.0, %v2664
        %v2666 = vpop.f32.mrb[0].mxu0
        %v2667 = vpop.f32.mrb[0].mxu0
        %v2668 = vadd.f32 0.0, %v2667
        %v2669 = vpop.f32.mrb[0].mxu0
        %2670 = vmatprep.mubr.bf16.mxu0 0
        %2671 = vmatmul.mubr.bf16.gmra.mrb[0].mxu0 %v2587
        %v2672 = vpop.f32.mrb[0].mxu0
        %v2673 = vadd.f32 0.0, %v2672
        %v2674 = vpop.f32.mrb[0].mxu0
        %v2675 = vpop.f32.mrb[0].mxu0
        %v2676 = vadd.f32 0.0, %v2675
        %v2677 = vpop.f32.mrb[0].mxu0
        %2678 = vmatprep.mubr.bf16.mxu0 0
        %2679 = vmatmul.mubr.bf16.gmra.mrb[0].mxu0 %v2590
        %v2680 = vpop.f32.mrb[0].mxu0
        %v2681 = vadd.f32 0.0, %v2680
        %v2682 = vpop.f32.mrb[0].mxu0
        %v2683 = vpop.f32.mrb[0].mxu0
        %v2684 = vadd.f32 0.0, %v2683
        %v2685 = vpop.f32.mrb[0].mxu0
        %2686 = vmatprep.mubr.bf16.mxu0 0
        %2687 = vmatmul.mubr.bf16.gmra.mrb[0].mxu0 %v2593
        %v2688 = vpop.f32.mrb[0].mxu0
        %v2689 = vadd.f32 0.0, %v2688
        %v2690 = vpop.f32.mrb[0].mxu0
        %v2691 = vpop.f32.mrb[0].mxu0
        %v2692 = vadd.f32 0.0, %v2691
        %v2693 = vpop.f32.mrb[0].mxu0
        %2694 = vdwg.mxu0
        %v2695 = vadd.f32 %v2483, %v2633
        %v2696 = vadd.f32 %v2486, %v2636
        %v2697 = vadd.f32 %v2491, %v2641
        %v2698 = vadd.f32 %v2494, %v2644
        %v2699 = vadd.f32 %v2499, %v2649
        %v2700 = vadd.f32 %v2502, %v2652
        %v2701 = vadd.f32 %v2507, %v2657
        %v2702 = vadd.f32 %v2510, %v2660
        %v2703 = vadd.f32 %v2515, %v2665
        %v2704 = vadd.f32 %v2518, %v2668
        %v2705 = vadd.f32 %v2523, %v2673
        %v2706 = vadd.f32 %v2526, %v2676
        %v2707 = vadd.f32 %v2531, %v2681
        %v2708 = vadd.f32 %v2534, %v2684
        %v2709 = vadd.f32 %v2539, %v2689
        %v2710 = vadd.f32 %v2542, %v2692
        %v2711 = vld [vmem:[%s269 + $0x1] sm:$0xff]
        %v2712 = vld [vmem:[%s269 + $0x9] sm:$0xff]
        %v2713 = vld [vmem:[%s269 + $0x19] sm:$0xff]
        %v2714 = vld [vmem:[%s269 + $0x21] sm:$0xff]
        %v2715 = vld [vmem:[%s269 + $0x31] sm:$0xff]
        %v2716 = vld [vmem:[%s269 + $0x39] sm:$0xff]
        %v2717 = vld [vmem:[%s269 + $0x49] sm:$0xff]
        %v2718 = vld [vmem:[%s269 + $0x51] sm:$0xff]
        %v2719 = vld [vmem:[%s269 + $0x61] sm:$0xff]
        %v2720 = vld [vmem:[%s269 + $0x69] sm:$0xff]
        %v2721 = vld [vmem:[%s269 + $0x79] sm:$0xff]
        %v2722 = vld [vmem:[%s269 + $0x81] sm:$0xff]
        %v2723 = vld [vmem:[%s269 + $0x91] sm:$0xff]
        %v2724 = vld [vmem:[%s269 + $0x99] sm:$0xff]
        %v2725 = vld [vmem:[%s269 + $0xa9] sm:$0xff]
        %v2726 = vld [vmem:[%s269 + $0xb1] sm:$0xff]
        %v2727 = vpack.c.bf16 %v2712, %v2711
        %v2728 = vpack.c.bf16 %v2714, %v2713
        %v2729 = vpack.c.bf16 %v2716, %v2715
        %v2730 = vpack.c.bf16 %v2718, %v2717
        %v2731 = vpack.c.bf16 %v2720, %v2719
        %v2732 = vpack.c.bf16 %v2722, %v2721
        %v2733 = vpack.c.bf16 %v2724, %v2723
        %v2734 = vpack.c.bf16 %v2726, %v2725
        %s2735 = scalar_lea.vmem %s2, 48
        %v2736 = vld [vmem:[%s2735] sm:$0xf]
        %v2738 = vsel %vm302, %v2727, 0
        %v2741 = vsel %vm302, %v2728, 0
        %v2744 = vsel %vm302, %v2729, 0
        %v2747 = vsel %vm302, %v2730, 0
        %v2750 = vsel %vm302, %v2731, 0
        %v2753 = vsel %vm302, %v2732, 0
        %v2756 = vsel %vm302, %v2733, 0
        %v2759 = vsel %vm302, %v2734, 0
        %v2762 = vsel %vm327, %v2736, 0
        %2764 = vmatprep.subr.bf16.mxu0 0
        %2765 = vmatpush1.bf16.msra.mxu0 %v2762
        %2766 = vmatprep.subr.bf16.mxu0 0
        %2767 = vmatpush1.bf16.msra.mxu0 0
        %2768 = vmatprep.subr.bf16.mxu0 0
        %2769 = vmatpush1.bf16.msra.mxu0 0
        %2770 = vmatprep.subr.bf16.mxu0 0
        %2771 = vmatpush1.bf16.msra.mxu0 0
        %2772 = vmatprep.subr.bf16.mxu0 0
        %2773 = vmatpush1.bf16.msra.mxu0 0
        %2774 = vmatprep.subr.bf16.mxu0 0
        %2775 = vmatpush1.bf16.msra.mxu0 0
        %2776 = vmatprep.subr.bf16.mxu0 0
        %2777 = vmatpush1.bf16.msra.mxu0 0
        %2778 = vmatprep.subr.bf16.mxu0 0
        %2779 = vmatpush1.bf16.msra.mxu0 0
        %2780 = vmatprep.subr.bf16.mxu0 0
        %2781 = vmatpush1.bf16.msra.mxu0 0
        %2782 = vmatprep.subr.bf16.mxu0 0
        %2783 = vmatpush1.bf16.msra.mxu0 0
        %2784 = vmatprep.subr.bf16.mxu0 0
        %2785 = vmatpush1.bf16.msra.mxu0 0
        %2786 = vmatprep.subr.bf16.mxu0 0
        %2787 = vmatpush1.bf16.msra.mxu0 0
        %2788 = vmatprep.subr.bf16.mxu0 0
        %2789 = vmatpush1.bf16.msra.mxu0 0
        %2790 = vmatprep.subr.bf16.mxu0 0
        %2791 = vmatpush1.bf16.msra.mxu0 0
        %2792 = vmatprep.subr.bf16.mxu0 0
        %2793 = vmatpush1.bf16.msra.mxu0 0
        %2794 = vmatprep.subr.bf16.mxu0 0
        %2795 = vmatpush1.bf16.msra.mxu0 0
        %2796 = vmatprep.mubr.bf16.mxu0 0
        %2797 = vmatmul.mubr.bf16.gmra.mrb[0].mxu0 %v2738
        %v2798 = vpop.f32.mrb[0].mxu0
        %v2799 = vadd.f32 0.0, %v2798
        %v2800 = vpop.f32.mrb[0].mxu0
        %v2801 = vpop.f32.mrb[0].mxu0
        %v2802 = vadd.f32 0.0, %v2801
        %v2803 = vpop.f32.mrb[0].mxu0
        %2804 = vmatprep.mubr.bf16.mxu0 0
        %2805 = vmatmul.mubr.bf16.gmra.mrb[0].mxu0 %v2741
        %v2806 = vpop.f32.mrb[0].mxu0
        %v2807 = vadd.f32 0.0, %v2806
        %v2808 = vpop.f32.mrb[0].mxu0
        %v2809 = vpop.f32.mrb[0].mxu0
        %v2810 = vadd.f32 0.0, %v2809
        %v2811 = vpop.f32.mrb[0].mxu0
        %2812 = vmatprep.mubr.bf16.mxu0 0
        %2813 = vmatmul.mubr.bf16.gmra.mrb[0].mxu0 %v2744
        %v2814 = vpop.f32.mrb[0].mxu0
        %v2815 = vadd.f32 0.0, %v2814
        %v2816 = vpop.f32.mrb[0].mxu0
        %v2817 = vpop.f32.mrb[0].mxu0
        %v2818 = vadd.f32 0.0, %v2817
        %v2819 = vpop.f32.mrb[0].mxu0
        %2820 = vmatprep.mubr.bf16.mxu0 0
        %2821 = vmatmul.mubr.bf16.gmra.mrb[0].mxu0 %v2747
        %v2822 = vpop.f32.mrb[0].mxu0
        %v2823 = vadd.f32 0.0, %v2822
        %v2824 = vpop.f32.mrb[0].mxu0
        %v2825 = vpop.f32.mrb[0].mxu0
        %v2826 = vadd.f32 0.0, %v2825
        %v2827 = vpop.f32.mrb[0].mxu0
        %2828 = vmatprep.mubr.bf16.mxu0 0
        %2829 = vmatmul.mubr.bf16.gmra.mrb[0].mxu0 %v2750
        %v2830 = vpop.f32.mrb[0].mxu0
        %v2831 = vadd.f32 0.0, %v2830
        %v2832 = vpop.f32.mrb[0].mxu0
        %v2833 = vpop.f32.mrb[0].mxu0
        %v2834 = vadd.f32 0.0, %v2833
        %v2835 = vpop.f32.mrb[0].mxu0
        %2836 = vmatprep.mubr.bf16.mxu0 0
        %2837 = vmatmul.mubr.bf16.gmra.mrb[0].mxu0 %v2753
        %v2838 = vpop.f32.mrb[0].mxu0
        %v2839 = vadd.f32 0.0, %v2838
        %v2840 = vpop.f32.mrb[0].mxu0
        %v2841 = vpop.f32.mrb[0].mxu0
        %v2842 = vadd.f32 0.0, %v2841
        %v2843 = vpop.f32.mrb[0].mxu0
        %2844 = vmatprep.mubr.bf16.mxu0 0
        %2845 = vmatmul.mubr.bf16.gmra.mrb[0].mxu0 %v2756
        %v2846 = vpop.f32.mrb[0].mxu0
        %v2847 = vadd.f32 0.0, %v2846
        %v2848 = vpop.f32.mrb[0].mxu0
        %v2849 = vpop.f32.mrb[0].mxu0
        %v2850 = vadd.f32 0.0, %v2849
        %v2851 = vpop.f32.mrb[0].mxu0
        %2852 = vmatprep.mubr.bf16.mxu0 0
        %2853 = vmatmul.mubr.bf16.gmra.mrb[0].mxu0 %v2759
        %v2854 = vpop.f32.mrb[0].mxu0
        %v2855 = vadd.f32 0.0, %v2854
        %v2856 = vpop.f32.mrb[0].mxu0
        %v2857 = vpop.f32.mrb[0].mxu0
        %v2858 = vadd.f32 0.0, %v2857
        %v2859 = vpop.f32.mrb[0].mxu0
        %2860 = vdwg.mxu0
        %v2861 = vadd.f32 %v2695, %v2799
        %v2862 = vadd.f32 %v2696, %v2802
        %v2863 = vadd.f32 %v2697, %v2807
        %v2864 = vadd.f32 %v2698, %v2810
        %v2865 = vadd.f32 %v2699, %v2815
        %v2866 = vadd.f32 %v2700, %v2818
        %v2867 = vadd.f32 %v2701, %v2823
        %v2868 = vadd.f32 %v2702, %v2826
        %v2869 = vadd.f32 %v2703, %v2831
        %v2870 = vadd.f32 %v2704, %v2834
        %v2871 = vadd.f32 %v2705, %v2839
        %v2872 = vadd.f32 %v2706, %v2842
        %v2873 = vadd.f32 %v2707, %v2847
        %v2874 = vadd.f32 %v2708, %v2850
        %v2875 = vadd.f32 %v2709, %v2855
        %v2876 = vadd.f32 %v2710, %v2858
        %s2877 = scalar_lea.vmem %s2, 52
        %v2878 = vld [vmem:[%s2877] sm:$0xf]
        %v2880 = vsel %vm327, %v2878, 0
        %2882 = vmatprep.subr.bf16.mxu0 0
        %2883 = vmatpush1.bf16.msra.mxu0 %v2880
        %2884 = vmatprep.subr.bf16.mxu0 0
        %2885 = vmatpush1.bf16.msra.mxu0 0
        %2886 = vmatprep.subr.bf16.mxu0 0
        %2887 = vmatpush1.bf16.msra.mxu0 0
        %2888 = vmatprep.subr.bf16.mxu0 0
        %2889 = vmatpush1.bf16.msra.mxu0 0
        %2890 = vmatprep.subr.bf16.mxu0 0
        %2891 = vmatpush1.bf16.msra.mxu0 0
        %2892 = vmatprep.subr.bf16.mxu0 0
        %2893 = vmatpush1.bf16.msra.mxu0 0
        %2894 = vmatprep.subr.bf16.mxu0 0
        %2895 = vmatpush1.bf16.msra.mxu0 0
        %2896 = vmatprep.subr.bf16.mxu0 0
        %2897 = vmatpush1.bf16.msra.mxu0 0
        %2898 = vmatprep.subr.bf16.mxu0 0
        %2899 = vmatpush1.bf16.msra.mxu0 0
        %2900 = vmatprep.subr.bf16.mxu0 0
        %2901 = vmatpush1.bf16.msra.mxu0 0
        %2902 = vmatprep.subr.bf16.mxu0 0
        %2903 = vmatpush1.bf16.msra.mxu0 0
        %2904 = vmatprep.subr.bf16.mxu0 0
        %2905 = vmatpush1.bf16.msra.mxu0 0
        %2906 = vmatprep.subr.bf16.mxu0 0
        %2907 = vmatpush1.bf16.msra.mxu0 0
        %2908 = vmatprep.subr.bf16.mxu0 0
        %2909 = vmatpush1.bf16.msra.mxu0 0
        %2910 = vmatprep.subr.bf16.mxu0 0
        %2911 = vmatpush1.bf16.msra.mxu0 0
        %2912 = vmatprep.subr.bf16.mxu0 0
        %2913 = vmatpush1.bf16.msra.mxu0 0
        %2914 = vmatprep.mubr.bf16.mxu0 0
        %2915 = vmatmul.mubr.bf16.gmra.mrb[0].mxu0 %v304
        %v2916 = vpop.f32.mrb[0].mxu0
        %v2917 = vadd.f32 0.0, %v2916
        %v2918 = vpop.f32.mrb[0].mxu0
        %v2919 = vpop.f32.mrb[0].mxu0
        %v2920 = vadd.f32 0.0, %v2919
        %v2921 = vpop.f32.mrb[0].mxu0
        %2922 = vmatprep.mubr.bf16.mxu0 0
        %2923 = vmatmul.mubr.bf16.gmra.mrb[0].mxu0 %v307
        %v2924 = vpop.f32.mrb[0].mxu0
        %v2925 = vadd.f32 0.0, %v2924
        %v2926 = vpop.f32.mrb[0].mxu0
        %v2927 = vpop.f32.mrb[0].mxu0
        %v2928 = vadd.f32 0.0, %v2927
        %v2929 = vpop.f32.mrb[0].mxu0
        %2930 = vmatprep.mubr.bf16.mxu0 0
        %2931 = vmatmul.mubr.bf16.gmra.mrb[0].mxu0 %v310
        %v2932 = vpop.f32.mrb[0].mxu0
        %v2933 = vadd.f32 0.0, %v2932
        %v2934 = vpop.f32.mrb[0].mxu0
        %v2935 = vpop.f32.mrb[0].mxu0
        %v2936 = vadd.f32 0.0, %v2935
        %v2937 = vpop.f32.mrb[0].mxu0
        %2938 = vmatprep.mubr.bf16.mxu0 0
        %2939 = vmatmul.mubr.bf16.gmra.mrb[0].mxu0 %v313
        %v2940 = vpop.f32.mrb[0].mxu0
        %v2941 = vadd.f32 0.0, %v2940
        %v2942 = vpop.f32.mrb[0].mxu0
        %v2943 = vpop.f32.mrb[0].mxu0
        %v2944 = vadd.f32 0.0, %v2943
        %v2945 = vpop.f32.mrb[0].mxu0
        %2946 = vmatprep.mubr.bf16.mxu0 0
        %2947 = vmatmul.mubr.bf16.gmra.mrb[0].mxu0 %v316
        %v2948 = vpop.f32.mrb[0].mxu0
        %v2949 = vadd.f32 0.0, %v2948
        %v2950 = vpop.f32.mrb[0].mxu0
        %v2951 = vpop.f32.mrb[0].mxu0
        %v2952 = vadd.f32 0.0, %v2951
        %v2953 = vpop.f32.mrb[0].mxu0
        %2954 = vmatprep.mubr.bf16.mxu0 0
        %2955 = vmatmul.mubr.bf16.gmra.mrb[0].mxu0 %v319
        %v2956 = vpop.f32.mrb[0].mxu0
        %v2957 = vadd.f32 0.0, %v2956
        %v2958 = vpop.f32.mrb[0].mxu0
        %v2959 = vpop.f32.mrb[0].mxu0
        %v2960 = vadd.f32 0.0, %v2959
        %v2961 = vpop.f32.mrb[0].mxu0
        %2962 = vmatprep.mubr.bf16.mxu0 0
        %2963 = vmatmul.mubr.bf16.gmra.mrb[0].mxu0 %v322
        %v2964 = vpop.f32.mrb[0].mxu0
        %v2965 = vadd.f32 0.0, %v2964
        %v2966 = vpop.f32.mrb[0].mxu0
        %v2967 = vpop.f32.mrb[0].mxu0
        %v2968 = vadd.f32 0.0, %v2967
        %v2969 = vpop.f32.mrb[0].mxu0
        %2970 = vmatprep.mubr.bf16.mxu0 0
        %2971 = vmatmul.mubr.bf16.gmra.mrb[0].mxu0 %v325
        %v2972 = vpop.f32.mrb[0].mxu0
        %v2973 = vadd.f32 0.0, %v2972
        %v2974 = vpop.f32.mrb[0].mxu0
        %v2975 = vpop.f32.mrb[0].mxu0
        %v2976 = vadd.f32 0.0, %v2975
        %v2977 = vpop.f32.mrb[0].mxu0
        %2978 = vdwg.mxu0
        %v2979 = vadd.f32 %v2861, %v2917
        %v2980 = vadd.f32 %v2862, %v2920
        %v2981 = vadd.f32 %v2863, %v2925
        %v2982 = vadd.f32 %v2864, %v2928
        %v2983 = vadd.f32 %v2865, %v2933
        %v2984 = vadd.f32 %v2866, %v2936
        %v2985 = vadd.f32 %v2867, %v2941
        %v2986 = vadd.f32 %v2868, %v2944
        %v2987 = vadd.f32 %v2869, %v2949
        %v2988 = vadd.f32 %v2870, %v2952
        %v2989 = vadd.f32 %v2871, %v2957
        %v2990 = vadd.f32 %v2872, %v2960
        %v2991 = vadd.f32 %v2873, %v2965
        %v2992 = vadd.f32 %v2874, %v2968
        %v2993 = vadd.f32 %v2875, %v2973
        %v2994 = vadd.f32 %v2876, %v2976
        %v2995 = vld [vmem:[%s269 + $0x5] sm:$0xff]
        %v2996 = vld [vmem:[%s269 + $0xd] sm:$0xff]
        %v2997 = vld [vmem:[%s269 + $0x1d] sm:$0xff]
        %v2998 = vld [vmem:[%s269 + $0x25] sm:$0xff]
        %v2999 = vld [vmem:[%s269 + $0x35] sm:$0xff]
        %v3000 = vld [vmem:[%s269 + $0x3d] sm:$0xff]
        %v3001 = vld [vmem:[%s269 + $0x4d] sm:$0xff]
        %v3002 = vld [vmem:[%s269 + $0x55] sm:$0xff]
        %v3003 = vld [vmem:[%s269 + $0x65] sm:$0xff]
        %v3004 = vld [vmem:[%s269 + $0x6d] sm:$0xff]
        %v3005 = vld [vmem:[%s269 + $0x7d] sm:$0xff]
        %v3006 = vld [vmem:[%s269 + $0x85] sm:$0xff]
        %v3007 = vld [vmem:[%s269 + $0x95] sm:$0xff]
        %v3008 = vld [vmem:[%s269 + $0x9d] sm:$0xff]
        %v3009 = vld [vmem:[%s269 + $0xad] sm:$0xff]
        %v3010 = vld [vmem:[%s269 + $0xb5] sm:$0xff]
        %v3011 = vpack.c.bf16 %v2996, %v2995
        %v3012 = vpack.c.bf16 %v2998, %v2997
        %v3013 = vpack.c.bf16 %v3000, %v2999
        %v3014 = vpack.c.bf16 %v3002, %v3001
        %v3015 = vpack.c.bf16 %v3004, %v3003
        %v3016 = vpack.c.bf16 %v3006, %v3005
        %v3017 = vpack.c.bf16 %v3008, %v3007
        %v3018 = vpack.c.bf16 %v3010, %v3009
        %s3019 = scalar_lea.vmem %s2, 56
        %v3020 = vld [vmem:[%s3019] sm:$0xf]
        %v3022 = vsel %vm302, %v3011, 0
        %v3025 = vsel %vm302, %v3012, 0
        %v3028 = vsel %vm302, %v3013, 0
        %v3031 = vsel %vm302, %v3014, 0
        %v3034 = vsel %vm302, %v3015, 0
        %v3037 = vsel %vm302, %v3016, 0
        %v3040 = vsel %vm302, %v3017, 0
        %v3043 = vsel %vm302, %v3018, 0
        %v3046 = vsel %vm327, %v3020, 0
        %3048 = vmatprep.subr.bf16.mxu0 0
        %3049 = vmatpush1.bf16.msra.mxu0 %v3046
        %3050 = vmatprep.subr.bf16.mxu0 0
        %3051 = vmatpush1.bf16.msra.mxu0 0
        %3052 = vmatprep.subr.bf16.mxu0 0
        %3053 = vmatpush1.bf16.msra.mxu0 0
        %3054 = vmatprep.subr.bf16.mxu0 0
        %3055 = vmatpush1.bf16.msra.mxu0 0
        %3056 = vmatprep.subr.bf16.mxu0 0
        %3057 = vmatpush1.bf16.msra.mxu0 0
        %3058 = vmatprep.subr.bf16.mxu0 0
        %3059 = vmatpush1.bf16.msra.mxu0 0
        %3060 = vmatprep.subr.bf16.mxu0 0
        %3061 = vmatpush1.bf16.msra.mxu0 0
        %3062 = vmatprep.subr.bf16.mxu0 0
        %3063 = vmatpush1.bf16.msra.mxu0 0
        %3064 = vmatprep.subr.bf16.mxu0 0
        %3065 = vmatpush1.bf16.msra.mxu0 0
        %3066 = vmatprep.subr.bf16.mxu0 0
        %3067 = vmatpush1.bf16.msra.mxu0 0
        %3068 = vmatprep.subr.bf16.mxu0 0
        %3069 = vmatpush1.bf16.msra.mxu0 0
        %3070 = vmatprep.subr.bf16.mxu0 0
        %3071 = vmatpush1.bf16.msra.mxu0 0
        %3072 = vmatprep.subr.bf16.mxu0 0
        %3073 = vmatpush1.bf16.msra.mxu0 0
        %3074 = vmatprep.subr.bf16.mxu0 0
        %3075 = vmatpush1.bf16.msra.mxu0 0
        %3076 = vmatprep.subr.bf16.mxu0 0
        %3077 = vmatpush1.bf16.msra.mxu0 0
        %3078 = vmatprep.subr.bf16.mxu0 0
        %3079 = vmatpush1.bf16.msra.mxu0 0
        %3080 = vmatprep.mubr.bf16.mxu0 0
        %3081 = vmatmul.mubr.bf16.gmra.mrb[0].mxu0 %v3022
        %v3082 = vpop.f32.mrb[0].mxu0
        %v3083 = vadd.f32 0.0, %v3082
        %v3084 = vpop.f32.mrb[0].mxu0
        %v3085 = vpop.f32.mrb[0].mxu0
        %v3086 = vadd.f32 0.0, %v3085
        %v3087 = vpop.f32.mrb[0].mxu0
        %3088 = vmatprep.mubr.bf16.mxu0 0
        %3089 = vmatmul.mubr.bf16.gmra.mrb[0].mxu0 %v3025
        %v3090 = vpop.f32.mrb[0].mxu0
        %v3091 = vadd.f32 0.0, %v3090
        %v3092 = vpop.f32.mrb[0].mxu0
        %v3093 = vpop.f32.mrb[0].mxu0
        %v3094 = vadd.f32 0.0, %v3093
        %v3095 = vpop.f32.mrb[0].mxu0
        %3096 = vmatprep.mubr.bf16.mxu0 0
        %3097 = vmatmul.mubr.bf16.gmra.mrb[0].mxu0 %v3028
        %v3098 = vpop.f32.mrb[0].mxu0
        %v3099 = vadd.f32 0.0, %v3098
        %v3100 = vpop.f32.mrb[0].mxu0
        %v3101 = vpop.f32.mrb[0].mxu0
        %v3102 = vadd.f32 0.0, %v3101
        %v3103 = vpop.f32.mrb[0].mxu0
        %3104 = vmatprep.mubr.bf16.mxu0 0
        %3105 = vmatmul.mubr.bf16.gmra.mrb[0].mxu0 %v3031
        %v3106 = vpop.f32.mrb[0].mxu0
        %v3107 = vadd.f32 0.0, %v3106
        %v3108 = vpop.f32.mrb[0].mxu0
        %v3109 = vpop.f32.mrb[0].mxu0
        %v3110 = vadd.f32 0.0, %v3109
        %v3111 = vpop.f32.mrb[0].mxu0
        %3112 = vmatprep.mubr.bf16.mxu0 0
        %3113 = vmatmul.mubr.bf16.gmra.mrb[0].mxu0 %v3034
        %v3114 = vpop.f32.mrb[0].mxu0
        %v3115 = vadd.f32 0.0, %v3114
        %v3116 = vpop.f32.mrb[0].mxu0
        %v3117 = vpop.f32.mrb[0].mxu0
        %v3118 = vadd.f32 0.0, %v3117
        %v3119 = vpop.f32.mrb[0].mxu0
        %3120 = vmatprep.mubr.bf16.mxu0 0
        %3121 = vmatmul.mubr.bf16.gmra.mrb[0].mxu0 %v3037
        %v3122 = vpop.f32.mrb[0].mxu0
        %v3123 = vadd.f32 0.0, %v3122
        %v3124 = vpop.f32.mrb[0].mxu0
        %v3125 = vpop.f32.mrb[0].mxu0
        %v3126 = vadd.f32 0.0, %v3125
        %v3127 = vpop.f32.mrb[0].mxu0
        %3128 = vmatprep.mubr.bf16.mxu0 0
        %3129 = vmatmul.mubr.bf16.gmra.mrb[0].mxu0 %v3040
        %v3130 = vpop.f32.mrb[0].mxu0
        %v3131 = vadd.f32 0.0, %v3130
        %v3132 = vpop.f32.mrb[0].mxu0
        %v3133 = vpop.f32.mrb[0].mxu0
        %v3134 = vadd.f32 0.0, %v3133
        %v3135 = vpop.f32.mrb[0].mxu0
        %3136 = vmatprep.mubr.bf16.mxu0 0
        %3137 = vmatmul.mubr.bf16.gmra.mrb[0].mxu0 %v3043
        %v3138 = vpop.f32.mrb[0].mxu0
        %v3139 = vadd.f32 0.0, %v3138
        %v3140 = vpop.f32.mrb[0].mxu0
        %v3141 = vpop.f32.mrb[0].mxu0
        %v3142 = vadd.f32 0.0, %v3141
        %v3143 = vpop.f32.mrb[0].mxu0
        %3144 = vdwg.mxu0
        %v3145 = vadd.f32 %v2979, %v3083
        %v3146 = vadd.f32 %v2980, %v3086
        %v3147 = vadd.f32 %v2981, %v3091
        %v3148 = vadd.f32 %v2982, %v3094
        %v3149 = vadd.f32 %v2983, %v3099
        %v3150 = vadd.f32 %v2984, %v3102
        %v3151 = vadd.f32 %v2985, %v3107
        %v3152 = vadd.f32 %v2986, %v3110
        %v3153 = vadd.f32 %v2987, %v3115
        %v3154 = vadd.f32 %v2988, %v3118
        %v3155 = vadd.f32 %v2989, %v3123
        %v3156 = vadd.f32 %v2990, %v3126
        %v3157 = vadd.f32 %v2991, %v3131
        %v3158 = vadd.f32 %v2992, %v3134
        %v3159 = vadd.f32 %v2993, %v3139
        %v3160 = vadd.f32 %v2994, %v3142
        %s3161 = sadd.s32 %s266, 5
        %s3162 = smul.u32 %s3161, 24
        %s3163 = scalar_lea.vmem %s263, %s3162
        %v3164 = vld [vmem:[%s3163 + $0x1] sm:$0xff]
        %v3165 = vld [vmem:[%s3163 + $0x9] sm:$0xff]
        %v3166 = vld [vmem:[%s3163 + $0x19] sm:$0xff]
        %v3167 = vld [vmem:[%s3163 + $0x21] sm:$0xff]
        %v3168 = vld [vmem:[%s3163 + $0x31] sm:$0xff]
        %v3169 = vld [vmem:[%s3163 + $0x39] sm:$0xff]
        %v3170 = vld [vmem:[%s3163 + $0x49] sm:$0xff]
        %v3171 = vld [vmem:[%s3163 + $0x51] sm:$0xff]
        %v3172 = vld [vmem:[%s3163 + $0x61] sm:$0xff]
        %v3173 = vld [vmem:[%s3163 + $0x69] sm:$0xff]
        %v3174 = vld [vmem:[%s3163 + $0x79] sm:$0xff]
        %v3175 = vld [vmem:[%s3163 + $0x81] sm:$0xff]
        %v3176 = vld [vmem:[%s3163 + $0x91] sm:$0xff]
        %v3177 = vld [vmem:[%s3163 + $0x99] sm:$0xff]
        %v3178 = vld [vmem:[%s3163 + $0xa9] sm:$0xff]
        %v3179 = vld [vmem:[%s3163 + $0xb1] sm:$0xff]
        %v3180 = vpack.c.bf16 %v3165, %v3164
        %v3181 = vpack.c.bf16 %v3167, %v3166
        %v3182 = vpack.c.bf16 %v3169, %v3168
        %v3183 = vpack.c.bf16 %v3171, %v3170
        %v3184 = vpack.c.bf16 %v3173, %v3172
        %v3185 = vpack.c.bf16 %v3175, %v3174
        %v3186 = vpack.c.bf16 %v3177, %v3176
        %v3187 = vpack.c.bf16 %v3179, %v3178
        %s3188 = scalar_lea.vmem %s2, 60
        %v3189 = vld [vmem:[%s3188] sm:$0xf]
        %v3191 = vsel %vm302, %v3180, 0
        %v3194 = vsel %vm302, %v3181, 0
        %v3197 = vsel %vm302, %v3182, 0
        %v3200 = vsel %vm302, %v3183, 0
        %v3203 = vsel %vm302, %v3184, 0
        %v3206 = vsel %vm302, %v3185, 0
        %v3209 = vsel %vm302, %v3186, 0
        %v3212 = vsel %vm302, %v3187, 0
        %v3215 = vsel %vm327, %v3189, 0
        %3217 = vmatprep.subr.bf16.mxu0 0
        %3218 = vmatpush1.bf16.msra.mxu0 %v3215
        %3219 = vmatprep.subr.bf16.mxu0 0
        %3220 = vmatpush1.bf16.msra.mxu0 0
        %3221 = vmatprep.subr.bf16.mxu0 0
        %3222 = vmatpush1.bf16.msra.mxu0 0
        %3223 = vmatprep.subr.bf16.mxu0 0
        %3224 = vmatpush1.bf16.msra.mxu0 0
        %3225 = vmatprep.subr.bf16.mxu0 0
        %3226 = vmatpush1.bf16.msra.mxu0 0
        %3227 = vmatprep.subr.bf16.mxu0 0
        %3228 = vmatpush1.bf16.msra.mxu0 0
        %3229 = vmatprep.subr.bf16.mxu0 0
        %3230 = vmatpush1.bf16.msra.mxu0 0
        %3231 = vmatprep.subr.bf16.mxu0 0
        %3232 = vmatpush1.bf16.msra.mxu0 0
        %3233 = vmatprep.subr.bf16.mxu0 0
        %3234 = vmatpush1.bf16.msra.mxu0 0
        %3235 = vmatprep.subr.bf16.mxu0 0
        %3236 = vmatpush1.bf16.msra.mxu0 0
        %3237 = vmatprep.subr.bf16.mxu0 0
        %3238 = vmatpush1.bf16.msra.mxu0 0
        %3239 = vmatprep.subr.bf16.mxu0 0
        %3240 = vmatpush1.bf16.msra.mxu0 0
        %3241 = vmatprep.subr.bf16.mxu0 0
        %3242 = vmatpush1.bf16.msra.mxu0 0
        %3243 = vmatprep.subr.bf16.mxu0 0
        %3244 = vmatpush1.bf16.msra.mxu0 0
        %3245 = vmatprep.subr.bf16.mxu0 0
        %3246 = vmatpush1.bf16.msra.mxu0 0
        %3247 = vmatprep.subr.bf16.mxu0 0
        %3248 = vmatpush1.bf16.msra.mxu0 0
        %3249 = vmatprep.mubr.bf16.mxu0 0
        %3250 = vmatmul.mubr.bf16.gmra.mrb[0].mxu0 %v3191
        %v3251 = vpop.f32.mrb[0].mxu0
        %v3252 = vadd.f32 0.0, %v3251
        %v3253 = vpop.f32.mrb[0].mxu0
        %v3254 = vpop.f32.mrb[0].mxu0
        %v3255 = vadd.f32 0.0, %v3254
        %v3256 = vpop.f32.mrb[0].mxu0
        %3257 = vmatprep.mubr.bf16.mxu0 0
        %3258 = vmatmul.mubr.bf16.gmra.mrb[0].mxu0 %v3194
        %v3259 = vpop.f32.mrb[0].mxu0
        %v3260 = vadd.f32 0.0, %v3259
        %v3261 = vpop.f32.mrb[0].mxu0
        %v3262 = vpop.f32.mrb[0].mxu0
        %v3263 = vadd.f32 0.0, %v3262
        %v3264 = vpop.f32.mrb[0].mxu0
        %3265 = vmatprep.mubr.bf16.mxu0 0
        %3266 = vmatmul.mubr.bf16.gmra.mrb[0].mxu0 %v3197
        %v3267 = vpop.f32.mrb[0].mxu0
        %v3268 = vadd.f32 0.0, %v3267
        %v3269 = vpop.f32.mrb[0].mxu0
        %v3270 = vpop.f32.mrb[0].mxu0
        %v3271 = vadd.f32 0.0, %v3270
        %v3272 = vpop.f32.mrb[0].mxu0
        %3273 = vmatprep.mubr.bf16.mxu0 0
        %3274 = vmatmul.mubr.bf16.gmra.mrb[0].mxu0 %v3200
        %v3275 = vpop.f32.mrb[0].mxu0
        %v3276 = vadd.f32 0.0, %v3275
        %v3277 = vpop.f32.mrb[0].mxu0
        %v3278 = vpop.f32.mrb[0].mxu0
        %v3279 = vadd.f32 0.0, %v3278
        %v3280 = vpop.f32.mrb[0].mxu0
        %3281 = vmatprep.mubr.bf16.mxu0 0
        %3282 = vmatmul.mubr.bf16.gmra.mrb[0].mxu0 %v3203
        %v3283 = vpop.f32.mrb[0].mxu0
        %v3284 = vadd.f32 0.0, %v3283
        %v3285 = vpop.f32.mrb[0].mxu0
        %v3286 = vpop.f32.mrb[0].mxu0
        %v3287 = vadd.f32 0.0, %v3286
        %v3288 = vpop.f32.mrb[0].mxu0
        %3289 = vmatprep.mubr.bf16.mxu0 0
        %3290 = vmatmul.mubr.bf16.gmra.mrb[0].mxu0 %v3206
        %v3291 = vpop.f32.mrb[0].mxu0
        %v3292 = vadd.f32 0.0, %v3291
        %v3293 = vpop.f32.mrb[0].mxu0
        %v3294 = vpop.f32.mrb[0].mxu0
        %v3295 = vadd.f32 0.0, %v3294
        %v3296 = vpop.f32.mrb[0].mxu0
        %3297 = vmatprep.mubr.bf16.mxu0 0
        %3298 = vmatmul.mubr.bf16.gmra.mrb[0].mxu0 %v3209
        %v3299 = vpop.f32.mrb[0].mxu0
        %v3300 = vadd.f32 0.0, %v3299
        %v3301 = vpop.f32.mrb[0].mxu0
        %v3302 = vpop.f32.mrb[0].mxu0
        %v3303 = vadd.f32 0.0, %v3302
        %v3304 = vpop.f32.mrb[0].mxu0
        %3305 = vmatprep.mubr.bf16.mxu0 0
        %3306 = vmatmul.mubr.bf16.gmra.mrb[0].mxu0 %v3212
        %v3307 = vpop.f32.mrb[0].mxu0
        %v3308 = vadd.f32 0.0, %v3307
        %v3309 = vpop.f32.mrb[0].mxu0
        %v3310 = vpop.f32.mrb[0].mxu0
        %v3311 = vadd.f32 0.0, %v3310
        %v3312 = vpop.f32.mrb[0].mxu0
        %3313 = vdwg.mxu0
        %v3314 = vadd.f32 %v3145, %v3252
        %v3315 = vadd.f32 %v3146, %v3255
        %v3316 = vadd.f32 %v3147, %v3260
        %v3317 = vadd.f32 %v3148, %v3263
        %v3318 = vadd.f32 %v3149, %v3268
        %v3319 = vadd.f32 %v3150, %v3271
        %v3320 = vadd.f32 %v3151, %v3276
        %v3321 = vadd.f32 %v3152, %v3279
        %v3322 = vadd.f32 %v3153, %v3284
        %v3323 = vadd.f32 %v3154, %v3287
        %v3324 = vadd.f32 %v3155, %v3292
        %v3325 = vadd.f32 %v3156, %v3295
        %v3326 = vadd.f32 %v3157, %v3300
        %v3327 = vadd.f32 %v3158, %v3303
        %v3328 = vadd.f32 %v3159, %v3308
        %v3329 = vadd.f32 %v3160, %v3311
        %v3330 = vld [vmem:[%s3163 + $0x3] sm:$0xff]
        %v3331 = vld [vmem:[%s3163 + $0xb] sm:$0xff]
        %v3332 = vld [vmem:[%s3163 + $0x1b] sm:$0xff]
        %v3333 = vld [vmem:[%s3163 + $0x23] sm:$0xff]
        %v3334 = vld [vmem:[%s3163 + $0x33] sm:$0xff]
        %v3335 = vld [vmem:[%s3163 + $0x3b] sm:$0xff]
        %v3336 = vld [vmem:[%s3163 + $0x4b] sm:$0xff]
        %v3337 = vld [vmem:[%s3163 + $0x53] sm:$0xff]
        %v3338 = vld [vmem:[%s3163 + $0x63] sm:$0xff]
        %v3339 = vld [vmem:[%s3163 + $0x6b] sm:$0xff]
        %v3340 = vld [vmem:[%s3163 + $0x7b] sm:$0xff]
        %v3341 = vld [vmem:[%s3163 + $0x83] sm:$0xff]
        %v3342 = vld [vmem:[%s3163 + $0x93] sm:$0xff]
        %v3343 = vld [vmem:[%s3163 + $0x9b] sm:$0xff]
        %v3344 = vld [vmem:[%s3163 + $0xab] sm:$0xff]
        %v3345 = vld [vmem:[%s3163 + $0xb3] sm:$0xff]
        %v3346 = vpack.c.bf16 %v3331, %v3330
        %v3347 = vpack.c.bf16 %v3333, %v3332
        %v3348 = vpack.c.bf16 %v3335, %v3334
        %v3349 = vpack.c.bf16 %v3337, %v3336
        %v3350 = vpack.c.bf16 %v3339, %v3338
        %v3351 = vpack.c.bf16 %v3341, %v3340
        %v3352 = vpack.c.bf16 %v3343, %v3342
        %v3353 = vpack.c.bf16 %v3345, %v3344
        %s3354 = scalar_lea.vmem %s2, 64
        %v3355 = vld [vmem:[%s3354] sm:$0xf]
        %v3357 = vsel %vm302, %v3346, 0
        %v3360 = vsel %vm302, %v3347, 0
        %v3363 = vsel %vm302, %v3348, 0
        %v3366 = vsel %vm302, %v3349, 0
        %v3369 = vsel %vm302, %v3350, 0
        %v3372 = vsel %vm302, %v3351, 0
        %v3375 = vsel %vm302, %v3352, 0
        %v3378 = vsel %vm302, %v3353, 0
        %v3381 = vsel %vm327, %v3355, 0
        %3383 = vmatprep.subr.bf16.mxu0 0
        %3384 = vmatpush1.bf16.msra.mxu0 %v3381
        %3385 = vmatprep.subr.bf16.mxu0 0
        %3386 = vmatpush1.bf16.msra.mxu0 0
        %3387 = vmatprep.subr.bf16.mxu0 0
        %3388 = vmatpush1.bf16.msra.mxu0 0
        %3389 = vmatprep.subr.bf16.mxu0 0
        %3390 = vmatpush1.bf16.msra.mxu0 0
        %3391 = vmatprep.subr.bf16.mxu0 0
        %3392 = vmatpush1.bf16.msra.mxu0 0
        %3393 = vmatprep.subr.bf16.mxu0 0
        %3394 = vmatpush1.bf16.msra.mxu0 0
        %3395 = vmatprep.subr.bf16.mxu0 0
        %3396 = vmatpush1.bf16.msra.mxu0 0
        %3397 = vmatprep.subr.bf16.mxu0 0
        %3398 = vmatpush1.bf16.msra.mxu0 0
        %3399 = vmatprep.subr.bf16.mxu0 0
        %3400 = vmatpush1.bf16.msra.mxu0 0
        %3401 = vmatprep.subr.bf16.mxu0 0
        %3402 = vmatpush1.bf16.msra.mxu0 0
        %3403 = vmatprep.subr.bf16.mxu0 0
        %3404 = vmatpush1.bf16.msra.mxu0 0
        %3405 = vmatprep.subr.bf16.mxu0 0
        %3406 = vmatpush1.bf16.msra.mxu0 0
        %3407 = vmatprep.subr.bf16.mxu0 0
        %3408 = vmatpush1.bf16.msra.mxu0 0
        %3409 = vmatprep.subr.bf16.mxu0 0
        %3410 = vmatpush1.bf16.msra.mxu0 0
        %3411 = vmatprep.subr.bf16.mxu0 0
        %3412 = vmatpush1.bf16.msra.mxu0 0
        %3413 = vmatprep.subr.bf16.mxu0 0
        %3414 = vmatpush1.bf16.msra.mxu0 0
        %3415 = vmatprep.mubr.bf16.mxu0 0
        %3416 = vmatmul.mubr.bf16.gmra.mrb[0].mxu0 %v3357
        %v3417 = vpop.f32.mrb[0].mxu0
        %v3418 = vadd.f32 0.0, %v3417
        %v3419 = vpop.f32.mrb[0].mxu0
        %v3420 = vpop.f32.mrb[0].mxu0
        %v3421 = vadd.f32 0.0, %v3420
        %v3422 = vpop.f32.mrb[0].mxu0
        %3423 = vmatprep.mubr.bf16.mxu0 0
        %3424 = vmatmul.mubr.bf16.gmra.mrb[0].mxu0 %v3360
        %v3425 = vpop.f32.mrb[0].mxu0
        %v3426 = vadd.f32 0.0, %v3425
        %v3427 = vpop.f32.mrb[0].mxu0
        %v3428 = vpop.f32.mrb[0].mxu0
        %v3429 = vadd.f32 0.0, %v3428
        %v3430 = vpop.f32.mrb[0].mxu0
        %3431 = vmatprep.mubr.bf16.mxu0 0
        %3432 = vmatmul.mubr.bf16.gmra.mrb[0].mxu0 %v3363
        %v3433 = vpop.f32.mrb[0].mxu0
        %v3434 = vadd.f32 0.0, %v3433
        %v3435 = vpop.f32.mrb[0].mxu0
        %v3436 = vpop.f32.mrb[0].mxu0
        %v3437 = vadd.f32 0.0, %v3436
        %v3438 = vpop.f32.mrb[0].mxu0
        %3439 = vmatprep.mubr.bf16.mxu0 0
        %3440 = vmatmul.mubr.bf16.gmra.mrb[0].mxu0 %v3366
        %v3441 = vpop.f32.mrb[0].mxu0
        %v3442 = vadd.f32 0.0, %v3441
        %v3443 = vpop.f32.mrb[0].mxu0
        %v3444 = vpop.f32.mrb[0].mxu0
        %v3445 = vadd.f32 0.0, %v3444
        %v3446 = vpop.f32.mrb[0].mxu0
        %3447 = vmatprep.mubr.bf16.mxu0 0
        %3448 = vmatmul.mubr.bf16.gmra.mrb[0].mxu0 %v3369
        %v3449 = vpop.f32.mrb[0].mxu0
        %v3450 = vadd.f32 0.0, %v3449
        %v3451 = vpop.f32.mrb[0].mxu0
        %v3452 = vpop.f32.mrb[0].mxu0
        %v3453 = vadd.f32 0.0, %v3452
        %v3454 = vpop.f32.mrb[0].mxu0
        %3455 = vmatprep.mubr.bf16.mxu0 0
        %3456 = vmatmul.mubr.bf16.gmra.mrb[0].mxu0 %v3372
        %v3457 = vpop.f32.mrb[0].mxu0
        %v3458 = vadd.f32 0.0, %v3457
        %v3459 = vpop.f32.mrb[0].mxu0
        %v3460 = vpop.f32.mrb[0].mxu0
        %v3461 = vadd.f32 0.0, %v3460
        %v3462 = vpop.f32.mrb[0].mxu0
        %3463 = vmatprep.mubr.bf16.mxu0 0
        %3464 = vmatmul.mubr.bf16.gmra.mrb[0].mxu0 %v3375
        %v3465 = vpop.f32.mrb[0].mxu0
        %v3466 = vadd.f32 0.0, %v3465
        %v3467 = vpop.f32.mrb[0].mxu0
        %v3468 = vpop.f32.mrb[0].mxu0
        %v3469 = vadd.f32 0.0, %v3468
        %v3470 = vpop.f32.mrb[0].mxu0
        %3471 = vmatprep.mubr.bf16.mxu0 0
        %3472 = vmatmul.mubr.bf16.gmra.mrb[0].mxu0 %v3378
        %v3473 = vpop.f32.mrb[0].mxu0
        %v3474 = vadd.f32 0.0, %v3473
        %v3475 = vpop.f32.mrb[0].mxu0
        %v3476 = vpop.f32.mrb[0].mxu0
        %v3477 = vadd.f32 0.0, %v3476
        %v3478 = vpop.f32.mrb[0].mxu0
        %3479 = vdwg.mxu0
        %v3480 = vadd.f32 %v3314, %v3418
        %v3481 = vadd.f32 %v3315, %v3421
        %v3482 = vadd.f32 %v3316, %v3426
        %v3483 = vadd.f32 %v3317, %v3429
        %v3484 = vadd.f32 %v3318, %v3434
        %v3485 = vadd.f32 %v3319, %v3437
        %v3486 = vadd.f32 %v3320, %v3442
        %v3487 = vadd.f32 %v3321, %v3445
        %v3488 = vadd.f32 %v3322, %v3450
        %v3489 = vadd.f32 %v3323, %v3453
        %v3490 = vadd.f32 %v3324, %v3458
        %v3491 = vadd.f32 %v3325, %v3461
        %v3492 = vadd.f32 %v3326, %v3466
        %v3493 = vadd.f32 %v3327, %v3469
        %v3494 = vadd.f32 %v3328, %v3474
        %v3495 = vadd.f32 %v3329, %v3477
        %v3496 = vld [vmem:[%s3163 + $0x5] sm:$0xff]
        %v3497 = vld [vmem:[%s3163 + $0xd] sm:$0xff]
        %v3498 = vld [vmem:[%s3163 + $0x1d] sm:$0xff]
        %v3499 = vld [vmem:[%s3163 + $0x25] sm:$0xff]
        %v3500 = vld [vmem:[%s3163 + $0x35] sm:$0xff]
        %v3501 = vld [vmem:[%s3163 + $0x3d] sm:$0xff]
        %v3502 = vld [vmem:[%s3163 + $0x4d] sm:$0xff]
        %v3503 = vld [vmem:[%s3163 + $0x55] sm:$0xff]
        %v3504 = vld [vmem:[%s3163 + $0x65] sm:$0xff]
        %v3505 = vld [vmem:[%s3163 + $0x6d] sm:$0xff]
        %v3506 = vld [vmem:[%s3163 + $0x7d] sm:$0xff]
        %v3507 = vld [vmem:[%s3163 + $0x85] sm:$0xff]
        %v3508 = vld [vmem:[%s3163 + $0x95] sm:$0xff]
        %v3509 = vld [vmem:[%s3163 + $0x9d] sm:$0xff]
        %v3510 = vld [vmem:[%s3163 + $0xad] sm:$0xff]
        %v3511 = vld [vmem:[%s3163 + $0xb5] sm:$0xff]
        %v3512 = vpack.c.bf16 %v3497, %v3496
        %v3513 = vpack.c.bf16 %v3499, %v3498
        %v3514 = vpack.c.bf16 %v3501, %v3500
        %v3515 = vpack.c.bf16 %v3503, %v3502
        %v3516 = vpack.c.bf16 %v3505, %v3504
        %v3517 = vpack.c.bf16 %v3507, %v3506
        %v3518 = vpack.c.bf16 %v3509, %v3508
        %v3519 = vpack.c.bf16 %v3511, %v3510
        %s3520 = scalar_lea.vmem %s2, 68
        %v3521 = vld [vmem:[%s3520] sm:$0xf]
        %v3523 = vsel %vm302, %v3512, 0
        %v3526 = vsel %vm302, %v3513, 0
        %v3529 = vsel %vm302, %v3514, 0
        %v3532 = vsel %vm302, %v3515, 0
        %v3535 = vsel %vm302, %v3516, 0
        %v3538 = vsel %vm302, %v3517, 0
        %v3541 = vsel %vm302, %v3518, 0
        %v3544 = vsel %vm302, %v3519, 0
        %v3547 = vsel %vm327, %v3521, 0
        %3549 = vmatprep.subr.bf16.mxu0 0
        %3550 = vmatpush1.bf16.msra.mxu0 %v3547
        %3551 = vmatprep.subr.bf16.mxu0 0
        %3552 = vmatpush1.bf16.msra.mxu0 0
        %3553 = vmatprep.subr.bf16.mxu0 0
        %3554 = vmatpush1.bf16.msra.mxu0 0
        %3555 = vmatprep.subr.bf16.mxu0 0
        %3556 = vmatpush1.bf16.msra.mxu0 0
        %3557 = vmatprep.subr.bf16.mxu0 0
        %3558 = vmatpush1.bf16.msra.mxu0 0
        %3559 = vmatprep.subr.bf16.mxu0 0
        %3560 = vmatpush1.bf16.msra.mxu0 0
        %3561 = vmatprep.subr.bf16.mxu0 0
        %3562 = vmatpush1.bf16.msra.mxu0 0
        %3563 = vmatprep.subr.bf16.mxu0 0
        %3564 = vmatpush1.bf16.msra.mxu0 0
        %3565 = vmatprep.subr.bf16.mxu0 0
        %3566 = vmatpush1.bf16.msra.mxu0 0
        %3567 = vmatprep.subr.bf16.mxu0 0
        %3568 = vmatpush1.bf16.msra.mxu0 0
        %3569 = vmatprep.subr.bf16.mxu0 0
        %3570 = vmatpush1.bf16.msra.mxu0 0
        %3571 = vmatprep.subr.bf16.mxu0 0
        %3572 = vmatpush1.bf16.msra.mxu0 0
        %3573 = vmatprep.subr.bf16.mxu0 0
        %3574 = vmatpush1.bf16.msra.mxu0 0
        %3575 = vmatprep.subr.bf16.mxu0 0
        %3576 = vmatpush1.bf16.msra.mxu0 0
        %3577 = vmatprep.subr.bf16.mxu0 0
        %3578 = vmatpush1.bf16.msra.mxu0 0
        %3579 = vmatprep.subr.bf16.mxu0 0
        %3580 = vmatpush1.bf16.msra.mxu0 0
        %3581 = vmatprep.mubr.bf16.mxu0 0
        %3582 = vmatmul.mubr.bf16.gmra.mrb[0].mxu0 %v3523
        %v3583 = vpop.f32.mrb[0].mxu0
        %v3584 = vadd.f32 0.0, %v3583
        %v3585 = vpop.f32.mrb[0].mxu0
        %v3586 = vpop.f32.mrb[0].mxu0
        %v3587 = vadd.f32 0.0, %v3586
        %v3588 = vpop.f32.mrb[0].mxu0
        %3589 = vmatprep.mubr.bf16.mxu0 0
        %3590 = vmatmul.mubr.bf16.gmra.mrb[0].mxu0 %v3526
        %v3591 = vpop.f32.mrb[0].mxu0
        %v3592 = vadd.f32 0.0, %v3591
        %v3593 = vpop.f32.mrb[0].mxu0
        %v3594 = vpop.f32.mrb[0].mxu0
        %v3595 = vadd.f32 0.0, %v3594
        %v3596 = vpop.f32.mrb[0].mxu0
        %3597 = vmatprep.mubr.bf16.mxu0 0
        %3598 = vmatmul.mubr.bf16.gmra.mrb[0].mxu0 %v3529
        %v3599 = vpop.f32.mrb[0].mxu0
        %v3600 = vadd.f32 0.0, %v3599
        %v3601 = vpop.f32.mrb[0].mxu0
        %v3602 = vpop.f32.mrb[0].mxu0
        %v3603 = vadd.f32 0.0, %v3602
        %v3604 = vpop.f32.mrb[0].mxu0
        %3605 = vmatprep.mubr.bf16.mxu0 0
        %3606 = vmatmul.mubr.bf16.gmra.mrb[0].mxu0 %v3532
        %v3607 = vpop.f32.mrb[0].mxu0
        %v3608 = vadd.f32 0.0, %v3607
        %v3609 = vpop.f32.mrb[0].mxu0
        %v3610 = vpop.f32.mrb[0].mxu0
        %v3611 = vadd.f32 0.0, %v3610
        %v3612 = vpop.f32.mrb[0].mxu0
        %3613 = vmatprep.mubr.bf16.mxu0 0
        %3614 = vmatmul.mubr.bf16.gmra.mrb[0].mxu0 %v3535
        %v3615 = vpop.f32.mrb[0].mxu0
        %v3616 = vadd.f32 0.0, %v3615
        %v3617 = vpop.f32.mrb[0].mxu0
        %v3618 = vpop.f32.mrb[0].mxu0
        %v3619 = vadd.f32 0.0, %v3618
        %v3620 = vpop.f32.mrb[0].mxu0
        %3621 = vmatprep.mubr.bf16.mxu0 0
        %3622 = vmatmul.mubr.bf16.gmra.mrb[0].mxu0 %v3538
        %v3623 = vpop.f32.mrb[0].mxu0
        %v3624 = vadd.f32 0.0, %v3623
        %v3625 = vpop.f32.mrb[0].mxu0
        %v3626 = vpop.f32.mrb[0].mxu0
        %v3627 = vadd.f32 0.0, %v3626
        %v3628 = vpop.f32.mrb[0].mxu0
        %3629 = vmatprep.mubr.bf16.mxu0 0
        %3630 = vmatmul.mubr.bf16.gmra.mrb[0].mxu0 %v3541
        %v3631 = vpop.f32.mrb[0].mxu0
        %v3632 = vadd.f32 0.0, %v3631
        %v3633 = vpop.f32.mrb[0].mxu0
        %v3634 = vpop.f32.mrb[0].mxu0
        %v3635 = vadd.f32 0.0, %v3634
        %v3636 = vpop.f32.mrb[0].mxu0
        %3637 = vmatprep.mubr.bf16.mxu0 0
        %3638 = vmatmul.mubr.bf16.gmra.mrb[0].mxu0 %v3544
        %v3639 = vpop.f32.mrb[0].mxu0
        %v3640 = vadd.f32 0.0, %v3639
        %v3641 = vpop.f32.mrb[0].mxu0
        %v3642 = vpop.f32.mrb[0].mxu0
        %v3643 = vadd.f32 0.0, %v3642
        %v3644 = vpop.f32.mrb[0].mxu0
        %3645 = vdwg.mxu0
        %v3646 = vadd.f32 %v3480, %v3584
        %v3647 = vadd.f32 %v3481, %v3587
        %v3648 = vadd.f32 %v3482, %v3592
        %v3649 = vadd.f32 %v3483, %v3595
        %v3650 = vadd.f32 %v3484, %v3600
        %v3651 = vadd.f32 %v3485, %v3603
        %v3652 = vadd.f32 %v3486, %v3608
        %v3653 = vadd.f32 %v3487, %v3611
        %v3654 = vadd.f32 %v3488, %v3616
        %v3655 = vadd.f32 %v3489, %v3619
        %v3656 = vadd.f32 %v3490, %v3624
        %v3657 = vadd.f32 %v3491, %v3627
        %v3658 = vadd.f32 %v3492, %v3632
        %v3659 = vadd.f32 %v3493, %v3635
        %v3660 = vadd.f32 %v3494, %v3640
        %v3661 = vadd.f32 %v3495, %v3643
        %s3662 = scalar_lea.vmem %s5, 2
        %v3663 = vld [vmem:[%s3662] sm:$0x1]
        %v3665 = vlaneseq
        %v3666 = vshrl.u32 %v3665, 7
        %v3667 = vsub.s32 0, %v3666
        %v3668 = vrot.slane %v3663, %v3667
        %v3670 = vadd.f32 %v3646, %v3668
        %v3671 = vadd.f32 %v3647, %v3668
        %v3672 = vadd.f32 %v3648, %v3668
        %v3673 = vadd.f32 %v3649, %v3668
        %v3674 = vadd.f32 %v3650, %v3668
        %v3675 = vadd.f32 %v3651, %v3668
        %v3676 = vadd.f32 %v3652, %v3668
        %v3677 = vadd.f32 %v3653, %v3668
        %v3678 = vadd.f32 %v3654, %v3668
        %v3679 = vadd.f32 %v3655, %v3668
        %v3680 = vadd.f32 %v3656, %v3668
        %v3681 = vadd.f32 %v3657, %v3668
        %v3682 = vadd.f32 %v3658, %v3668
        %v3683 = vadd.f32 %v3659, %v3668
        %v3684 = vadd.f32 %v3660, %v3668
        %v3685 = vadd.f32 %v3661, %v3668
        %v3686 = vmax.f32 %v3670, 0.0
        %v3687 = vmax.f32 %v3671, 0.0
        %v3688 = vmax.f32 %v3672, 0.0
        %v3689 = vmax.f32 %v3673, 0.0
        %v3690 = vmax.f32 %v3674, 0.0
        %v3691 = vmax.f32 %v3675, 0.0
        %v3692 = vmax.f32 %v3676, 0.0
        %v3693 = vmax.f32 %v3677, 0.0
        %v3694 = vmax.f32 %v3678, 0.0
        %v3695 = vmax.f32 %v3679, 0.0
        %v3696 = vmax.f32 %v3680, 0.0
        %v3697 = vmax.f32 %v3681, 0.0
        %v3698 = vmax.f32 %v3682, 0.0
        %v3699 = vmax.f32 %v3683, 0.0
        %v3700 = vmax.f32 %v3684, 0.0
        %v3701 = vmax.f32 %v3685, 0.0
        %v3702 = vpack.c.bf16 %v3687, %v3686
        %v3703 = vpack.c.bf16 %v3689, %v3688
        %v3704 = vpack.c.bf16 %v3691, %v3690
        %v3705 = vpack.c.bf16 %v3693, %v3692
        %v3706 = vpack.c.bf16 %v3695, %v3694
        %v3707 = vpack.c.bf16 %v3697, %v3696
        %v3708 = vpack.c.bf16 %v3699, %v3698
        %v3709 = vpack.c.bf16 %v3701, %v3700
        %s3710 = scalar_lea.vmem %s4, 128
        %v3711 = vld [vmem:[%s3710] sm:$0xf]
        %v3712 = vld [vmem:[%s3710 + $0x4] sm:$0xf]
        %v3713 = vld [vmem:[%s3710 + $0x8] sm:$0xf]
        %v3714 = vld [vmem:[%s3710 + $0xc] sm:$0xf]
        %v3715 = vld [vmem:[%s3710 + $0x10] sm:$0xf]
        %v3716 = vld [vmem:[%s3710 + $0x14] sm:$0xf]
        %v3717 = vld [vmem:[%s3710 + $0x18] sm:$0xf]
        %v3718 = vld [vmem:[%s3710 + $0x1c] sm:$0xf]
        %v3719 = vld [vmem:[%s3710 + $0x20] sm:$0xf]
        %v3720 = vld [vmem:[%s3710 + $0x24] sm:$0xf]
        %v3721 = vld [vmem:[%s3710 + $0x28] sm:$0xf]
        %v3722 = vld [vmem:[%s3710 + $0x2c] sm:$0xf]
        %v3723 = vld [vmem:[%s3710 + $0x30] sm:$0xf]
        %v3724 = vld [vmem:[%s3710 + $0x34] sm:$0xf]
        %v3725 = vld [vmem:[%s3710 + $0x38] sm:$0xf]
        %v3726 = vld [vmem:[%s3710 + $0x3c] sm:$0xf]
        %v3743 = vunpack.c.l.b16 %v3711
        %v3744 = vunpack.c.l.b16 %v3712
        %v3745 = vunpack.c.l.b16 %v3713
        %v3746 = vunpack.c.l.b16 %v3714
        %v3747 = vunpack.c.l.b16 %v3715
        %v3748 = vunpack.c.l.b16 %v3716
        %v3749 = vunpack.c.l.b16 %v3717
        %v3750 = vunpack.c.l.b16 %v3718
        %v3751 = vunpack.c.l.b16 %v3719
        %v3752 = vunpack.c.l.b16 %v3720
        %v3753 = vunpack.c.l.b16 %v3721
        %v3754 = vunpack.c.l.b16 %v3722
        %v3755 = vunpack.c.l.b16 %v3723
        %v3756 = vunpack.c.l.b16 %v3724
        %v3757 = vunpack.c.l.b16 %v3725
        %v3758 = vunpack.c.l.b16 %v3726
        %v3759 = vpack.c.b16 %v3744, %v3743
        %v3760 = vpack.c.b16 %v3746, %v3745
        %v3761 = vpack.c.b16 %v3748, %v3747
        %v3762 = vpack.c.b16 %v3750, %v3749
        %v3763 = vpack.c.b16 %v3752, %v3751
        %v3764 = vpack.c.b16 %v3754, %v3753
        %v3765 = vpack.c.b16 %v3756, %v3755
        %v3766 = vpack.c.b16 %v3758, %v3757
        %3775 = vmatprep.subr.bf16.mxu0 0
        %3776 = vmatpush1.bf16.msra.mxu0 %v3759
        %3777 = vmatprep.subr.bf16.mxu0 0
        %3778 = vmatpush1.bf16.msra.mxu0 %v3760
        %3779 = vmatprep.subr.bf16.mxu0 0
        %3780 = vmatpush1.bf16.msra.mxu0 %v3761
        %3781 = vmatprep.subr.bf16.mxu0 0
        %3782 = vmatpush1.bf16.msra.mxu0 %v3762
        %3783 = vmatprep.subr.bf16.mxu0 0
        %3784 = vmatpush1.bf16.msra.mxu0 %v3763
        %3785 = vmatprep.subr.bf16.mxu0 0
        %3786 = vmatpush1.bf16.msra.mxu0 %v3764
        %3787 = vmatprep.subr.bf16.mxu0 0
        %3788 = vmatpush1.bf16.msra.mxu0 %v3765
        %3789 = vmatprep.subr.bf16.mxu0 0
        %3790 = vmatpush1.bf16.msra.mxu0 %v3766
        %3791 = vmatprep.subr.bf16.mxu0 0
        %3792 = vmatpush1.bf16.msra.mxu0 0
        %3793 = vmatprep.subr.bf16.mxu0 0
        %3794 = vmatpush1.bf16.msra.mxu0 0
        %3795 = vmatprep.subr.bf16.mxu0 0
        %3796 = vmatpush1.bf16.msra.mxu0 0
        %3797 = vmatprep.subr.bf16.mxu0 0
        %3798 = vmatpush1.bf16.msra.mxu0 0
        %3799 = vmatprep.subr.bf16.mxu0 0
        %3800 = vmatpush1.bf16.msra.mxu0 0
        %3801 = vmatprep.subr.bf16.mxu0 0
        %3802 = vmatpush1.bf16.msra.mxu0 0
        %3803 = vmatprep.subr.bf16.mxu0 0
        %3804 = vmatpush1.bf16.msra.mxu0 0
        %3805 = vmatprep.subr.bf16.mxu0 0
        %3806 = vmatpush1.bf16.msra.mxu0 0
        %3807 = vmatprep.mubr.bf16.mxu0 0
        %3808 = vmatmul.mubr.bf16.gmra.mrb[0].mxu0 %v3702
        %v3809 = vpop.f32.mrb[0].mxu0
        %v3810 = vadd.f32 0.0, %v3809
        %v3811 = vpop.f32.mrb[0].mxu0
        %v3812 = vpop.f32.mrb[0].mxu0
        %v3813 = vadd.f32 0.0, %v3812
        %v3814 = vpop.f32.mrb[0].mxu0
        %3815 = vmatprep.mubr.bf16.mxu0 0
        %3816 = vmatmul.mubr.bf16.gmra.mrb[0].mxu0 %v3703
        %v3817 = vpop.f32.mrb[0].mxu0
        %v3818 = vadd.f32 0.0, %v3817
        %v3819 = vpop.f32.mrb[0].mxu0
        %v3820 = vpop.f32.mrb[0].mxu0
        %v3821 = vadd.f32 0.0, %v3820
        %v3822 = vpop.f32.mrb[0].mxu0
        %3823 = vmatprep.mubr.bf16.mxu0 0
        %3824 = vmatmul.mubr.bf16.gmra.mrb[0].mxu0 %v3704
        %v3825 = vpop.f32.mrb[0].mxu0
        %v3826 = vadd.f32 0.0, %v3825
        %v3827 = vpop.f32.mrb[0].mxu0
        %v3828 = vpop.f32.mrb[0].mxu0
        %v3829 = vadd.f32 0.0, %v3828
        %v3830 = vpop.f32.mrb[0].mxu0
        %3831 = vmatprep.mubr.bf16.mxu0 0
        %3832 = vmatmul.mubr.bf16.gmra.mrb[0].mxu0 %v3705
        %v3833 = vpop.f32.mrb[0].mxu0
        %v3834 = vadd.f32 0.0, %v3833
        %v3835 = vpop.f32.mrb[0].mxu0
        %v3836 = vpop.f32.mrb[0].mxu0
        %v3837 = vadd.f32 0.0, %v3836
        %v3838 = vpop.f32.mrb[0].mxu0
        %3839 = vmatprep.mubr.bf16.mxu0 0
        %3840 = vmatmul.mubr.bf16.gmra.mrb[0].mxu0 %v3706
        %v3841 = vpop.f32.mrb[0].mxu0
        %v3842 = vadd.f32 0.0, %v3841
        %v3843 = vpop.f32.mrb[0].mxu0
        %v3844 = vpop.f32.mrb[0].mxu0
        %v3845 = vadd.f32 0.0, %v3844
        %v3846 = vpop.f32.mrb[0].mxu0
        %3847 = vmatprep.mubr.bf16.mxu0 0
        %3848 = vmatmul.mubr.bf16.gmra.mrb[0].mxu0 %v3707
        %v3849 = vpop.f32.mrb[0].mxu0
        %v3850 = vadd.f32 0.0, %v3849
        %v3851 = vpop.f32.mrb[0].mxu0
        %v3852 = vpop.f32.mrb[0].mxu0
        %v3853 = vadd.f32 0.0, %v3852
        %v3854 = vpop.f32.mrb[0].mxu0
        %3855 = vmatprep.mubr.bf16.mxu0 0
        %3856 = vmatmul.mubr.bf16.gmra.mrb[0].mxu0 %v3708
        %v3857 = vpop.f32.mrb[0].mxu0
        %v3858 = vadd.f32 0.0, %v3857
        %v3859 = vpop.f32.mrb[0].mxu0
        %v3860 = vpop.f32.mrb[0].mxu0
        %v3861 = vadd.f32 0.0, %v3860
        %v3862 = vpop.f32.mrb[0].mxu0
        %3863 = vmatprep.mubr.bf16.mxu0 0
        %3864 = vmatmul.mubr.bf16.gmra.mrb[0].mxu0 %v3709
        %v3865 = vpop.f32.mrb[0].mxu0
        %v3866 = vadd.f32 0.0, %v3865
        %v3867 = vpop.f32.mrb[0].mxu0
        %v3868 = vpop.f32.mrb[0].mxu0
        %v3869 = vadd.f32 0.0, %v3868
        %v3870 = vpop.f32.mrb[0].mxu0
        %3871 = vdwg.mxu0
        %v3872 = vadd.f32 %v2180, %v3810
        %v3873 = vadd.f32 %v2183, %v3813
        %v3874 = vadd.f32 %v2188, %v3818
        %v3875 = vadd.f32 %v2191, %v3821
        %v3876 = vadd.f32 %v2196, %v3826
        %v3877 = vadd.f32 %v2199, %v3829
        %v3878 = vadd.f32 %v2204, %v3834
        %v3879 = vadd.f32 %v2207, %v3837
        %v3880 = vadd.f32 %v2212, %v3842
        %v3881 = vadd.f32 %v2215, %v3845
        %v3882 = vadd.f32 %v2220, %v3850
        %v3883 = vadd.f32 %v2223, %v3853
        %v3884 = vadd.f32 %v2228, %v3858
        %v3885 = vadd.f32 %v2231, %v3861
        %v3886 = vadd.f32 %v2236, %v3866
        %v3887 = vadd.f32 %v2239, %v3869
        %s3888 = smul.u32 %s266, 24
        %s3889 = scalar_lea.vmem %s263, %s3888
        %v3890 = vld [vmem:[%s3889] sm:$0xff]
        %v3891 = vld [vmem:[%s3889 + $0x8] sm:$0xff]
        %v3892 = vld [vmem:[%s3889 + $0x18] sm:$0xff]
        %v3893 = vld [vmem:[%s3889 + $0x20] sm:$0xff]
        %v3894 = vld [vmem:[%s3889 + $0x30] sm:$0xff]
        %v3895 = vld [vmem:[%s3889 + $0x38] sm:$0xff]
        %v3896 = vld [vmem:[%s3889 + $0x48] sm:$0xff]
        %v3897 = vld [vmem:[%s3889 + $0x50] sm:$0xff]
        %v3898 = vld [vmem:[%s3889 + $0x60] sm:$0xff]
        %v3899 = vld [vmem:[%s3889 + $0x68] sm:$0xff]
        %v3900 = vld [vmem:[%s3889 + $0x78] sm:$0xff]
        %v3901 = vld [vmem:[%s3889 + $0x80] sm:$0xff]
        %v3902 = vld [vmem:[%s3889 + $0x90] sm:$0xff]
        %v3903 = vld [vmem:[%s3889 + $0x98] sm:$0xff]
        %v3904 = vld [vmem:[%s3889 + $0xa8] sm:$0xff]
        %v3905 = vld [vmem:[%s3889 + $0xb0] sm:$0xff]
        %v3906 = vpack.c.bf16 %v3891, %v3890
        %v3907 = vpack.c.bf16 %v3893, %v3892
        %v3908 = vpack.c.bf16 %v3895, %v3894
        %v3909 = vpack.c.bf16 %v3897, %v3896
        %v3910 = vpack.c.bf16 %v3899, %v3898
        %v3911 = vpack.c.bf16 %v3901, %v3900
        %v3912 = vpack.c.bf16 %v3903, %v3902
        %v3913 = vpack.c.bf16 %v3905, %v3904
        %s3914 = scalar_lea.vmem %s2, 72
        %v3915 = vld [vmem:[%s3914] sm:$0xf]
        %v3916 = vld [vmem:[%s3889 + $0x3] sm:$0xff]
        %v3917 = vld [vmem:[%s3889 + $0xb] sm:$0xff]
        %v3918 = vld [vmem:[%s3889 + $0x1b] sm:$0xff]
        %v3919 = vld [vmem:[%s3889 + $0x23] sm:$0xff]
        %v3920 = vld [vmem:[%s3889 + $0x33] sm:$0xff]
        %v3921 = vld [vmem:[%s3889 + $0x3b] sm:$0xff]
        %v3922 = vld [vmem:[%s3889 + $0x4b] sm:$0xff]
        %v3923 = vld [vmem:[%s3889 + $0x53] sm:$0xff]
        %v3924 = vld [vmem:[%s3889 + $0x63] sm:$0xff]
        %v3925 = vld [vmem:[%s3889 + $0x6b] sm:$0xff]
        %v3926 = vld [vmem:[%s3889 + $0x7b] sm:$0xff]
        %v3927 = vld [vmem:[%s3889 + $0x83] sm:$0xff]
        %v3928 = vld [vmem:[%s3889 + $0x93] sm:$0xff]
        %v3929 = vld [vmem:[%s3889 + $0x9b] sm:$0xff]
        %v3930 = vld [vmem:[%s3889 + $0xab] sm:$0xff]
        %v3931 = vld [vmem:[%s3889 + $0xb3] sm:$0xff]
        %v3932 = vpack.c.bf16 %v3917, %v3916
        %v3933 = vpack.c.bf16 %v3919, %v3918
        %v3934 = vpack.c.bf16 %v3921, %v3920
        %v3935 = vpack.c.bf16 %v3923, %v3922
        %v3936 = vpack.c.bf16 %v3925, %v3924
        %v3937 = vpack.c.bf16 %v3927, %v3926
        %v3938 = vpack.c.bf16 %v3929, %v3928
        %v3939 = vpack.c.bf16 %v3931, %v3930
        %s3940 = scalar_lea.vmem %s2, 76
        %v3941 = vld [vmem:[%s3940] sm:$0xf]
        %v3943 = vsel %vm302, %v3932, 0
        %v3946 = vsel %vm302, %v3933, 0
        %v3949 = vsel %vm302, %v3934, 0
        %v3952 = vsel %vm302, %v3935, 0
        %v3955 = vsel %vm302, %v3936, 0
        %v3958 = vsel %vm302, %v3937, 0
        %v3961 = vsel %vm302, %v3938, 0
        %v3964 = vsel %vm302, %v3939, 0
        %v3967 = vsel %vm327, %v3941, 0
        %3969 = vmatprep.subr.bf16.mxu0 0
        %3970 = vmatpush1.bf16.msra.mxu0 %v3967
        %3971 = vmatprep.subr.bf16.mxu0 0
        %3972 = vmatpush1.bf16.msra.mxu0 0
        %3973 = vmatprep.subr.bf16.mxu0 0
        %3974 = vmatpush1.bf16.msra.mxu0 0
        %3975 = vmatprep.subr.bf16.mxu0 0
        %3976 = vmatpush1.bf16.msra.mxu0 0
        %3977 = vmatprep.subr.bf16.mxu0 0
        %3978 = vmatpush1.bf16.msra.mxu0 0
        %3979 = vmatprep.subr.bf16.mxu0 0
        %3980 = vmatpush1.bf16.msra.mxu0 0
        %3981 = vmatprep.subr.bf16.mxu0 0
        %3982 = vmatpush1.bf16.msra.mxu0 0
        %3983 = vmatprep.subr.bf16.mxu0 0
        %3984 = vmatpush1.bf16.msra.mxu0 0
        %3985 = vmatprep.subr.bf16.mxu0 0
        %3986 = vmatpush1.bf16.msra.mxu0 0
        %3987 = vmatprep.subr.bf16.mxu0 0
        %3988 = vmatpush1.bf16.msra.mxu0 0
        %3989 = vmatprep.subr.bf16.mxu0 0
        %3990 = vmatpush1.bf16.msra.mxu0 0
        %3991 = vmatprep.subr.bf16.mxu0 0
        %3992 = vmatpush1.bf16.msra.mxu0 0
        %3993 = vmatprep.subr.bf16.mxu0 0
        %3994 = vmatpush1.bf16.msra.mxu0 0
        %3995 = vmatprep.subr.bf16.mxu0 0
        %3996 = vmatpush1.bf16.msra.mxu0 0
        %3997 = vmatprep.subr.bf16.mxu0 0
        %3998 = vmatpush1.bf16.msra.mxu0 0
        %3999 = vmatprep.subr.bf16.mxu0 0
        %4000 = vmatpush1.bf16.msra.mxu0 0
        %4001 = vmatprep.mubr.bf16.mxu0 0
        %4002 = vmatmul.mubr.bf16.gmra.mrb[0].mxu0 %v3943
        %v4003 = vpop.f32.mrb[0].mxu0
        %v4004 = vadd.f32 0.0, %v4003
        %v4005 = vpop.f32.mrb[0].mxu0
        %v4006 = vpop.f32.mrb[0].mxu0
        %v4007 = vadd.f32 0.0, %v4006
        %v4008 = vpop.f32.mrb[0].mxu0
        %4009 = vmatprep.mubr.bf16.mxu0 0
        %4010 = vmatmul.mubr.bf16.gmra.mrb[0].mxu0 %v3946
        %v4011 = vpop.f32.mrb[0].mxu0
        %v4012 = vadd.f32 0.0, %v4011
        %v4013 = vpop.f32.mrb[0].mxu0
        %v4014 = vpop.f32.mrb[0].mxu0
        %v4015 = vadd.f32 0.0, %v4014
        %v4016 = vpop.f32.mrb[0].mxu0
        %4017 = vmatprep.mubr.bf16.mxu0 0
        %4018 = vmatmul.mubr.bf16.gmra.mrb[0].mxu0 %v3949
        %v4019 = vpop.f32.mrb[0].mxu0
        %v4020 = vadd.f32 0.0, %v4019
        %v4021 = vpop.f32.mrb[0].mxu0
        %v4022 = vpop.f32.mrb[0].mxu0
        %v4023 = vadd.f32 0.0, %v4022
        %v4024 = vpop.f32.mrb[0].mxu0
        %4025 = vmatprep.mubr.bf16.mxu0 0
        %4026 = vmatmul.mubr.bf16.gmra.mrb[0].mxu0 %v3952
        %v4027 = vpop.f32.mrb[0].mxu0
        %v4028 = vadd.f32 0.0, %v4027
        %v4029 = vpop.f32.mrb[0].mxu0
        %v4030 = vpop.f32.mrb[0].mxu0
        %v4031 = vadd.f32 0.0, %v4030
        %v4032 = vpop.f32.mrb[0].mxu0
        %4033 = vmatprep.mubr.bf16.mxu0 0
        %4034 = vmatmul.mubr.bf16.gmra.mrb[0].mxu0 %v3955
        %v4035 = vpop.f32.mrb[0].mxu0
        %v4036 = vadd.f32 0.0, %v4035
        %v4037 = vpop.f32.mrb[0].mxu0
        %v4038 = vpop.f32.mrb[0].mxu0
        %v4039 = vadd.f32 0.0, %v4038
        %v4040 = vpop.f32.mrb[0].mxu0
        %4041 = vmatprep.mubr.bf16.mxu0 0
        %4042 = vmatmul.mubr.bf16.gmra.mrb[0].mxu0 %v3958
        %v4043 = vpop.f32.mrb[0].mxu0
        %v4044 = vadd.f32 0.0, %v4043
        %v4045 = vpop.f32.mrb[0].mxu0
        %v4046 = vpop.f32.mrb[0].mxu0
        %v4047 = vadd.f32 0.0, %v4046
        %v4048 = vpop.f32.mrb[0].mxu0
        %4049 = vmatprep.mubr.bf16.mxu0 0
        %4050 = vmatmul.mubr.bf16.gmra.mrb[0].mxu0 %v3961
        %v4051 = vpop.f32.mrb[0].mxu0
        %v4052 = vadd.f32 0.0, %v4051
        %v4053 = vpop.f32.mrb[0].mxu0
        %v4054 = vpop.f32.mrb[0].mxu0
        %v4055 = vadd.f32 0.0, %v4054
        %v4056 = vpop.f32.mrb[0].mxu0
        %4057 = vmatprep.mubr.bf16.mxu0 0
        %4058 = vmatmul.mubr.bf16.gmra.mrb[0].mxu0 %v3964
        %v4059 = vpop.f32.mrb[0].mxu0
        %v4060 = vadd.f32 0.0, %v4059
        %v4061 = vpop.f32.mrb[0].mxu0
        %v4062 = vpop.f32.mrb[0].mxu0
        %v4063 = vadd.f32 0.0, %v4062
        %v4064 = vpop.f32.mrb[0].mxu0
        %4065 = vdwg.mxu0
        %v4067 = vsel %vm302, %v3906, 0
        %v4070 = vsel %vm302, %v3907, 0
        %v4073 = vsel %vm302, %v3908, 0
        %v4076 = vsel %vm302, %v3909, 0
        %v4079 = vsel %vm302, %v3910, 0
        %v4082 = vsel %vm302, %v3911, 0
        %v4085 = vsel %vm302, %v3912, 0
        %v4088 = vsel %vm302, %v3913, 0
        %v4091 = vsel %vm327, %v3915, 0
        %4093 = vmatprep.subr.bf16.mxu0 0
        %4094 = vmatpush1.bf16.msra.mxu0 %v4091
        %4095 = vmatprep.subr.bf16.mxu0 0
        %4096 = vmatpush1.bf16.msra.mxu0 0
        %4097 = vmatprep.subr.bf16.mxu0 0
        %4098 = vmatpush1.bf16.msra.mxu0 0
        %4099 = vmatprep.subr.bf16.mxu0 0
        %4100 = vmatpush1.bf16.msra.mxu0 0
        %4101 = vmatprep.subr.bf16.mxu0 0
        %4102 = vmatpush1.bf16.msra.mxu0 0
        %4103 = vmatprep.subr.bf16.mxu0 0
        %4104 = vmatpush1.bf16.msra.mxu0 0
        %4105 = vmatprep.subr.bf16.mxu0 0
        %4106 = vmatpush1.bf16.msra.mxu0 0
        %4107 = vmatprep.subr.bf16.mxu0 0
        %4108 = vmatpush1.bf16.msra.mxu0 0
        %4109 = vmatprep.subr.bf16.mxu0 0
        %4110 = vmatpush1.bf16.msra.mxu0 0
        %4111 = vmatprep.subr.bf16.mxu0 0
        %4112 = vmatpush1.bf16.msra.mxu0 0
        %4113 = vmatprep.subr.bf16.mxu0 0
        %4114 = vmatpush1.bf16.msra.mxu0 0
        %4115 = vmatprep.subr.bf16.mxu0 0
        %4116 = vmatpush1.bf16.msra.mxu0 0
        %4117 = vmatprep.subr.bf16.mxu0 0
        %4118 = vmatpush1.bf16.msra.mxu0 0
        %4119 = vmatprep.subr.bf16.mxu0 0
        %4120 = vmatpush1.bf16.msra.mxu0 0
        %4121 = vmatprep.subr.bf16.mxu0 0
        %4122 = vmatpush1.bf16.msra.mxu0 0
        %4123 = vmatprep.subr.bf16.mxu0 0
        %4124 = vmatpush1.bf16.msra.mxu0 0
        %4125 = vmatprep.mubr.bf16.mxu0 0
        %4126 = vmatmul.mubr.bf16.gmra.mrb[0].mxu0 %v4067
        %v4127 = vpop.f32.mrb[0].mxu0
        %v4128 = vadd.f32 %v4004, %v4127
        %v4129 = vpop.f32.mrb[0].mxu0
        %v4130 = vpop.f32.mrb[0].mxu0
        %v4131 = vadd.f32 %v4007, %v4130
        %v4132 = vpop.f32.mrb[0].mxu0
        %4133 = vmatprep.mubr.bf16.mxu0 0
        %4134 = vmatmul.mubr.bf16.gmra.mrb[0].mxu0 %v4070
        %v4135 = vpop.f32.mrb[0].mxu0
        %v4136 = vadd.f32 %v4012, %v4135
        %v4137 = vpop.f32.mrb[0].mxu0
        %v4138 = vpop.f32.mrb[0].mxu0
        %v4139 = vadd.f32 %v4015, %v4138
        %v4140 = vpop.f32.mrb[0].mxu0
        %4141 = vmatprep.mubr.bf16.mxu0 0
        %4142 = vmatmul.mubr.bf16.gmra.mrb[0].mxu0 %v4073
        %v4143 = vpop.f32.mrb[0].mxu0
        %v4144 = vadd.f32 %v4020, %v4143
        %v4145 = vpop.f32.mrb[0].mxu0
        %v4146 = vpop.f32.mrb[0].mxu0
        %v4147 = vadd.f32 %v4023, %v4146
        %v4148 = vpop.f32.mrb[0].mxu0
        %4149 = vmatprep.mubr.bf16.mxu0 0
        %4150 = vmatmul.mubr.bf16.gmra.mrb[0].mxu0 %v4076
        %v4151 = vpop.f32.mrb[0].mxu0
        %v4152 = vadd.f32 %v4028, %v4151
        %v4153 = vpop.f32.mrb[0].mxu0
        %v4154 = vpop.f32.mrb[0].mxu0
        %v4155 = vadd.f32 %v4031, %v4154
        %v4156 = vpop.f32.mrb[0].mxu0
        %4157 = vmatprep.mubr.bf16.mxu0 0
        %4158 = vmatmul.mubr.bf16.gmra.mrb[0].mxu0 %v4079
        %v4159 = vpop.f32.mrb[0].mxu0
        %v4160 = vadd.f32 %v4036, %v4159
        %v4161 = vpop.f32.mrb[0].mxu0
        %v4162 = vpop.f32.mrb[0].mxu0
        %v4163 = vadd.f32 %v4039, %v4162
        %v4164 = vpop.f32.mrb[0].mxu0
        %4165 = vmatprep.mubr.bf16.mxu0 0
        %4166 = vmatmul.mubr.bf16.gmra.mrb[0].mxu0 %v4082
        %v4167 = vpop.f32.mrb[0].mxu0
        %v4168 = vadd.f32 %v4044, %v4167
        %v4169 = vpop.f32.mrb[0].mxu0
        %v4170 = vpop.f32.mrb[0].mxu0
        %v4171 = vadd.f32 %v4047, %v4170
        %v4172 = vpop.f32.mrb[0].mxu0
        %4173 = vmatprep.mubr.bf16.mxu0 0
        %4174 = vmatmul.mubr.bf16.gmra.mrb[0].mxu0 %v4085
        %v4175 = vpop.f32.mrb[0].mxu0
        %v4176 = vadd.f32 %v4052, %v4175
        %v4177 = vpop.f32.mrb[0].mxu0
        %v4178 = vpop.f32.mrb[0].mxu0
        %v4179 = vadd.f32 %v4055, %v4178
        %v4180 = vpop.f32.mrb[0].mxu0
        %4181 = vmatprep.mubr.bf16.mxu0 0
        %4182 = vmatmul.mubr.bf16.gmra.mrb[0].mxu0 %v4088
        %v4183 = vpop.f32.mrb[0].mxu0
        %v4184 = vadd.f32 %v4060, %v4183
        %v4185 = vpop.f32.mrb[0].mxu0
        %v4186 = vpop.f32.mrb[0].mxu0
        %v4187 = vadd.f32 %v4063, %v4186
        %v4188 = vpop.f32.mrb[0].mxu0
        %4189 = vdwg.mxu0
        %v4190 = vld [vmem:[%s3889 + $0x6] sm:$0xff]
        %v4191 = vld [vmem:[%s3889 + $0xe] sm:$0xff]
        %v4192 = vld [vmem:[%s3889 + $0x1e] sm:$0xff]
        %v4193 = vld [vmem:[%s3889 + $0x26] sm:$0xff]
        %v4194 = vld [vmem:[%s3889 + $0x36] sm:$0xff]
        %v4195 = vld [vmem:[%s3889 + $0x3e] sm:$0xff]
        %v4196 = vld [vmem:[%s3889 + $0x4e] sm:$0xff]
        %v4197 = vld [vmem:[%s3889 + $0x56] sm:$0xff]
        %v4198 = vld [vmem:[%s3889 + $0x66] sm:$0xff]
        %v4199 = vld [vmem:[%s3889 + $0x6e] sm:$0xff]
        %v4200 = vld [vmem:[%s3889 + $0x7e] sm:$0xff]
        %v4201 = vld [vmem:[%s3889 + $0x86] sm:$0xff]
        %v4202 = vld [vmem:[%s3889 + $0x96] sm:$0xff]
        %v4203 = vld [vmem:[%s3889 + $0x9e] sm:$0xff]
        %v4204 = vld [vmem:[%s3889 + $0xae] sm:$0xff]
        %v4205 = vld [vmem:[%s3889 + $0xb6] sm:$0xff]
        %v4206 = vpack.c.bf16 %v4191, %v4190
        %v4207 = vpack.c.bf16 %v4193, %v4192
        %v4208 = vpack.c.bf16 %v4195, %v4194
        %v4209 = vpack.c.bf16 %v4197, %v4196
        %v4210 = vpack.c.bf16 %v4199, %v4198
        %v4211 = vpack.c.bf16 %v4201, %v4200
        %v4212 = vpack.c.bf16 %v4203, %v4202
        %v4213 = vpack.c.bf16 %v4205, %v4204
        %s4214 = scalar_lea.vmem %s2, 80
        %v4215 = vld [vmem:[%s4214] sm:$0xf]
        %v4217 = vsel %vm302, %v4206, 0
        %v4220 = vsel %vm302, %v4207, 0
        %v4223 = vsel %vm302, %v4208, 0
        %v4226 = vsel %vm302, %v4209, 0
        %v4229 = vsel %vm302, %v4210, 0
        %v4232 = vsel %vm302, %v4211, 0
        %v4235 = vsel %vm302, %v4212, 0
        %v4238 = vsel %vm302, %v4213, 0
        %v4241 = vsel %vm327, %v4215, 0
        %4243 = vmatprep.subr.bf16.mxu0 0
        %4244 = vmatpush1.bf16.msra.mxu0 %v4241
        %4245 = vmatprep.subr.bf16.mxu0 0
        %4246 = vmatpush1.bf16.msra.mxu0 0
        %4247 = vmatprep.subr.bf16.mxu0 0
        %4248 = vmatpush1.bf16.msra.mxu0 0
        %4249 = vmatprep.subr.bf16.mxu0 0
        %4250 = vmatpush1.bf16.msra.mxu0 0
        %4251 = vmatprep.subr.bf16.mxu0 0
        %4252 = vmatpush1.bf16.msra.mxu0 0
        %4253 = vmatprep.subr.bf16.mxu0 0
        %4254 = vmatpush1.bf16.msra.mxu0 0
        %4255 = vmatprep.subr.bf16.mxu0 0
        %4256 = vmatpush1.bf16.msra.mxu0 0
        %4257 = vmatprep.subr.bf16.mxu0 0
        %4258 = vmatpush1.bf16.msra.mxu0 0
        %4259 = vmatprep.subr.bf16.mxu0 0
        %4260 = vmatpush1.bf16.msra.mxu0 0
        %4261 = vmatprep.subr.bf16.mxu0 0
        %4262 = vmatpush1.bf16.msra.mxu0 0
        %4263 = vmatprep.subr.bf16.mxu0 0
        %4264 = vmatpush1.bf16.msra.mxu0 0
        %4265 = vmatprep.subr.bf16.mxu0 0
        %4266 = vmatpush1.bf16.msra.mxu0 0
        %4267 = vmatprep.subr.bf16.mxu0 0
        %4268 = vmatpush1.bf16.msra.mxu0 0
        %4269 = vmatprep.subr.bf16.mxu0 0
        %4270 = vmatpush1.bf16.msra.mxu0 0
        %4271 = vmatprep.subr.bf16.mxu0 0
        %4272 = vmatpush1.bf16.msra.mxu0 0
        %4273 = vmatprep.subr.bf16.mxu0 0
        %4274 = vmatpush1.bf16.msra.mxu0 0
        %4275 = vmatprep.mubr.bf16.mxu0 0
        %4276 = vmatmul.mubr.bf16.gmra.mrb[0].mxu0 %v4217
        %v4277 = vpop.f32.mrb[0].mxu0
        %v4278 = vadd.f32 0.0, %v4277
        %v4279 = vpop.f32.mrb[0].mxu0
        %v4280 = vpop.f32.mrb[0].mxu0
        %v4281 = vadd.f32 0.0, %v4280
        %v4282 = vpop.f32.mrb[0].mxu0
        %4283 = vmatprep.mubr.bf16.mxu0 0
        %4284 = vmatmul.mubr.bf16.gmra.mrb[0].mxu0 %v4220
        %v4285 = vpop.f32.mrb[0].mxu0
        %v4286 = vadd.f32 0.0, %v4285
        %v4287 = vpop.f32.mrb[0].mxu0
        %v4288 = vpop.f32.mrb[0].mxu0
        %v4289 = vadd.f32 0.0, %v4288
        %v4290 = vpop.f32.mrb[0].mxu0
        %4291 = vmatprep.mubr.bf16.mxu0 0
        %4292 = vmatmul.mubr.bf16.gmra.mrb[0].mxu0 %v4223
        %v4293 = vpop.f32.mrb[0].mxu0
        %v4294 = vadd.f32 0.0, %v4293
        %v4295 = vpop.f32.mrb[0].mxu0
        %v4296 = vpop.f32.mrb[0].mxu0
        %v4297 = vadd.f32 0.0, %v4296
        %v4298 = vpop.f32.mrb[0].mxu0
        %4299 = vmatprep.mubr.bf16.mxu0 0
        %4300 = vmatmul.mubr.bf16.gmra.mrb[0].mxu0 %v4226
        %v4301 = vpop.f32.mrb[0].mxu0
        %v4302 = vadd.f32 0.0, %v4301
        %v4303 = vpop.f32.mrb[0].mxu0
        %v4304 = vpop.f32.mrb[0].mxu0
        %v4305 = vadd.f32 0.0, %v4304
        %v4306 = vpop.f32.mrb[0].mxu0
        %4307 = vmatprep.mubr.bf16.mxu0 0
        %4308 = vmatmul.mubr.bf16.gmra.mrb[0].mxu0 %v4229
        %v4309 = vpop.f32.mrb[0].mxu0
        %v4310 = vadd.f32 0.0, %v4309
        %v4311 = vpop.f32.mrb[0].mxu0
        %v4312 = vpop.f32.mrb[0].mxu0
        %v4313 = vadd.f32 0.0, %v4312
        %v4314 = vpop.f32.mrb[0].mxu0
        %4315 = vmatprep.mubr.bf16.mxu0 0
        %4316 = vmatmul.mubr.bf16.gmra.mrb[0].mxu0 %v4232
        %v4317 = vpop.f32.mrb[0].mxu0
        %v4318 = vadd.f32 0.0, %v4317
        %v4319 = vpop.f32.mrb[0].mxu0
        %v4320 = vpop.f32.mrb[0].mxu0
        %v4321 = vadd.f32 0.0, %v4320
        %v4322 = vpop.f32.mrb[0].mxu0
        %4323 = vmatprep.mubr.bf16.mxu0 0
        %4324 = vmatmul.mubr.bf16.gmra.mrb[0].mxu0 %v4235
        %v4325 = vpop.f32.mrb[0].mxu0
        %v4326 = vadd.f32 0.0, %v4325
        %v4327 = vpop.f32.mrb[0].mxu0
        %v4328 = vpop.f32.mrb[0].mxu0
        %v4329 = vadd.f32 0.0, %v4328
        %v4330 = vpop.f32.mrb[0].mxu0
        %4331 = vmatprep.mubr.bf16.mxu0 0
        %4332 = vmatmul.mubr.bf16.gmra.mrb[0].mxu0 %v4238
        %v4333 = vpop.f32.mrb[0].mxu0
        %v4334 = vadd.f32 0.0, %v4333
        %v4335 = vpop.f32.mrb[0].mxu0
        %v4336 = vpop.f32.mrb[0].mxu0
        %v4337 = vadd.f32 0.0, %v4336
        %v4338 = vpop.f32.mrb[0].mxu0
        %4339 = vdwg.mxu0
        %v4340 = vadd.f32 %v4128, %v4278
        %v4341 = vadd.f32 %v4131, %v4281
        %v4342 = vadd.f32 %v4136, %v4286
        %v4343 = vadd.f32 %v4139, %v4289
        %v4344 = vadd.f32 %v4144, %v4294
        %v4345 = vadd.f32 %v4147, %v4297
        %v4346 = vadd.f32 %v4152, %v4302
        %v4347 = vadd.f32 %v4155, %v4305
        %v4348 = vadd.f32 %v4160, %v4310
        %v4349 = vadd.f32 %v4163, %v4313
        %v4350 = vadd.f32 %v4168, %v4318
        %v4351 = vadd.f32 %v4171, %v4321
        %v4352 = vadd.f32 %v4176, %v4326
        %v4353 = vadd.f32 %v4179, %v4329
        %v4354 = vadd.f32 %v4184, %v4334
        %v4355 = vadd.f32 %v4187, %v4337
        %v4356 = vld [vmem:[%s269] sm:$0xff]
        %v4357 = vld [vmem:[%s269 + $0x8] sm:$0xff]
        %v4358 = vld [vmem:[%s269 + $0x18] sm:$0xff]
        %v4359 = vld [vmem:[%s269 + $0x20] sm:$0xff]
        %v4360 = vld [vmem:[%s269 + $0x30] sm:$0xff]
        %v4361 = vld [vmem:[%s269 + $0x38] sm:$0xff]
        %v4362 = vld [vmem:[%s269 + $0x48] sm:$0xff]
        %v4363 = vld [vmem:[%s269 + $0x50] sm:$0xff]
        %v4364 = vld [vmem:[%s269 + $0x60] sm:$0xff]
        %v4365 = vld [vmem:[%s269 + $0x68] sm:$0xff]
        %v4366 = vld [vmem:[%s269 + $0x78] sm:$0xff]
        %v4367 = vld [vmem:[%s269 + $0x80] sm:$0xff]
        %v4368 = vld [vmem:[%s269 + $0x90] sm:$0xff]
        %v4369 = vld [vmem:[%s269 + $0x98] sm:$0xff]
        %v4370 = vld [vmem:[%s269 + $0xa8] sm:$0xff]
        %v4371 = vld [vmem:[%s269 + $0xb0] sm:$0xff]
        %v4372 = vpack.c.bf16 %v4357, %v4356
        %v4373 = vpack.c.bf16 %v4359, %v4358
        %v4374 = vpack.c.bf16 %v4361, %v4360
        %v4375 = vpack.c.bf16 %v4363, %v4362
        %v4376 = vpack.c.bf16 %v4365, %v4364
        %v4377 = vpack.c.bf16 %v4367, %v4366
        %v4378 = vpack.c.bf16 %v4369, %v4368
        %v4379 = vpack.c.bf16 %v4371, %v4370
        %s4380 = scalar_lea.vmem %s2, 84
        %v4381 = vld [vmem:[%s4380] sm:$0xf]
        %v4383 = vsel %vm302, %v4372, 0
        %v4386 = vsel %vm302, %v4373, 0
        %v4389 = vsel %vm302, %v4374, 0
        %v4392 = vsel %vm302, %v4375, 0
        %v4395 = vsel %vm302, %v4376, 0
        %v4398 = vsel %vm302, %v4377, 0
        %v4401 = vsel %vm302, %v4378, 0
        %v4404 = vsel %vm302, %v4379, 0
        %v4407 = vsel %vm327, %v4381, 0
        %4409 = vmatprep.subr.bf16.mxu0 0
        %4410 = vmatpush1.bf16.msra.mxu0 %v4407
        %4411 = vmatprep.subr.bf16.mxu0 0
        %4412 = vmatpush1.bf16.msra.mxu0 0
        %4413 = vmatprep.subr.bf16.mxu0 0
        %4414 = vmatpush1.bf16.msra.mxu0 0
        %4415 = vmatprep.subr.bf16.mxu0 0
        %4416 = vmatpush1.bf16.msra.mxu0 0
        %4417 = vmatprep.subr.bf16.mxu0 0
        %4418 = vmatpush1.bf16.msra.mxu0 0
        %4419 = vmatprep.subr.bf16.mxu0 0
        %4420 = vmatpush1.bf16.msra.mxu0 0
        %4421 = vmatprep.subr.bf16.mxu0 0
        %4422 = vmatpush1.bf16.msra.mxu0 0
        %4423 = vmatprep.subr.bf16.mxu0 0
        %4424 = vmatpush1.bf16.msra.mxu0 0
        %4425 = vmatprep.subr.bf16.mxu0 0
        %4426 = vmatpush1.bf16.msra.mxu0 0
        %4427 = vmatprep.subr.bf16.mxu0 0
        %4428 = vmatpush1.bf16.msra.mxu0 0
        %4429 = vmatprep.subr.bf16.mxu0 0
        %4430 = vmatpush1.bf16.msra.mxu0 0
        %4431 = vmatprep.subr.bf16.mxu0 0
        %4432 = vmatpush1.bf16.msra.mxu0 0
        %4433 = vmatprep.subr.bf16.mxu0 0
        %4434 = vmatpush1.bf16.msra.mxu0 0
        %4435 = vmatprep.subr.bf16.mxu0 0
        %4436 = vmatpush1.bf16.msra.mxu0 0
        %4437 = vmatprep.subr.bf16.mxu0 0
        %4438 = vmatpush1.bf16.msra.mxu0 0
        %4439 = vmatprep.subr.bf16.mxu0 0
        %4440 = vmatpush1.bf16.msra.mxu0 0
        %4441 = vmatprep.mubr.bf16.mxu0 0
        %4442 = vmatmul.mubr.bf16.gmra.mrb[0].mxu0 %v4383
        %v4443 = vpop.f32.mrb[0].mxu0
        %v4444 = vadd.f32 0.0, %v4443
        %v4445 = vpop.f32.mrb[0].mxu0
        %v4446 = vpop.f32.mrb[0].mxu0
        %v4447 = vadd.f32 0.0, %v4446
        %v4448 = vpop.f32.mrb[0].mxu0
        %4449 = vmatprep.mubr.bf16.mxu0 0
        %4450 = vmatmul.mubr.bf16.gmra.mrb[0].mxu0 %v4386
        %v4451 = vpop.f32.mrb[0].mxu0
        %v4452 = vadd.f32 0.0, %v4451
        %v4453 = vpop.f32.mrb[0].mxu0
        %v4454 = vpop.f32.mrb[0].mxu0
        %v4455 = vadd.f32 0.0, %v4454
        %v4456 = vpop.f32.mrb[0].mxu0
        %4457 = vmatprep.mubr.bf16.mxu0 0
        %4458 = vmatmul.mubr.bf16.gmra.mrb[0].mxu0 %v4389
        %v4459 = vpop.f32.mrb[0].mxu0
        %v4460 = vadd.f32 0.0, %v4459
        %v4461 = vpop.f32.mrb[0].mxu0
        %v4462 = vpop.f32.mrb[0].mxu0
        %v4463 = vadd.f32 0.0, %v4462
        %v4464 = vpop.f32.mrb[0].mxu0
        %4465 = vmatprep.mubr.bf16.mxu0 0
        %4466 = vmatmul.mubr.bf16.gmra.mrb[0].mxu0 %v4392
        %v4467 = vpop.f32.mrb[0].mxu0
        %v4468 = vadd.f32 0.0, %v4467
        %v4469 = vpop.f32.mrb[0].mxu0
        %v4470 = vpop.f32.mrb[0].mxu0
        %v4471 = vadd.f32 0.0, %v4470
        %v4472 = vpop.f32.mrb[0].mxu0
        %4473 = vmatprep.mubr.bf16.mxu0 0
        %4474 = vmatmul.mubr.bf16.gmra.mrb[0].mxu0 %v4395
        %v4475 = vpop.f32.mrb[0].mxu0
        %v4476 = vadd.f32 0.0, %v4475
        %v4477 = vpop.f32.mrb[0].mxu0
        %v4478 = vpop.f32.mrb[0].mxu0
        %v4479 = vadd.f32 0.0, %v4478
        %v4480 = vpop.f32.mrb[0].mxu0
        %4481 = vmatprep.mubr.bf16.mxu0 0
        %4482 = vmatmul.mubr.bf16.gmra.mrb[0].mxu0 %v4398
        %v4483 = vpop.f32.mrb[0].mxu0
        %v4484 = vadd.f32 0.0, %v4483
        %v4485 = vpop.f32.mrb[0].mxu0
        %v4486 = vpop.f32.mrb[0].mxu0
        %v4487 = vadd.f32 0.0, %v4486
        %v4488 = vpop.f32.mrb[0].mxu0
        %4489 = vmatprep.mubr.bf16.mxu0 0
        %4490 = vmatmul.mubr.bf16.gmra.mrb[0].mxu0 %v4401
        %v4491 = vpop.f32.mrb[0].mxu0
        %v4492 = vadd.f32 0.0, %v4491
        %v4493 = vpop.f32.mrb[0].mxu0
        %v4494 = vpop.f32.mrb[0].mxu0
        %v4495 = vadd.f32 0.0, %v4494
        %v4496 = vpop.f32.mrb[0].mxu0
        %4497 = vmatprep.mubr.bf16.mxu0 0
        %4498 = vmatmul.mubr.bf16.gmra.mrb[0].mxu0 %v4404
        %v4499 = vpop.f32.mrb[0].mxu0
        %v4500 = vadd.f32 0.0, %v4499
        %v4501 = vpop.f32.mrb[0].mxu0
        %v4502 = vpop.f32.mrb[0].mxu0
        %v4503 = vadd.f32 0.0, %v4502
        %v4504 = vpop.f32.mrb[0].mxu0
        %4505 = vdwg.mxu0
        %v4506 = vadd.f32 %v4340, %v4444
        %v4507 = vadd.f32 %v4341, %v4447
        %v4508 = vadd.f32 %v4342, %v4452
        %v4509 = vadd.f32 %v4343, %v4455
        %v4510 = vadd.f32 %v4344, %v4460
        %v4511 = vadd.f32 %v4345, %v4463
        %v4512 = vadd.f32 %v4346, %v4468
        %v4513 = vadd.f32 %v4347, %v4471
        %v4514 = vadd.f32 %v4348, %v4476
        %v4515 = vadd.f32 %v4349, %v4479
        %v4516 = vadd.f32 %v4350, %v4484
        %v4517 = vadd.f32 %v4351, %v4487
        %v4518 = vadd.f32 %v4352, %v4492
        %v4519 = vadd.f32 %v4353, %v4495
        %v4520 = vadd.f32 %v4354, %v4500
        %v4521 = vadd.f32 %v4355, %v4503
        %s4522 = scalar_lea.vmem %s2, 88
        %v4523 = vld [vmem:[%s4522] sm:$0xf]
        %v4525 = vsel %vm327, %v4523, 0
        %4527 = vmatprep.subr.bf16.mxu0 0
        %4528 = vmatpush1.bf16.msra.mxu0 %v4525
        %4529 = vmatprep.subr.bf16.mxu0 0
        %4530 = vmatpush1.bf16.msra.mxu0 0
        %4531 = vmatprep.subr.bf16.mxu0 0
        %4532 = vmatpush1.bf16.msra.mxu0 0
        %4533 = vmatprep.subr.bf16.mxu0 0
        %4534 = vmatpush1.bf16.msra.mxu0 0
        %4535 = vmatprep.subr.bf16.mxu0 0
        %4536 = vmatpush1.bf16.msra.mxu0 0
        %4537 = vmatprep.subr.bf16.mxu0 0
        %4538 = vmatpush1.bf16.msra.mxu0 0
        %4539 = vmatprep.subr.bf16.mxu0 0
        %4540 = vmatpush1.bf16.msra.mxu0 0
        %4541 = vmatprep.subr.bf16.mxu0 0
        %4542 = vmatpush1.bf16.msra.mxu0 0
        %4543 = vmatprep.subr.bf16.mxu0 0
        %4544 = vmatpush1.bf16.msra.mxu0 0
        %4545 = vmatprep.subr.bf16.mxu0 0
        %4546 = vmatpush1.bf16.msra.mxu0 0
        %4547 = vmatprep.subr.bf16.mxu0 0
        %4548 = vmatpush1.bf16.msra.mxu0 0
        %4549 = vmatprep.subr.bf16.mxu0 0
        %4550 = vmatpush1.bf16.msra.mxu0 0
        %4551 = vmatprep.subr.bf16.mxu0 0
        %4552 = vmatpush1.bf16.msra.mxu0 0
        %4553 = vmatprep.subr.bf16.mxu0 0
        %4554 = vmatpush1.bf16.msra.mxu0 0
        %4555 = vmatprep.subr.bf16.mxu0 0
        %4556 = vmatpush1.bf16.msra.mxu0 0
        %4557 = vmatprep.subr.bf16.mxu0 0
        %4558 = vmatpush1.bf16.msra.mxu0 0
        %4559 = vmatprep.mubr.bf16.mxu0 0
        %4560 = vmatmul.mubr.bf16.gmra.mrb[0].mxu0 %v304
        %v4561 = vpop.f32.mrb[0].mxu0
        %v4562 = vadd.f32 0.0, %v4561
        %v4563 = vpop.f32.mrb[0].mxu0
        %v4564 = vpop.f32.mrb[0].mxu0
        %v4565 = vadd.f32 0.0, %v4564
        %v4566 = vpop.f32.mrb[0].mxu0
        %4567 = vmatprep.mubr.bf16.mxu0 0
        %4568 = vmatmul.mubr.bf16.gmra.mrb[0].mxu0 %v307
        %v4569 = vpop.f32.mrb[0].mxu0
        %v4570 = vadd.f32 0.0, %v4569
        %v4571 = vpop.f32.mrb[0].mxu0
        %v4572 = vpop.f32.mrb[0].mxu0
        %v4573 = vadd.f32 0.0, %v4572
        %v4574 = vpop.f32.mrb[0].mxu0
        %4575 = vmatprep.mubr.bf16.mxu0 0
        %4576 = vmatmul.mubr.bf16.gmra.mrb[0].mxu0 %v310
        %v4577 = vpop.f32.mrb[0].mxu0
        %v4578 = vadd.f32 0.0, %v4577
        %v4579 = vpop.f32.mrb[0].mxu0
        %v4580 = vpop.f32.mrb[0].mxu0
        %v4581 = vadd.f32 0.0, %v4580
        %v4582 = vpop.f32.mrb[0].mxu0
        %4583 = vmatprep.mubr.bf16.mxu0 0
        %4584 = vmatmul.mubr.bf16.gmra.mrb[0].mxu0 %v313
        %v4585 = vpop.f32.mrb[0].mxu0
        %v4586 = vadd.f32 0.0, %v4585
        %v4587 = vpop.f32.mrb[0].mxu0
        %v4588 = vpop.f32.mrb[0].mxu0
        %v4589 = vadd.f32 0.0, %v4588
        %v4590 = vpop.f32.mrb[0].mxu0
        %4591 = vmatprep.mubr.bf16.mxu0 0
        %4592 = vmatmul.mubr.bf16.gmra.mrb[0].mxu0 %v316
        %v4593 = vpop.f32.mrb[0].mxu0
        %v4594 = vadd.f32 0.0, %v4593
        %v4595 = vpop.f32.mrb[0].mxu0
        %v4596 = vpop.f32.mrb[0].mxu0
        %v4597 = vadd.f32 0.0, %v4596
        %v4598 = vpop.f32.mrb[0].mxu0
        %4599 = vmatprep.mubr.bf16.mxu0 0
        %4600 = vmatmul.mubr.bf16.gmra.mrb[0].mxu0 %v319
        %v4601 = vpop.f32.mrb[0].mxu0
        %v4602 = vadd.f32 0.0, %v4601
        %v4603 = vpop.f32.mrb[0].mxu0
        %v4604 = vpop.f32.mrb[0].mxu0
        %v4605 = vadd.f32 0.0, %v4604
        %v4606 = vpop.f32.mrb[0].mxu0
        %4607 = vmatprep.mubr.bf16.mxu0 0
        %4608 = vmatmul.mubr.bf16.gmra.mrb[0].mxu0 %v322
        %v4609 = vpop.f32.mrb[0].mxu0
        %v4610 = vadd.f32 0.0, %v4609
        %v4611 = vpop.f32.mrb[0].mxu0
        %v4612 = vpop.f32.mrb[0].mxu0
        %v4613 = vadd.f32 0.0, %v4612
        %v4614 = vpop.f32.mrb[0].mxu0
        %4615 = vmatprep.mubr.bf16.mxu0 0
        %4616 = vmatmul.mubr.bf16.gmra.mrb[0].mxu0 %v325
        %v4617 = vpop.f32.mrb[0].mxu0
        %v4618 = vadd.f32 0.0, %v4617
        %v4619 = vpop.f32.mrb[0].mxu0
        %v4620 = vpop.f32.mrb[0].mxu0
        %v4621 = vadd.f32 0.0, %v4620
        %v4622 = vpop.f32.mrb[0].mxu0
        %4623 = vdwg.mxu0
        %v4624 = vadd.f32 %v4506, %v4562
        %v4625 = vadd.f32 %v4507, %v4565
        %v4626 = vadd.f32 %v4508, %v4570
        %v4627 = vadd.f32 %v4509, %v4573
        %v4628 = vadd.f32 %v4510, %v4578
        %v4629 = vadd.f32 %v4511, %v4581
        %v4630 = vadd.f32 %v4512, %v4586
        %v4631 = vadd.f32 %v4513, %v4589
        %v4632 = vadd.f32 %v4514, %v4594
        %v4633 = vadd.f32 %v4515, %v4597
        %v4634 = vadd.f32 %v4516, %v4602
        %v4635 = vadd.f32 %v4517, %v4605
        %v4636 = vadd.f32 %v4518, %v4610
        %v4637 = vadd.f32 %v4519, %v4613
        %v4638 = vadd.f32 %v4520, %v4618
        %v4639 = vadd.f32 %v4521, %v4621
        %v4640 = vld [vmem:[%s269 + $0x6] sm:$0xff]
        %v4641 = vld [vmem:[%s269 + $0xe] sm:$0xff]
        %v4642 = vld [vmem:[%s269 + $0x1e] sm:$0xff]
        %v4643 = vld [vmem:[%s269 + $0x26] sm:$0xff]
        %v4644 = vld [vmem:[%s269 + $0x36] sm:$0xff]
        %v4645 = vld [vmem:[%s269 + $0x3e] sm:$0xff]
        %v4646 = vld [vmem:[%s269 + $0x4e] sm:$0xff]
        %v4647 = vld [vmem:[%s269 + $0x56] sm:$0xff]
        %v4648 = vld [vmem:[%s269 + $0x66] sm:$0xff]
        %v4649 = vld [vmem:[%s269 + $0x6e] sm:$0xff]
        %v4650 = vld [vmem:[%s269 + $0x7e] sm:$0xff]
        %v4651 = vld [vmem:[%s269 + $0x86] sm:$0xff]
        %v4652 = vld [vmem:[%s269 + $0x96] sm:$0xff]
        %v4653 = vld [vmem:[%s269 + $0x9e] sm:$0xff]
        %v4654 = vld [vmem:[%s269 + $0xae] sm:$0xff]
        %v4655 = vld [vmem:[%s269 + $0xb6] sm:$0xff]
        %v4656 = vpack.c.bf16 %v4641, %v4640
        %v4657 = vpack.c.bf16 %v4643, %v4642
        %v4658 = vpack.c.bf16 %v4645, %v4644
        %v4659 = vpack.c.bf16 %v4647, %v4646
        %v4660 = vpack.c.bf16 %v4649, %v4648
        %v4661 = vpack.c.bf16 %v4651, %v4650
        %v4662 = vpack.c.bf16 %v4653, %v4652
        %v4663 = vpack.c.bf16 %v4655, %v4654
        %s4664 = scalar_lea.vmem %s2, 92
        %v4665 = vld [vmem:[%s4664] sm:$0xf]
        %v4667 = vsel %vm302, %v4656, 0
        %v4670 = vsel %vm302, %v4657, 0
        %v4673 = vsel %vm302, %v4658, 0
        %v4676 = vsel %vm302, %v4659, 0
        %v4679 = vsel %vm302, %v4660, 0
        %v4682 = vsel %vm302, %v4661, 0
        %v4685 = vsel %vm302, %v4662, 0
        %v4688 = vsel %vm302, %v4663, 0
        %v4691 = vsel %vm327, %v4665, 0
        %4693 = vmatprep.subr.bf16.mxu0 0
        %4694 = vmatpush1.bf16.msra.mxu0 %v4691
        %4695 = vmatprep.subr.bf16.mxu0 0
        %4696 = vmatpush1.bf16.msra.mxu0 0
        %4697 = vmatprep.subr.bf16.mxu0 0
        %4698 = vmatpush1.bf16.msra.mxu0 0
        %4699 = vmatprep.subr.bf16.mxu0 0
        %4700 = vmatpush1.bf16.msra.mxu0 0
        %4701 = vmatprep.subr.bf16.mxu0 0
        %4702 = vmatpush1.bf16.msra.mxu0 0
        %4703 = vmatprep.subr.bf16.mxu0 0
        %4704 = vmatpush1.bf16.msra.mxu0 0
        %4705 = vmatprep.subr.bf16.mxu0 0
        %4706 = vmatpush1.bf16.msra.mxu0 0
        %4707 = vmatprep.subr.bf16.mxu0 0
        %4708 = vmatpush1.bf16.msra.mxu0 0
        %4709 = vmatprep.subr.bf16.mxu0 0
        %4710 = vmatpush1.bf16.msra.mxu0 0
        %4711 = vmatprep.subr.bf16.mxu0 0
        %4712 = vmatpush1.bf16.msra.mxu0 0
        %4713 = vmatprep.subr.bf16.mxu0 0
        %4714 = vmatpush1.bf16.msra.mxu0 0
        %4715 = vmatprep.subr.bf16.mxu0 0
        %4716 = vmatpush1.bf16.msra.mxu0 0
        %4717 = vmatprep.subr.bf16.mxu0 0
        %4718 = vmatpush1.bf16.msra.mxu0 0
        %4719 = vmatprep.subr.bf16.mxu0 0
        %4720 = vmatpush1.bf16.msra.mxu0 0
        %4721 = vmatprep.subr.bf16.mxu0 0
        %4722 = vmatpush1.bf16.msra.mxu0 0
        %4723 = vmatprep.subr.bf16.mxu0 0
        %4724 = vmatpush1.bf16.msra.mxu0 0
        %4725 = vmatprep.mubr.bf16.mxu0 0
        %4726 = vmatmul.mubr.bf16.gmra.mrb[0].mxu0 %v4667
        %v4727 = vpop.f32.mrb[0].mxu0
        %v4728 = vadd.f32 0.0, %v4727
        %v4729 = vpop.f32.mrb[0].mxu0
        %v4730 = vpop.f32.mrb[0].mxu0
        %v4731 = vadd.f32 0.0, %v4730
        %v4732 = vpop.f32.mrb[0].mxu0
        %4733 = vmatprep.mubr.bf16.mxu0 0
        %4734 = vmatmul.mubr.bf16.gmra.mrb[0].mxu0 %v4670
        %v4735 = vpop.f32.mrb[0].mxu0
        %v4736 = vadd.f32 0.0, %v4735
        %v4737 = vpop.f32.mrb[0].mxu0
        %v4738 = vpop.f32.mrb[0].mxu0
        %v4739 = vadd.f32 0.0, %v4738
        %v4740 = vpop.f32.mrb[0].mxu0
        %4741 = vmatprep.mubr.bf16.mxu0 0
        %4742 = vmatmul.mubr.bf16.gmra.mrb[0].mxu0 %v4673
        %v4743 = vpop.f32.mrb[0].mxu0
        %v4744 = vadd.f32 0.0, %v4743
        %v4745 = vpop.f32.mrb[0].mxu0
        %v4746 = vpop.f32.mrb[0].mxu0
        %v4747 = vadd.f32 0.0, %v4746
        %v4748 = vpop.f32.mrb[0].mxu0
        %4749 = vmatprep.mubr.bf16.mxu0 0
        %4750 = vmatmul.mubr.bf16.gmra.mrb[0].mxu0 %v4676
        %v4751 = vpop.f32.mrb[0].mxu0
        %v4752 = vadd.f32 0.0, %v4751
        %v4753 = vpop.f32.mrb[0].mxu0
        %v4754 = vpop.f32.mrb[0].mxu0
        %v4755 = vadd.f32 0.0, %v4754
        %v4756 = vpop.f32.mrb[0].mxu0
        %4757 = vmatprep.mubr.bf16.mxu0 0
        %4758 = vmatmul.mubr.bf16.gmra.mrb[0].mxu0 %v4679
        %v4759 = vpop.f32.mrb[0].mxu0
        %v4760 = vadd.f32 0.0, %v4759
        %v4761 = vpop.f32.mrb[0].mxu0
        %v4762 = vpop.f32.mrb[0].mxu0
        %v4763 = vadd.f32 0.0, %v4762
        %v4764 = vpop.f32.mrb[0].mxu0
        %4765 = vmatprep.mubr.bf16.mxu0 0
        %4766 = vmatmul.mubr.bf16.gmra.mrb[0].mxu0 %v4682
        %v4767 = vpop.f32.mrb[0].mxu0
        %v4768 = vadd.f32 0.0, %v4767
        %v4769 = vpop.f32.mrb[0].mxu0
        %v4770 = vpop.f32.mrb[0].mxu0
        %v4771 = vadd.f32 0.0, %v4770
        %v4772 = vpop.f32.mrb[0].mxu0
        %4773 = vmatprep.mubr.bf16.mxu0 0
        %4774 = vmatmul.mubr.bf16.gmra.mrb[0].mxu0 %v4685
        %v4775 = vpop.f32.mrb[0].mxu0
        %v4776 = vadd.f32 0.0, %v4775
        %v4777 = vpop.f32.mrb[0].mxu0
        %v4778 = vpop.f32.mrb[0].mxu0
        %v4779 = vadd.f32 0.0, %v4778
        %v4780 = vpop.f32.mrb[0].mxu0
        %4781 = vmatprep.mubr.bf16.mxu0 0
        %4782 = vmatmul.mubr.bf16.gmra.mrb[0].mxu0 %v4688
        %v4783 = vpop.f32.mrb[0].mxu0
        %v4784 = vadd.f32 0.0, %v4783
        %v4785 = vpop.f32.mrb[0].mxu0
        %v4786 = vpop.f32.mrb[0].mxu0
        %v4787 = vadd.f32 0.0, %v4786
        %v4788 = vpop.f32.mrb[0].mxu0
        %4789 = vdwg.mxu0
        %v4790 = vadd.f32 %v4624, %v4728
        %v4791 = vadd.f32 %v4625, %v4731
        %v4792 = vadd.f32 %v4626, %v4736
        %v4793 = vadd.f32 %v4627, %v4739
        %v4794 = vadd.f32 %v4628, %v4744
        %v4795 = vadd.f32 %v4629, %v4747
        %v4796 = vadd.f32 %v4630, %v4752
        %v4797 = vadd.f32 %v4631, %v4755
        %v4798 = vadd.f32 %v4632, %v4760
        %v4799 = vadd.f32 %v4633, %v4763
        %v4800 = vadd.f32 %v4634, %v4768
        %v4801 = vadd.f32 %v4635, %v4771
        %v4802 = vadd.f32 %v4636, %v4776
        %v4803 = vadd.f32 %v4637, %v4779
        %v4804 = vadd.f32 %v4638, %v4784
        %v4805 = vadd.f32 %v4639, %v4787
        %s4806 = sadd.s32 %s266, 6
        %s4807 = smul.u32 %s4806, 24
        %s4808 = scalar_lea.vmem %s263, %s4807
        %v4809 = vld [vmem:[%s4808] sm:$0xff]
        %v4810 = vld [vmem:[%s4808 + $0x8] sm:$0xff]
        %v4811 = vld [vmem:[%s4808 + $0x18] sm:$0xff]
        %v4812 = vld [vmem:[%s4808 + $0x20] sm:$0xff]
        %v4813 = vld [vmem:[%s4808 + $0x30] sm:$0xff]
        %v4814 = vld [vmem:[%s4808 + $0x38] sm:$0xff]
        %v4815 = vld [vmem:[%s4808 + $0x48] sm:$0xff]
        %v4816 = vld [vmem:[%s4808 + $0x50] sm:$0xff]
        %v4817 = vld [vmem:[%s4808 + $0x60] sm:$0xff]
        %v4818 = vld [vmem:[%s4808 + $0x68] sm:$0xff]
        %v4819 = vld [vmem:[%s4808 + $0x78] sm:$0xff]
        %v4820 = vld [vmem:[%s4808 + $0x80] sm:$0xff]
        %v4821 = vld [vmem:[%s4808 + $0x90] sm:$0xff]
        %v4822 = vld [vmem:[%s4808 + $0x98] sm:$0xff]
        %v4823 = vld [vmem:[%s4808 + $0xa8] sm:$0xff]
        %v4824 = vld [vmem:[%s4808 + $0xb0] sm:$0xff]
        %v4825 = vpack.c.bf16 %v4810, %v4809
        %v4826 = vpack.c.bf16 %v4812, %v4811
        %v4827 = vpack.c.bf16 %v4814, %v4813
        %v4828 = vpack.c.bf16 %v4816, %v4815
        %v4829 = vpack.c.bf16 %v4818, %v4817
        %v4830 = vpack.c.bf16 %v4820, %v4819
        %v4831 = vpack.c.bf16 %v4822, %v4821
        %v4832 = vpack.c.bf16 %v4824, %v4823
        %s4833 = scalar_lea.vmem %s2, 96
        %v4834 = vld [vmem:[%s4833] sm:$0xf]
        %v4836 = vsel %vm302, %v4825, 0
        %v4839 = vsel %vm302, %v4826, 0
        %v4842 = vsel %vm302, %v4827, 0
        %v4845 = vsel %vm302, %v4828, 0
        %v4848 = vsel %vm302, %v4829, 0
        %v4851 = vsel %vm302, %v4830, 0
        %v4854 = vsel %vm302, %v4831, 0
        %v4857 = vsel %vm302, %v4832, 0
        %v4860 = vsel %vm327, %v4834, 0
        %4862 = vmatprep.subr.bf16.mxu0 0
        %4863 = vmatpush1.bf16.msra.mxu0 %v4860
        %4864 = vmatprep.subr.bf16.mxu0 0
        %4865 = vmatpush1.bf16.msra.mxu0 0
        %4866 = vmatprep.subr.bf16.mxu0 0
        %4867 = vmatpush1.bf16.msra.mxu0 0
        %4868 = vmatprep.subr.bf16.mxu0 0
        %4869 = vmatpush1.bf16.msra.mxu0 0
        %4870 = vmatprep.subr.bf16.mxu0 0
        %4871 = vmatpush1.bf16.msra.mxu0 0
        %4872 = vmatprep.subr.bf16.mxu0 0
        %4873 = vmatpush1.bf16.msra.mxu0 0
        %4874 = vmatprep.subr.bf16.mxu0 0
        %4875 = vmatpush1.bf16.msra.mxu0 0
        %4876 = vmatprep.subr.bf16.mxu0 0
        %4877 = vmatpush1.bf16.msra.mxu0 0
        %4878 = vmatprep.subr.bf16.mxu0 0
        %4879 = vmatpush1.bf16.msra.mxu0 0
        %4880 = vmatprep.subr.bf16.mxu0 0
        %4881 = vmatpush1.bf16.msra.mxu0 0
        %4882 = vmatprep.subr.bf16.mxu0 0
        %4883 = vmatpush1.bf16.msra.mxu0 0
        %4884 = vmatprep.subr.bf16.mxu0 0
        %4885 = vmatpush1.bf16.msra.mxu0 0
        %4886 = vmatprep.subr.bf16.mxu0 0
        %4887 = vmatpush1.bf16.msra.mxu0 0
        %4888 = vmatprep.subr.bf16.mxu0 0
        %4889 = vmatpush1.bf16.msra.mxu0 0
        %4890 = vmatprep.subr.bf16.mxu0 0
        %4891 = vmatpush1.bf16.msra.mxu0 0
        %4892 = vmatprep.subr.bf16.mxu0 0
        %4893 = vmatpush1.bf16.msra.mxu0 0
        %4894 = vmatprep.mubr.bf16.mxu0 0
        %4895 = vmatmul.mubr.bf16.gmra.mrb[0].mxu0 %v4836
        %v4896 = vpop.f32.mrb[0].mxu0
        %v4897 = vadd.f32 0.0, %v4896
        %v4898 = vpop.f32.mrb[0].mxu0
        %v4899 = vpop.f32.mrb[0].mxu0
        %v4900 = vadd.f32 0.0, %v4899
        %v4901 = vpop.f32.mrb[0].mxu0
        %4902 = vmatprep.mubr.bf16.mxu0 0
        %4903 = vmatmul.mubr.bf16.gmra.mrb[0].mxu0 %v4839
        %v4904 = vpop.f32.mrb[0].mxu0
        %v4905 = vadd.f32 0.0, %v4904
        %v4906 = vpop.f32.mrb[0].mxu0
        %v4907 = vpop.f32.mrb[0].mxu0
        %v4908 = vadd.f32 0.0, %v4907
        %v4909 = vpop.f32.mrb[0].mxu0
        %4910 = vmatprep.mubr.bf16.mxu0 0
        %4911 = vmatmul.mubr.bf16.gmra.mrb[0].mxu0 %v4842
        %v4912 = vpop.f32.mrb[0].mxu0
        %v4913 = vadd.f32 0.0, %v4912
        %v4914 = vpop.f32.mrb[0].mxu0
        %v4915 = vpop.f32.mrb[0].mxu0
        %v4916 = vadd.f32 0.0, %v4915
        %v4917 = vpop.f32.mrb[0].mxu0
        %4918 = vmatprep.mubr.bf16.mxu0 0
        %4919 = vmatmul.mubr.bf16.gmra.mrb[0].mxu0 %v4845
        %v4920 = vpop.f32.mrb[0].mxu0
        %v4921 = vadd.f32 0.0, %v4920
        %v4922 = vpop.f32.mrb[0].mxu0
        %v4923 = vpop.f32.mrb[0].mxu0
        %v4924 = vadd.f32 0.0, %v4923
        %v4925 = vpop.f32.mrb[0].mxu0
        %4926 = vmatprep.mubr.bf16.mxu0 0
        %4927 = vmatmul.mubr.bf16.gmra.mrb[0].mxu0 %v4848
        %v4928 = vpop.f32.mrb[0].mxu0
        %v4929 = vadd.f32 0.0, %v4928
        %v4930 = vpop.f32.mrb[0].mxu0
        %v4931 = vpop.f32.mrb[0].mxu0
        %v4932 = vadd.f32 0.0, %v4931
        %v4933 = vpop.f32.mrb[0].mxu0
        %4934 = vmatprep.mubr.bf16.mxu0 0
        %4935 = vmatmul.mubr.bf16.gmra.mrb[0].mxu0 %v4851
        %v4936 = vpop.f32.mrb[0].mxu0
        %v4937 = vadd.f32 0.0, %v4936
        %v4938 = vpop.f32.mrb[0].mxu0
        %v4939 = vpop.f32.mrb[0].mxu0
        %v4940 = vadd.f32 0.0, %v4939
        %v4941 = vpop.f32.mrb[0].mxu0
        %4942 = vmatprep.mubr.bf16.mxu0 0
        %4943 = vmatmul.mubr.bf16.gmra.mrb[0].mxu0 %v4854
        %v4944 = vpop.f32.mrb[0].mxu0
        %v4945 = vadd.f32 0.0, %v4944
        %v4946 = vpop.f32.mrb[0].mxu0
        %v4947 = vpop.f32.mrb[0].mxu0
        %v4948 = vadd.f32 0.0, %v4947
        %v4949 = vpop.f32.mrb[0].mxu0
        %4950 = vmatprep.mubr.bf16.mxu0 0
        %4951 = vmatmul.mubr.bf16.gmra.mrb[0].mxu0 %v4857
        %v4952 = vpop.f32.mrb[0].mxu0
        %v4953 = vadd.f32 0.0, %v4952
        %v4954 = vpop.f32.mrb[0].mxu0
        %v4955 = vpop.f32.mrb[0].mxu0
        %v4956 = vadd.f32 0.0, %v4955
        %v4957 = vpop.f32.mrb[0].mxu0
        %4958 = vdwg.mxu0
        %v4959 = vadd.f32 %v4790, %v4897
        %v4960 = vadd.f32 %v4791, %v4900
        %v4961 = vadd.f32 %v4792, %v4905
        %v4962 = vadd.f32 %v4793, %v4908
        %v4963 = vadd.f32 %v4794, %v4913
        %v4964 = vadd.f32 %v4795, %v4916
        %v4965 = vadd.f32 %v4796, %v4921
        %v4966 = vadd.f32 %v4797, %v4924
        %v4967 = vadd.f32 %v4798, %v4929
        %v4968 = vadd.f32 %v4799, %v4932
        %v4969 = vadd.f32 %v4800, %v4937
        %v4970 = vadd.f32 %v4801, %v4940
        %v4971 = vadd.f32 %v4802, %v4945
        %v4972 = vadd.f32 %v4803, %v4948
        %v4973 = vadd.f32 %v4804, %v4953
        %v4974 = vadd.f32 %v4805, %v4956
        %v4975 = vld [vmem:[%s4808 + $0x3] sm:$0xff]
        %v4976 = vld [vmem:[%s4808 + $0xb] sm:$0xff]
        %v4977 = vld [vmem:[%s4808 + $0x1b] sm:$0xff]
        %v4978 = vld [vmem:[%s4808 + $0x23] sm:$0xff]
        %v4979 = vld [vmem:[%s4808 + $0x33] sm:$0xff]
        %v4980 = vld [vmem:[%s4808 + $0x3b] sm:$0xff]
        %v4981 = vld [vmem:[%s4808 + $0x4b] sm:$0xff]
        %v4982 = vld [vmem:[%s4808 + $0x53] sm:$0xff]
        %v4983 = vld [vmem:[%s4808 + $0x63] sm:$0xff]
        %v4984 = vld [vmem:[%s4808 + $0x6b] sm:$0xff]
        %v4985 = vld [vmem:[%s4808 + $0x7b] sm:$0xff]
        %v4986 = vld [vmem:[%s4808 + $0x83] sm:$0xff]
        %v4987 = vld [vmem:[%s4808 + $0x93] sm:$0xff]
        %v4988 = vld [vmem:[%s4808 + $0x9b] sm:$0xff]
        %v4989 = vld [vmem:[%s4808 + $0xab] sm:$0xff]
        %v4990 = vld [vmem:[%s4808 + $0xb3] sm:$0xff]
        %v4991 = vpack.c.bf16 %v4976, %v4975
        %v4992 = vpack.c.bf16 %v4978, %v4977
        %v4993 = vpack.c.bf16 %v4980, %v4979
        %v4994 = vpack.c.bf16 %v4982, %v4981
        %v4995 = vpack.c.bf16 %v4984, %v4983
        %v4996 = vpack.c.bf16 %v4986, %v4985
        %v4997 = vpack.c.bf16 %v4988, %v4987
        %v4998 = vpack.c.bf16 %v4990, %v4989
        %s4999 = scalar_lea.vmem %s2, 100
        %v5000 = vld [vmem:[%s4999] sm:$0xf]
        %v5002 = vsel %vm302, %v4991, 0
        %v5005 = vsel %vm302, %v4992, 0
        %v5008 = vsel %vm302, %v4993, 0
        %v5011 = vsel %vm302, %v4994, 0
        %v5014 = vsel %vm302, %v4995, 0
        %v5017 = vsel %vm302, %v4996, 0
        %v5020 = vsel %vm302, %v4997, 0
        %v5023 = vsel %vm302, %v4998, 0
        %v5026 = vsel %vm327, %v5000, 0
        %5028 = vmatprep.subr.bf16.mxu0 0
        %5029 = vmatpush1.bf16.msra.mxu0 %v5026
        %5030 = vmatprep.subr.bf16.mxu0 0
        %5031 = vmatpush1.bf16.msra.mxu0 0
        %5032 = vmatprep.subr.bf16.mxu0 0
        %5033 = vmatpush1.bf16.msra.mxu0 0
        %5034 = vmatprep.subr.bf16.mxu0 0
        %5035 = vmatpush1.bf16.msra.mxu0 0
        %5036 = vmatprep.subr.bf16.mxu0 0
        %5037 = vmatpush1.bf16.msra.mxu0 0
        %5038 = vmatprep.subr.bf16.mxu0 0
        %5039 = vmatpush1.bf16.msra.mxu0 0
        %5040 = vmatprep.subr.bf16.mxu0 0
        %5041 = vmatpush1.bf16.msra.mxu0 0
        %5042 = vmatprep.subr.bf16.mxu0 0
        %5043 = vmatpush1.bf16.msra.mxu0 0
        %5044 = vmatprep.subr.bf16.mxu0 0
        %5045 = vmatpush1.bf16.msra.mxu0 0
        %5046 = vmatprep.subr.bf16.mxu0 0
        %5047 = vmatpush1.bf16.msra.mxu0 0
        %5048 = vmatprep.subr.bf16.mxu0 0
        %5049 = vmatpush1.bf16.msra.mxu0 0
        %5050 = vmatprep.subr.bf16.mxu0 0
        %5051 = vmatpush1.bf16.msra.mxu0 0
        %5052 = vmatprep.subr.bf16.mxu0 0
        %5053 = vmatpush1.bf16.msra.mxu0 0
        %5054 = vmatprep.subr.bf16.mxu0 0
        %5055 = vmatpush1.bf16.msra.mxu0 0
        %5056 = vmatprep.subr.bf16.mxu0 0
        %5057 = vmatpush1.bf16.msra.mxu0 0
        %5058 = vmatprep.subr.bf16.mxu0 0
        %5059 = vmatpush1.bf16.msra.mxu0 0
        %5060 = vmatprep.mubr.bf16.mxu0 0
        %5061 = vmatmul.mubr.bf16.gmra.mrb[0].mxu0 %v5002
        %v5062 = vpop.f32.mrb[0].mxu0
        %v5063 = vadd.f32 0.0, %v5062
        %v5064 = vpop.f32.mrb[0].mxu0
        %v5065 = vpop.f32.mrb[0].mxu0
        %v5066 = vadd.f32 0.0, %v5065
        %v5067 = vpop.f32.mrb[0].mxu0
        %5068 = vmatprep.mubr.bf16.mxu0 0
        %5069 = vmatmul.mubr.bf16.gmra.mrb[0].mxu0 %v5005
        %v5070 = vpop.f32.mrb[0].mxu0
        %v5071 = vadd.f32 0.0, %v5070
        %v5072 = vpop.f32.mrb[0].mxu0
        %v5073 = vpop.f32.mrb[0].mxu0
        %v5074 = vadd.f32 0.0, %v5073
        %v5075 = vpop.f32.mrb[0].mxu0
        %5076 = vmatprep.mubr.bf16.mxu0 0
        %5077 = vmatmul.mubr.bf16.gmra.mrb[0].mxu0 %v5008
        %v5078 = vpop.f32.mrb[0].mxu0
        %v5079 = vadd.f32 0.0, %v5078
        %v5080 = vpop.f32.mrb[0].mxu0
        %v5081 = vpop.f32.mrb[0].mxu0
        %v5082 = vadd.f32 0.0, %v5081
        %v5083 = vpop.f32.mrb[0].mxu0
        %5084 = vmatprep.mubr.bf16.mxu0 0
        %5085 = vmatmul.mubr.bf16.gmra.mrb[0].mxu0 %v5011
        %v5086 = vpop.f32.mrb[0].mxu0
        %v5087 = vadd.f32 0.0, %v5086
        %v5088 = vpop.f32.mrb[0].mxu0
        %v5089 = vpop.f32.mrb[0].mxu0
        %v5090 = vadd.f32 0.0, %v5089
        %v5091 = vpop.f32.mrb[0].mxu0
        %5092 = vmatprep.mubr.bf16.mxu0 0
        %5093 = vmatmul.mubr.bf16.gmra.mrb[0].mxu0 %v5014
        %v5094 = vpop.f32.mrb[0].mxu0
        %v5095 = vadd.f32 0.0, %v5094
        %v5096 = vpop.f32.mrb[0].mxu0
        %v5097 = vpop.f32.mrb[0].mxu0
        %v5098 = vadd.f32 0.0, %v5097
        %v5099 = vpop.f32.mrb[0].mxu0
        %5100 = vmatprep.mubr.bf16.mxu0 0
        %5101 = vmatmul.mubr.bf16.gmra.mrb[0].mxu0 %v5017
        %v5102 = vpop.f32.mrb[0].mxu0
        %v5103 = vadd.f32 0.0, %v5102
        %v5104 = vpop.f32.mrb[0].mxu0
        %v5105 = vpop.f32.mrb[0].mxu0
        %v5106 = vadd.f32 0.0, %v5105
        %v5107 = vpop.f32.mrb[0].mxu0
        %5108 = vmatprep.mubr.bf16.mxu0 0
        %5109 = vmatmul.mubr.bf16.gmra.mrb[0].mxu0 %v5020
        %v5110 = vpop.f32.mrb[0].mxu0
        %v5111 = vadd.f32 0.0, %v5110
        %v5112 = vpop.f32.mrb[0].mxu0
        %v5113 = vpop.f32.mrb[0].mxu0
        %v5114 = vadd.f32 0.0, %v5113
        %v5115 = vpop.f32.mrb[0].mxu0
        %5116 = vmatprep.mubr.bf16.mxu0 0
        %5117 = vmatmul.mubr.bf16.gmra.mrb[0].mxu0 %v5023
        %v5118 = vpop.f32.mrb[0].mxu0
        %v5119 = vadd.f32 0.0, %v5118
        %v5120 = vpop.f32.mrb[0].mxu0
        %v5121 = vpop.f32.mrb[0].mxu0
        %v5122 = vadd.f32 0.0, %v5121
        %v5123 = vpop.f32.mrb[0].mxu0
        %5124 = vdwg.mxu0
        %v5125 = vadd.f32 %v4959, %v5063
        %v5126 = vadd.f32 %v4960, %v5066
        %v5127 = vadd.f32 %v4961, %v5071
        %v5128 = vadd.f32 %v4962, %v5074
        %v5129 = vadd.f32 %v4963, %v5079
        %v5130 = vadd.f32 %v4964, %v5082
        %v5131 = vadd.f32 %v4965, %v5087
        %v5132 = vadd.f32 %v4966, %v5090
        %v5133 = vadd.f32 %v4967, %v5095
        %v5134 = vadd.f32 %v4968, %v5098
        %v5135 = vadd.f32 %v4969, %v5103
        %v5136 = vadd.f32 %v4970, %v5106
        %v5137 = vadd.f32 %v4971, %v5111
        %v5138 = vadd.f32 %v4972, %v5114
        %v5139 = vadd.f32 %v4973, %v5119
        %v5140 = vadd.f32 %v4974, %v5122
        %v5141 = vld [vmem:[%s4808 + $0x6] sm:$0xff]
        %v5142 = vld [vmem:[%s4808 + $0xe] sm:$0xff]
        %v5143 = vld [vmem:[%s4808 + $0x1e] sm:$0xff]
        %v5144 = vld [vmem:[%s4808 + $0x26] sm:$0xff]
        %v5145 = vld [vmem:[%s4808 + $0x36] sm:$0xff]
        %v5146 = vld [vmem:[%s4808 + $0x3e] sm:$0xff]
        %v5147 = vld [vmem:[%s4808 + $0x4e] sm:$0xff]
        %v5148 = vld [vmem:[%s4808 + $0x56] sm:$0xff]
        %v5149 = vld [vmem:[%s4808 + $0x66] sm:$0xff]
        %v5150 = vld [vmem:[%s4808 + $0x6e] sm:$0xff]
        %v5151 = vld [vmem:[%s4808 + $0x7e] sm:$0xff]
        %v5152 = vld [vmem:[%s4808 + $0x86] sm:$0xff]
        %v5153 = vld [vmem:[%s4808 + $0x96] sm:$0xff]
        %v5154 = vld [vmem:[%s4808 + $0x9e] sm:$0xff]
        %v5155 = vld [vmem:[%s4808 + $0xae] sm:$0xff]
        %v5156 = vld [vmem:[%s4808 + $0xb6] sm:$0xff]
        %v5157 = vpack.c.bf16 %v5142, %v5141
        %v5158 = vpack.c.bf16 %v5144, %v5143
        %v5159 = vpack.c.bf16 %v5146, %v5145
        %v5160 = vpack.c.bf16 %v5148, %v5147
        %v5161 = vpack.c.bf16 %v5150, %v5149
        %v5162 = vpack.c.bf16 %v5152, %v5151
        %v5163 = vpack.c.bf16 %v5154, %v5153
        %v5164 = vpack.c.bf16 %v5156, %v5155
        %s5165 = scalar_lea.vmem %s2, 104
        %v5166 = vld [vmem:[%s5165] sm:$0xf]
        %v5168 = vsel %vm302, %v5157, 0
        %v5171 = vsel %vm302, %v5158, 0
        %v5174 = vsel %vm302, %v5159, 0
        %v5177 = vsel %vm302, %v5160, 0
        %v5180 = vsel %vm302, %v5161, 0
        %v5183 = vsel %vm302, %v5162, 0
        %v5186 = vsel %vm302, %v5163, 0
        %v5189 = vsel %vm302, %v5164, 0
        %v5192 = vsel %vm327, %v5166, 0
        %5194 = vmatprep.subr.bf16.mxu0 0
        %5195 = vmatpush1.bf16.msra.mxu0 %v5192
        %5196 = vmatprep.subr.bf16.mxu0 0
        %5197 = vmatpush1.bf16.msra.mxu0 0
        %5198 = vmatprep.subr.bf16.mxu0 0
        %5199 = vmatpush1.bf16.msra.mxu0 0
        %5200 = vmatprep.subr.bf16.mxu0 0
        %5201 = vmatpush1.bf16.msra.mxu0 0
        %5202 = vmatprep.subr.bf16.mxu0 0
        %5203 = vmatpush1.bf16.msra.mxu0 0
        %5204 = vmatprep.subr.bf16.mxu0 0
        %5205 = vmatpush1.bf16.msra.mxu0 0
        %5206 = vmatprep.subr.bf16.mxu0 0
        %5207 = vmatpush1.bf16.msra.mxu0 0
        %5208 = vmatprep.subr.bf16.mxu0 0
        %5209 = vmatpush1.bf16.msra.mxu0 0
        %5210 = vmatprep.subr.bf16.mxu0 0
        %5211 = vmatpush1.bf16.msra.mxu0 0
        %5212 = vmatprep.subr.bf16.mxu0 0
        %5213 = vmatpush1.bf16.msra.mxu0 0
        %5214 = vmatprep.subr.bf16.mxu0 0
        %5215 = vmatpush1.bf16.msra.mxu0 0
        %5216 = vmatprep.subr.bf16.mxu0 0
        %5217 = vmatpush1.bf16.msra.mxu0 0
        %5218 = vmatprep.subr.bf16.mxu0 0
        %5219 = vmatpush1.bf16.msra.mxu0 0
        %5220 = vmatprep.subr.bf16.mxu0 0
        %5221 = vmatpush1.bf16.msra.mxu0 0
        %5222 = vmatprep.subr.bf16.mxu0 0
        %5223 = vmatpush1.bf16.msra.mxu0 0
        %5224 = vmatprep.subr.bf16.mxu0 0
        %5225 = vmatpush1.bf16.msra.mxu0 0
        %5226 = vmatprep.mubr.bf16.mxu0 0
        %5227 = vmatmul.mubr.bf16.gmra.mrb[0].mxu0 %v5168
        %v5228 = vpop.f32.mrb[0].mxu0
        %v5229 = vadd.f32 0.0, %v5228
        %v5230 = vpop.f32.mrb[0].mxu0
        %v5231 = vpop.f32.mrb[0].mxu0
        %v5232 = vadd.f32 0.0, %v5231
        %v5233 = vpop.f32.mrb[0].mxu0
        %5234 = vmatprep.mubr.bf16.mxu0 0
        %5235 = vmatmul.mubr.bf16.gmra.mrb[0].mxu0 %v5171
        %v5236 = vpop.f32.mrb[0].mxu0
        %v5237 = vadd.f32 0.0, %v5236
        %v5238 = vpop.f32.mrb[0].mxu0
        %v5239 = vpop.f32.mrb[0].mxu0
        %v5240 = vadd.f32 0.0, %v5239
        %v5241 = vpop.f32.mrb[0].mxu0
        %5242 = vmatprep.mubr.bf16.mxu0 0
        %5243 = vmatmul.mubr.bf16.gmra.mrb[0].mxu0 %v5174
        %v5244 = vpop.f32.mrb[0].mxu0
        %v5245 = vadd.f32 0.0, %v5244
        %v5246 = vpop.f32.mrb[0].mxu0
        %v5247 = vpop.f32.mrb[0].mxu0
        %v5248 = vadd.f32 0.0, %v5247
        %v5249 = vpop.f32.mrb[0].mxu0
        %5250 = vmatprep.mubr.bf16.mxu0 0
        %5251 = vmatmul.mubr.bf16.gmra.mrb[0].mxu0 %v5177
        %v5252 = vpop.f32.mrb[0].mxu0
        %v5253 = vadd.f32 0.0, %v5252
        %v5254 = vpop.f32.mrb[0].mxu0
        %v5255 = vpop.f32.mrb[0].mxu0
        %v5256 = vadd.f32 0.0, %v5255
        %v5257 = vpop.f32.mrb[0].mxu0
        %5258 = vmatprep.mubr.bf16.mxu0 0
        %5259 = vmatmul.mubr.bf16.gmra.mrb[0].mxu0 %v5180
        %v5260 = vpop.f32.mrb[0].mxu0
        %v5261 = vadd.f32 0.0, %v5260
        %v5262 = vpop.f32.mrb[0].mxu0
        %v5263 = vpop.f32.mrb[0].mxu0
        %v5264 = vadd.f32 0.0, %v5263
        %v5265 = vpop.f32.mrb[0].mxu0
        %5266 = vmatprep.mubr.bf16.mxu0 0
        %5267 = vmatmul.mubr.bf16.gmra.mrb[0].mxu0 %v5183
        %v5268 = vpop.f32.mrb[0].mxu0
        %v5269 = vadd.f32 0.0, %v5268
        %v5270 = vpop.f32.mrb[0].mxu0
        %v5271 = vpop.f32.mrb[0].mxu0
        %v5272 = vadd.f32 0.0, %v5271
        %v5273 = vpop.f32.mrb[0].mxu0
        %5274 = vmatprep.mubr.bf16.mxu0 0
        %5275 = vmatmul.mubr.bf16.gmra.mrb[0].mxu0 %v5186
        %v5276 = vpop.f32.mrb[0].mxu0
        %v5277 = vadd.f32 0.0, %v5276
        %v5278 = vpop.f32.mrb[0].mxu0
        %v5279 = vpop.f32.mrb[0].mxu0
        %v5280 = vadd.f32 0.0, %v5279
        %v5281 = vpop.f32.mrb[0].mxu0
        %5282 = vmatprep.mubr.bf16.mxu0 0
        %5283 = vmatmul.mubr.bf16.gmra.mrb[0].mxu0 %v5189
        %v5284 = vpop.f32.mrb[0].mxu0
        %v5285 = vadd.f32 0.0, %v5284
        %v5286 = vpop.f32.mrb[0].mxu0
        %v5287 = vpop.f32.mrb[0].mxu0
        %v5288 = vadd.f32 0.0, %v5287
        %v5289 = vpop.f32.mrb[0].mxu0
        %5290 = vdwg.mxu0
        %v5291 = vadd.f32 %v5125, %v5229
        %v5292 = vadd.f32 %v5126, %v5232
        %v5293 = vadd.f32 %v5127, %v5237
        %v5294 = vadd.f32 %v5128, %v5240
        %v5295 = vadd.f32 %v5129, %v5245
        %v5296 = vadd.f32 %v5130, %v5248
        %v5297 = vadd.f32 %v5131, %v5253
        %v5298 = vadd.f32 %v5132, %v5256
        %v5299 = vadd.f32 %v5133, %v5261
        %v5300 = vadd.f32 %v5134, %v5264
        %v5301 = vadd.f32 %v5135, %v5269
        %v5302 = vadd.f32 %v5136, %v5272
        %v5303 = vadd.f32 %v5137, %v5277
        %v5304 = vadd.f32 %v5138, %v5280
        %v5305 = vadd.f32 %v5139, %v5285
        %v5306 = vadd.f32 %v5140, %v5288
        %s5307 = scalar_lea.vmem %s5, 3
        %v5308 = vld [vmem:[%s5307] sm:$0x1]
        %v5310 = vlaneseq
        %v5311 = vshrl.u32 %v5310, 7
        %v5312 = vsub.s32 0, %v5311
        %v5313 = vrot.slane %v5308, %v5312
        %v5315 = vadd.f32 %v5291, %v5313
        %v5316 = vadd.f32 %v5292, %v5313
        %v5317 = vadd.f32 %v5293, %v5313
        %v5318 = vadd.f32 %v5294, %v5313
        %v5319 = vadd.f32 %v5295, %v5313
        %v5320 = vadd.f32 %v5296, %v5313
        %v5321 = vadd.f32 %v5297, %v5313
        %v5322 = vadd.f32 %v5298, %v5313
        %v5323 = vadd.f32 %v5299, %v5313
        %v5324 = vadd.f32 %v5300, %v5313
        %v5325 = vadd.f32 %v5301, %v5313
        %v5326 = vadd.f32 %v5302, %v5313
        %v5327 = vadd.f32 %v5303, %v5313
        %v5328 = vadd.f32 %v5304, %v5313
        %v5329 = vadd.f32 %v5305, %v5313
        %v5330 = vadd.f32 %v5306, %v5313
        %v5331 = vmax.f32 %v5315, 0.0
        %v5332 = vmax.f32 %v5316, 0.0
        %v5333 = vmax.f32 %v5317, 0.0
        %v5334 = vmax.f32 %v5318, 0.0
        %v5335 = vmax.f32 %v5319, 0.0
        %v5336 = vmax.f32 %v5320, 0.0
        %v5337 = vmax.f32 %v5321, 0.0
        %v5338 = vmax.f32 %v5322, 0.0
        %v5339 = vmax.f32 %v5323, 0.0
        %v5340 = vmax.f32 %v5324, 0.0
        %v5341 = vmax.f32 %v5325, 0.0
        %v5342 = vmax.f32 %v5326, 0.0
        %v5343 = vmax.f32 %v5327, 0.0
        %v5344 = vmax.f32 %v5328, 0.0
        %v5345 = vmax.f32 %v5329, 0.0
        %v5346 = vmax.f32 %v5330, 0.0
        %v5347 = vpack.c.bf16 %v5332, %v5331
        %v5348 = vpack.c.bf16 %v5334, %v5333
        %v5349 = vpack.c.bf16 %v5336, %v5335
        %v5350 = vpack.c.bf16 %v5338, %v5337
        %v5351 = vpack.c.bf16 %v5340, %v5339
        %v5352 = vpack.c.bf16 %v5342, %v5341
        %v5353 = vpack.c.bf16 %v5344, %v5343
        %v5354 = vpack.c.bf16 %v5346, %v5345
        %s5355 = scalar_lea.vmem %s4, 192
        %v5356 = vld [vmem:[%s5355] sm:$0xf]
        %v5357 = vld [vmem:[%s5355 + $0x4] sm:$0xf]
        %v5358 = vld [vmem:[%s5355 + $0x8] sm:$0xf]
        %v5359 = vld [vmem:[%s5355 + $0xc] sm:$0xf]
        %v5360 = vld [vmem:[%s5355 + $0x10] sm:$0xf]
        %v5361 = vld [vmem:[%s5355 + $0x14] sm:$0xf]
        %v5362 = vld [vmem:[%s5355 + $0x18] sm:$0xf]
        %v5363 = vld [vmem:[%s5355 + $0x1c] sm:$0xf]
        %v5364 = vld [vmem:[%s5355 + $0x20] sm:$0xf]
        %v5365 = vld [vmem:[%s5355 + $0x24] sm:$0xf]
        %v5366 = vld [vmem:[%s5355 + $0x28] sm:$0xf]
        %v5367 = vld [vmem:[%s5355 + $0x2c] sm:$0xf]
        %v5368 = vld [vmem:[%s5355 + $0x30] sm:$0xf]
        %v5369 = vld [vmem:[%s5355 + $0x34] sm:$0xf]
        %v5370 = vld [vmem:[%s5355 + $0x38] sm:$0xf]
        %v5371 = vld [vmem:[%s5355 + $0x3c] sm:$0xf]
        %v5388 = vunpack.c.l.b16 %v5356
        %v5389 = vunpack.c.l.b16 %v5357
        %v5390 = vunpack.c.l.b16 %v5358
        %v5391 = vunpack.c.l.b16 %v5359
        %v5392 = vunpack.c.l.b16 %v5360
        %v5393 = vunpack.c.l.b16 %v5361
        %v5394 = vunpack.c.l.b16 %v5362
        %v5395 = vunpack.c.l.b16 %v5363
        %v5396 = vunpack.c.l.b16 %v5364
        %v5397 = vunpack.c.l.b16 %v5365
        %v5398 = vunpack.c.l.b16 %v5366
        %v5399 = vunpack.c.l.b16 %v5367
        %v5400 = vunpack.c.l.b16 %v5368
        %v5401 = vunpack.c.l.b16 %v5369
        %v5402 = vunpack.c.l.b16 %v5370
        %v5403 = vunpack.c.l.b16 %v5371
        %v5404 = vpack.c.b16 %v5389, %v5388
        %v5405 = vpack.c.b16 %v5391, %v5390
        %v5406 = vpack.c.b16 %v5393, %v5392
        %v5407 = vpack.c.b16 %v5395, %v5394
        %v5408 = vpack.c.b16 %v5397, %v5396
        %v5409 = vpack.c.b16 %v5399, %v5398
        %v5410 = vpack.c.b16 %v5401, %v5400
        %v5411 = vpack.c.b16 %v5403, %v5402
        %5420 = vmatprep.subr.bf16.mxu0 0
        %5421 = vmatpush1.bf16.msra.mxu0 %v5404
        %5422 = vmatprep.subr.bf16.mxu0 0
        %5423 = vmatpush1.bf16.msra.mxu0 %v5405
        %5424 = vmatprep.subr.bf16.mxu0 0
        %5425 = vmatpush1.bf16.msra.mxu0 %v5406
        %5426 = vmatprep.subr.bf16.mxu0 0
        %5427 = vmatpush1.bf16.msra.mxu0 %v5407
        %5428 = vmatprep.subr.bf16.mxu0 0
        %5429 = vmatpush1.bf16.msra.mxu0 %v5408
        %5430 = vmatprep.subr.bf16.mxu0 0
        %5431 = vmatpush1.bf16.msra.mxu0 %v5409
        %5432 = vmatprep.subr.bf16.mxu0 0
        %5433 = vmatpush1.bf16.msra.mxu0 %v5410
        %5434 = vmatprep.subr.bf16.mxu0 0
        %5435 = vmatpush1.bf16.msra.mxu0 %v5411
        %5436 = vmatprep.subr.bf16.mxu0 0
        %5437 = vmatpush1.bf16.msra.mxu0 0
        %5438 = vmatprep.subr.bf16.mxu0 0
        %5439 = vmatpush1.bf16.msra.mxu0 0
        %5440 = vmatprep.subr.bf16.mxu0 0
        %5441 = vmatpush1.bf16.msra.mxu0 0
        %5442 = vmatprep.subr.bf16.mxu0 0
        %5443 = vmatpush1.bf16.msra.mxu0 0
        %5444 = vmatprep.subr.bf16.mxu0 0
        %5445 = vmatpush1.bf16.msra.mxu0 0
        %5446 = vmatprep.subr.bf16.mxu0 0
        %5447 = vmatpush1.bf16.msra.mxu0 0
        %5448 = vmatprep.subr.bf16.mxu0 0
        %5449 = vmatpush1.bf16.msra.mxu0 0
        %5450 = vmatprep.subr.bf16.mxu0 0
        %5451 = vmatpush1.bf16.msra.mxu0 0
        %5452 = vmatprep.mubr.bf16.mxu0 0
        %5453 = vmatmul.mubr.bf16.gmra.mrb[0].mxu0 %v5347
        %v5454 = vpop.f32.mrb[0].mxu0
        %v5455 = vadd.f32 0.0, %v5454
        %v5456 = vpop.f32.mrb[0].mxu0
        %v5457 = vpop.f32.mrb[0].mxu0
        %v5458 = vadd.f32 0.0, %v5457
        %v5459 = vpop.f32.mrb[0].mxu0
        %5460 = vmatprep.mubr.bf16.mxu0 0
        %5461 = vmatmul.mubr.bf16.gmra.mrb[0].mxu0 %v5348
        %v5462 = vpop.f32.mrb[0].mxu0
        %v5463 = vadd.f32 0.0, %v5462
        %v5464 = vpop.f32.mrb[0].mxu0
        %v5465 = vpop.f32.mrb[0].mxu0
        %v5466 = vadd.f32 0.0, %v5465
        %v5467 = vpop.f32.mrb[0].mxu0
        %5468 = vmatprep.mubr.bf16.mxu0 0
        %5469 = vmatmul.mubr.bf16.gmra.mrb[0].mxu0 %v5349
        %v5470 = vpop.f32.mrb[0].mxu0
        %v5471 = vadd.f32 0.0, %v5470
        %v5472 = vpop.f32.mrb[0].mxu0
        %v5473 = vpop.f32.mrb[0].mxu0
        %v5474 = vadd.f32 0.0, %v5473
        %v5475 = vpop.f32.mrb[0].mxu0
        %5476 = vmatprep.mubr.bf16.mxu0 0
        %5477 = vmatmul.mubr.bf16.gmra.mrb[0].mxu0 %v5350
        %v5478 = vpop.f32.mrb[0].mxu0
        %v5479 = vadd.f32 0.0, %v5478
        %v5480 = vpop.f32.mrb[0].mxu0
        %v5481 = vpop.f32.mrb[0].mxu0
        %v5482 = vadd.f32 0.0, %v5481
        %v5483 = vpop.f32.mrb[0].mxu0
        %5484 = vmatprep.mubr.bf16.mxu0 0
        %5485 = vmatmul.mubr.bf16.gmra.mrb[0].mxu0 %v5351
        %v5486 = vpop.f32.mrb[0].mxu0
        %v5487 = vadd.f32 0.0, %v5486
        %v5488 = vpop.f32.mrb[0].mxu0
        %v5489 = vpop.f32.mrb[0].mxu0
        %v5490 = vadd.f32 0.0, %v5489
        %v5491 = vpop.f32.mrb[0].mxu0
        %5492 = vmatprep.mubr.bf16.mxu0 0
        %5493 = vmatmul.mubr.bf16.gmra.mrb[0].mxu0 %v5352
        %v5494 = vpop.f32.mrb[0].mxu0
        %v5495 = vadd.f32 0.0, %v5494
        %v5496 = vpop.f32.mrb[0].mxu0
        %v5497 = vpop.f32.mrb[0].mxu0
        %v5498 = vadd.f32 0.0, %v5497
        %v5499 = vpop.f32.mrb[0].mxu0
        %5500 = vmatprep.mubr.bf16.mxu0 0
        %5501 = vmatmul.mubr.bf16.gmra.mrb[0].mxu0 %v5353
        %v5502 = vpop.f32.mrb[0].mxu0
        %v5503 = vadd.f32 0.0, %v5502
        %v5504 = vpop.f32.mrb[0].mxu0
        %v5505 = vpop.f32.mrb[0].mxu0
        %v5506 = vadd.f32 0.0, %v5505
        %v5507 = vpop.f32.mrb[0].mxu0
        %5508 = vmatprep.mubr.bf16.mxu0 0
        %5509 = vmatmul.mubr.bf16.gmra.mrb[0].mxu0 %v5354
        %v5510 = vpop.f32.mrb[0].mxu0
        %v5511 = vadd.f32 0.0, %v5510
        %v5512 = vpop.f32.mrb[0].mxu0
        %v5513 = vpop.f32.mrb[0].mxu0
        %v5514 = vadd.f32 0.0, %v5513
        %v5515 = vpop.f32.mrb[0].mxu0
        %5516 = vdwg.mxu0
        %v5517 = vadd.f32 %v3872, %v5455
        %v5518 = vadd.f32 %v3873, %v5458
        %v5519 = vadd.f32 %v3874, %v5463
        %v5520 = vadd.f32 %v3875, %v5466
        %v5521 = vadd.f32 %v3876, %v5471
        %v5522 = vadd.f32 %v3877, %v5474
        %v5523 = vadd.f32 %v3878, %v5479
        %v5524 = vadd.f32 %v3879, %v5482
        %v5525 = vadd.f32 %v3880, %v5487
        %v5526 = vadd.f32 %v3881, %v5490
        %v5527 = vadd.f32 %v3882, %v5495
        %v5528 = vadd.f32 %v3883, %v5498
        %v5529 = vadd.f32 %v3884, %v5503
        %v5530 = vadd.f32 %v3885, %v5506
        %v5531 = vadd.f32 %v3886, %v5511
        %v5532 = vadd.f32 %v3887, %v5514
        %s5533 = scalar_lea.vmem %s263, 72
        %v5534 = vld [vmem:[%s5533 + $0x3] sm:$0xff]
        %v5535 = vld [vmem:[%s5533 + $0xb] sm:$0xff]
        %v5536 = vld [vmem:[%s5533 + $0x1b] sm:$0xff]
        %v5537 = vld [vmem:[%s5533 + $0x23] sm:$0xff]
        %v5538 = vld [vmem:[%s5533 + $0x33] sm:$0xff]
        %v5539 = vld [vmem:[%s5533 + $0x3b] sm:$0xff]
        %v5540 = vld [vmem:[%s5533 + $0x4b] sm:$0xff]
        %v5541 = vld [vmem:[%s5533 + $0x53] sm:$0xff]
        %v5542 = vld [vmem:[%s5533 + $0x63] sm:$0xff]
        %v5543 = vld [vmem:[%s5533 + $0x6b] sm:$0xff]
        %v5544 = vld [vmem:[%s5533 + $0x7b] sm:$0xff]
        %v5545 = vld [vmem:[%s5533 + $0x83] sm:$0xff]
        %v5546 = vld [vmem:[%s5533 + $0x93] sm:$0xff]
        %v5547 = vld [vmem:[%s5533 + $0x9b] sm:$0xff]
        %v5548 = vld [vmem:[%s5533 + $0xab] sm:$0xff]
        %v5549 = vld [vmem:[%s5533 + $0xb3] sm:$0xff]
        %v5550 = vld [vmem:[%s5533 + $0xc3] sm:$0xff]
        %v5551 = vld [vmem:[%s5533 + $0xcb] sm:$0xff]
        %v5552 = vld [vmem:[%s5533 + $0xdb] sm:$0xff]
        %v5553 = vld [vmem:[%s5533 + $0xe3] sm:$0xff]
        %v5554 = vld [vmem:[%s5533 + $0xf3] sm:$0xff]
        %v5555 = vld [vmem:[%s5533 + $0xfb] sm:$0xff]
        %v5556 = vld [vmem:[%s5533 + $0x10b] sm:$0xff]
        %v5557 = vld [vmem:[%s5533 + $0x113] sm:$0xff]
        %v5558 = vld [vmem:[%s5533 + $0x123] sm:$0xff]
        %v5559 = vld [vmem:[%s5533 + $0x12b] sm:$0xff]
        %v5560 = vld [vmem:[%s5533 + $0x13b] sm:$0xff]
        %v5561 = vld [vmem:[%s5533 + $0x143] sm:$0xff]
        %v5562 = vld [vmem:[%s5533 + $0x153] sm:$0xff]
        %v5563 = vld [vmem:[%s5533 + $0x15b] sm:$0xff]
        %v5564 = vld [vmem:[%s5533 + $0x16b] sm:$0xff]
        %v5565 = vld [vmem:[%s5533 + $0x173] sm:$0xff]
        %v5566 = vsel %vm302, %v5534, 0.0
        %v5567 = vsel %vm302, %v5535, 0.0
        %v5568 = vadd.f32 %v5566, %v5567
        %v5569 = vsel %vm302, %v5536, 0.0
        %v5570 = vadd.f32 %v5568, %v5569
        %v5571 = vsel %vm302, %v5537, 0.0
        %v5572 = vadd.f32 %v5570, %v5571
        %v5573 = vsel %vm302, %v5538, 0.0
        %v5574 = vadd.f32 %v5572, %v5573
        %v5575 = vsel %vm302, %v5539, 0.0
        %v5576 = vadd.f32 %v5574, %v5575
        %v5577 = vsel %vm302, %v5540, 0.0
        %v5578 = vadd.f32 %v5576, %v5577
        %v5579 = vsel %vm302, %v5541, 0.0
        %v5580 = vadd.f32 %v5578, %v5579
        %v5581 = vsel %vm302, %v5542, 0.0
        %v5582 = vadd.f32 %v5580, %v5581
        %v5583 = vsel %vm302, %v5543, 0.0
        %v5584 = vadd.f32 %v5582, %v5583
        %v5585 = vsel %vm302, %v5544, 0.0
        %v5586 = vadd.f32 %v5584, %v5585
        %v5587 = vsel %vm302, %v5545, 0.0
        %v5588 = vadd.f32 %v5586, %v5587
        %v5589 = vsel %vm302, %v5546, 0.0
        %v5590 = vadd.f32 %v5588, %v5589
        %v5591 = vsel %vm302, %v5547, 0.0
        %v5592 = vadd.f32 %v5590, %v5591
        %v5593 = vsel %vm302, %v5548, 0.0
        %v5594 = vadd.f32 %v5592, %v5593
        %v5595 = vsel %vm302, %v5549, 0.0
        %v5596 = vadd.f32 %v5594, %v5595
        %v5597 = vsel %vm302, %v5550, 0.0
        %v5598 = vadd.f32 %v5596, %v5597
        %v5599 = vsel %vm302, %v5551, 0.0
        %v5600 = vadd.f32 %v5598, %v5599
        %v5601 = vsel %vm302, %v5552, 0.0
        %v5602 = vadd.f32 %v5600, %v5601
        %v5603 = vsel %vm302, %v5553, 0.0
        %v5604 = vadd.f32 %v5602, %v5603
        %v5605 = vsel %vm302, %v5554, 0.0
        %v5606 = vadd.f32 %v5604, %v5605
        %v5607 = vsel %vm302, %v5555, 0.0
        %v5608 = vadd.f32 %v5606, %v5607
        %v5609 = vsel %vm302, %v5556, 0.0
        %v5610 = vadd.f32 %v5608, %v5609
        %v5611 = vsel %vm302, %v5557, 0.0
        %v5612 = vadd.f32 %v5610, %v5611
        %v5613 = vsel %vm302, %v5558, 0.0
        %v5614 = vadd.f32 %v5612, %v5613
        %v5615 = vsel %vm302, %v5559, 0.0
        %v5616 = vadd.f32 %v5614, %v5615
        %v5617 = vsel %vm302, %v5560, 0.0
        %v5618 = vadd.f32 %v5616, %v5617
        %v5619 = vsel %vm302, %v5561, 0.0
        %v5620 = vadd.f32 %v5618, %v5619
        %v5621 = vsel %vm302, %v5562, 0.0
        %v5622 = vadd.f32 %v5620, %v5621
        %v5623 = vsel %vm302, %v5563, 0.0
        %v5624 = vadd.f32 %v5622, %v5623
        %v5625 = vsel %vm302, %v5564, 0.0
        %v5626 = vadd.f32 %v5624, %v5625
        %v5627 = vsel %vm302, %v5565, 0.0
        %v5628 = vadd.f32 %v5626, %v5627
        %v5629 = vrot.slane %v5628, 4
        %v5630 = vadd.f32 %v5628, %v5629
        %v5631 = vrot.slane %v5630, 2
        %v5632 = vadd.f32 %v5630, %v5631
        %v5633 = vrot.slane %v5632, 1
        %v5634 = vadd.f32 %v5632, %v5633
        %v5635 = vrcp.pop 256.0
        %v5636 = vmul.f32 %v5634, %v5635
        %v5637 = vpack.c.bf16 %v5636, %v5636
        %v5638 = vld [vmem:[%s3] sm:$0xf]
        %s5639 = scalar_lea.vmem %s5, 4
        %v5640 = vld [vmem:[%s5639] sm:$0x1]
        %v5642 = vsel %vm302, %v5637, 0
        %v5645 = vsel %vm327, %v5638, 0
        %5647 = vmatprep.subr.bf16.mxu0 0
        %5648 = vmatpush1.bf16.msra.mxu0 %v5645
        %5649 = vmatprep.subr.bf16.mxu0 0
        %5650 = vmatpush1.bf16.msra.mxu0 0
        %5651 = vmatprep.subr.bf16.mxu0 0
        %5652 = vmatpush1.bf16.msra.mxu0 0
        %5653 = vmatprep.subr.bf16.mxu0 0
        %5654 = vmatpush1.bf16.msra.mxu0 0
        %5655 = vmatprep.subr.bf16.mxu0 0
        %5656 = vmatpush1.bf16.msra.mxu0 0
        %5657 = vmatprep.subr.bf16.mxu0 0
        %5658 = vmatpush1.bf16.msra.mxu0 0
        %5659 = vmatprep.subr.bf16.mxu0 0
        %5660 = vmatpush1.bf16.msra.mxu0 0
        %5661 = vmatprep.subr.bf16.mxu0 0
        %5662 = vmatpush1.bf16.msra.mxu0 0
        %5663 = vmatprep.subr.bf16.mxu0 0
        %5664 = vmatpush1.bf16.msra.mxu0 0
        %5665 = vmatprep.subr.bf16.mxu0 0
        %5666 = vmatpush1.bf16.msra.mxu0 0
        %5667 = vmatprep.subr.bf16.mxu0 0
        %5668 = vmatpush1.bf16.msra.mxu0 0
        %5669 = vmatprep.subr.bf16.mxu0 0
        %5670 = vmatpush1.bf16.msra.mxu0 0
        %5671 = vmatprep.subr.bf16.mxu0 0
        %5672 = vmatpush1.bf16.msra.mxu0 0
        %5673 = vmatprep.subr.bf16.mxu0 0
        %5674 = vmatpush1.bf16.msra.mxu0 0
        %5675 = vmatprep.subr.bf16.mxu0 0
        %5676 = vmatpush1.bf16.msra.mxu0 0
        %5677 = vmatprep.subr.bf16.mxu0 0
        %5678 = vmatpush1.bf16.msra.mxu0 0
        %5679 = vmatprep.mubr.bf16.mxu0 0
        %5680 = vmatmul.mubr.bf16.gmra.mrb[0].mxu0 %v5642
        %v5681 = vpop.f32.mrb[0].mxu0
        %v5682 = vadd.f32 %v5640, %v5681
        %v5683 = vpop.f32.mrb[0].mxu0
        %v5684 = vpop.f32.mrb[0].mxu0
        %v5685 = vpop.f32.mrb[0].mxu0
        %5686 = vdwg.mxu0
        %v5687 = vmax.f32 %v5682, 0.0
        %v5688 = vpack.c.bf16 %v5687, %v5687
        %s5689 = scalar_lea.vmem %s4, 256
        %v5690 = vld [vmem:[%s5689] sm:$0xf]
        %v5691 = vld [vmem:[%s5689 + $0x4] sm:$0xf]
        %v5692 = vld [vmem:[%s5689 + $0x8] sm:$0xf]
        %v5693 = vld [vmem:[%s5689 + $0xc] sm:$0xf]
        %v5694 = vld [vmem:[%s5689 + $0x10] sm:$0xf]
        %v5695 = vld [vmem:[%s5689 + $0x14] sm:$0xf]
        %v5696 = vld [vmem:[%s5689 + $0x18] sm:$0xf]
        %v5697 = vld [vmem:[%s5689 + $0x1c] sm:$0xf]
        %v5698 = vld [vmem:[%s5689 + $0x20] sm:$0xf]
        %v5699 = vld [vmem:[%s5689 + $0x24] sm:$0xf]
        %v5700 = vld [vmem:[%s5689 + $0x28] sm:$0xf]
        %v5701 = vld [vmem:[%s5689 + $0x2c] sm:$0xf]
        %v5702 = vld [vmem:[%s5689 + $0x30] sm:$0xf]
        %v5703 = vld [vmem:[%s5689 + $0x34] sm:$0xf]
        %v5704 = vld [vmem:[%s5689 + $0x38] sm:$0xf]
        %v5705 = vld [vmem:[%s5689 + $0x3c] sm:$0xf]
        %v5722 = vunpack.c.l.b16 %v5690
        %v5723 = vunpack.c.l.b16 %v5691
        %v5724 = vunpack.c.l.b16 %v5692
        %v5725 = vunpack.c.l.b16 %v5693
        %v5726 = vunpack.c.l.b16 %v5694
        %v5727 = vunpack.c.l.b16 %v5695
        %v5728 = vunpack.c.l.b16 %v5696
        %v5729 = vunpack.c.l.b16 %v5697
        %v5730 = vunpack.c.l.b16 %v5698
        %v5731 = vunpack.c.l.b16 %v5699
        %v5732 = vunpack.c.l.b16 %v5700
        %v5733 = vunpack.c.l.b16 %v5701
        %v5734 = vunpack.c.l.b16 %v5702
        %v5735 = vunpack.c.l.b16 %v5703
        %v5736 = vunpack.c.l.b16 %v5704
        %v5737 = vunpack.c.l.b16 %v5705
        %v5738 = vpack.c.b16 %v5723, %v5722
        %v5739 = vpack.c.b16 %v5725, %v5724
        %v5740 = vpack.c.b16 %v5727, %v5726
        %v5741 = vpack.c.b16 %v5729, %v5728
        %v5742 = vpack.c.b16 %v5731, %v5730
        %v5743 = vpack.c.b16 %v5733, %v5732
        %v5744 = vpack.c.b16 %v5735, %v5734
        %v5745 = vpack.c.b16 %v5737, %v5736
        %5754 = vmatprep.subr.bf16.mxu0 0
        %5755 = vmatpush1.bf16.msra.mxu0 %v5738
        %5756 = vmatprep.subr.bf16.mxu0 0
        %5757 = vmatpush1.bf16.msra.mxu0 %v5739
        %5758 = vmatprep.subr.bf16.mxu0 0
        %5759 = vmatpush1.bf16.msra.mxu0 %v5740
        %5760 = vmatprep.subr.bf16.mxu0 0
        %5761 = vmatpush1.bf16.msra.mxu0 %v5741
        %5762 = vmatprep.subr.bf16.mxu0 0
        %5763 = vmatpush1.bf16.msra.mxu0 %v5742
        %5764 = vmatprep.subr.bf16.mxu0 0
        %5765 = vmatpush1.bf16.msra.mxu0 %v5743
        %5766 = vmatprep.subr.bf16.mxu0 0
        %5767 = vmatpush1.bf16.msra.mxu0 %v5744
        %5768 = vmatprep.subr.bf16.mxu0 0
        %5769 = vmatpush1.bf16.msra.mxu0 %v5745
        %5770 = vmatprep.subr.bf16.mxu0 0
        %5771 = vmatpush1.bf16.msra.mxu0 0
        %5772 = vmatprep.subr.bf16.mxu0 0
        %5773 = vmatpush1.bf16.msra.mxu0 0
        %5774 = vmatprep.subr.bf16.mxu0 0
        %5775 = vmatpush1.bf16.msra.mxu0 0
        %5776 = vmatprep.subr.bf16.mxu0 0
        %5777 = vmatpush1.bf16.msra.mxu0 0
        %5778 = vmatprep.subr.bf16.mxu0 0
        %5779 = vmatpush1.bf16.msra.mxu0 0
        %5780 = vmatprep.subr.bf16.mxu0 0
        %5781 = vmatpush1.bf16.msra.mxu0 0
        %5782 = vmatprep.subr.bf16.mxu0 0
        %5783 = vmatpush1.bf16.msra.mxu0 0
        %5784 = vmatprep.subr.bf16.mxu0 0
        %5785 = vmatpush1.bf16.msra.mxu0 0
        %5786 = vmatprep.mubr.bf16.mxu0 0
        %5787 = vmatmul.mubr.bf16.gmra.mrb[0].mxu0 %v5688
        %v5788 = vpop.f32.mrb[0].mxu0
        %v5789 = vadd.f32 0.0, %v5788
        %v5790 = vpop.f32.mrb[0].mxu0
        %v5791 = vpop.f32.mrb[0].mxu0
        %v5792 = vpop.f32.mrb[0].mxu0
        %5793 = vdwg.mxu0
        %v5794 = vlaneseq
        %v5795 = vshrl.u32 %v5794, 7
        %v5796 = vsub.s32 0, %v5795
        %v5797 = vrot.slane %v5789, %v5796
        %v5798 = vadd.f32 %v5517, %v5797
        %v5799 = vadd.f32 %v5518, %v5797
        %v5800 = vadd.f32 %v5519, %v5797
        %v5801 = vadd.f32 %v5520, %v5797
        %v5802 = vadd.f32 %v5521, %v5797
        %v5803 = vadd.f32 %v5522, %v5797
        %v5804 = vadd.f32 %v5523, %v5797
        %v5805 = vadd.f32 %v5524, %v5797
        %v5806 = vadd.f32 %v5525, %v5797
        %v5807 = vadd.f32 %v5526, %v5797
        %v5808 = vadd.f32 %v5527, %v5797
        %v5809 = vadd.f32 %v5528, %v5797
        %v5810 = vadd.f32 %v5529, %v5797
        %v5811 = vadd.f32 %v5530, %v5797
        %v5812 = vadd.f32 %v5531, %v5797
        %v5813 = vadd.f32 %v5532, %v5797
        %s5814 = scalar_lea.vmem %s5, 5
        %v5815 = vld [vmem:[%s5814] sm:$0x1]
        %v5817 = vlaneseq
        %v5818 = vshrl.u32 %v5817, 7
        %v5819 = vsub.s32 0, %v5818
        %v5820 = vrot.slane %v5815, %v5819
        %v5822 = vadd.f32 %v5798, %v5820
        %v5823 = vadd.f32 %v5799, %v5820
        %v5824 = vadd.f32 %v5800, %v5820
        %v5825 = vadd.f32 %v5801, %v5820
        %v5826 = vadd.f32 %v5802, %v5820
        %v5827 = vadd.f32 %v5803, %v5820
        %v5828 = vadd.f32 %v5804, %v5820
        %v5829 = vadd.f32 %v5805, %v5820
        %v5830 = vadd.f32 %v5806, %v5820
        %v5831 = vadd.f32 %v5807, %v5820
        %v5832 = vadd.f32 %v5808, %v5820
        %v5833 = vadd.f32 %v5809, %v5820
        %v5834 = vadd.f32 %v5810, %v5820
        %v5835 = vadd.f32 %v5811, %v5820
        %v5836 = vadd.f32 %v5812, %v5820
        %v5837 = vadd.f32 %v5813, %v5820
        %v5838 = vmax.f32 %v5822, 0.0
        %v5839 = vmax.f32 %v5823, 0.0
        %v5840 = vmax.f32 %v5824, 0.0
        %v5841 = vmax.f32 %v5825, 0.0
        %v5842 = vmax.f32 %v5826, 0.0
        %v5843 = vmax.f32 %v5827, 0.0
        %v5844 = vmax.f32 %v5828, 0.0
        %v5845 = vmax.f32 %v5829, 0.0
        %v5846 = vmax.f32 %v5830, 0.0
        %v5847 = vmax.f32 %v5831, 0.0
        %v5848 = vmax.f32 %v5832, 0.0
        %v5849 = vmax.f32 %v5833, 0.0
        %v5850 = vmax.f32 %v5834, 0.0
        %v5851 = vmax.f32 %v5835, 0.0
        %v5852 = vmax.f32 %v5836, 0.0
        %v5853 = vmax.f32 %v5837, 0.0
        %5854 = vst [vmem:[%s258] sm:$0xff] %v5838
        %5855 = vst [vmem:[%s258 + $0x8] sm:$0xff] %v5839
        %5856 = vst [vmem:[%s258 + $0x10] sm:$0xff] %v5840
        %5857 = vst [vmem:[%s258 + $0x18] sm:$0xff] %v5841
        %5858 = vst [vmem:[%s258 + $0x20] sm:$0xff] %v5842
        %5859 = vst [vmem:[%s258 + $0x28] sm:$0xff] %v5843
        %5860 = vst [vmem:[%s258 + $0x30] sm:$0xff] %v5844
        %5861 = vst [vmem:[%s258 + $0x38] sm:$0xff] %v5845
        %5862 = vst [vmem:[%s258 + $0x40] sm:$0xff] %v5846
        %5863 = vst [vmem:[%s258 + $0x48] sm:$0xff] %v5847
        %5864 = vst [vmem:[%s258 + $0x50] sm:$0xff] %v5848
        %5865 = vst [vmem:[%s258 + $0x58] sm:$0xff] %v5849
        %5866 = vst [vmem:[%s258 + $0x60] sm:$0xff] %v5850
        %5867 = vst [vmem:[%s258 + $0x68] sm:$0xff] %v5851
        %5868 = vst [vmem:[%s258 + $0x70] sm:$0xff] %v5852
        %5869 = vst [vmem:[%s258 + $0x78] sm:$0xff] %v5853
        %s5870 = sand.u32 %s173, 1
        %s5871 = scalar_lea.sflag [#allocation3], %s5870
        %s5872 = sand.u32 %s173, 1
        %s5873 = smul.addr %s5872, 128
        %s5874 = scalar_lea.vmem [#allocation2], %s5873
        // Predicated region
        $region45: #{aspp_forward.1} parent=43 // pred_check
          %p5875 = pneg %p183
        $region46: #{aspp_forward.1} parent=43 // pred_check_branch
          %5877 = sbr.rel (%p5875) target = $region48
        $region47: #{aspp_forward.1} parent=43 // pred_region
          %s5878 = smul.u32 16, %s25
          %s5880 = ssub.s32 2048, 2048
          %5881 = vsyncadd %s5871, %s5880
          %s5882 = smul.addr %s24, 32
          %s5883 = sadd.s32 %s5878, %s5882
          %s5884 = smul.addr %s5883, 128
          %s5885 = scalar_lea.hbm %s6, %s5884
          %s5886 = sshll.u32 %s5874, 4
          %s5887 = int_to_ptr.vmem [resolvable:$true] %s5886
          %5892 = dma.vmem_to_hbm [thread:$0]  %s5887, 2048, %s5885, %s5871, 128, 128, 8
        $region48: #{aspp_forward.1} parent=43 // pred_fallthru
          _
      $region44: #{aspp_forward.1} parent=5 // pred_fallthru
        _
      %p5893 = scmp.le.s32.totalorder 2, %s15
      // Predicated region
      $region49: #{aspp_forward.1} parent=5 // pred_check
        %p5894 = pneg %p5893
      $region50: #{aspp_forward.1} parent=5 // pred_check_branch
        %5896 = sbr.rel (%p5894) target = $region52
      $region51: #{aspp_forward.1} parent=5 // pred_region
        %s5897 = ssub.s32 %s15, 2
        // Predicated region
        $region53: #{aspp_forward.1} parent=51 // pred_check
          %p5898 = pneg %p189
        $region54: #{aspp_forward.1} parent=51 // pred_check_branch
          %5900 = sbr.rel (%p5898) target = $region56
        $region55: #{aspp_forward.1} parent=51 // pred_region
          %s5901 = sand.u32 %s174, 1
          %s5902 = scalar_lea.sflag [#allocation3], %s5901
          %s5903 = sand.u32 %s174, 1
          %s5904 = smul.addr %s5903, 128
          %s5905 = scalar_lea.vmem [#allocation2], %s5904
          %5906 = dma.done %s5902, 2048
        $region56: #{aspp_forward.1} parent=51 // pred_fallthru
          _
      $region52: #{aspp_forward.1} parent=5 // pred_fallthru
        _
    $region6: #{aspp_forward.1} parent=1 // loop_footer
      %s19 = sadd.s32 1, %s15
    $region7: #{aspp_forward.1} parent=1 // loop_footer_branch
      %14 = sbr.rel target = $region3
    $region8: #{aspp_forward.1} parent=1 // loop_exit
      _
    %5907 = vsyncpa [#allocation3], 1
    %s5908 = scalar_lea.sflag [#allocation3], 1
    %5909 = vsyncpa %s5908, 1

</llo_original>
